<compile_context>
chip_gen: v7x
topology: tpu7x:2x2x1
jax: 0.10.0
libtpu: 0.0.40
codegen_flags: <defaults>
</compile_context>

<pallas_src>
import functools
import math

import jax
import jax.numpy as jnp
import numpy as np
from jax.experimental import pallas as pl
from jax.experimental.pallas import tpu as pltpu


def _round_up(n, m):
    return ((n + m - 1) // m) * m


def _pad_axis(x, axis, target):
    if x.shape[axis] == target:
        return x
    pad = [(0, 0)] * x.ndim
    pad[axis] = (0, target - x.shape[axis])
    return jnp.pad(x, pad)


# ----------------------------------------------------------------------------
# Fused kernel: bidirectional LSTM recurrence (both directions interleaved per
# timestep) + MLP head epilogue, all in one pallas_call.
# ----------------------------------------------------------------------------
def _fused_kernel(x_ref, wih_ref, whh_ref, b_ref, w1_ref, b1_ref, w2_ref,
                  b2_ref, y_ref, hn_ref, cn_ref,
                  xpf_ref, xpb_ref, of_ref, ob_ref):
    T, Bp, Ein = x_ref.shape
    Hp = hn_ref.shape[-1]
    G = 4 * Hp
    Eh = w1_ref.shape[-1]

    # ---- Hoisted, gate-fused input projection for BOTH directions ----------
    # One (T*Bp, Ep) @ (Ep, 8*Hp) GEMM (+ bias) instead of 2 * 4 * T tiny
    # matmuls inside the serial recurrence.
    x2 = x_ref[...].reshape(T * Bp, Ein)
    proj = (jnp.dot(x2, wih_ref[...], preferred_element_type=jnp.float32)
            + b_ref[...])                               # (T*Bp, 8*Hp)
    xpf_ref[...] = proj[:, :G].reshape(T, Bp, G)        # forward-dir gates
    xpb_ref[...] = proj[:, G:].reshape(T, Bp, G)        # backward-dir gates

    def cell(gates, c):
        # Gate layout i,f,o,g: one contiguous sigmoid stream + one tanh.
        sig = jax.nn.sigmoid(gates[:, :3 * Hp])
        g_g = jnp.tanh(gates[:, 3 * Hp:])
        i_g = sig[:, :Hp]
        f_g = sig[:, Hp:2 * Hp]
        o_g = sig[:, 2 * Hp:]
        c_new = f_g * c + i_g * g_g
        h_new = o_g * jnp.tanh(c_new)
        return h_new, c_new

    def step(t, carry):
        h_f, c_f, h_b, c_b = carry
        tb = T - 1 - t
        # Two independent (8,128)@(128,512) matmuls issued back-to-back so the
        # forward / backward recurrences overlap in the MXU / EUP pipelines.
        g_f = xpf_ref[t] + jnp.dot(h_f, whh_ref[0],
                                   preferred_element_type=jnp.float32)
        g_b = xpb_ref[tb] + jnp.dot(h_b, whh_ref[1],
                                    preferred_element_type=jnp.float32)
        h_f, c_f = cell(g_f, c_f)
        h_b, c_b = cell(g_b, c_b)
        of_ref[t] = h_f           # forward output at time t
        ob_ref[tb] = h_b          # backward output at time T-1-t
        return h_f, c_f, h_b, c_b

    zeros = jnp.zeros((Bp, Hp), jnp.float32)
    carry = (zeros, zeros, zeros, zeros)
    if T <= 32:
        # Static unroll with static time indices: no per-step select / dynamic
        # address computation on the serial critical path.
        for t in range(T):
            carry = step(t, carry)
    else:
        # Bounded unroll: scheduler visibility without vreg blow-up.
        carry = jax.lax.fori_loop(0, T, step, carry, unroll=8)
    h_f, c_f, h_b, c_b = carry

    hn_ref[0] = h_f
    hn_ref[1] = h_b
    cn_ref[0] = c_f
    cn_ref[1] = c_b

    # ---- Fused MLP head epilogue: Linear(2H->E) -> tanh -> Linear(E->1) ----
    hf2 = of_ref[...].reshape(T * Bp, Hp)
    hb2 = ob_ref[...].reshape(T * Bp, Hp)
    z = jnp.tanh(jnp.dot(hf2, w1_ref[0], preferred_element_type=jnp.float32)
                 + jnp.dot(hb2, w1_ref[1], preferred_element_type=jnp.float32)
                 + b1_ref[...])                          # (T*Bp, Ep)
    # Final Linear(E -> 1): VPU multiply + lane reduction (no (n,1) matmul).
    y = jnp.sum(z.reshape(T, Bp, Eh) * w2_ref[...], axis=-1) + b2_ref[0, 0]
    y_ref[...] = y                                       # (T, Bp)


def fused_bilstm_head(x_tbe, wih_cat, whh, b_cat, w1, b1, w2_row, b2):
    """x_tbe: (T, Bp, Ep). wih_cat: (Ep, 8Hp). whh: (2, Hp, 4Hp).
    b_cat: (1, 8Hp). w1: (2, Hp, Ep). b1: (1, Ep). w2_row: (1, Ep). b2: (1, 1).
    Returns y (T, Bp), hn (2, Bp, Hp), cn (2, Bp, Hp)."""
    T, Bp, _ = x_tbe.shape
    Hp = whh.shape[1]
    G = 4 * Hp
    return pl.pallas_call(
        _fused_kernel,
        out_shape=(jax.ShapeDtypeStruct((T, Bp), jnp.float32),
                   jax.ShapeDtypeStruct((2, Bp, Hp), jnp.float32),
                   jax.ShapeDtypeStruct((2, Bp, Hp), jnp.float32)),
        grid=(1,),
        in_specs=[
            pl.BlockSpec(x_tbe.shape, lambda i: (0, 0, 0)),
            pl.BlockSpec(wih_cat.shape, lambda i: (0, 0)),
            pl.BlockSpec(whh.shape, lambda i: (0, 0, 0)),
            pl.BlockSpec(b_cat.shape, lambda i: (0, 0)),
            pl.BlockSpec(w1.shape, lambda i: (0, 0, 0)),
            pl.BlockSpec(b1.shape, lambda i: (0, 0)),
            pl.BlockSpec(w2_row.shape, lambda i: (0, 0)),
            pl.BlockSpec(memory_space=pltpu.MemorySpace.SMEM),   # scalar b2
        ],
        out_specs=(
            pl.BlockSpec((T, Bp), lambda i: (0, 0)),
            pl.BlockSpec((2, Bp, Hp), lambda i: (0, 0, 0)),
            pl.BlockSpec((2, Bp, Hp), lambda i: (0, 0, 0)),
        ),
        scratch_shapes=[
            pltpu.VMEM((T, Bp, G), jnp.float32),   # xproj forward
            pltpu.VMEM((T, Bp, G), jnp.float32),   # xproj backward
            pltpu.VMEM((T, Bp, Hp), jnp.float32),  # h outputs forward
            pltpu.VMEM((T, Bp, Hp), jnp.float32),  # h outputs backward
        ],
        compiler_params=pltpu.CompilerParams(
            dimension_semantics=("arbitrary",),
            vmem_limit_bytes=32 * 1024 * 1024),
    )(x_tbe, wih_cat, whh, b_cat, w1, b1, w2_row, b2)


# ----------------------------------------------------------------------------
# One-time weight preparation (padding / gate fusion / reorder / transposes).
# Hoisted out of the per-call forward: weights are call-invariant.
# ----------------------------------------------------------------------------
def prepare_params(params):
    E = params["emb"].shape[1]
    H = params["wih"].shape[-1]
    Ep, Hp = _round_up(E, 128), _round_up(H, 128)
    perm = [0, 1, 3, 2]            # PyTorch gate order i,f,g,o -> i,f,o,g

    emb_p = _pad_axis(params["emb"], 1, Ep)                         # (V, Ep)

    wih = _pad_axis(_pad_axis(params["wih"], 2, Ep), 3, Hp)[:, perm]  # (2,4,Ep,Hp)
    wih_f = jnp.transpose(wih, (0, 2, 1, 3)).reshape(2, Ep, 4 * Hp)
    wih_cat = jnp.concatenate([wih_f[0], wih_f[1]], axis=-1)        # (Ep, 8Hp)

    whh = _pad_axis(_pad_axis(params["whh"], 2, Hp), 3, Hp)[:, perm]  # (2,4,Hp,Hp)
    whh_f = jnp.transpose(whh, (0, 2, 1, 3)).reshape(2, Hp, 4 * Hp)  # (2,Hp,4Hp)

    b = _pad_axis(params["b"], 3, Hp)[:, perm].reshape(2, 1, 4 * Hp)
    b_cat = jnp.concatenate([b[0], b[1]], axis=-1)                   # (1, 8Hp)

    w1, b1, w2, b2 = params["w1"], params["b1"], params["w2"], params["b2"]
    w1f = jnp.zeros((Hp, Ep), jnp.float32).at[:H, :E].set(w1[:H])    # forward rows
    w1b = jnp.zeros((Hp, Ep), jnp.float32).at[:H, :E].set(w1[H:])    # backward rows
    w1_s = jnp.stack([w1f, w1b])                                     # (2, Hp, Ep)
    b1_p = _pad_axis(b1, 1, Ep)                                      # (1, Ep)
    w2_row = _pad_axis(w2.T, 1, Ep)                                  # (1, Ep)

    return dict(emb=emb_p, wih=wih_cat, whh=whh_f, b=b_cat,
                w1=w1_s, b1=b1_p, w2=w2_row, b2=b2)


# ----------------------------------------------------------------------------
# Full forward (activations only; weights already prepped).
# ----------------------------------------------------------------------------
@functools.partial(jax.jit, static_argnums=(2, 3))
def simple_lstm_forward(input_ids, prepped, E, H):
    B, T = input_ids.shape
    Bp = _round_up(B, 8)

    # Embedding lookup (glue); dropout = identity (eval mode).
    x = jnp.take(prepped["emb"], input_ids, axis=0)                  # (B, T, Ep)
    x_tbe = jnp.transpose(x, (1, 0, 2)).astype(jnp.float32)          # (T, B, Ep)
    x_tbe = _pad_axis(x_tbe, 1, Bp)                                  # (T, Bp, Ep)

    y_tb, hn, cn = fused_bilstm_head(
        x_tbe, prepped["wih"], prepped["whh"], prepped["b"],
        prepped["w1"], prepped["b1"], prepped["w2"], prepped["b2"])

    y = y_tb[:, :B].T                                                # (B, T)  .squeeze(2)
    return y, (hn[:, :B, :H], cn[:, :B, :H])


# ----------------------------------------------------------------------------
# Pure-JAX reference (for correctness check of the Pallas kernel).
# ----------------------------------------------------------------------------
def _ref_forward(input_ids, params):
    B, T = input_ids.shape
    H = params["wih"].shape[-1]
    x = jnp.take(params["emb"], input_ids, axis=0)                   # (B, T, E)
    x_tbe = jnp.transpose(x, (1, 0, 2))

    def run_dir(d, reverse):
        h = jnp.zeros((B, H), jnp.float32)
        c = jnp.zeros((B, H), jnp.float32)
        outs = [None] * T
        order = range(T - 1, -1, -1) if reverse else range(T)
        for t in order:
            g = [x_tbe[t] @ params["wih"][d, k] + h @ params["whh"][d, k]
                 + params["b"][d, k] for k in range(4)]
            i_g, f_g = jax.nn.sigmoid(g[0]), jax.nn.sigmoid(g[1])
            g_g, o_g = jnp.tanh(g[2]), jax.nn.sigmoid(g[3])
            c = f_g * c + i_g * g_g
            h = o_g * jnp.tanh(c)
            outs[t] = h
        return jnp.stack(outs, axis=0), h, c

    of, hf, cf = run_dir(0, False)
    ob, hb, cb = run_dir(1, True)
    out_bf = jnp.transpose(jnp.concatenate([of, ob], axis=-1), (1, 0, 2))
    y = jnp.tanh(out_bf.reshape(B * T, 2 * H) @ params["w1"] + params["b1"])
    y = (y @ params["w2"] + params["b2"]).reshape(B, T)
    return y, (jnp.stack([hf, hb]), jnp.stack([cf, cb]))


# ----------------------------------------------------------------------------
# Deterministic parameter init (synthetic; shapes follow the module __init__).
# ----------------------------------------------------------------------------
def make_params(key, vocab, emb_dim, lstm_dim):
    ks = jax.random.split(key, 8)
    s = 1.0 / math.sqrt(lstm_dim)
    emb = 0.1 * jax.random.normal(ks[0], (vocab, emb_dim), jnp.float32)
    emb = emb.at[0].set(0.0)                                         # padding_idx=0
    wih = jax.random.uniform(ks[1], (2, 4, emb_dim, lstm_dim), jnp.float32, -s, s)
    whh = jax.random.uniform(ks[2], (2, 4, lstm_dim, lstm_dim), jnp.float32, -s, s)
    b = jax.random.uniform(ks[3], (2, 4, 1, lstm_dim), jnp.float32, -2 * s, 2 * s)
    s1 = 1.0 / math.sqrt(2 * lstm_dim)
    w1 = jax.random.uniform(ks[4], (2 * lstm_dim, emb_dim), jnp.float32, -s1, s1)
    b1 = jax.random.uniform(ks[5], (1, emb_dim), jnp.float32, -s1, s1)
    s2 = 1.0 / math.sqrt(emb_dim)
    w2 = jax.random.uniform(ks[6], (emb_dim, 1), jnp.float32, -s2, s2)
    b2 = jax.random.uniform(ks[7], (1, 1), jnp.float32, -s2, s2)
    return dict(emb=emb, wih=wih, whh=whh, b=b, w1=w1, b1=b1, w2=w2, b2=b2)


if __name__ == "__main__":
    B, T = 2, 8
    VOCAB, EMB_DIM, LSTM_DIM = 50, 100, 100   # module defaults: emb_dim=100, lstm_dim=100

    key = jax.random.PRNGKey(0)
    k_par, k_ids = jax.random.split(key)
    params = make_params(k_par, VOCAB, EMB_DIM, LSTM_DIM)
    input_ids = jax.random.randint(k_ids, (B, T), 1, VOCAB, dtype=jnp.int32)

    # One-time weight prep (hoisted out of the per-call forward).
    prepped = prepare_params(params)
    prepped = jax.block_until_ready(prepped)

    y, (h_n, c_n) = simple_lstm_forward(input_ids, prepped, EMB_DIM, LSTM_DIM)
    jax.block_until_ready((y, h_n, c_n))

    # Correctness check against pure-JAX reference.
    y_ref, (h_ref, c_ref) = _ref_forward(input_ids, params)
    np.testing.assert_allclose(np.asarray(y), np.asarray(y_ref), rtol=1e-4, atol=1e-4)
    np.testing.assert_allclose(np.asarray(h_n), np.asarray(h_ref), rtol=1e-4, atol=1e-4)
    np.testing.assert_allclose(np.asarray(c_n), np.asarray(c_ref), rtol=1e-4, atol=1e-4)
    assert y.shape == (B, T) and h_n.shape == (2, B, LSTM_DIM) and c_n.shape == (2, B, LSTM_DIM)

    print("KERNEL_OK")
</pallas_src>

<mosaic_0001>
module attributes {stable_mosaic.version = 11 : i64} {
  func.func @_fused_kernel(%arg0: i32, %arg1: memref<8x8x128xf32, #tpu.memory_space<vmem>>, %arg2: memref<128x1024xf32, #tpu.memory_space<vmem>>, %arg3: memref<2x128x512xf32, #tpu.memory_space<vmem>>, %arg4: memref<1x1024xf32, #tpu.memory_space<vmem>>, %arg5: memref<2x128x128xf32, #tpu.memory_space<vmem>>, %arg6: memref<1x128xf32, #tpu.memory_space<vmem>>, %arg7: memref<1x128xf32, #tpu.memory_space<vmem>>, %arg8: memref<1x1xf32, #tpu.memory_space<smem>>, %arg9: memref<8x8xf32, #tpu.memory_space<vmem>>, %arg10: memref<2x8x128xf32, #tpu.memory_space<vmem>>, %arg11: memref<2x8x128xf32, #tpu.memory_space<vmem>>, %arg12: memref<8x8x512xf32, #tpu.memory_space<vmem>>, %arg13: memref<8x8x512xf32, #tpu.memory_space<vmem>>, %arg14: memref<8x8x128xf32, #tpu.memory_space<vmem>>, %arg15: memref<8x8x128xf32, #tpu.memory_space<vmem>>) attributes {dimension_semantics = [#tpu.dimension_semantics<arbitrary>], iteration_bounds = array<i64: 1>, scalar_prefetch = 0 : i64, scratch_operands = 4 : i64, tpu.core_type = #tpu.core_type<tc>, window_params = [{pipeline_mode = #tpu.pipeline_mode<synchronous>, transform_indices = @transform_0, window_bounds = array<i64: 8, 8, 128>}, {pipeline_mode = #tpu.pipeline_mode<synchronous>, transform_indices = @transform_1, window_bounds = array<i64: 128, 1024>}, {pipeline_mode = #tpu.pipeline_mode<synchronous>, transform_indices = @transform_2, window_bounds = array<i64: 2, 128, 512>}, {pipeline_mode = #tpu.pipeline_mode<synchronous>, transform_indices = @transform_3, window_bounds = array<i64: 1, 1024>}, {pipeline_mode = #tpu.pipeline_mode<synchronous>, transform_indices = @transform_4, window_bounds = array<i64: 2, 128, 128>}, {pipeline_mode = #tpu.pipeline_mode<synchronous>, transform_indices = @transform_5, window_bounds = array<i64: 1, 128>}, {pipeline_mode = #tpu.pipeline_mode<synchronous>, transform_indices = @transform_6, window_bounds = array<i64: 1, 128>}, {transform_indices = @transform_7, window_bounds = array<i64: 1, 1>}, {pipeline_mode = #tpu.pipeline_mode<synchronous>, transform_indices = @transform_8, window_bounds = array<i64: 8, 8>}, {pipeline_mode = #tpu.pipeline_mode<synchronous>, transform_indices = @transform_9, window_bounds = array<i64: 2, 8, 128>}, {pipeline_mode = #tpu.pipeline_mode<synchronous>, transform_indices = @transform_10, window_bounds = array<i64: 2, 8, 128>}]} {
    %c0 = arith.constant 0 : index
    %c0_0 = arith.constant 0 : index
    %c0_1 = arith.constant 0 : index
    %0 = vector.load %arg1[%c0, %c0_0, %c0_1] : memref<8x8x128xf32, #tpu.memory_space<vmem>>, vector<8x8x128xf32>
    %1 = vector.shape_cast %0 : vector<8x8x128xf32> to vector<64x128xf32>
    %c0_2 = arith.constant 0 : index
    %c0_3 = arith.constant 0 : index
    %2 = vector.load %arg2[%c0_2, %c0_3] : memref<128x1024xf32, #tpu.memory_space<vmem>>, vector<128x1024xf32>
    %cst = arith.constant dense<0.000000e+00> : vector<64x1024xf32>
    %3 = tpu.matmul %1, %2, %cst {dimension_numbers = #tpu.dot_dimension_numbers<[1], [0], [0], [1], [0, 0, 1, 1], [], []>} : vector<64x128xf32>, vector<128x1024xf32>, vector<64x1024xf32> -> vector<64x1024xf32>
    %c0_4 = arith.constant 0 : index
    %c0_5 = arith.constant 0 : index
    %4 = vector.load %arg4[%c0_4, %c0_5] : memref<1x1024xf32, #tpu.memory_space<vmem>>, vector<1x1024xf32>
    %5 = vector.broadcast %4 : vector<1x1024xf32> to vector<64x1024xf32>
    %6 = arith.addf %3, %5 : vector<64x1024xf32>
    %7 = vector.extract_strided_slice %6 {offsets = [0, 0], sizes = [64, 512], strides = [1, 1]} : vector<64x1024xf32> to vector<64x512xf32>
    %8 = vector.shape_cast %7 : vector<64x512xf32> to vector<8x8x512xf32>
    %c0_6 = arith.constant 0 : index
    %c0_7 = arith.constant 0 : index
    %c0_8 = arith.constant 0 : index
    %9 = vector.load %arg12[%c0_6, %c0_7, %c0_8] : memref<8x8x512xf32, #tpu.memory_space<vmem>>, vector<8x8x512xf32>
    tpu.vector_store %arg12[%c0_6, %c0_7, %c0_8], %8 {strides = array<i32>} : memref<8x8x512xf32, #tpu.memory_space<vmem>>, vector<8x8x512xf32>,
    %10 = vector.extract_strided_slice %6 {offsets = [0, 512], sizes = [64, 512], strides = [1, 1]} : vector<64x1024xf32> to vector<64x512xf32>
    %11 = vector.shape_cast %10 : vector<64x512xf32> to vector<8x8x512xf32>
    %c0_9 = arith.constant 0 : index
    %c0_10 = arith.constant 0 : index
    %c0_11 = arith.constant 0 : index
    %12 = vector.load %arg13[%c0_9, %c0_10, %c0_11] : memref<8x8x512xf32, #tpu.memory_space<vmem>>, vector<8x8x512xf32>
    tpu.vector_store %arg13[%c0_9, %c0_10, %c0_11], %11 {strides = array<i32>} : memref<8x8x512xf32, #tpu.memory_space<vmem>>, vector<8x8x512xf32>,
    %cst_12 = arith.constant 0.000000e+00 : f32
    %13 = vector.broadcast %cst_12 : f32 to vector<8x128xf32>
    %c0_13 = arith.constant 0 : index
    %c0_14 = arith.constant 0 : index
    %c0_15 = arith.constant 0 : index
    %14 = vector.load %arg12[%c0_13, %c0_14, %c0_15] : memref<8x8x512xf32, #tpu.memory_space<vmem>>, vector<1x8x512xf32>
    %15 = vector.shape_cast %14 : vector<1x8x512xf32> to vector<8x512xf32>
    %c0_16 = arith.constant 0 : index
    %c0_17 = arith.constant 0 : index
    %c0_18 = arith.constant 0 : index
    %16 = vector.load %arg3[%c0_16, %c0_17, %c0_18] : memref<2x128x512xf32, #tpu.memory_space<vmem>>, vector<1x128x512xf32>
    %17 = vector.shape_cast %16 : vector<1x128x512xf32> to vector<128x512xf32>
    %cst_19 = arith.constant dense<0.000000e+00> : vector<8x512xf32>
    %18 = tpu.matmul %13, %17, %cst_19 {dimension_numbers = #tpu.dot_dimension_numbers<[1], [0], [0], [1], [0, 0, 1, 1], [], []>} : vector<8x128xf32>, vector<128x512xf32>, vector<8x512xf32> -> vector<8x512xf32>
    %19 = arith.addf %15, %18 : vector<8x512xf32>
    %c7 = arith.constant 7 : index
    %c0_20 = arith.constant 0 : index
    %c0_21 = arith.constant 0 : index
    %20 = vector.load %arg13[%c7, %c0_20, %c0_21] : memref<8x8x512xf32, #tpu.memory_space<vmem>>, vector<1x8x512xf32>
    %21 = vector.shape_cast %20 : vector<1x8x512xf32> to vector<8x512xf32>
    %c1 = arith.constant 1 : index
    %c0_22 = arith.constant 0 : index
    %c0_23 = arith.constant 0 : index
    %22 = vector.load %arg3[%c1, %c0_22, %c0_23] : memref<2x128x512xf32, #tpu.memory_space<vmem>>, vector<1x128x512xf32>
    %23 = vector.shape_cast %22 : vector<1x128x512xf32> to vector<128x512xf32>
    %cst_24 = arith.constant dense<0.000000e+00> : vector<8x512xf32>
    %24 = tpu.matmul %13, %23, %cst_24 {dimension_numbers = #tpu.dot_dimension_numbers<[1], [0], [0], [1], [0, 0, 1, 1], [], []>} : vector<8x128xf32>, vector<128x512xf32>, vector<8x512xf32> -> vector<8x512xf32>
    %25 = arith.addf %21, %24 : vector<8x512xf32>
    %26 = vector.extract_strided_slice %19 {offsets = [0, 0], sizes = [8, 384], strides = [1, 1]} : vector<8x512xf32> to vector<8x384xf32>
    %27 = arith.negf %26 : vector<8x384xf32>
    %28 = math.exp %27 : vector<8x384xf32>
    %cst_25 = arith.constant 1.000000e+00 : f32
    %29 = vector.broadcast %cst_25 : f32 to vector<8x384xf32>
    %30 = arith.addf %29, %28 : vector<8x384xf32>
    %31 = arith.divf %29, %30 : vector<8x384xf32>
    %32 = vector.extract_strided_slice %19 {offsets = [0, 384], sizes = [8, 128], strides = [1, 1]} : vector<8x512xf32> to vector<8x128xf32>
    %33 = math.tanh %32 : vector<8x128xf32>
    %34 = vector.extract_strided_slice %31 {offsets = [0, 0], sizes = [8, 128], strides = [1, 1]} : vector<8x384xf32> to vector<8x128xf32>
    %35 = vector.extract_strided_slice %31 {offsets = [0, 128], sizes = [8, 128], strides = [1, 1]} : vector<8x384xf32> to vector<8x128xf32>
    %36 = vector.extract_strided_slice %31 {offsets = [0, 256], sizes = [8, 128], strides = [1, 1]} : vector<8x384xf32> to vector<8x128xf32>
    %37 = arith.mulf %35, %13 : vector<8x128xf32>
    %38 = arith.mulf %34, %33 : vector<8x128xf32>
    %39 = arith.addf %37, %38 : vector<8x128xf32>
    %40 = math.tanh %39 : vector<8x128xf32>
    %41 = arith.mulf %36, %40 : vector<8x128xf32>
    %42 = vector.extract_strided_slice %25 {offsets = [0, 0], sizes = [8, 384], strides = [1, 1]} : vector<8x512xf32> to vector<8x384xf32>
    %43 = arith.negf %42 : vector<8x384xf32>
    %44 = math.exp %43 : vector<8x384xf32>
    %cst_26 = arith.constant 1.000000e+00 : f32
    %45 = vector.broadcast %cst_26 : f32 to vector<8x384xf32>
    %46 = arith.addf %45, %44 : vector<8x384xf32>
    %47 = arith.divf %45, %46 : vector<8x384xf32>
    %48 = vector.extract_strided_slice %25 {offsets = [0, 384], sizes = [8, 128], strides = [1, 1]} : vector<8x512xf32> to vector<8x128xf32>
    %49 = math.tanh %48 : vector<8x128xf32>
    %50 = vector.extract_strided_slice %47 {offsets = [0, 0], sizes = [8, 128], strides = [1, 1]} : vector<8x384xf32> to vector<8x128xf32>
    %51 = vector.extract_strided_slice %47 {offsets = [0, 128], sizes = [8, 128], strides = [1, 1]} : vector<8x384xf32> to vector<8x128xf32>
    %52 = vector.extract_strided_slice %47 {offsets = [0, 256], sizes = [8, 128], strides = [1, 1]} : vector<8x384xf32> to vector<8x128xf32>
    %53 = arith.mulf %51, %13 : vector<8x128xf32>
    %54 = arith.mulf %50, %49 : vector<8x128xf32>
    %55 = arith.addf %53, %54 : vector<8x128xf32>
    %56 = math.tanh %55 : vector<8x128xf32>
    %57 = arith.mulf %52, %56 : vector<8x128xf32>
    %c0_27 = arith.constant 0 : index
    %c0_28 = arith.constant 0 : index
    %c0_29 = arith.constant 0 : index
    %58 = vector.load %arg14[%c0_27, %c0_28, %c0_29] : memref<8x8x128xf32, #tpu.memory_space<vmem>>, vector<1x8x128xf32>
    %59 = vector.shape_cast %58 : vector<1x8x128xf32> to vector<8x128xf32>
    %60 = vector.shape_cast %41 : vector<8x128xf32> to vector<1x8x128xf32>
    tpu.vector_store %arg14[%c0_27, %c0_28, %c0_29], %60 {strides = array<i32>} : memref<8x8x128xf32, #tpu.memory_space<vmem>>, vector<1x8x128xf32>,
    %c7_30 = arith.constant 7 : index
    %c0_31 = arith.constant 0 : index
    %c0_32 = arith.constant 0 : index
    %61 = vector.load %arg15[%c7_30, %c0_31, %c0_32] : memref<8x8x128xf32, #tpu.memory_space<vmem>>, vector<1x8x128xf32>
    %62 = vector.shape_cast %61 : vector<1x8x128xf32> to vector<8x128xf32>
    %63 = vector.shape_cast %57 : vector<8x128xf32> to vector<1x8x128xf32>
    tpu.vector_store %arg15[%c7_30, %c0_31, %c0_32], %63 {strides = array<i32>} : memref<8x8x128xf32, #tpu.memory_space<vmem>>, vector<1x8x128xf32>,
    %c1_33 = arith.constant 1 : index
    %c0_34 = arith.constant 0 : index
    %c0_35 = arith.constant 0 : index
    %64 = vector.load %arg12[%c1_33, %c0_34, %c0_35] : memref<8x8x512xf32, #tpu.memory_space<vmem>>, vector<1x8x512xf32>
    %65 = vector.shape_cast %64 : vector<1x8x512xf32> to vector<8x512xf32>
    %c0_36 = arith.constant 0 : index
    %c0_37 = arith.constant 0 : index
    %c0_38 = arith.constant 0 : index
    %66 = vector.load %arg3[%c0_36, %c0_37, %c0_38] : memref<2x128x512xf32, #tpu.memory_space<vmem>>, vector<1x128x512xf32>
    %67 = vector.shape_cast %66 : vector<1x128x512xf32> to vector<128x512xf32>
    %cst_39 = arith.constant dense<0.000000e+00> : vector<8x512xf32>
    %68 = tpu.matmul %41, %67, %cst_39 {dimension_numbers = #tpu.dot_dimension_numbers<[1], [0], [0], [1], [0, 0, 1, 1], [], []>} : vector<8x128xf32>, vector<128x512xf32>, vector<8x512xf32> -> vector<8x512xf32>
    %69 = arith.addf %65, %68 : vector<8x512xf32>
    %c6 = arith.constant 6 : index
    %c0_40 = arith.constant 0 : index
    %c0_41 = arith.constant 0 : index
    %70 = vector.load %arg13[%c6, %c0_40, %c0_41] : memref<8x8x512xf32, #tpu.memory_space<vmem>>, vector<1x8x512xf32>
    %71 = vector.shape_cast %70 : vector<1x8x512xf32> to vector<8x512xf32>
    %c1_42 = arith.constant 1 : index
    %c0_43 = arith.constant 0 : index
    %c0_44 = arith.constant 0 : index
    %72 = vector.load %arg3[%c1_42, %c0_43, %c0_44] : memref<2x128x512xf32, #tpu.memory_space<vmem>>, vector<1x128x512xf32>
    %73 = vector.shape_cast %72 : vector<1x128x512xf32> to vector<128x512xf32>
    %cst_45 = arith.constant dense<0.000000e+00> : vector<8x512xf32>
    %74 = tpu.matmul %57, %73, %cst_45 {dimension_numbers = #tpu.dot_dimension_numbers<[1], [0], [0], [1], [0, 0, 1, 1], [], []>} : vector<8x128xf32>, vector<128x512xf32>, vector<8x512xf32> -> vector<8x512xf32>
    %75 = arith.addf %71, %74 : vector<8x512xf32>
    %76 = vector.extract_strided_slice %69 {offsets = [0, 0], sizes = [8, 384], strides = [1, 1]} : vector<8x512xf32> to vector<8x384xf32>
    %77 = arith.negf %76 : vector<8x384xf32>
    %78 = math.exp %77 : vector<8x384xf32>
    %cst_46 = arith.constant 1.000000e+00 : f32
    %79 = vector.broadcast %cst_46 : f32 to vector<8x384xf32>
    %80 = arith.addf %79, %78 : vector<8x384xf32>
    %81 = arith.divf %79, %80 : vector<8x384xf32>
    %82 = vector.extract_strided_slice %69 {offsets = [0, 384], sizes = [8, 128], strides = [1, 1]} : vector<8x512xf32> to vector<8x128xf32>
    %83 = math.tanh %82 : vector<8x128xf32>
    %84 = vector.extract_strided_slice %81 {offsets = [0, 0], sizes = [8, 128], strides = [1, 1]} : vector<8x384xf32> to vector<8x128xf32>
    %85 = vector.extract_strided_slice %81 {offsets = [0, 128], sizes = [8, 128], strides = [1, 1]} : vector<8x384xf32> to vector<8x128xf32>
    %86 = vector.extract_strided_slice %81 {offsets = [0, 256], sizes = [8, 128], strides = [1, 1]} : vector<8x384xf32> to vector<8x128xf32>
    %87 = arith.mulf %85, %39 : vector<8x128xf32>
    %88 = arith.mulf %84, %83 : vector<8x128xf32>
    %89 = arith.addf %87, %88 : vector<8x128xf32>
    %90 = math.tanh %89 : vector<8x128xf32>
    %91 = arith.mulf %86, %90 : vector<8x128xf32>
    %92 = vector.extract_strided_slice %75 {offsets = [0, 0], sizes = [8, 384], strides = [1, 1]} : vector<8x512xf32> to vector<8x384xf32>
    %93 = arith.negf %92 : vector<8x384xf32>
    %94 = math.exp %93 : vector<8x384xf32>
    %cst_47 = arith.constant 1.000000e+00 : f32
    %95 = vector.broadcast %cst_47 : f32 to vector<8x384xf32>
    %96 = arith.addf %95, %94 : vector<8x384xf32>
    %97 = arith.divf %95, %96 : vector<8x384xf32>
    %98 = vector.extract_strided_slice %75 {offsets = [0, 384], sizes = [8, 128], strides = [1, 1]} : vector<8x512xf32> to vector<8x128xf32>
    %99 = math.tanh %98 : vector<8x128xf32>
    %100 = vector.extract_strided_slice %97 {offsets = [0, 0], sizes = [8, 128], strides = [1, 1]} : vector<8x384xf32> to vector<8x128xf32>
    %101 = vector.extract_strided_slice %97 {offsets = [0, 128], sizes = [8, 128], strides = [1, 1]} : vector<8x384xf32> to vector<8x128xf32>
    %102 = vector.extract_strided_slice %97 {offsets = [0, 256], sizes = [8, 128], strides = [1, 1]} : vector<8x384xf32> to vector<8x128xf32>
    %103 = arith.mulf %101, %55 : vector<8x128xf32>
    %104 = arith.mulf %100, %99 : vector<8x128xf32>
    %105 = arith.addf %103, %104 : vector<8x128xf32>
    %106 = math.tanh %105 : vector<8x128xf32>
    %107 = arith.mulf %102, %106 : vector<8x128xf32>
    %c1_48 = arith.constant 1 : index
    %c0_49 = arith.constant 0 : index
    %c0_50 = arith.constant 0 : index
    %108 = vector.load %arg14[%c1_48, %c0_49, %c0_50] : memref<8x8x128xf32, #tpu.memory_space<vmem>>, vector<1x8x128xf32>
    %109 = vector.shape_cast %108 : vector<1x8x128xf32> to vector<8x128xf32>
    %110 = vector.shape_cast %91 : vector<8x128xf32> to vector<1x8x128xf32>
    tpu.vector_store %arg14[%c1_48, %c0_49, %c0_50], %110 {strides = array<i32>} : memref<8x8x128xf32, #tpu.memory_space<vmem>>, vector<1x8x128xf32>,
    %c6_51 = arith.constant 6 : index
    %c0_52 = arith.constant 0 : index
    %c0_53 = arith.constant 0 : index
    %111 = vector.load %arg15[%c6_51, %c0_52, %c0_53] : memref<8x8x128xf32, #tpu.memory_space<vmem>>, vector<1x8x128xf32>
    %112 = vector.shape_cast %111 : vector<1x8x128xf32> to vector<8x128xf32>
    %113 = vector.shape_cast %107 : vector<8x128xf32> to vector<1x8x128xf32>
    tpu.vector_store %arg15[%c6_51, %c0_52, %c0_53], %113 {strides = array<i32>} : memref<8x8x128xf32, #tpu.memory_space<vmem>>, vector<1x8x128xf32>,
    %c2 = arith.constant 2 : index
    %c0_54 = arith.constant 0 : index
    %c0_55 = arith.constant 0 : index
    %114 = vector.load %arg12[%c2, %c0_54, %c0_55] : memref<8x8x512xf32, #tpu.memory_space<vmem>>, vector<1x8x512xf32>
    %115 = vector.shape_cast %114 : vector<1x8x512xf32> to vector<8x512xf32>
    %c0_56 = arith.constant 0 : index
    %c0_57 = arith.constant 0 : index
    %c0_58 = arith.constant 0 : index
    %116 = vector.load %arg3[%c0_56, %c0_57, %c0_58] : memref<2x128x512xf32, #tpu.memory_space<vmem>>, vector<1x128x512xf32>
    %117 = vector.shape_cast %116 : vector<1x128x512xf32> to vector<128x512xf32>
    %cst_59 = arith.constant dense<0.000000e+00> : vector<8x512xf32>
    %118 = tpu.matmul %91, %117, %cst_59 {dimension_numbers = #tpu.dot_dimension_numbers<[1], [0], [0], [1], [0, 0, 1, 1], [], []>} : vector<8x128xf32>, vector<128x512xf32>, vector<8x512xf32> -> vector<8x512xf32>
    %119 = arith.addf %115, %118 : vector<8x512xf32>
    %c5 = arith.constant 5 : index
    %c0_60 = arith.constant 0 : index
    %c0_61 = arith.constant 0 : index
    %120 = vector.load %arg13[%c5, %c0_60, %c0_61] : memref<8x8x512xf32, #tpu.memory_space<vmem>>, vector<1x8x512xf32>
    %121 = vector.shape_cast %120 : vector<1x8x512xf32> to vector<8x512xf32>
    %c1_62 = arith.constant 1 : index
    %c0_63 = arith.constant 0 : index
    %c0_64 = arith.constant 0 : index
    %122 = vector.load %arg3[%c1_62, %c0_63, %c0_64] : memref<2x128x512xf32, #tpu.memory_space<vmem>>, vector<1x128x512xf32>
    %123 = vector.shape_cast %122 : vector<1x128x512xf32> to vector<128x512xf32>
    %cst_65 = arith.constant dense<0.000000e+00> : vector<8x512xf32>
    %124 = tpu.matmul %107, %123, %cst_65 {dimension_numbers = #tpu.dot_dimension_numbers<[1], [0], [0], [1], [0, 0, 1, 1], [], []>} : vector<8x128xf32>, vector<128x512xf32>, vector<8x512xf32> -> vector<8x512xf32>
    %125 = arith.addf %121, %124 : vector<8x512xf32>
    %126 = vector.extract_strided_slice %119 {offsets = [0, 0], sizes = [8, 384], strides = [1, 1]} : vector<8x512xf32> to vector<8x384xf32>
    %127 = arith.negf %126 : vector<8x384xf32>
    %128 = math.exp %127 : vector<8x384xf32>
    %cst_66 = arith.constant 1.000000e+00 : f32
    %129 = vector.broadcast %cst_66 : f32 to vector<8x384xf32>
    %130 = arith.addf %129, %128 : vector<8x384xf32>
    %131 = arith.divf %129, %130 : vector<8x384xf32>
    %132 = vector.extract_strided_slice %119 {offsets = [0, 384], sizes = [8, 128], strides = [1, 1]} : vector<8x512xf32> to vector<8x128xf32>
    %133 = math.tanh %132 : vector<8x128xf32>
    %134 = vector.extract_strided_slice %131 {offsets = [0, 0], sizes = [8, 128], strides = [1, 1]} : vector<8x384xf32> to vector<8x128xf32>
    %135 = vector.extract_strided_slice %131 {offsets = [0, 128], sizes = [8, 128], strides = [1, 1]} : vector<8x384xf32> to vector<8x128xf32>
    %136 = vector.extract_strided_slice %131 {offsets = [0, 256], sizes = [8, 128], strides = [1, 1]} : vector<8x384xf32> to vector<8x128xf32>
    %137 = arith.mulf %135, %89 : vector<8x128xf32>
    %138 = arith.mulf %134, %133 : vector<8x128xf32>
    %139 = arith.addf %137, %138 : vector<8x128xf32>
    %140 = math.tanh %139 : vector<8x128xf32>
    %141 = arith.mulf %136, %140 : vector<8x128xf32>
    %142 = vector.extract_strided_slice %125 {offsets = [0, 0], sizes = [8, 384], strides = [1, 1]} : vector<8x512xf32> to vector<8x384xf32>
    %143 = arith.negf %142 : vector<8x384xf32>
    %144 = math.exp %143 : vector<8x384xf32>
    %cst_67 = arith.constant 1.000000e+00 : f32
    %145 = vector.broadcast %cst_67 : f32 to vector<8x384xf32>
    %146 = arith.addf %145, %144 : vector<8x384xf32>
    %147 = arith.divf %145, %146 : vector<8x384xf32>
    %148 = vector.extract_strided_slice %125 {offsets = [0, 384], sizes = [8, 128], strides = [1, 1]} : vector<8x512xf32> to vector<8x128xf32>
    %149 = math.tanh %148 : vector<8x128xf32>
    %150 = vector.extract_strided_slice %147 {offsets = [0, 0], sizes = [8, 128], strides = [1, 1]} : vector<8x384xf32> to vector<8x128xf32>
    %151 = vector.extract_strided_slice %147 {offsets = [0, 128], sizes = [8, 128], strides = [1, 1]} : vector<8x384xf32> to vector<8x128xf32>
    %152 = vector.extract_strided_slice %147 {offsets = [0, 256], sizes = [8, 128], strides = [1, 1]} : vector<8x384xf32> to vector<8x128xf32>
    %153 = arith.mulf %151, %105 : vector<8x128xf32>
    %154 = arith.mulf %150, %149 : vector<8x128xf32>
    %155 = arith.addf %153, %154 : vector<8x128xf32>
    %156 = math.tanh %155 : vector<8x128xf32>
    %157 = arith.mulf %152, %156 : vector<8x128xf32>
    %c2_68 = arith.constant 2 : index
    %c0_69 = arith.constant 0 : index
    %c0_70 = arith.constant 0 : index
    %158 = vector.load %arg14[%c2_68, %c0_69, %c0_70] : memref<8x8x128xf32, #tpu.memory_space<vmem>>, vector<1x8x128xf32>
    %159 = vector.shape_cast %158 : vector<1x8x128xf32> to vector<8x128xf32>
    %160 = vector.shape_cast %141 : vector<8x128xf32> to vector<1x8x128xf32>
    tpu.vector_store %arg14[%c2_68, %c0_69, %c0_70], %160 {strides = array<i32>} : memref<8x8x128xf32, #tpu.memory_space<vmem>>, vector<1x8x128xf32>,
    %c5_71 = arith.constant 5 : index
    %c0_72 = arith.constant 0 : index
    %c0_73 = arith.constant 0 : index
    %161 = vector.load %arg15[%c5_71, %c0_72, %c0_73] : memref<8x8x128xf32, #tpu.memory_space<vmem>>, vector<1x8x128xf32>
    %162 = vector.shape_cast %161 : vector<1x8x128xf32> to vector<8x128xf32>
    %163 = vector.shape_cast %157 : vector<8x128xf32> to vector<1x8x128xf32>
    tpu.vector_store %arg15[%c5_71, %c0_72, %c0_73], %163 {strides = array<i32>} : memref<8x8x128xf32, #tpu.memory_space<vmem>>, vector<1x8x128xf32>,
    %c3 = arith.constant 3 : index
    %c0_74 = arith.constant 0 : index
    %c0_75 = arith.constant 0 : index
    %164 = vector.load %arg12[%c3, %c0_74, %c0_75] : memref<8x8x512xf32, #tpu.memory_space<vmem>>, vector<1x8x512xf32>
    %165 = vector.shape_cast %164 : vector<1x8x512xf32> to vector<8x512xf32>
    %c0_76 = arith.constant 0 : index
    %c0_77 = arith.constant 0 : index
    %c0_78 = arith.constant 0 : index
    %166 = vector.load %arg3[%c0_76, %c0_77, %c0_78] : memref<2x128x512xf32, #tpu.memory_space<vmem>>, vector<1x128x512xf32>
    %167 = vector.shape_cast %166 : vector<1x128x512xf32> to vector<128x512xf32>
    %cst_79 = arith.constant dense<0.000000e+00> : vector<8x512xf32>
    %168 = tpu.matmul %141, %167, %cst_79 {dimension_numbers = #tpu.dot_dimension_numbers<[1], [0], [0], [1], [0, 0, 1, 1], [], []>} : vector<8x128xf32>, vector<128x512xf32>, vector<8x512xf32> -> vector<8x512xf32>
    %169 = arith.addf %165, %168 : vector<8x512xf32>
    %c4 = arith.constant 4 : index
    %c0_80 = arith.constant 0 : index
    %c0_81 = arith.constant 0 : index
    %170 = vector.load %arg13[%c4, %c0_80, %c0_81] : memref<8x8x512xf32, #tpu.memory_space<vmem>>, vector<1x8x512xf32>
    %171 = vector.shape_cast %170 : vector<1x8x512xf32> to vector<8x512xf32>
    %c1_82 = arith.constant 1 : index
    %c0_83 = arith.constant 0 : index
    %c0_84 = arith.constant 0 : index
    %172 = vector.load %arg3[%c1_82, %c0_83, %c0_84] : memref<2x128x512xf32, #tpu.memory_space<vmem>>, vector<1x128x512xf32>
    %173 = vector.shape_cast %172 : vector<1x128x512xf32> to vector<128x512xf32>
    %cst_85 = arith.constant dense<0.000000e+00> : vector<8x512xf32>
    %174 = tpu.matmul %157, %173, %cst_85 {dimension_numbers = #tpu.dot_dimension_numbers<[1], [0], [0], [1], [0, 0, 1, 1], [], []>} : vector<8x128xf32>, vector<128x512xf32>, vector<8x512xf32> -> vector<8x512xf32>
    %175 = arith.addf %171, %174 : vector<8x512xf32>
    %176 = vector.extract_strided_slice %169 {offsets = [0, 0], sizes = [8, 384], strides = [1, 1]} : vector<8x512xf32> to vector<8x384xf32>
    %177 = arith.negf %176 : vector<8x384xf32>
    %178 = math.exp %177 : vector<8x384xf32>
    %cst_86 = arith.constant 1.000000e+00 : f32
    %179 = vector.broadcast %cst_86 : f32 to vector<8x384xf32>
    %180 = arith.addf %179, %178 : vector<8x384xf32>
    %181 = arith.divf %179, %180 : vector<8x384xf32>
    %182 = vector.extract_strided_slice %169 {offsets = [0, 384], sizes = [8, 128], strides = [1, 1]} : vector<8x512xf32> to vector<8x128xf32>
    %183 = math.tanh %182 : vector<8x128xf32>
    %184 = vector.extract_strided_slice %181 {offsets = [0, 0], sizes = [8, 128], strides = [1, 1]} : vector<8x384xf32> to vector<8x128xf32>
    %185 = vector.extract_strided_slice %181 {offsets = [0, 128], sizes = [8, 128], strides = [1, 1]} : vector<8x384xf32> to vector<8x128xf32>
    %186 = vector.extract_strided_slice %181 {offsets = [0, 256], sizes = [8, 128], strides = [1, 1]} : vector<8x384xf32> to vector<8x128xf32>
    %187 = arith.mulf %185, %139 : vector<8x128xf32>
    %188 = arith.mulf %184, %183 : vector<8x128xf32>
    %189 = arith.addf %187, %188 : vector<8x128xf32>
    %190 = math.tanh %189 : vector<8x128xf32>
    %191 = arith.mulf %186, %190 : vector<8x128xf32>
    %192 = vector.extract_strided_slice %175 {offsets = [0, 0], sizes = [8, 384], strides = [1, 1]} : vector<8x512xf32> to vector<8x384xf32>
    %193 = arith.negf %192 : vector<8x384xf32>
    %194 = math.exp %193 : vector<8x384xf32>
    %cst_87 = arith.constant 1.000000e+00 : f32
    %195 = vector.broadcast %cst_87 : f32 to vector<8x384xf32>
    %196 = arith.addf %195, %194 : vector<8x384xf32>
    %197 = arith.divf %195, %196 : vector<8x384xf32>
    %198 = vector.extract_strided_slice %175 {offsets = [0, 384], sizes = [8, 128], strides = [1, 1]} : vector<8x512xf32> to vector<8x128xf32>
    %199 = math.tanh %198 : vector<8x128xf32>
    %200 = vector.extract_strided_slice %197 {offsets = [0, 0], sizes = [8, 128], strides = [1, 1]} : vector<8x384xf32> to vector<8x128xf32>
    %201 = vector.extract_strided_slice %197 {offsets = [0, 128], sizes = [8, 128], strides = [1, 1]} : vector<8x384xf32> to vector<8x128xf32>
    %202 = vector.extract_strided_slice %197 {offsets = [0, 256], sizes = [8, 128], strides = [1, 1]} : vector<8x384xf32> to vector<8x128xf32>
    %203 = arith.mulf %201, %155 : vector<8x128xf32>
    %204 = arith.mulf %200, %199 : vector<8x128xf32>
    %205 = arith.addf %203, %204 : vector<8x128xf32>
    %206 = math.tanh %205 : vector<8x128xf32>
    %207 = arith.mulf %202, %206 : vector<8x128xf32>
    %c3_88 = arith.constant 3 : index
    %c0_89 = arith.constant 0 : index
    %c0_90 = arith.constant 0 : index
    %208 = vector.load %arg14[%c3_88, %c0_89, %c0_90] : memref<8x8x128xf32, #tpu.memory_space<vmem>>, vector<1x8x128xf32>
    %209 = vector.shape_cast %208 : vector<1x8x128xf32> to vector<8x128xf32>
    %210 = vector.shape_cast %191 : vector<8x128xf32> to vector<1x8x128xf32>
    tpu.vector_store %arg14[%c3_88, %c0_89, %c0_90], %210 {strides = array<i32>} : memref<8x8x128xf32, #tpu.memory_space<vmem>>, vector<1x8x128xf32>,
    %c4_91 = arith.constant 4 : index
    %c0_92 = arith.constant 0 : index
    %c0_93 = arith.constant 0 : index
    %211 = vector.load %arg15[%c4_91, %c0_92, %c0_93] : memref<8x8x128xf32, #tpu.memory_space<vmem>>, vector<1x8x128xf32>
    %212 = vector.shape_cast %211 : vector<1x8x128xf32> to vector<8x128xf32>
    %213 = vector.shape_cast %207 : vector<8x128xf32> to vector<1x8x128xf32>
    tpu.vector_store %arg15[%c4_91, %c0_92, %c0_93], %213 {strides = array<i32>} : memref<8x8x128xf32, #tpu.memory_space<vmem>>, vector<1x8x128xf32>,
    %c4_94 = arith.constant 4 : index
    %c0_95 = arith.constant 0 : index
    %c0_96 = arith.constant 0 : index
    %214 = vector.load %arg12[%c4_94, %c0_95, %c0_96] : memref<8x8x512xf32, #tpu.memory_space<vmem>>, vector<1x8x512xf32>
    %215 = vector.shape_cast %214 : vector<1x8x512xf32> to vector<8x512xf32>
    %c0_97 = arith.constant 0 : index
    %c0_98 = arith.constant 0 : index
    %c0_99 = arith.constant 0 : index
    %216 = vector.load %arg3[%c0_97, %c0_98, %c0_99] : memref<2x128x512xf32, #tpu.memory_space<vmem>>, vector<1x128x512xf32>
    %217 = vector.shape_cast %216 : vector<1x128x512xf32> to vector<128x512xf32>
    %cst_100 = arith.constant dense<0.000000e+00> : vector<8x512xf32>
    %218 = tpu.matmul %191, %217, %cst_100 {dimension_numbers = #tpu.dot_dimension_numbers<[1], [0], [0], [1], [0, 0, 1, 1], [], []>} : vector<8x128xf32>, vector<128x512xf32>, vector<8x512xf32> -> vector<8x512xf32>
    %219 = arith.addf %215, %218 : vector<8x512xf32>
    %c3_101 = arith.constant 3 : index
    %c0_102 = arith.constant 0 : index
    %c0_103 = arith.constant 0 : index
    %220 = vector.load %arg13[%c3_101, %c0_102, %c0_103] : memref<8x8x512xf32, #tpu.memory_space<vmem>>, vector<1x8x512xf32>
    %221 = vector.shape_cast %220 : vector<1x8x512xf32> to vector<8x512xf32>
    %c1_104 = arith.constant 1 : index
    %c0_105 = arith.constant 0 : index
    %c0_106 = arith.constant 0 : index
    %222 = vector.load %arg3[%c1_104, %c0_105, %c0_106] : memref<2x128x512xf32, #tpu.memory_space<vmem>>, vector<1x128x512xf32>
    %223 = vector.shape_cast %222 : vector<1x128x512xf32> to vector<128x512xf32>
    %cst_107 = arith.constant dense<0.000000e+00> : vector<8x512xf32>
    %224 = tpu.matmul %207, %223, %cst_107 {dimension_numbers = #tpu.dot_dimension_numbers<[1], [0], [0], [1], [0, 0, 1, 1], [], []>} : vector<8x128xf32>, vector<128x512xf32>, vector<8x512xf32> -> vector<8x512xf32>
    %225 = arith.addf %221, %224 : vector<8x512xf32>
    %226 = vector.extract_strided_slice %219 {offsets = [0, 0], sizes = [8, 384], strides = [1, 1]} : vector<8x512xf32> to vector<8x384xf32>
    %227 = arith.negf %226 : vector<8x384xf32>
    %228 = math.exp %227 : vector<8x384xf32>
    %cst_108 = arith.constant 1.000000e+00 : f32
    %229 = vector.broadcast %cst_108 : f32 to vector<8x384xf32>
    %230 = arith.addf %229, %228 : vector<8x384xf32>
    %231 = arith.divf %229, %230 : vector<8x384xf32>
    %232 = vector.extract_strided_slice %219 {offsets = [0, 384], sizes = [8, 128], strides = [1, 1]} : vector<8x512xf32> to vector<8x128xf32>
    %233 = math.tanh %232 : vector<8x128xf32>
    %234 = vector.extract_strided_slice %231 {offsets = [0, 0], sizes = [8, 128], strides = [1, 1]} : vector<8x384xf32> to vector<8x128xf32>
    %235 = vector.extract_strided_slice %231 {offsets = [0, 128], sizes = [8, 128], strides = [1, 1]} : vector<8x384xf32> to vector<8x128xf32>
    %236 = vector.extract_strided_slice %231 {offsets = [0, 256], sizes = [8, 128], strides = [1, 1]} : vector<8x384xf32> to vector<8x128xf32>
    %237 = arith.mulf %235, %189 : vector<8x128xf32>
    %238 = arith.mulf %234, %233 : vector<8x128xf32>
    %239 = arith.addf %237, %238 : vector<8x128xf32>
    %240 = math.tanh %239 : vector<8x128xf32>
    %241 = arith.mulf %236, %240 : vector<8x128xf32>
    %242 = vector.extract_strided_slice %225 {offsets = [0, 0], sizes = [8, 384], strides = [1, 1]} : vector<8x512xf32> to vector<8x384xf32>
    %243 = arith.negf %242 : vector<8x384xf32>
    %244 = math.exp %243 : vector<8x384xf32>
    %cst_109 = arith.constant 1.000000e+00 : f32
    %245 = vector.broadcast %cst_109 : f32 to vector<8x384xf32>
    %246 = arith.addf %245, %244 : vector<8x384xf32>
    %247 = arith.divf %245, %246 : vector<8x384xf32>
    %248 = vector.extract_strided_slice %225 {offsets = [0, 384], sizes = [8, 128], strides = [1, 1]} : vector<8x512xf32> to vector<8x128xf32>
    %249 = math.tanh %248 : vector<8x128xf32>
    %250 = vector.extract_strided_slice %247 {offsets = [0, 0], sizes = [8, 128], strides = [1, 1]} : vector<8x384xf32> to vector<8x128xf32>
    %251 = vector.extract_strided_slice %247 {offsets = [0, 128], sizes = [8, 128], strides = [1, 1]} : vector<8x384xf32> to vector<8x128xf32>
    %252 = vector.extract_strided_slice %247 {offsets = [0, 256], sizes = [8, 128], strides = [1, 1]} : vector<8x384xf32> to vector<8x128xf32>
    %253 = arith.mulf %251, %205 : vector<8x128xf32>
    %254 = arith.mulf %250, %249 : vector<8x128xf32>
    %255 = arith.addf %253, %254 : vector<8x128xf32>
    %256 = math.tanh %255 : vector<8x128xf32>
    %257 = arith.mulf %252, %256 : vector<8x128xf32>
    %c4_110 = arith.constant 4 : index
    %c0_111 = arith.constant 0 : index
    %c0_112 = arith.constant 0 : index
    %258 = vector.load %arg14[%c4_110, %c0_111, %c0_112] : memref<8x8x128xf32, #tpu.memory_space<vmem>>, vector<1x8x128xf32>
    %259 = vector.shape_cast %258 : vector<1x8x128xf32> to vector<8x128xf32>
    %260 = vector.shape_cast %241 : vector<8x128xf32> to vector<1x8x128xf32>
    tpu.vector_store %arg14[%c4_110, %c0_111, %c0_112], %260 {strides = array<i32>} : memref<8x8x128xf32, #tpu.memory_space<vmem>>, vector<1x8x128xf32>,
    %c3_113 = arith.constant 3 : index
    %c0_114 = arith.constant 0 : index
    %c0_115 = arith.constant 0 : index
    %261 = vector.load %arg15[%c3_113, %c0_114, %c0_115] : memref<8x8x128xf32, #tpu.memory_space<vmem>>, vector<1x8x128xf32>
    %262 = vector.shape_cast %261 : vector<1x8x128xf32> to vector<8x128xf32>
    %263 = vector.shape_cast %257 : vector<8x128xf32> to vector<1x8x128xf32>
    tpu.vector_store %arg15[%c3_113, %c0_114, %c0_115], %263 {strides = array<i32>} : memref<8x8x128xf32, #tpu.memory_space<vmem>>, vector<1x8x128xf32>,
    %c5_116 = arith.constant 5 : index
    %c0_117 = arith.constant 0 : index
    %c0_118 = arith.constant 0 : index
    %264 = vector.load %arg12[%c5_116, %c0_117, %c0_118] : memref<8x8x512xf32, #tpu.memory_space<vmem>>, vector<1x8x512xf32>
    %265 = vector.shape_cast %264 : vector<1x8x512xf32> to vector<8x512xf32>
    %c0_119 = arith.constant 0 : index
    %c0_120 = arith.constant 0 : index
    %c0_121 = arith.constant 0 : index
    %266 = vector.load %arg3[%c0_119, %c0_120, %c0_121] : memref<2x128x512xf32, #tpu.memory_space<vmem>>, vector<1x128x512xf32>
    %267 = vector.shape_cast %266 : vector<1x128x512xf32> to vector<128x512xf32>
    %cst_122 = arith.constant dense<0.000000e+00> : vector<8x512xf32>
    %268 = tpu.matmul %241, %267, %cst_122 {dimension_numbers = #tpu.dot_dimension_numbers<[1], [0], [0], [1], [0, 0, 1, 1], [], []>} : vector<8x128xf32>, vector<128x512xf32>, vector<8x512xf32> -> vector<8x512xf32>
    %269 = arith.addf %265, %268 : vector<8x512xf32>
    %c2_123 = arith.constant 2 : index
    %c0_124 = arith.constant 0 : index
    %c0_125 = arith.constant 0 : index
    %270 = vector.load %arg13[%c2_123, %c0_124, %c0_125] : memref<8x8x512xf32, #tpu.memory_space<vmem>>, vector<1x8x512xf32>
    %271 = vector.shape_cast %270 : vector<1x8x512xf32> to vector<8x512xf32>
    %c1_126 = arith.constant 1 : index
    %c0_127 = arith.constant 0 : index
    %c0_128 = arith.constant 0 : index
    %272 = vector.load %arg3[%c1_126, %c0_127, %c0_128] : memref<2x128x512xf32, #tpu.memory_space<vmem>>, vector<1x128x512xf32>
    %273 = vector.shape_cast %272 : vector<1x128x512xf32> to vector<128x512xf32>
    %cst_129 = arith.constant dense<0.000000e+00> : vector<8x512xf32>
    %274 = tpu.matmul %257, %273, %cst_129 {dimension_numbers = #tpu.dot_dimension_numbers<[1], [0], [0], [1], [0, 0, 1, 1], [], []>} : vector<8x128xf32>, vector<128x512xf32>, vector<8x512xf32> -> vector<8x512xf32>
    %275 = arith.addf %271, %274 : vector<8x512xf32>
    %276 = vector.extract_strided_slice %269 {offsets = [0, 0], sizes = [8, 384], strides = [1, 1]} : vector<8x512xf32> to vector<8x384xf32>
    %277 = arith.negf %276 : vector<8x384xf32>
    %278 = math.exp %277 : vector<8x384xf32>
    %cst_130 = arith.constant 1.000000e+00 : f32
    %279 = vector.broadcast %cst_130 : f32 to vector<8x384xf32>
    %280 = arith.addf %279, %278 : vector<8x384xf32>
    %281 = arith.divf %279, %280 : vector<8x384xf32>
    %282 = vector.extract_strided_slice %269 {offsets = [0, 384], sizes = [8, 128], strides = [1, 1]} : vector<8x512xf32> to vector<8x128xf32>
    %283 = math.tanh %282 : vector<8x128xf32>
    %284 = vector.extract_strided_slice %281 {offsets = [0, 0], sizes = [8, 128], strides = [1, 1]} : vector<8x384xf32> to vector<8x128xf32>
    %285 = vector.extract_strided_slice %281 {offsets = [0, 128], sizes = [8, 128], strides = [1, 1]} : vector<8x384xf32> to vector<8x128xf32>
    %286 = vector.extract_strided_slice %281 {offsets = [0, 256], sizes = [8, 128], strides = [1, 1]} : vector<8x384xf32> to vector<8x128xf32>
    %287 = arith.mulf %285, %239 : vector<8x128xf32>
    %288 = arith.mulf %284, %283 : vector<8x128xf32>
    %289 = arith.addf %287, %288 : vector<8x128xf32>
    %290 = math.tanh %289 : vector<8x128xf32>
    %291 = arith.mulf %286, %290 : vector<8x128xf32>
    %292 = vector.extract_strided_slice %275 {offsets = [0, 0], sizes = [8, 384], strides = [1, 1]} : vector<8x512xf32> to vector<8x384xf32>
    %293 = arith.negf %292 : vector<8x384xf32>
    %294 = math.exp %293 : vector<8x384xf32>
    %cst_131 = arith.constant 1.000000e+00 : f32
    %295 = vector.broadcast %cst_131 : f32 to vector<8x384xf32>
    %296 = arith.addf %295, %294 : vector<8x384xf32>
    %297 = arith.divf %295, %296 : vector<8x384xf32>
    %298 = vector.extract_strided_slice %275 {offsets = [0, 384], sizes = [8, 128], strides = [1, 1]} : vector<8x512xf32> to vector<8x128xf32>
    %299 = math.tanh %298 : vector<8x128xf32>
    %300 = vector.extract_strided_slice %297 {offsets = [0, 0], sizes = [8, 128], strides = [1, 1]} : vector<8x384xf32> to vector<8x128xf32>
    %301 = vector.extract_strided_slice %297 {offsets = [0, 128], sizes = [8, 128], strides = [1, 1]} : vector<8x384xf32> to vector<8x128xf32>
    %302 = vector.extract_strided_slice %297 {offsets = [0, 256], sizes = [8, 128], strides = [1, 1]} : vector<8x384xf32> to vector<8x128xf32>
    %303 = arith.mulf %301, %255 : vector<8x128xf32>
    %304 = arith.mulf %300, %299 : vector<8x128xf32>
    %305 = arith.addf %303, %304 : vector<8x128xf32>
    %306 = math.tanh %305 : vector<8x128xf32>
    %307 = arith.mulf %302, %306 : vector<8x128xf32>
    %c5_132 = arith.constant 5 : index
    %c0_133 = arith.constant 0 : index
    %c0_134 = arith.constant 0 : index
    %308 = vector.load %arg14[%c5_132, %c0_133, %c0_134] : memref<8x8x128xf32, #tpu.memory_space<vmem>>, vector<1x8x128xf32>
    %309 = vector.shape_cast %308 : vector<1x8x128xf32> to vector<8x128xf32>
    %310 = vector.shape_cast %291 : vector<8x128xf32> to vector<1x8x128xf32>
    tpu.vector_store %arg14[%c5_132, %c0_133, %c0_134], %310 {strides = array<i32>} : memref<8x8x128xf32, #tpu.memory_space<vmem>>, vector<1x8x128xf32>,
    %c2_135 = arith.constant 2 : index
    %c0_136 = arith.constant 0 : index
    %c0_137 = arith.constant 0 : index
    %311 = vector.load %arg15[%c2_135, %c0_136, %c0_137] : memref<8x8x128xf32, #tpu.memory_space<vmem>>, vector<1x8x128xf32>
    %312 = vector.shape_cast %311 : vector<1x8x128xf32> to vector<8x128xf32>
    %313 = vector.shape_cast %307 : vector<8x128xf32> to vector<1x8x128xf32>
    tpu.vector_store %arg15[%c2_135, %c0_136, %c0_137], %313 {strides = array<i32>} : memref<8x8x128xf32, #tpu.memory_space<vmem>>, vector<1x8x128xf32>,
    %c6_138 = arith.constant 6 : index
    %c0_139 = arith.constant 0 : index
    %c0_140 = arith.constant 0 : index
    %314 = vector.load %arg12[%c6_138, %c0_139, %c0_140] : memref<8x8x512xf32, #tpu.memory_space<vmem>>, vector<1x8x512xf32>
    %315 = vector.shape_cast %314 : vector<1x8x512xf32> to vector<8x512xf32>
    %c0_141 = arith.constant 0 : index
    %c0_142 = arith.constant 0 : index
    %c0_143 = arith.constant 0 : index
    %316 = vector.load %arg3[%c0_141, %c0_142, %c0_143] : memref<2x128x512xf32, #tpu.memory_space<vmem>>, vector<1x128x512xf32>
    %317 = vector.shape_cast %316 : vector<1x128x512xf32> to vector<128x512xf32>
    %cst_144 = arith.constant dense<0.000000e+00> : vector<8x512xf32>
    %318 = tpu.matmul %291, %317, %cst_144 {dimension_numbers = #tpu.dot_dimension_numbers<[1], [0], [0], [1], [0, 0, 1, 1], [], []>} : vector<8x128xf32>, vector<128x512xf32>, vector<8x512xf32> -> vector<8x512xf32>
    %319 = arith.addf %315, %318 : vector<8x512xf32>
    %c1_145 = arith.constant 1 : index
    %c0_146 = arith.constant 0 : index
    %c0_147 = arith.constant 0 : index
    %320 = vector.load %arg13[%c1_145, %c0_146, %c0_147] : memref<8x8x512xf32, #tpu.memory_space<vmem>>, vector<1x8x512xf32>
    %321 = vector.shape_cast %320 : vector<1x8x512xf32> to vector<8x512xf32>
    %c1_148 = arith.constant 1 : index
    %c0_149 = arith.constant 0 : index
    %c0_150 = arith.constant 0 : index
    %322 = vector.load %arg3[%c1_148, %c0_149, %c0_150] : memref<2x128x512xf32, #tpu.memory_space<vmem>>, vector<1x128x512xf32>
    %323 = vector.shape_cast %322 : vector<1x128x512xf32> to vector<128x512xf32>
    %cst_151 = arith.constant dense<0.000000e+00> : vector<8x512xf32>
    %324 = tpu.matmul %307, %323, %cst_151 {dimension_numbers = #tpu.dot_dimension_numbers<[1], [0], [0], [1], [0, 0, 1, 1], [], []>} : vector<8x128xf32>, vector<128x512xf32>, vector<8x512xf32> -> vector<8x512xf32>
    %325 = arith.addf %321, %324 : vector<8x512xf32>
    %326 = vector.extract_strided_slice %319 {offsets = [0, 0], sizes = [8, 384], strides = [1, 1]} : vector<8x512xf32> to vector<8x384xf32>
    %327 = arith.negf %326 : vector<8x384xf32>
    %328 = math.exp %327 : vector<8x384xf32>
    %cst_152 = arith.constant 1.000000e+00 : f32
    %329 = vector.broadcast %cst_152 : f32 to vector<8x384xf32>
    %330 = arith.addf %329, %328 : vector<8x384xf32>
    %331 = arith.divf %329, %330 : vector<8x384xf32>
    %332 = vector.extract_strided_slice %319 {offsets = [0, 384], sizes = [8, 128], strides = [1, 1]} : vector<8x512xf32> to vector<8x128xf32>
    %333 = math.tanh %332 : vector<8x128xf32>
    %334 = vector.extract_strided_slice %331 {offsets = [0, 0], sizes = [8, 128], strides = [1, 1]} : vector<8x384xf32> to vector<8x128xf32>
    %335 = vector.extract_strided_slice %331 {offsets = [0, 128], sizes = [8, 128], strides = [1, 1]} : vector<8x384xf32> to vector<8x128xf32>
    %336 = vector.extract_strided_slice %331 {offsets = [0, 256], sizes = [8, 128], strides = [1, 1]} : vector<8x384xf32> to vector<8x128xf32>
    %337 = arith.mulf %335, %289 : vector<8x128xf32>
    %338 = arith.mulf %334, %333 : vector<8x128xf32>
    %339 = arith.addf %337, %338 : vector<8x128xf32>
    %340 = math.tanh %339 : vector<8x128xf32>
    %341 = arith.mulf %336, %340 : vector<8x128xf32>
    %342 = vector.extract_strided_slice %325 {offsets = [0, 0], sizes = [8, 384], strides = [1, 1]} : vector<8x512xf32> to vector<8x384xf32>
    %343 = arith.negf %342 : vector<8x384xf32>
    %344 = math.exp %343 : vector<8x384xf32>
    %cst_153 = arith.constant 1.000000e+00 : f32
    %345 = vector.broadcast %cst_153 : f32 to vector<8x384xf32>
    %346 = arith.addf %345, %344 : vector<8x384xf32>
    %347 = arith.divf %345, %346 : vector<8x384xf32>
    %348 = vector.extract_strided_slice %325 {offsets = [0, 384], sizes = [8, 128], strides = [1, 1]} : vector<8x512xf32> to vector<8x128xf32>
    %349 = math.tanh %348 : vector<8x128xf32>
    %350 = vector.extract_strided_slice %347 {offsets = [0, 0], sizes = [8, 128], strides = [1, 1]} : vector<8x384xf32> to vector<8x128xf32>
    %351 = vector.extract_strided_slice %347 {offsets = [0, 128], sizes = [8, 128], strides = [1, 1]} : vector<8x384xf32> to vector<8x128xf32>
    %352 = vector.extract_strided_slice %347 {offsets = [0, 256], sizes = [8, 128], strides = [1, 1]} : vector<8x384xf32> to vector<8x128xf32>
    %353 = arith.mulf %351, %305 : vector<8x128xf32>
    %354 = arith.mulf %350, %349 : vector<8x128xf32>
    %355 = arith.addf %353, %354 : vector<8x128xf32>
    %356 = math.tanh %355 : vector<8x128xf32>
    %357 = arith.mulf %352, %356 : vector<8x128xf32>
    %c6_154 = arith.constant 6 : index
    %c0_155 = arith.constant 0 : index
    %c0_156 = arith.constant 0 : index
    %358 = vector.load %arg14[%c6_154, %c0_155, %c0_156] : memref<8x8x128xf32, #tpu.memory_space<vmem>>, vector<1x8x128xf32>
    %359 = vector.shape_cast %358 : vector<1x8x128xf32> to vector<8x128xf32>
    %360 = vector.shape_cast %341 : vector<8x128xf32> to vector<1x8x128xf32>
    tpu.vector_store %arg14[%c6_154, %c0_155, %c0_156], %360 {strides = array<i32>} : memref<8x8x128xf32, #tpu.memory_space<vmem>>, vector<1x8x128xf32>,
    %c1_157 = arith.constant 1 : index
    %c0_158 = arith.constant 0 : index
    %c0_159 = arith.constant 0 : index
    %361 = vector.load %arg15[%c1_157, %c0_158, %c0_159] : memref<8x8x128xf32, #tpu.memory_space<vmem>>, vector<1x8x128xf32>
    %362 = vector.shape_cast %361 : vector<1x8x128xf32> to vector<8x128xf32>
    %363 = vector.shape_cast %357 : vector<8x128xf32> to vector<1x8x128xf32>
    tpu.vector_store %arg15[%c1_157, %c0_158, %c0_159], %363 {strides = array<i32>} : memref<8x8x128xf32, #tpu.memory_space<vmem>>, vector<1x8x128xf32>,
    %c7_160 = arith.constant 7 : index
    %c0_161 = arith.constant 0 : index
    %c0_162 = arith.constant 0 : index
    %364 = vector.load %arg12[%c7_160, %c0_161, %c0_162] : memref<8x8x512xf32, #tpu.memory_space<vmem>>, vector<1x8x512xf32>
    %365 = vector.shape_cast %364 : vector<1x8x512xf32> to vector<8x512xf32>
    %c0_163 = arith.constant 0 : index
    %c0_164 = arith.constant 0 : index
    %c0_165 = arith.constant 0 : index
    %366 = vector.load %arg3[%c0_163, %c0_164, %c0_165] : memref<2x128x512xf32, #tpu.memory_space<vmem>>, vector<1x128x512xf32>
    %367 = vector.shape_cast %366 : vector<1x128x512xf32> to vector<128x512xf32>
    %cst_166 = arith.constant dense<0.000000e+00> : vector<8x512xf32>
    %368 = tpu.matmul %341, %367, %cst_166 {dimension_numbers = #tpu.dot_dimension_numbers<[1], [0], [0], [1], [0, 0, 1, 1], [], []>} : vector<8x128xf32>, vector<128x512xf32>, vector<8x512xf32> -> vector<8x512xf32>
    %369 = arith.addf %365, %368 : vector<8x512xf32>
    %c0_167 = arith.constant 0 : index
    %c0_168 = arith.constant 0 : index
    %c0_169 = arith.constant 0 : index
    %370 = vector.load %arg13[%c0_167, %c0_168, %c0_169] : memref<8x8x512xf32, #tpu.memory_space<vmem>>, vector<1x8x512xf32>
    %371 = vector.shape_cast %370 : vector<1x8x512xf32> to vector<8x512xf32>
    %c1_170 = arith.constant 1 : index
    %c0_171 = arith.constant 0 : index
    %c0_172 = arith.constant 0 : index
    %372 = vector.load %arg3[%c1_170, %c0_171, %c0_172] : memref<2x128x512xf32, #tpu.memory_space<vmem>>, vector<1x128x512xf32>
    %373 = vector.shape_cast %372 : vector<1x128x512xf32> to vector<128x512xf32>
    %cst_173 = arith.constant dense<0.000000e+00> : vector<8x512xf32>
    %374 = tpu.matmul %357, %373, %cst_173 {dimension_numbers = #tpu.dot_dimension_numbers<[1], [0], [0], [1], [0, 0, 1, 1], [], []>} : vector<8x128xf32>, vector<128x512xf32>, vector<8x512xf32> -> vector<8x512xf32>
    %375 = arith.addf %371, %374 : vector<8x512xf32>
    %376 = vector.extract_strided_slice %369 {offsets = [0, 0], sizes = [8, 384], strides = [1, 1]} : vector<8x512xf32> to vector<8x384xf32>
    %377 = arith.negf %376 : vector<8x384xf32>
    %378 = math.exp %377 : vector<8x384xf32>
    %cst_174 = arith.constant 1.000000e+00 : f32
    %379 = vector.broadcast %cst_174 : f32 to vector<8x384xf32>
    %380 = arith.addf %379, %378 : vector<8x384xf32>
    %381 = arith.divf %379, %380 : vector<8x384xf32>
    %382 = vector.extract_strided_slice %369 {offsets = [0, 384], sizes = [8, 128], strides = [1, 1]} : vector<8x512xf32> to vector<8x128xf32>
    %383 = math.tanh %382 : vector<8x128xf32>
    %384 = vector.extract_strided_slice %381 {offsets = [0, 0], sizes = [8, 128], strides = [1, 1]} : vector<8x384xf32> to vector<8x128xf32>
    %385 = vector.extract_strided_slice %381 {offsets = [0, 128], sizes = [8, 128], strides = [1, 1]} : vector<8x384xf32> to vector<8x128xf32>
    %386 = vector.extract_strided_slice %381 {offsets = [0, 256], sizes = [8, 128], strides = [1, 1]} : vector<8x384xf32> to vector<8x128xf32>
    %387 = arith.mulf %385, %339 : vector<8x128xf32>
    %388 = arith.mulf %384, %383 : vector<8x128xf32>
    %389 = arith.addf %387, %388 : vector<8x128xf32>
    %390 = math.tanh %389 : vector<8x128xf32>
    %391 = arith.mulf %386, %390 : vector<8x128xf32>
    %392 = vector.extract_strided_slice %375 {offsets = [0, 0], sizes = [8, 384], strides = [1, 1]} : vector<8x512xf32> to vector<8x384xf32>
    %393 = arith.negf %392 : vector<8x384xf32>
    %394 = math.exp %393 : vector<8x384xf32>
    %cst_175 = arith.constant 1.000000e+00 : f32
    %395 = vector.broadcast %cst_175 : f32 to vector<8x384xf32>
    %396 = arith.addf %395, %394 : vector<8x384xf32>
    %397 = arith.divf %395, %396 : vector<8x384xf32>
    %398 = vector.extract_strided_slice %375 {offsets = [0, 384], sizes = [8, 128], strides = [1, 1]} : vector<8x512xf32> to vector<8x128xf32>
    %399 = math.tanh %398 : vector<8x128xf32>
    %400 = vector.extract_strided_slice %397 {offsets = [0, 0], sizes = [8, 128], strides = [1, 1]} : vector<8x384xf32> to vector<8x128xf32>
    %401 = vector.extract_strided_slice %397 {offsets = [0, 128], sizes = [8, 128], strides = [1, 1]} : vector<8x384xf32> to vector<8x128xf32>
    %402 = vector.extract_strided_slice %397 {offsets = [0, 256], sizes = [8, 128], strides = [1, 1]} : vector<8x384xf32> to vector<8x128xf32>
    %403 = arith.mulf %401, %355 : vector<8x128xf32>
    %404 = arith.mulf %400, %399 : vector<8x128xf32>
    %405 = arith.addf %403, %404 : vector<8x128xf32>
    %406 = math.tanh %405 : vector<8x128xf32>
    %407 = arith.mulf %402, %406 : vector<8x128xf32>
    %c7_176 = arith.constant 7 : index
    %c0_177 = arith.constant 0 : index
    %c0_178 = arith.constant 0 : index
    %408 = vector.load %arg14[%c7_176, %c0_177, %c0_178] : memref<8x8x128xf32, #tpu.memory_space<vmem>>, vector<1x8x128xf32>
    %409 = vector.shape_cast %408 : vector<1x8x128xf32> to vector<8x128xf32>
    %410 = vector.shape_cast %391 : vector<8x128xf32> to vector<1x8x128xf32>
    tpu.vector_store %arg14[%c7_176, %c0_177, %c0_178], %410 {strides = array<i32>} : memref<8x8x128xf32, #tpu.memory_space<vmem>>, vector<1x8x128xf32>,
    %c0_179 = arith.constant 0 : index
    %c0_180 = arith.constant 0 : index
    %c0_181 = arith.constant 0 : index
    %411 = vector.load %arg15[%c0_179, %c0_180, %c0_181] : memref<8x8x128xf32, #tpu.memory_space<vmem>>, vector<1x8x128xf32>
    %412 = vector.shape_cast %411 : vector<1x8x128xf32> to vector<8x128xf32>
    %413 = vector.shape_cast %407 : vector<8x128xf32> to vector<1x8x128xf32>
    tpu.vector_store %arg15[%c0_179, %c0_180, %c0_181], %413 {strides = array<i32>} : memref<8x8x128xf32, #tpu.memory_space<vmem>>, vector<1x8x128xf32>,
    %c0_182 = arith.constant 0 : index
    %c0_183 = arith.constant 0 : index
    %c0_184 = arith.constant 0 : index
    %414 = vector.load %arg10[%c0_182, %c0_183, %c0_184] : memref<2x8x128xf32, #tpu.memory_space<vmem>>, vector<1x8x128xf32>
    %415 = vector.shape_cast %414 : vector<1x8x128xf32> to vector<8x128xf32>
    %416 = vector.shape_cast %391 : vector<8x128xf32> to vector<1x8x128xf32>
    tpu.vector_store %arg10[%c0_182, %c0_183, %c0_184], %416 {strides = array<i32>} : memref<2x8x128xf32, #tpu.memory_space<vmem>>, vector<1x8x128xf32>,
    %c1_185 = arith.constant 1 : index
    %c0_186 = arith.constant 0 : index
    %c0_187 = arith.constant 0 : index
    %417 = vector.load %arg10[%c1_185, %c0_186, %c0_187] : memref<2x8x128xf32, #tpu.memory_space<vmem>>, vector<1x8x128xf32>
    %418 = vector.shape_cast %417 : vector<1x8x128xf32> to vector<8x128xf32>
    %419 = vector.shape_cast %407 : vector<8x128xf32> to vector<1x8x128xf32>
    tpu.vector_store %arg10[%c1_185, %c0_186, %c0_187], %419 {strides = array<i32>} : memref<2x8x128xf32, #tpu.memory_space<vmem>>, vector<1x8x128xf32>,
    %c0_188 = arith.constant 0 : index
    %c0_189 = arith.constant 0 : index
    %c0_190 = arith.constant 0 : index
    %420 = vector.load %arg11[%c0_188, %c0_189, %c0_190] : memref<2x8x128xf32, #tpu.memory_space<vmem>>, vector<1x8x128xf32>
    %421 = vector.shape_cast %420 : vector<1x8x128xf32> to vector<8x128xf32>
    %422 = vector.shape_cast %389 : vector<8x128xf32> to vector<1x8x128xf32>
    tpu.vector_store %arg11[%c0_188, %c0_189, %c0_190], %422 {strides = array<i32>} : memref<2x8x128xf32, #tpu.memory_space<vmem>>, vector<1x8x128xf32>,
    %c1_191 = arith.constant 1 : index
    %c0_192 = arith.constant 0 : index
    %c0_193 = arith.constant 0 : index
    %423 = vector.load %arg11[%c1_191, %c0_192, %c0_193] : memref<2x8x128xf32, #tpu.memory_space<vmem>>, vector<1x8x128xf32>
    %424 = vector.shape_cast %423 : vector<1x8x128xf32> to vector<8x128xf32>
    %425 = vector.shape_cast %405 : vector<8x128xf32> to vector<1x8x128xf32>
    tpu.vector_store %arg11[%c1_191, %c0_192, %c0_193], %425 {strides = array<i32>} : memref<2x8x128xf32, #tpu.memory_space<vmem>>, vector<1x8x128xf32>,
    %c0_194 = arith.constant 0 : index
    %c0_195 = arith.constant 0 : index
    %c0_196 = arith.constant 0 : index
    %426 = vector.load %arg14[%c0_194, %c0_195, %c0_196] : memref<8x8x128xf32, #tpu.memory_space<vmem>>, vector<8x8x128xf32>
    %427 = vector.shape_cast %426 : vector<8x8x128xf32> to vector<64x128xf32>
    %c0_197 = arith.constant 0 : index
    %c0_198 = arith.constant 0 : index
    %c0_199 = arith.constant 0 : index
    %428 = vector.load %arg15[%c0_197, %c0_198, %c0_199] : memref<8x8x128xf32, #tpu.memory_space<vmem>>, vector<8x8x128xf32>
    %429 = vector.shape_cast %428 : vector<8x8x128xf32> to vector<64x128xf32>
    %c0_200 = arith.constant 0 : index
    %c0_201 = arith.constant 0 : index
    %c0_202 = arith.constant 0 : index
    %430 = vector.load %arg5[%c0_200, %c0_201, %c0_202] : memref<2x128x128xf32, #tpu.memory_space<vmem>>, vector<1x128x128xf32>
    %431 = vector.shape_cast %430 : vector<1x128x128xf32> to vector<128x128xf32>
    %cst_203 = arith.constant dense<0.000000e+00> : vector<64x128xf32>
    %432 = tpu.matmul %427, %431, %cst_203 {dimension_numbers = #tpu.dot_dimension_numbers<[1], [0], [0], [1], [0, 0, 1, 1], [], []>} : vector<64x128xf32>, vector<128x128xf32>, vector<64x128xf32> -> vector<64x128xf32>
    %c1_204 = arith.constant 1 : index
    %c0_205 = arith.constant 0 : index
    %c0_206 = arith.constant 0 : index
    %433 = vector.load %arg5[%c1_204, %c0_205, %c0_206] : memref<2x128x128xf32, #tpu.memory_space<vmem>>, vector<1x128x128xf32>
    %434 = vector.shape_cast %433 : vector<1x128x128xf32> to vector<128x128xf32>
    %cst_207 = arith.constant dense<0.000000e+00> : vector<64x128xf32>
    %435 = tpu.matmul %429, %434, %cst_207 {dimension_numbers = #tpu.dot_dimension_numbers<[1], [0], [0], [1], [0, 0, 1, 1], [], []>} : vector<64x128xf32>, vector<128x128xf32>, vector<64x128xf32> -> vector<64x128xf32>
    %436 = arith.addf %432, %435 : vector<64x128xf32>
    %c0_208 = arith.constant 0 : index
    %c0_209 = arith.constant 0 : index
    %437 = vector.load %arg6[%c0_208, %c0_209] : memref<1x128xf32, #tpu.memory_space<vmem>>, vector<1x128xf32>
    %438 = vector.broadcast %437 : vector<1x128xf32> to vector<64x128xf32>
    %439 = arith.addf %436, %438 : vector<64x128xf32>
    %440 = math.tanh %439 : vector<64x128xf32>
    %441 = vector.shape_cast %440 : vector<64x128xf32> to vector<8x8x128xf32>
    %c0_210 = arith.constant 0 : index
    %c0_211 = arith.constant 0 : index
    %442 = vector.load %arg7[%c0_210, %c0_211] : memref<1x128xf32, #tpu.memory_space<vmem>>, vector<1x128xf32>
    %443 = vector.shape_cast %442 : vector<1x128xf32> to vector<1x1x128xf32>
    %444 = vector.broadcast %443 : vector<1x1x128xf32> to vector<8x8x128xf32>
    %445 = arith.mulf %441, %444 : vector<8x8x128xf32>
    %cst_212 = arith.constant dense<0.000000e+00> : vector<8x8xf32>
    %446 = vector.multi_reduction <add>, %445, %cst_212 [2] : vector<8x8x128xf32> to vector<8x8xf32>
    %c0_213 = arith.constant 0 : index
    %c0_214 = arith.constant 0 : index
    %447 = memref.load %arg8[%c0_213, %c0_214] : memref<1x1xf32, #tpu.memory_space<smem>>
    %448 = vector.broadcast %447 : f32 to vector<8x8xf32>
    %449 = arith.addf %446, %448 : vector<8x8xf32>
    %c0_215 = arith.constant 0 : index
    %c0_216 = arith.constant 0 : index
    %450 = vector.load %arg9[%c0_215, %c0_216] : memref<8x8xf32, #tpu.memory_space<vmem>>, vector<8x8xf32>
    tpu.vector_store %arg9[%c0_215, %c0_216], %449 {strides = array<i32>} : memref<8x8xf32, #tpu.memory_space<vmem>>, vector<8x8xf32>,
    return
  }
  func.func @transform_0(%arg0: i32) -> (i32, i32, i32) {
    %c0_i32 = arith.constant 0 : i32
    %c0_i32_0 = arith.constant 0 : i32
    %c0_i32_1 = arith.constant 0 : i32
    %c0_i32_2 = arith.constant 0 : i32
    return %c0_i32, %c0_i32_0, %c0_i32_1 : i32, i32, i32
  }
  func.func @transform_1(%arg0: i32) -> (i32, i32) {
    %c0_i32 = arith.constant 0 : i32
    %c0_i32_0 = arith.constant 0 : i32
    %c0_i32_1 = arith.constant 0 : i32
    return %c0_i32, %c0_i32_0 : i32, i32
  }
  func.func @transform_2(%arg0: i32) -> (i32, i32, i32) {
    %c0_i32 = arith.constant 0 : i32
    %c0_i32_0 = arith.constant 0 : i32
    %c0_i32_1 = arith.constant 0 : i32
    %c0_i32_2 = arith.constant 0 : i32
    return %c0_i32, %c0_i32_0, %c0_i32_1 : i32, i32, i32
  }
  func.func @transform_3(%arg0: i32) -> (i32, i32) {
    %c0_i32 = arith.constant 0 : i32
    %c0_i32_0 = arith.constant 0 : i32
    %c0_i32_1 = arith.constant 0 : i32
    return %c0_i32, %c0_i32_0 : i32, i32
  }
  func.func @transform_4(%arg0: i32) -> (i32, i32, i32) {
    %c0_i32 = arith.constant 0 : i32
    %c0_i32_0 = arith.constant 0 : i32
    %c0_i32_1 = arith.constant 0 : i32
    %c0_i32_2 = arith.constant 0 : i32
    return %c0_i32, %c0_i32_0, %c0_i32_1 : i32, i32, i32
  }
  func.func @transform_5(%arg0: i32) -> (i32, i32) {
    %c0_i32 = arith.constant 0 : i32
    %c0_i32_0 = arith.constant 0 : i32
    %c0_i32_1 = arith.constant 0 : i32
    return %c0_i32, %c0_i32_0 : i32, i32
  }
  func.func @transform_6(%arg0: i32) -> (i32, i32) {
    %c0_i32 = arith.constant 0 : i32
    %c0_i32_0 = arith.constant 0 : i32
    %c0_i32_1 = arith.constant 0 : i32
    return %c0_i32, %c0_i32_0 : i32, i32
  }
  func.func @transform_7(%arg0: i32) -> (i32, i32) {
    %c0_i32 = arith.constant 0 : i32
    %c0_i32_0 = arith.constant 0 : i32
    %c0_i32_1 = arith.constant 0 : i32
    return %c0_i32, %c0_i32_0 : i32, i32
  }
  func.func @transform_8(%arg0: i32) -> (i32, i32) {
    %c0_i32 = arith.constant 0 : i32
    %c0_i32_0 = arith.constant 0 : i32
    %c0_i32_1 = arith.constant 0 : i32
    return %c0_i32, %c0_i32_0 : i32, i32
  }
  func.func @transform_9(%arg0: i32) -> (i32, i32, i32) {
    %c0_i32 = arith.constant 0 : i32
    %c0_i32_0 = arith.constant 0 : i32
    %c0_i32_1 = arith.constant 0 : i32
    %c0_i32_2 = arith.constant 0 : i32
    return %c0_i32, %c0_i32_0, %c0_i32_1 : i32, i32, i32
  }
  func.func @transform_10(%arg0: i32) -> (i32, i32, i32) {
    %c0_i32 = arith.constant 0 : i32
    %c0_i32_0 = arith.constant 0 : i32
    %c0_i32_1 = arith.constant 0 : i32
    %c0_i32_2 = arith.constant 0 : i32
    return %c0_i32, %c0_i32_0, %c0_i32_1 : i32, i32, i32
  }
}

</mosaic_0001>

<llo_original>
// kernel: simple_lstm_forward.1
$region0: #{simple_lstm_forward.1}
  #allocation0 [shape = 'u32[]', space=smem, size = 0x4, offset = 0x4, fixed_abs, tag = 'smem constant byte address 0x4 - core index']
  #allocation1 [shape = 'u32[144,128]{1,0:T(1,128)}', space=vmem, size = 0x12000, scoped, tag = 'internal scratch']
  #allocation2 [shape = 'f32[8,8,512]{2,1,0:T(8,128)}', space=vmem, size = 0x20000, scoped, tag = 'scratch operand']
  #allocation3 [shape = 'f32[8,8,512]{2,1,0:T(8,128)}', space=vmem, size = 0x20000, scoped, tag = 'scratch operand']
  #allocation4 [shape = 'f32[8,8,128]{2,1,0:T(8,128)}', space=vmem, size = 0x8000, scoped, tag = 'scratch operand']
  #allocation5 [shape = 'f32[8,8,128]{2,1,0:T(8,128)}', space=vmem, size = 0x8000, scoped, tag = 'scratch operand']
  #allocation6 [shape = 'f32[1,1]{1,0:T(1,128)S(6)}', space=smem, size = 0x200, scoped, tag = 'scoped memory for simple_lstm_forward.1']
  %s0 = inlined_call_operand.vmem [shape: f32[8,8,128], index: 0, kind: input, shape index: {}]
  %s1 = inlined_call_operand.hbm [shape: f32[128,1024], index: 1, kind: input, shape index: {}]
  %s2 = inlined_call_operand.hbm [shape: f32[2,128,512], index: 2, kind: input, shape index: {}]
  %s3 = inlined_call_operand.vmem [shape: f32[1,1024], index: 3, kind: input, shape index: {}]
  %s4 = inlined_call_operand.vmem [shape: f32[2,128,128], index: 4, kind: input, shape index: {}]
  %s5 = inlined_call_operand.vmem [shape: f32[1,128], index: 5, kind: input, shape index: {}]
  %s6 = inlined_call_operand.vmem [shape: f32[1,128], index: 6, kind: input, shape index: {}]
  %s7 = inlined_call_operand.<no memory space> [shape: f32[1,1], index: 7, kind: input, shape index: {}]
  %s8 = inlined_call_operand.vmem [shape: f32[8,8], index: 8, kind: output, shape index: {0}]
  %s9 = inlined_call_operand.vmem [shape: f32[2,8,128], index: 9, kind: output, shape index: {1}]
  %s10 = inlined_call_operand.vmem [shape: f32[2,8,128], index: 10, kind: output, shape index: {2}]
  %11 = xla_tuple %s8, %s9, %s10
  %s12 = sld [smem:[#allocation0]]
  $region66: #{simple_lstm_forward.1} parent=0
    _
  %s14 = ssub.s32 1, %s12
  %s15 = scalar_select 0, %s14, %s12
  %16 = sst [smem:[#allocation6]] %s7
  $region1: #{simple_lstm_forward.1} parent=0
    #allocation7 [shape = 'u8[524288]{0}', space=vmem, size = 0x80000, scoped, tag = 'input window, operand 1, single buffered']
    #allocation8 [shape = 's32[1]{0}', space=sflag, size = 0x4, scoped, tag = 'scoped memory for simple_lstm_forward.1']
    #allocation9 [shape = 'u8[524288]{0}', space=vmem, size = 0x80000, scoped, tag = 'input window, operand 2, single buffered']
    #allocation10 [shape = 's32[1]{0}', space=sflag, size = 0x4, scoped, tag = 'scoped memory for simple_lstm_forward.1']
    %17 = vsyncpa [#allocation8], 0
    %18 = vsyncpa [#allocation10], 0
    // Predicated region
    $region2: #{simple_lstm_forward.1} parent=1 // pred_check
      _
    $region3: #{simple_lstm_forward.1} parent=1 // pred_check_branch
      %20 = sbr.rel (0) target = $region5
    $region4: #{simple_lstm_forward.1} parent=1 // pred_region
      _
    $region5: #{simple_lstm_forward.1} parent=1 // pred_fallthru
      _
    // Predicated region
    $region6: #{simple_lstm_forward.1} parent=1 // pred_check
      _
    $region7: #{simple_lstm_forward.1} parent=1 // pred_check_branch
      %22 = sbr.rel (0) target = $region9
    $region8: #{simple_lstm_forward.1} parent=1 // pred_region
      %s24 = ssub.s32 16384, 16384
      %25 = vsyncadd [#allocation8], %s24
      %s26 = sshll.u32 [#allocation7], 4
      %s27 = int_to_ptr.vmem [resolvable:$true] %s26
      %32 = dma.hbm_to_vmem [thread:$0]  %s1, 16384, %s27, [#allocation8], 1024, 1024, 64
    $region9: #{simple_lstm_forward.1} parent=1 // pred_fallthru
      _
    // Predicated region
    $region10: #{simple_lstm_forward.1} parent=1 // pred_check
      _
    $region11: #{simple_lstm_forward.1} parent=1 // pred_check_branch
      %34 = sbr.rel (0) target = $region13
    $region12: #{simple_lstm_forward.1} parent=1 // pred_region
      %s36 = ssub.s32 16384, 16384
      %37 = vsyncadd [#allocation10], %s36
      %s38 = sshll.u32 [#allocation9], 4
      %s39 = int_to_ptr.vmem [resolvable:$true] %s38
      %44 = dma.hbm_to_vmem [thread:$0]  %s2, 16384, %s39, [#allocation10], 512, 512, 32
    $region13: #{simple_lstm_forward.1} parent=1 // pred_fallthru
      _
    // Predicated region
    $region14: #{simple_lstm_forward.1} parent=1 // pred_check
      _
    $region15: #{simple_lstm_forward.1} parent=1 // pred_check_branch
      %46 = sbr.rel (0) target = $region17
    $region16: #{simple_lstm_forward.1} parent=1 // pred_region
      _
    $region17: #{simple_lstm_forward.1} parent=1 // pred_fallthru
      _
    // Predicated region
    $region18: #{simple_lstm_forward.1} parent=1 // pred_check
      _
    $region19: #{simple_lstm_forward.1} parent=1 // pred_check_branch
      %48 = sbr.rel (0) target = $region21
    $region20: #{simple_lstm_forward.1} parent=1 // pred_region
      _
    $region21: #{simple_lstm_forward.1} parent=1 // pred_fallthru
      _
    // Predicated region
    $region22: #{simple_lstm_forward.1} parent=1 // pred_check
      _
    $region23: #{simple_lstm_forward.1} parent=1 // pred_check_branch
      %50 = sbr.rel (0) target = $region25
    $region24: #{simple_lstm_forward.1} parent=1 // pred_region
      _
    $region25: #{simple_lstm_forward.1} parent=1 // pred_fallthru
      _
    // Predicated region
    $region26: #{simple_lstm_forward.1} parent=1 // pred_check
      _
    $region27: #{simple_lstm_forward.1} parent=1 // pred_check_branch
      %52 = sbr.rel (0) target = $region29
    $region28: #{simple_lstm_forward.1} parent=1 // pred_region
      _
    $region29: #{simple_lstm_forward.1} parent=1 // pred_fallthru
      _
    // Predicated region
    $region30: #{simple_lstm_forward.1} parent=1 // pred_check
      _
    $region31: #{simple_lstm_forward.1} parent=1 // pred_check_branch
      %54 = sbr.rel (0) target = $region33
    $region32: #{simple_lstm_forward.1} parent=1 // pred_region
      _
    $region33: #{simple_lstm_forward.1} parent=1 // pred_fallthru
      _
    // Predicated region
    $region34: #{simple_lstm_forward.1} parent=1 // pred_check
      _
    $region35: #{simple_lstm_forward.1} parent=1 // pred_check_branch
      %56 = sbr.rel (0) target = $region37
    $region36: #{simple_lstm_forward.1} parent=1 // pred_region
      %57 = dma.done [#allocation8], 16384
    $region37: #{simple_lstm_forward.1} parent=1 // pred_fallthru
      _
    // Predicated region
    $region38: #{simple_lstm_forward.1} parent=1 // pred_check
      _
    $region39: #{simple_lstm_forward.1} parent=1 // pred_check_branch
      %59 = sbr.rel (0) target = $region41
    $region40: #{simple_lstm_forward.1} parent=1 // pred_region
      %60 = dma.done [#allocation10], 16384
    $region41: #{simple_lstm_forward.1} parent=1 // pred_fallthru
      _
    %v61 = vld [vmem:[%s0] sm:$0xff]
    %v62 = vld [vmem:[%s0 + $0x8] sm:$0xff]
    %v63 = vld [vmem:[%s0 + $0x10] sm:$0xff]
    %v64 = vld [vmem:[%s0 + $0x18] sm:$0xff]
    %v65 = vld [vmem:[%s0 + $0x20] sm:$0xff]
    %v66 = vld [vmem:[%s0 + $0x28] sm:$0xff]
    %v67 = vld [vmem:[%s0 + $0x30] sm:$0xff]
    %v68 = vld [vmem:[%s0 + $0x38] sm:$0xff]
    %v69 = vld [vmem:[#allocation7] sm:$0xff]
    %v70 = vld [vmem:[#allocation7 + $0x8] sm:$0xff]
    %v71 = vld [vmem:[#allocation7 + $0x10] sm:$0xff]
    %v72 = vld [vmem:[#allocation7 + $0x18] sm:$0xff]
    %v73 = vld [vmem:[#allocation7 + $0x20] sm:$0xff]
    %v74 = vld [vmem:[#allocation7 + $0x28] sm:$0xff]
    %v75 = vld [vmem:[#allocation7 + $0x30] sm:$0xff]
    %v76 = vld [vmem:[#allocation7 + $0x38] sm:$0xff]
    %v77 = vld [vmem:[#allocation7 + $0x40] sm:$0xff]
    %v78 = vld [vmem:[#allocation7 + $0x48] sm:$0xff]
    %v79 = vld [vmem:[#allocation7 + $0x50] sm:$0xff]
    %v80 = vld [vmem:[#allocation7 + $0x58] sm:$0xff]
    %v81 = vld [vmem:[#allocation7 + $0x60] sm:$0xff]
    %v82 = vld [vmem:[#allocation7 + $0x68] sm:$0xff]
    %v83 = vld [vmem:[#allocation7 + $0x70] sm:$0xff]
    %v84 = vld [vmem:[#allocation7 + $0x78] sm:$0xff]
    %v85 = vld [vmem:[#allocation7 + $0x80] sm:$0xff]
    %v86 = vld [vmem:[#allocation7 + $0x88] sm:$0xff]
    %v87 = vld [vmem:[#allocation7 + $0x90] sm:$0xff]
    %v88 = vld [vmem:[#allocation7 + $0x98] sm:$0xff]
    %v89 = vld [vmem:[#allocation7 + $0xa0] sm:$0xff]
    %v90 = vld [vmem:[#allocation7 + $0xa8] sm:$0xff]
    %v91 = vld [vmem:[#allocation7 + $0xb0] sm:$0xff]
    %v92 = vld [vmem:[#allocation7 + $0xb8] sm:$0xff]
    %v93 = vld [vmem:[#allocation7 + $0xc0] sm:$0xff]
    %v94 = vld [vmem:[#allocation7 + $0xc8] sm:$0xff]
    %v95 = vld [vmem:[#allocation7 + $0xd0] sm:$0xff]
    %v96 = vld [vmem:[#allocation7 + $0xd8] sm:$0xff]
    %v97 = vld [vmem:[#allocation7 + $0xe0] sm:$0xff]
    %v98 = vld [vmem:[#allocation7 + $0xe8] sm:$0xff]
    %v99 = vld [vmem:[#allocation7 + $0xf0] sm:$0xff]
    %v100 = vld [vmem:[#allocation7 + $0xf8] sm:$0xff]
    %v101 = vld [vmem:[#allocation7 + $0x100] sm:$0xff]
    %v102 = vld [vmem:[#allocation7 + $0x108] sm:$0xff]
    %v103 = vld [vmem:[#allocation7 + $0x110] sm:$0xff]
    %v104 = vld [vmem:[#allocation7 + $0x118] sm:$0xff]
    %v105 = vld [vmem:[#allocation7 + $0x120] sm:$0xff]
    %v106 = vld [vmem:[#allocation7 + $0x128] sm:$0xff]
    %v107 = vld [vmem:[#allocation7 + $0x130] sm:$0xff]
    %v108 = vld [vmem:[#allocation7 + $0x138] sm:$0xff]
    %v109 = vld [vmem:[#allocation7 + $0x140] sm:$0xff]
    %v110 = vld [vmem:[#allocation7 + $0x148] sm:$0xff]
    %v111 = vld [vmem:[#allocation7 + $0x150] sm:$0xff]
    %v112 = vld [vmem:[#allocation7 + $0x158] sm:$0xff]
    %v113 = vld [vmem:[#allocation7 + $0x160] sm:$0xff]
    %v114 = vld [vmem:[#allocation7 + $0x168] sm:$0xff]
    %v115 = vld [vmem:[#allocation7 + $0x170] sm:$0xff]
    %v116 = vld [vmem:[#allocation7 + $0x178] sm:$0xff]
    %v117 = vld [vmem:[#allocation7 + $0x180] sm:$0xff]
    %v118 = vld [vmem:[#allocation7 + $0x188] sm:$0xff]
    %v119 = vld [vmem:[#allocation7 + $0x190] sm:$0xff]
    %v120 = vld [vmem:[#allocation7 + $0x198] sm:$0xff]
    %v121 = vld [vmem:[#allocation7 + $0x1a0] sm:$0xff]
    %v122 = vld [vmem:[#allocation7 + $0x1a8] sm:$0xff]
    %v123 = vld [vmem:[#allocation7 + $0x1b0] sm:$0xff]
    %v124 = vld [vmem:[#allocation7 + $0x1b8] sm:$0xff]
    %v125 = vld [vmem:[#allocation7 + $0x1c0] sm:$0xff]
    %v126 = vld [vmem:[#allocation7 + $0x1c8] sm:$0xff]
    %v127 = vld [vmem:[#allocation7 + $0x1d0] sm:$0xff]
    %v128 = vld [vmem:[#allocation7 + $0x1d8] sm:$0xff]
    %v129 = vld [vmem:[#allocation7 + $0x1e0] sm:$0xff]
    %v130 = vld [vmem:[#allocation7 + $0x1e8] sm:$0xff]
    %v131 = vld [vmem:[#allocation7 + $0x1f0] sm:$0xff]
    %v132 = vld [vmem:[#allocation7 + $0x1f8] sm:$0xff]
    %v133 = vld [vmem:[#allocation7 + $0x200] sm:$0xff]
    %v134 = vld [vmem:[#allocation7 + $0x208] sm:$0xff]
    %v135 = vld [vmem:[#allocation7 + $0x210] sm:$0xff]
    %v136 = vld [vmem:[#allocation7 + $0x218] sm:$0xff]
    %v137 = vld [vmem:[#allocation7 + $0x220] sm:$0xff]
    %v138 = vld [vmem:[#allocation7 + $0x228] sm:$0xff]
    %v139 = vld [vmem:[#allocation7 + $0x230] sm:$0xff]
    %v140 = vld [vmem:[#allocation7 + $0x238] sm:$0xff]
    %v141 = vld [vmem:[#allocation7 + $0x240] sm:$0xff]
    %v142 = vld [vmem:[#allocation7 + $0x248] sm:$0xff]
    %v143 = vld [vmem:[#allocation7 + $0x250] sm:$0xff]
    %v144 = vld [vmem:[#allocation7 + $0x258] sm:$0xff]
    %v145 = vld [vmem:[#allocation7 + $0x260] sm:$0xff]
    %v146 = vld [vmem:[#allocation7 + $0x268] sm:$0xff]
    %v147 = vld [vmem:[#allocation7 + $0x270] sm:$0xff]
    %v148 = vld [vmem:[#allocation7 + $0x278] sm:$0xff]
    %v149 = vld [vmem:[#allocation7 + $0x280] sm:$0xff]
    %v150 = vld [vmem:[#allocation7 + $0x288] sm:$0xff]
    %v151 = vld [vmem:[#allocation7 + $0x290] sm:$0xff]
    %v152 = vld [vmem:[#allocation7 + $0x298] sm:$0xff]
    %v153 = vld [vmem:[#allocation7 + $0x2a0] sm:$0xff]
    %v154 = vld [vmem:[#allocation7 + $0x2a8] sm:$0xff]
    %v155 = vld [vmem:[#allocation7 + $0x2b0] sm:$0xff]
    %v156 = vld [vmem:[#allocation7 + $0x2b8] sm:$0xff]
    %v157 = vld [vmem:[#allocation7 + $0x2c0] sm:$0xff]
    %v158 = vld [vmem:[#allocation7 + $0x2c8] sm:$0xff]
    %v159 = vld [vmem:[#allocation7 + $0x2d0] sm:$0xff]
    %v160 = vld [vmem:[#allocation7 + $0x2d8] sm:$0xff]
    %v161 = vld [vmem:[#allocation7 + $0x2e0] sm:$0xff]
    %v162 = vld [vmem:[#allocation7 + $0x2e8] sm:$0xff]
    %v163 = vld [vmem:[#allocation7 + $0x2f0] sm:$0xff]
    %v164 = vld [vmem:[#allocation7 + $0x2f8] sm:$0xff]
    %v165 = vld [vmem:[#allocation7 + $0x300] sm:$0xff]
    %v166 = vld [vmem:[#allocation7 + $0x308] sm:$0xff]
    %v167 = vld [vmem:[#allocation7 + $0x310] sm:$0xff]
    %v168 = vld [vmem:[#allocation7 + $0x318] sm:$0xff]
    %v169 = vld [vmem:[#allocation7 + $0x320] sm:$0xff]
    %v170 = vld [vmem:[#allocation7 + $0x328] sm:$0xff]
    %v171 = vld [vmem:[#allocation7 + $0x330] sm:$0xff]
    %v172 = vld [vmem:[#allocation7 + $0x338] sm:$0xff]
    %v173 = vld [vmem:[#allocation7 + $0x340] sm:$0xff]
    %v174 = vld [vmem:[#allocation7 + $0x348] sm:$0xff]
    %v175 = vld [vmem:[#allocation7 + $0x350] sm:$0xff]
    %v176 = vld [vmem:[#allocation7 + $0x358] sm:$0xff]
    %v177 = vld [vmem:[#allocation7 + $0x360] sm:$0xff]
    %v178 = vld [vmem:[#allocation7 + $0x368] sm:$0xff]
    %v179 = vld [vmem:[#allocation7 + $0x370] sm:$0xff]
    %v180 = vld [vmem:[#allocation7 + $0x378] sm:$0xff]
    %v181 = vld [vmem:[#allocation7 + $0x380] sm:$0xff]
    %v182 = vld [vmem:[#allocation7 + $0x388] sm:$0xff]
    %v183 = vld [vmem:[#allocation7 + $0x390] sm:$0xff]
    %v184 = vld [vmem:[#allocation7 + $0x398] sm:$0xff]
    %v185 = vld [vmem:[#allocation7 + $0x3a0] sm:$0xff]
    %v186 = vld [vmem:[#allocation7 + $0x3a8] sm:$0xff]
    %v187 = vld [vmem:[#allocation7 + $0x3b0] sm:$0xff]
    %v188 = vld [vmem:[#allocation7 + $0x3b8] sm:$0xff]
    %v189 = vld [vmem:[#allocation7 + $0x3c0] sm:$0xff]
    %v190 = vld [vmem:[#allocation7 + $0x3c8] sm:$0xff]
    %v191 = vld [vmem:[#allocation7 + $0x3d0] sm:$0xff]
    %v192 = vld [vmem:[#allocation7 + $0x3d8] sm:$0xff]
    %v193 = vld [vmem:[#allocation7 + $0x3e0] sm:$0xff]
    %v194 = vld [vmem:[#allocation7 + $0x3e8] sm:$0xff]
    %v195 = vld [vmem:[#allocation7 + $0x3f0] sm:$0xff]
    %v196 = vld [vmem:[#allocation7 + $0x3f8] sm:$0xff]
    %v197 = vld [vmem:[%s3] sm:$0xff]
    %v199 = vlaneseq
    %v200 = vshrl.u32 %v199, 7
    %v201 = vsub.s32 0, %v200
    %v202 = vrot.slane %v197, %v201
    %v203 = vlaneseq
    %v204 = vshrl.u32 %v203, 7
    %v205 = vsub.s32 1, %v204
    %v206 = vrot.slane %v197, %v205
    %v207 = vlaneseq
    %v208 = vshrl.u32 %v207, 7
    %v209 = vsub.s32 2, %v208
    %v210 = vrot.slane %v197, %v209
    %v211 = vlaneseq
    %v212 = vshrl.u32 %v211, 7
    %v213 = vsub.s32 3, %v212
    %v214 = vrot.slane %v197, %v213
    %v215 = vlaneseq
    %v216 = vshrl.u32 %v215, 7
    %v217 = vsub.s32 4, %v216
    %v218 = vrot.slane %v197, %v217
    %v219 = vlaneseq
    %v220 = vshrl.u32 %v219, 7
    %v221 = vsub.s32 5, %v220
    %v222 = vrot.slane %v197, %v221
    %v223 = vlaneseq
    %v224 = vshrl.u32 %v223, 7
    %v225 = vsub.s32 6, %v224
    %v226 = vrot.slane %v197, %v225
    %v227 = vlaneseq
    %v228 = vshrl.u32 %v227, 7
    %v229 = vsub.s32 7, %v228
    %v230 = vrot.slane %v197, %v229
    %239 = vmatprep.subr.mxu0 %v70
    %240 = vmatpush1.msra.mxu0 %v69
    %241 = vmatprep.subr.mxu0 %v78
    %242 = vmatpush1.msra.mxu0 %v77
    %243 = vmatprep.subr.mxu0 %v86
    %244 = vmatpush1.msra.mxu0 %v85
    %245 = vmatprep.subr.mxu0 %v94
    %246 = vmatpush1.msra.mxu0 %v93
    %247 = vmatprep.subr.mxu0 %v102
    %248 = vmatpush1.msra.mxu0 %v101
    %249 = vmatprep.subr.mxu0 %v110
    %250 = vmatpush1.msra.mxu0 %v109
    %251 = vmatprep.subr.mxu0 %v118
    %252 = vmatpush1.msra.mxu0 %v117
    %253 = vmatprep.subr.mxu0 %v126
    %254 = vmatpush1.msra.mxu0 %v125
    %255 = vmatprep.subr.mxu0 %v134
    %256 = vmatpush1.msra.mxu0 %v133
    %257 = vmatprep.subr.mxu0 %v142
    %258 = vmatpush1.msra.mxu0 %v141
    %259 = vmatprep.subr.mxu0 %v150
    %260 = vmatpush1.msra.mxu0 %v149
    %261 = vmatprep.subr.mxu0 %v158
    %262 = vmatpush1.msra.mxu0 %v157
    %263 = vmatprep.subr.mxu0 %v166
    %264 = vmatpush1.msra.mxu0 %v165
    %265 = vmatprep.subr.mxu0 %v174
    %266 = vmatpush1.msra.mxu0 %v173
    %267 = vmatprep.subr.mxu0 %v182
    %268 = vmatpush1.msra.mxu0 %v181
    %269 = vmatprep.subr.mxu0 %v190
    %270 = vmatpush1.msra.mxu0 %v189
    %271 = vmatprep.subr.mxu0 0.0
    %272 = vmatpush1.msra.mxu0 0.0
    %273 = vmatprep.subr.mxu0 0.0
    %274 = vmatpush1.msra.mxu0 0.0
    %275 = vmatprep.subr.mxu0 0.0
    %276 = vmatpush1.msra.mxu0 0.0
    %277 = vmatprep.subr.mxu0 0.0
    %278 = vmatpush1.msra.mxu0 0.0
    %279 = vmatprep.subr.mxu0 0.0
    %280 = vmatpush1.msra.mxu0 0.0
    %281 = vmatprep.subr.mxu0 0.0
    %282 = vmatpush1.msra.mxu0 0.0
    %283 = vmatprep.subr.mxu0 0.0
    %284 = vmatpush1.msra.mxu0 0.0
    %285 = vmatprep.subr.mxu0 0.0
    %286 = vmatpush1.msra.mxu0 0.0
    %287 = vmatprep.subr.mxu0 0.0
    %288 = vmatpush1.msra.mxu0 0.0
    %289 = vmatprep.subr.mxu0 0.0
    %290 = vmatpush1.msra.mxu0 0.0
    %291 = vmatprep.subr.mxu0 0.0
    %292 = vmatpush1.msra.mxu0 0.0
    %293 = vmatprep.subr.mxu0 0.0
    %294 = vmatpush1.msra.mxu0 0.0
    %295 = vmatprep.subr.mxu0 0.0
    %296 = vmatpush1.msra.mxu0 0.0
    %297 = vmatprep.subr.mxu0 0.0
    %298 = vmatpush1.msra.mxu0 0.0
    %299 = vmatprep.subr.mxu0 0.0
    %300 = vmatpush1.msra.mxu0 0.0
    %301 = vmatprep.subr.mxu0 0.0
    %302 = vmatpush1.msra.mxu0 0.0
    %303 = vmatprep.mubr.f32.mxu0 0.0
    %304 = vmatmul.mubr.f32.gmra.mrb[0].mxu0 %v61
    %v305 = vpop.f32.mrb[0].mxu0
    %v306 = vadd.f32 %v202, %v305
    %v307 = vpop.f32.mrb[0].mxu0
    %v308 = vadd.f32 %v206, %v307
    %309 = vmatprep.mubr.f32.mxu0 0.0
    %310 = vmatmul.mubr.f32.gmra.mrb[0].mxu0 %v62
    %v311 = vpop.f32.mrb[0].mxu0
    %v312 = vadd.f32 %v202, %v311
    %v313 = vpop.f32.mrb[0].mxu0
    %v314 = vadd.f32 %v206, %v313
    %315 = vmatprep.mubr.f32.mxu0 0.0
    %316 = vmatmul.mubr.f32.gmra.mrb[0].mxu0 %v63
    %v317 = vpop.f32.mrb[0].mxu0
    %v318 = vadd.f32 %v202, %v317
    %v319 = vpop.f32.mrb[0].mxu0
    %v320 = vadd.f32 %v206, %v319
    %321 = vmatprep.mubr.f32.mxu0 0.0
    %322 = vmatmul.mubr.f32.gmra.mrb[0].mxu0 %v64
    %v323 = vpop.f32.mrb[0].mxu0
    %v324 = vadd.f32 %v202, %v323
    %v325 = vpop.f32.mrb[0].mxu0
    %v326 = vadd.f32 %v206, %v325
    %327 = vmatprep.mubr.f32.mxu0 0.0
    %328 = vmatmul.mubr.f32.gmra.mrb[0].mxu0 %v65
    %v329 = vpop.f32.mrb[0].mxu0
    %v330 = vadd.f32 %v202, %v329
    %v331 = vpop.f32.mrb[0].mxu0
    %v332 = vadd.f32 %v206, %v331
    %333 = vmatprep.mubr.f32.mxu0 0.0
    %334 = vmatmul.mubr.f32.gmra.mrb[0].mxu0 %v66
    %v335 = vpop.f32.mrb[0].mxu0
    %v336 = vadd.f32 %v202, %v335
    %v337 = vpop.f32.mrb[0].mxu0
    %v338 = vadd.f32 %v206, %v337
    %339 = vmatprep.mubr.f32.mxu0 0.0
    %340 = vmatmul.mubr.f32.gmra.mrb[0].mxu0 %v67
    %v341 = vpop.f32.mrb[0].mxu0
    %v342 = vadd.f32 %v202, %v341
    %v343 = vpop.f32.mrb[0].mxu0
    %v344 = vadd.f32 %v206, %v343
    %345 = vmatprep.mubr.f32.mxu0 0.0
    %346 = vmatmul.mubr.f32.gmra.mrb[0].mxu0 %v68
    %v347 = vpop.f32.mrb[0].mxu0
    %v348 = vadd.f32 %v202, %v347
    %v349 = vpop.f32.mrb[0].mxu0
    %v350 = vadd.f32 %v206, %v349
    %351 = vdwg.mxu0
    %352 = vmatprep.subr.mxu0 %v72
    %353 = vmatpush1.msra.mxu0 %v71
    %354 = vmatprep.subr.mxu0 %v80
    %355 = vmatpush1.msra.mxu0 %v79
    %356 = vmatprep.subr.mxu0 %v88
    %357 = vmatpush1.msra.mxu0 %v87
    %358 = vmatprep.subr.mxu0 %v96
    %359 = vmatpush1.msra.mxu0 %v95
    %360 = vmatprep.subr.mxu0 %v104
    %361 = vmatpush1.msra.mxu0 %v103
    %362 = vmatprep.subr.mxu0 %v112
    %363 = vmatpush1.msra.mxu0 %v111
    %364 = vmatprep.subr.mxu0 %v120
    %365 = vmatpush1.msra.mxu0 %v119
    %366 = vmatprep.subr.mxu0 %v128
    %367 = vmatpush1.msra.mxu0 %v127
    %368 = vmatprep.subr.mxu0 %v136
    %369 = vmatpush1.msra.mxu0 %v135
    %370 = vmatprep.subr.mxu0 %v144
    %371 = vmatpush1.msra.mxu0 %v143
    %372 = vmatprep.subr.mxu0 %v152
    %373 = vmatpush1.msra.mxu0 %v151
    %374 = vmatprep.subr.mxu0 %v160
    %375 = vmatpush1.msra.mxu0 %v159
    %376 = vmatprep.subr.mxu0 %v168
    %377 = vmatpush1.msra.mxu0 %v167
    %378 = vmatprep.subr.mxu0 %v176
    %379 = vmatpush1.msra.mxu0 %v175
    %380 = vmatprep.subr.mxu0 %v184
    %381 = vmatpush1.msra.mxu0 %v183
    %382 = vmatprep.subr.mxu0 %v192
    %383 = vmatpush1.msra.mxu0 %v191
    %384 = vmatprep.subr.mxu0 0.0
    %385 = vmatpush1.msra.mxu0 0.0
    %386 = vmatprep.subr.mxu0 0.0
    %387 = vmatpush1.msra.mxu0 0.0
    %388 = vmatprep.subr.mxu0 0.0
    %389 = vmatpush1.msra.mxu0 0.0
    %390 = vmatprep.subr.mxu0 0.0
    %391 = vmatpush1.msra.mxu0 0.0
    %392 = vmatprep.subr.mxu0 0.0
    %393 = vmatpush1.msra.mxu0 0.0
    %394 = vmatprep.subr.mxu0 0.0
    %395 = vmatpush1.msra.mxu0 0.0
    %396 = vmatprep.subr.mxu0 0.0
    %397 = vmatpush1.msra.mxu0 0.0
    %398 = vmatprep.subr.mxu0 0.0
    %399 = vmatpush1.msra.mxu0 0.0
    %400 = vmatprep.subr.mxu0 0.0
    %401 = vmatpush1.msra.mxu0 0.0
    %402 = vmatprep.subr.mxu0 0.0
    %403 = vmatpush1.msra.mxu0 0.0
    %404 = vmatprep.subr.mxu0 0.0
    %405 = vmatpush1.msra.mxu0 0.0
    %406 = vmatprep.subr.mxu0 0.0
    %407 = vmatpush1.msra.mxu0 0.0
    %408 = vmatprep.subr.mxu0 0.0
    %409 = vmatpush1.msra.mxu0 0.0
    %410 = vmatprep.subr.mxu0 0.0
    %411 = vmatpush1.msra.mxu0 0.0
    %412 = vmatprep.subr.mxu0 0.0
    %413 = vmatpush1.msra.mxu0 0.0
    %414 = vmatprep.subr.mxu0 0.0
    %415 = vmatpush1.msra.mxu0 0.0
    %416 = vmatprep.mubr.f32.mxu0 0.0
    %417 = vmatmul.mubr.f32.gmra.mrb[0].mxu0 %v61
    %v418 = vpop.f32.mrb[0].mxu0
    %v419 = vadd.f32 %v210, %v418
    %v420 = vpop.f32.mrb[0].mxu0
    %v421 = vadd.f32 %v214, %v420
    %422 = vmatprep.mubr.f32.mxu0 0.0
    %423 = vmatmul.mubr.f32.gmra.mrb[0].mxu0 %v62
    %v424 = vpop.f32.mrb[0].mxu0
    %v425 = vadd.f32 %v210, %v424
    %v426 = vpop.f32.mrb[0].mxu0
    %v427 = vadd.f32 %v214, %v426
    %428 = vmatprep.mubr.f32.mxu0 0.0
    %429 = vmatmul.mubr.f32.gmra.mrb[0].mxu0 %v63
    %v430 = vpop.f32.mrb[0].mxu0
    %v431 = vadd.f32 %v210, %v430
    %v432 = vpop.f32.mrb[0].mxu0
    %v433 = vadd.f32 %v214, %v432
    %434 = vmatprep.mubr.f32.mxu0 0.0
    %435 = vmatmul.mubr.f32.gmra.mrb[0].mxu0 %v64
    %v436 = vpop.f32.mrb[0].mxu0
    %v437 = vadd.f32 %v210, %v436
    %v438 = vpop.f32.mrb[0].mxu0
    %v439 = vadd.f32 %v214, %v438
    %440 = vmatprep.mubr.f32.mxu0 0.0
    %441 = vmatmul.mubr.f32.gmra.mrb[0].mxu0 %v65
    %v442 = vpop.f32.mrb[0].mxu0
    %v443 = vadd.f32 %v210, %v442
    %v444 = vpop.f32.mrb[0].mxu0
    %v445 = vadd.f32 %v214, %v444
    %446 = vmatprep.mubr.f32.mxu0 0.0
    %447 = vmatmul.mubr.f32.gmra.mrb[0].mxu0 %v66
    %v448 = vpop.f32.mrb[0].mxu0
    %v449 = vadd.f32 %v210, %v448
    %v450 = vpop.f32.mrb[0].mxu0
    %v451 = vadd.f32 %v214, %v450
    %452 = vmatprep.mubr.f32.mxu0 0.0
    %453 = vmatmul.mubr.f32.gmra.mrb[0].mxu0 %v67
    %v454 = vpop.f32.mrb[0].mxu0
    %v455 = vadd.f32 %v210, %v454
    %v456 = vpop.f32.mrb[0].mxu0
    %v457 = vadd.f32 %v214, %v456
    %458 = vmatprep.mubr.f32.mxu0 0.0
    %459 = vmatmul.mubr.f32.gmra.mrb[0].mxu0 %v68
    %v460 = vpop.f32.mrb[0].mxu0
    %v461 = vadd.f32 %v210, %v460
    %v462 = vpop.f32.mrb[0].mxu0
    %v463 = vadd.f32 %v214, %v462
    %464 = vdwg.mxu0
    %465 = vmatprep.subr.mxu0 %v74
    %466 = vmatpush1.msra.mxu0 %v73
    %467 = vmatprep.subr.mxu0 %v82
    %468 = vmatpush1.msra.mxu0 %v81
    %469 = vmatprep.subr.mxu0 %v90
    %470 = vmatpush1.msra.mxu0 %v89
    %471 = vmatprep.subr.mxu0 %v98
    %472 = vmatpush1.msra.mxu0 %v97
    %473 = vmatprep.subr.mxu0 %v106
    %474 = vmatpush1.msra.mxu0 %v105
    %475 = vmatprep.subr.mxu0 %v114
    %476 = vmatpush1.msra.mxu0 %v113
    %477 = vmatprep.subr.mxu0 %v122
    %478 = vmatpush1.msra.mxu0 %v121
    %479 = vmatprep.subr.mxu0 %v130
    %480 = vmatpush1.msra.mxu0 %v129
    %481 = vmatprep.subr.mxu0 %v138
    %482 = vmatpush1.msra.mxu0 %v137
    %483 = vmatprep.subr.mxu0 %v146
    %484 = vmatpush1.msra.mxu0 %v145
    %485 = vmatprep.subr.mxu0 %v154
    %486 = vmatpush1.msra.mxu0 %v153
    %487 = vmatprep.subr.mxu0 %v162
    %488 = vmatpush1.msra.mxu0 %v161
    %489 = vmatprep.subr.mxu0 %v170
    %490 = vmatpush1.msra.mxu0 %v169
    %491 = vmatprep.subr.mxu0 %v178
    %492 = vmatpush1.msra.mxu0 %v177
    %493 = vmatprep.subr.mxu0 %v186
    %494 = vmatpush1.msra.mxu0 %v185
    %495 = vmatprep.subr.mxu0 %v194
    %496 = vmatpush1.msra.mxu0 %v193
    %497 = vmatprep.subr.mxu0 0.0
    %498 = vmatpush1.msra.mxu0 0.0
    %499 = vmatprep.subr.mxu0 0.0
    %500 = vmatpush1.msra.mxu0 0.0
    %501 = vmatprep.subr.mxu0 0.0
    %502 = vmatpush1.msra.mxu0 0.0
    %503 = vmatprep.subr.mxu0 0.0
    %504 = vmatpush1.msra.mxu0 0.0
    %505 = vmatprep.subr.mxu0 0.0
    %506 = vmatpush1.msra.mxu0 0.0
    %507 = vmatprep.subr.mxu0 0.0
    %508 = vmatpush1.msra.mxu0 0.0
    %509 = vmatprep.subr.mxu0 0.0
    %510 = vmatpush1.msra.mxu0 0.0
    %511 = vmatprep.subr.mxu0 0.0
    %512 = vmatpush1.msra.mxu0 0.0
    %513 = vmatprep.subr.mxu0 0.0
    %514 = vmatpush1.msra.mxu0 0.0
    %515 = vmatprep.subr.mxu0 0.0
    %516 = vmatpush1.msra.mxu0 0.0
    %517 = vmatprep.subr.mxu0 0.0
    %518 = vmatpush1.msra.mxu0 0.0
    %519 = vmatprep.subr.mxu0 0.0
    %520 = vmatpush1.msra.mxu0 0.0
    %521 = vmatprep.subr.mxu0 0.0
    %522 = vmatpush1.msra.mxu0 0.0
    %523 = vmatprep.subr.mxu0 0.0
    %524 = vmatpush1.msra.mxu0 0.0
    %525 = vmatprep.subr.mxu0 0.0
    %526 = vmatpush1.msra.mxu0 0.0
    %527 = vmatprep.subr.mxu0 0.0
    %528 = vmatpush1.msra.mxu0 0.0
    %529 = vmatprep.mubr.f32.mxu0 0.0
    %530 = vmatmul.mubr.f32.gmra.mrb[0].mxu0 %v61
    %v531 = vpop.f32.mrb[0].mxu0
    %v532 = vadd.f32 %v218, %v531
    %v533 = vpop.f32.mrb[0].mxu0
    %v534 = vadd.f32 %v222, %v533
    %535 = vmatprep.mubr.f32.mxu0 0.0
    %536 = vmatmul.mubr.f32.gmra.mrb[0].mxu0 %v62
    %v537 = vpop.f32.mrb[0].mxu0
    %v538 = vadd.f32 %v218, %v537
    %v539 = vpop.f32.mrb[0].mxu0
    %v540 = vadd.f32 %v222, %v539
    %541 = vmatprep.mubr.f32.mxu0 0.0
    %542 = vmatmul.mubr.f32.gmra.mrb[0].mxu0 %v63
    %v543 = vpop.f32.mrb[0].mxu0
    %v544 = vadd.f32 %v218, %v543
    %v545 = vpop.f32.mrb[0].mxu0
    %v546 = vadd.f32 %v222, %v545
    %547 = vmatprep.mubr.f32.mxu0 0.0
    %548 = vmatmul.mubr.f32.gmra.mrb[0].mxu0 %v64
    %v549 = vpop.f32.mrb[0].mxu0
    %v550 = vadd.f32 %v218, %v549
    %v551 = vpop.f32.mrb[0].mxu0
    %v552 = vadd.f32 %v222, %v551
    %553 = vmatprep.mubr.f32.mxu0 0.0
    %554 = vmatmul.mubr.f32.gmra.mrb[0].mxu0 %v65
    %v555 = vpop.f32.mrb[0].mxu0
    %v556 = vadd.f32 %v218, %v555
    %v557 = vpop.f32.mrb[0].mxu0
    %v558 = vadd.f32 %v222, %v557
    %559 = vmatprep.mubr.f32.mxu0 0.0
    %560 = vmatmul.mubr.f32.gmra.mrb[0].mxu0 %v66
    %v561 = vpop.f32.mrb[0].mxu0
    %v562 = vadd.f32 %v218, %v561
    %v563 = vpop.f32.mrb[0].mxu0
    %v564 = vadd.f32 %v222, %v563
    %565 = vmatprep.mubr.f32.mxu0 0.0
    %566 = vmatmul.mubr.f32.gmra.mrb[0].mxu0 %v67
    %v567 = vpop.f32.mrb[0].mxu0
    %v568 = vadd.f32 %v218, %v567
    %v569 = vpop.f32.mrb[0].mxu0
    %v570 = vadd.f32 %v222, %v569
    %571 = vmatprep.mubr.f32.mxu0 0.0
    %572 = vmatmul.mubr.f32.gmra.mrb[0].mxu0 %v68
    %v573 = vpop.f32.mrb[0].mxu0
    %v574 = vadd.f32 %v218, %v573
    %v575 = vpop.f32.mrb[0].mxu0
    %v576 = vadd.f32 %v222, %v575
    %577 = vdwg.mxu0
    %578 = vmatprep.subr.mxu0 %v76
    %579 = vmatpush1.msra.mxu0 %v75
    %580 = vmatprep.subr.mxu0 %v84
    %581 = vmatpush1.msra.mxu0 %v83
    %582 = vmatprep.subr.mxu0 %v92
    %583 = vmatpush1.msra.mxu0 %v91
    %584 = vmatprep.subr.mxu0 %v100
    %585 = vmatpush1.msra.mxu0 %v99
    %586 = vmatprep.subr.mxu0 %v108
    %587 = vmatpush1.msra.mxu0 %v107
    %588 = vmatprep.subr.mxu0 %v116
    %589 = vmatpush1.msra.mxu0 %v115
    %590 = vmatprep.subr.mxu0 %v124
    %591 = vmatpush1.msra.mxu0 %v123
    %592 = vmatprep.subr.mxu0 %v132
    %593 = vmatpush1.msra.mxu0 %v131
    %594 = vmatprep.subr.mxu0 %v140
    %595 = vmatpush1.msra.mxu0 %v139
    %596 = vmatprep.subr.mxu0 %v148
    %597 = vmatpush1.msra.mxu0 %v147
    %598 = vmatprep.subr.mxu0 %v156
    %599 = vmatpush1.msra.mxu0 %v155
    %600 = vmatprep.subr.mxu0 %v164
    %601 = vmatpush1.msra.mxu0 %v163
    %602 = vmatprep.subr.mxu0 %v172
    %603 = vmatpush1.msra.mxu0 %v171
    %604 = vmatprep.subr.mxu0 %v180
    %605 = vmatpush1.msra.mxu0 %v179
    %606 = vmatprep.subr.mxu0 %v188
    %607 = vmatpush1.msra.mxu0 %v187
    %608 = vmatprep.subr.mxu0 %v196
    %609 = vmatpush1.msra.mxu0 %v195
    %610 = vmatprep.subr.mxu0 0.0
    %611 = vmatpush1.msra.mxu0 0.0
    %612 = vmatprep.subr.mxu0 0.0
    %613 = vmatpush1.msra.mxu0 0.0
    %614 = vmatprep.subr.mxu0 0.0
    %615 = vmatpush1.msra.mxu0 0.0
    %616 = vmatprep.subr.mxu0 0.0
    %617 = vmatpush1.msra.mxu0 0.0
    %618 = vmatprep.subr.mxu0 0.0
    %619 = vmatpush1.msra.mxu0 0.0
    %620 = vmatprep.subr.mxu0 0.0
    %621 = vmatpush1.msra.mxu0 0.0
    %622 = vmatprep.subr.mxu0 0.0
    %623 = vmatpush1.msra.mxu0 0.0
    %624 = vmatprep.subr.mxu0 0.0
    %625 = vmatpush1.msra.mxu0 0.0
    %626 = vmatprep.subr.mxu0 0.0
    %627 = vmatpush1.msra.mxu0 0.0
    %628 = vmatprep.subr.mxu0 0.0
    %629 = vmatpush1.msra.mxu0 0.0
    %630 = vmatprep.subr.mxu0 0.0
    %631 = vmatpush1.msra.mxu0 0.0
    %632 = vmatprep.subr.mxu0 0.0
    %633 = vmatpush1.msra.mxu0 0.0
    %634 = vmatprep.subr.mxu0 0.0
    %635 = vmatpush1.msra.mxu0 0.0
    %636 = vmatprep.subr.mxu0 0.0
    %637 = vmatpush1.msra.mxu0 0.0
    %638 = vmatprep.subr.mxu0 0.0
    %639 = vmatpush1.msra.mxu0 0.0
    %640 = vmatprep.subr.mxu0 0.0
    %641 = vmatpush1.msra.mxu0 0.0
    %642 = vmatprep.mubr.f32.mxu0 0.0
    %643 = vmatmul.mubr.f32.gmra.mrb[0].mxu0 %v61
    %v644 = vpop.f32.mrb[0].mxu0
    %v645 = vadd.f32 %v226, %v644
    %v646 = vpop.f32.mrb[0].mxu0
    %v647 = vadd.f32 %v230, %v646
    %648 = vmatprep.mubr.f32.mxu0 0.0
    %649 = vmatmul.mubr.f32.gmra.mrb[0].mxu0 %v62
    %v650 = vpop.f32.mrb[0].mxu0
    %v651 = vadd.f32 %v226, %v650
    %v652 = vpop.f32.mrb[0].mxu0
    %v653 = vadd.f32 %v230, %v652
    %654 = vmatprep.mubr.f32.mxu0 0.0
    %655 = vmatmul.mubr.f32.gmra.mrb[0].mxu0 %v63
    %v656 = vpop.f32.mrb[0].mxu0
    %v657 = vadd.f32 %v226, %v656
    %v658 = vpop.f32.mrb[0].mxu0
    %v659 = vadd.f32 %v230, %v658
    %660 = vmatprep.mubr.f32.mxu0 0.0
    %661 = vmatmul.mubr.f32.gmra.mrb[0].mxu0 %v64
    %v662 = vpop.f32.mrb[0].mxu0
    %v663 = vadd.f32 %v226, %v662
    %v664 = vpop.f32.mrb[0].mxu0
    %v665 = vadd.f32 %v230, %v664
    %666 = vmatprep.mubr.f32.mxu0 0.0
    %667 = vmatmul.mubr.f32.gmra.mrb[0].mxu0 %v65
    %v668 = vpop.f32.mrb[0].mxu0
    %v669 = vadd.f32 %v226, %v668
    %v670 = vpop.f32.mrb[0].mxu0
    %v671 = vadd.f32 %v230, %v670
    %672 = vmatprep.mubr.f32.mxu0 0.0
    %673 = vmatmul.mubr.f32.gmra.mrb[0].mxu0 %v66
    %v674 = vpop.f32.mrb[0].mxu0
    %v675 = vadd.f32 %v226, %v674
    %v676 = vpop.f32.mrb[0].mxu0
    %v677 = vadd.f32 %v230, %v676
    %678 = vmatprep.mubr.f32.mxu0 0.0
    %679 = vmatmul.mubr.f32.gmra.mrb[0].mxu0 %v67
    %v680 = vpop.f32.mrb[0].mxu0
    %v681 = vadd.f32 %v226, %v680
    %v682 = vpop.f32.mrb[0].mxu0
    %v683 = vadd.f32 %v230, %v682
    %684 = vmatprep.mubr.f32.mxu0 0.0
    %685 = vmatmul.mubr.f32.gmra.mrb[0].mxu0 %v68
    %v686 = vpop.f32.mrb[0].mxu0
    %v687 = vadd.f32 %v226, %v686
    %v688 = vpop.f32.mrb[0].mxu0
    %v689 = vadd.f32 %v230, %v688
    %690 = vdwg.mxu0
    %691 = vst [vmem:[#allocation2] sm:$0xff] %v306
    %692 = vst [vmem:[#allocation2 + $0x8] sm:$0xff] %v308
    %693 = vst [vmem:[#allocation2 + $0x10] sm:$0xff] %v419
    %694 = vst [vmem:[#allocation2 + $0x18] sm:$0xff] %v421
    %695 = vst [vmem:[#allocation2 + $0x20] sm:$0xff] %v312
    %696 = vst [vmem:[#allocation2 + $0x28] sm:$0xff] %v314
    %697 = vst [vmem:[#allocation2 + $0x30] sm:$0xff] %v425
    %698 = vst [vmem:[#allocation2 + $0x38] sm:$0xff] %v427
    %699 = vst [vmem:[#allocation2 + $0x40] sm:$0xff] %v318
    %700 = vst [vmem:[#allocation2 + $0x48] sm:$0xff] %v320
    %701 = vst [vmem:[#allocation2 + $0x50] sm:$0xff] %v431
    %702 = vst [vmem:[#allocation2 + $0x58] sm:$0xff] %v433
    %703 = vst [vmem:[#allocation2 + $0x60] sm:$0xff] %v324
    %704 = vst [vmem:[#allocation2 + $0x68] sm:$0xff] %v326
    %705 = vst [vmem:[#allocation2 + $0x70] sm:$0xff] %v437
    %706 = vst [vmem:[#allocation2 + $0x78] sm:$0xff] %v439
    %707 = vst [vmem:[#allocation2 + $0x80] sm:$0xff] %v330
    %708 = vst [vmem:[#allocation2 + $0x88] sm:$0xff] %v332
    %709 = vst [vmem:[#allocation2 + $0x90] sm:$0xff] %v443
    %710 = vst [vmem:[#allocation2 + $0x98] sm:$0xff] %v445
    %711 = vst [vmem:[#allocation2 + $0xa0] sm:$0xff] %v336
    %712 = vst [vmem:[#allocation2 + $0xa8] sm:$0xff] %v338
    %713 = vst [vmem:[#allocation2 + $0xb0] sm:$0xff] %v449
    %714 = vst [vmem:[#allocation2 + $0xb8] sm:$0xff] %v451
    %715 = vst [vmem:[#allocation2 + $0xc0] sm:$0xff] %v342
    %716 = vst [vmem:[#allocation2 + $0xc8] sm:$0xff] %v344
    %717 = vst [vmem:[#allocation2 + $0xd0] sm:$0xff] %v455
    %718 = vst [vmem:[#allocation2 + $0xd8] sm:$0xff] %v457
    %719 = vst [vmem:[#allocation2 + $0xe0] sm:$0xff] %v348
    %720 = vst [vmem:[#allocation2 + $0xe8] sm:$0xff] %v350
    %721 = vst [vmem:[#allocation2 + $0xf0] sm:$0xff] %v461
    %722 = vst [vmem:[#allocation2 + $0xf8] sm:$0xff] %v463
    %723 = vst [vmem:[#allocation3] sm:$0xff] %v532
    %724 = vst [vmem:[#allocation3 + $0x8] sm:$0xff] %v534
    %725 = vst [vmem:[#allocation3 + $0x10] sm:$0xff] %v645
    %726 = vst [vmem:[#allocation3 + $0x18] sm:$0xff] %v647
    %727 = vst [vmem:[#allocation3 + $0x20] sm:$0xff] %v538
    %728 = vst [vmem:[#allocation3 + $0x28] sm:$0xff] %v540
    %729 = vst [vmem:[#allocation3 + $0x30] sm:$0xff] %v651
    %730 = vst [vmem:[#allocation3 + $0x38] sm:$0xff] %v653
    %731 = vst [vmem:[#allocation3 + $0x40] sm:$0xff] %v544
    %732 = vst [vmem:[#allocation3 + $0x48] sm:$0xff] %v546
    %733 = vst [vmem:[#allocation3 + $0x50] sm:$0xff] %v657
    %734 = vst [vmem:[#allocation3 + $0x58] sm:$0xff] %v659
    %735 = vst [vmem:[#allocation3 + $0x60] sm:$0xff] %v550
    %736 = vst [vmem:[#allocation3 + $0x68] sm:$0xff] %v552
    %737 = vst [vmem:[#allocation3 + $0x70] sm:$0xff] %v663
    %738 = vst [vmem:[#allocation3 + $0x78] sm:$0xff] %v665
    %739 = vst [vmem:[#allocation3 + $0x80] sm:$0xff] %v556
    %740 = vst [vmem:[#allocation3 + $0x88] sm:$0xff] %v558
    %741 = vst [vmem:[#allocation3 + $0x90] sm:$0xff] %v669
    %742 = vst [vmem:[#allocation3 + $0x98] sm:$0xff] %v671
    %743 = vst [vmem:[#allocation3 + $0xa0] sm:$0xff] %v562
    %744 = vst [vmem:[#allocation3 + $0xa8] sm:$0xff] %v564
    %745 = vst [vmem:[#allocation3 + $0xb0] sm:$0xff] %v675
    %746 = vst [vmem:[#allocation3 + $0xb8] sm:$0xff] %v677
    %747 = vst [vmem:[#allocation3 + $0xc0] sm:$0xff] %v568
    %748 = vst [vmem:[#allocation3 + $0xc8] sm:$0xff] %v570
    %749 = vst [vmem:[#allocation3 + $0xd0] sm:$0xff] %v681
    %750 = vst [vmem:[#allocation3 + $0xd8] sm:$0xff] %v683
    %751 = vst [vmem:[#allocation3 + $0xe0] sm:$0xff] %v574
    %752 = vst [vmem:[#allocation3 + $0xe8] sm:$0xff] %v576
    %753 = vst [vmem:[#allocation3 + $0xf0] sm:$0xff] %v687
    %754 = vst [vmem:[#allocation3 + $0xf8] sm:$0xff] %v689
    %v755 = vld [vmem:[#allocation2] sm:$0xff]
    %v756 = vld [vmem:[#allocation2 + $0x8] sm:$0xff]
    %v757 = vld [vmem:[#allocation2 + $0x10] sm:$0xff]
    %v758 = vld [vmem:[#allocation2 + $0x18] sm:$0xff]
    %v759 = vld [vmem:[#allocation9] sm:$0xff]
    %v760 = vld [vmem:[#allocation9 + $0x8] sm:$0xff]
    %v761 = vld [vmem:[#allocation9 + $0x10] sm:$0xff]
    %v762 = vld [vmem:[#allocation9 + $0x18] sm:$0xff]
    %v763 = vld [vmem:[#allocation9 + $0x20] sm:$0xff]
    %v764 = vld [vmem:[#allocation9 + $0x28] sm:$0xff]
    %v765 = vld [vmem:[#allocation9 + $0x30] sm:$0xff]
    %v766 = vld [vmem:[#allocation9 + $0x38] sm:$0xff]
    %v767 = vld [vmem:[#allocation9 + $0x40] sm:$0xff]
    %v768 = vld [vmem:[#allocation9 + $0x48] sm:$0xff]
    %v769 = vld [vmem:[#allocation9 + $0x50] sm:$0xff]
    %v770 = vld [vmem:[#allocation9 + $0x58] sm:$0xff]
    %v771 = vld [vmem:[#allocation9 + $0x60] sm:$0xff]
    %v772 = vld [vmem:[#allocation9 + $0x68] sm:$0xff]
    %v773 = vld [vmem:[#allocation9 + $0x70] sm:$0xff]
    %v774 = vld [vmem:[#allocation9 + $0x78] sm:$0xff]
    %v775 = vld [vmem:[#allocation9 + $0x80] sm:$0xff]
    %v776 = vld [vmem:[#allocation9 + $0x88] sm:$0xff]
    %v777 = vld [vmem:[#allocation9 + $0x90] sm:$0xff]
    %v778 = vld [vmem:[#allocation9 + $0x98] sm:$0xff]
    %v779 = vld [vmem:[#allocation9 + $0xa0] sm:$0xff]
    %v780 = vld [vmem:[#allocation9 + $0xa8] sm:$0xff]
    %v781 = vld [vmem:[#allocation9 + $0xb0] sm:$0xff]
    %v782 = vld [vmem:[#allocation9 + $0xb8] sm:$0xff]
    %v783 = vld [vmem:[#allocation9 + $0xc0] sm:$0xff]
    %v784 = vld [vmem:[#allocation9 + $0xc8] sm:$0xff]
    %v785 = vld [vmem:[#allocation9 + $0xd0] sm:$0xff]
    %v786 = vld [vmem:[#allocation9 + $0xd8] sm:$0xff]
    %v787 = vld [vmem:[#allocation9 + $0xe0] sm:$0xff]
    %v788 = vld [vmem:[#allocation9 + $0xe8] sm:$0xff]
    %v789 = vld [vmem:[#allocation9 + $0xf0] sm:$0xff]
    %v790 = vld [vmem:[#allocation9 + $0xf8] sm:$0xff]
    %v791 = vld [vmem:[#allocation9 + $0x100] sm:$0xff]
    %v792 = vld [vmem:[#allocation9 + $0x108] sm:$0xff]
    %v793 = vld [vmem:[#allocation9 + $0x110] sm:$0xff]
    %v794 = vld [vmem:[#allocation9 + $0x118] sm:$0xff]
    %v795 = vld [vmem:[#allocation9 + $0x120] sm:$0xff]
    %v796 = vld [vmem:[#allocation9 + $0x128] sm:$0xff]
    %v797 = vld [vmem:[#allocation9 + $0x130] sm:$0xff]
    %v798 = vld [vmem:[#allocation9 + $0x138] sm:$0xff]
    %v799 = vld [vmem:[#allocation9 + $0x140] sm:$0xff]
    %v800 = vld [vmem:[#allocation9 + $0x148] sm:$0xff]
    %v801 = vld [vmem:[#allocation9 + $0x150] sm:$0xff]
    %v802 = vld [vmem:[#allocation9 + $0x158] sm:$0xff]
    %v803 = vld [vmem:[#allocation9 + $0x160] sm:$0xff]
    %v804 = vld [vmem:[#allocation9 + $0x168] sm:$0xff]
    %v805 = vld [vmem:[#allocation9 + $0x170] sm:$0xff]
    %v806 = vld [vmem:[#allocation9 + $0x178] sm:$0xff]
    %v807 = vld [vmem:[#allocation9 + $0x180] sm:$0xff]
    %v808 = vld [vmem:[#allocation9 + $0x188] sm:$0xff]
    %v809 = vld [vmem:[#allocation9 + $0x190] sm:$0xff]
    %v810 = vld [vmem:[#allocation9 + $0x198] sm:$0xff]
    %v811 = vld [vmem:[#allocation9 + $0x1a0] sm:$0xff]
    %v812 = vld [vmem:[#allocation9 + $0x1a8] sm:$0xff]
    %v813 = vld [vmem:[#allocation9 + $0x1b0] sm:$0xff]
    %v814 = vld [vmem:[#allocation9 + $0x1b8] sm:$0xff]
    %v815 = vld [vmem:[#allocation9 + $0x1c0] sm:$0xff]
    %v816 = vld [vmem:[#allocation9 + $0x1c8] sm:$0xff]
    %v817 = vld [vmem:[#allocation9 + $0x1d0] sm:$0xff]
    %v818 = vld [vmem:[#allocation9 + $0x1d8] sm:$0xff]
    %v819 = vld [vmem:[#allocation9 + $0x1e0] sm:$0xff]
    %v820 = vld [vmem:[#allocation9 + $0x1e8] sm:$0xff]
    %v821 = vld [vmem:[#allocation9 + $0x1f0] sm:$0xff]
    %v822 = vld [vmem:[#allocation9 + $0x1f8] sm:$0xff]
    %823 = vmatprep.subr.mxu0 %v760
    %824 = vmatpush1.msra.mxu0 %v759
    %825 = vmatprep.subr.mxu0 %v764
    %826 = vmatpush1.msra.mxu0 %v763
    %827 = vmatprep.subr.mxu0 %v768
    %828 = vmatpush1.msra.mxu0 %v767
    %829 = vmatprep.subr.mxu0 %v772
    %830 = vmatpush1.msra.mxu0 %v771
    %831 = vmatprep.subr.mxu0 %v776
    %832 = vmatpush1.msra.mxu0 %v775
    %833 = vmatprep.subr.mxu0 %v780
    %834 = vmatpush1.msra.mxu0 %v779
    %835 = vmatprep.subr.mxu0 %v784
    %836 = vmatpush1.msra.mxu0 %v783
    %837 = vmatprep.subr.mxu0 %v788
    %838 = vmatpush1.msra.mxu0 %v787
    %839 = vmatprep.subr.mxu0 %v792
    %840 = vmatpush1.msra.mxu0 %v791
    %841 = vmatprep.subr.mxu0 %v796
    %842 = vmatpush1.msra.mxu0 %v795
    %843 = vmatprep.subr.mxu0 %v800
    %844 = vmatpush1.msra.mxu0 %v799
    %845 = vmatprep.subr.mxu0 %v804
    %846 = vmatpush1.msra.mxu0 %v803
    %847 = vmatprep.subr.mxu0 %v808
    %848 = vmatpush1.msra.mxu0 %v807
    %849 = vmatprep.subr.mxu0 %v812
    %850 = vmatpush1.msra.mxu0 %v811
    %851 = vmatprep.subr.mxu0 %v816
    %852 = vmatpush1.msra.mxu0 %v815
    %853 = vmatprep.subr.mxu0 %v820
    %854 = vmatpush1.msra.mxu0 %v819
    %855 = vmatprep.subr.mxu0 0.0
    %856 = vmatpush1.msra.mxu0 0.0
    %857 = vmatprep.subr.mxu0 0.0
    %858 = vmatpush1.msra.mxu0 0.0
    %859 = vmatprep.subr.mxu0 0.0
    %860 = vmatpush1.msra.mxu0 0.0
    %861 = vmatprep.subr.mxu0 0.0
    %862 = vmatpush1.msra.mxu0 0.0
    %863 = vmatprep.subr.mxu0 0.0
    %864 = vmatpush1.msra.mxu0 0.0
    %865 = vmatprep.subr.mxu0 0.0
    %866 = vmatpush1.msra.mxu0 0.0
    %867 = vmatprep.subr.mxu0 0.0
    %868 = vmatpush1.msra.mxu0 0.0
    %869 = vmatprep.subr.mxu0 0.0
    %870 = vmatpush1.msra.mxu0 0.0
    %871 = vmatprep.subr.mxu0 0.0
    %872 = vmatpush1.msra.mxu0 0.0
    %873 = vmatprep.subr.mxu0 0.0
    %874 = vmatpush1.msra.mxu0 0.0
    %875 = vmatprep.subr.mxu0 0.0
    %876 = vmatpush1.msra.mxu0 0.0
    %877 = vmatprep.subr.mxu0 0.0
    %878 = vmatpush1.msra.mxu0 0.0
    %879 = vmatprep.subr.mxu0 0.0
    %880 = vmatpush1.msra.mxu0 0.0
    %881 = vmatprep.subr.mxu0 0.0
    %882 = vmatpush1.msra.mxu0 0.0
    %883 = vmatprep.subr.mxu0 0.0
    %884 = vmatpush1.msra.mxu0 0.0
    %885 = vmatprep.subr.mxu0 0.0
    %886 = vmatpush1.msra.mxu0 0.0
    %887 = vmatprep.mubr.f32.mxu0 0.0
    %888 = vmatmul.mubr.f32.gmra.mrb[0].mxu0 0.0
    %v889 = vpop.f32.mrb[0].mxu0
    %v890 = vadd.f32 0.0, %v889
    %v891 = vpop.f32.mrb[0].mxu0
    %v892 = vadd.f32 0.0, %v891
    %893 = vdwg.mxu0
    %894 = vmatprep.subr.mxu0 %v762
    %895 = vmatpush1.msra.mxu0 %v761
    %896 = vmatprep.subr.mxu0 %v766
    %897 = vmatpush1.msra.mxu0 %v765
    %898 = vmatprep.subr.mxu0 %v770
    %899 = vmatpush1.msra.mxu0 %v769
    %900 = vmatprep.subr.mxu0 %v774
    %901 = vmatpush1.msra.mxu0 %v773
    %902 = vmatprep.subr.mxu0 %v778
    %903 = vmatpush1.msra.mxu0 %v777
    %904 = vmatprep.subr.mxu0 %v782
    %905 = vmatpush1.msra.mxu0 %v781
    %906 = vmatprep.subr.mxu0 %v786
    %907 = vmatpush1.msra.mxu0 %v785
    %908 = vmatprep.subr.mxu0 %v790
    %909 = vmatpush1.msra.mxu0 %v789
    %910 = vmatprep.subr.mxu0 %v794
    %911 = vmatpush1.msra.mxu0 %v793
    %912 = vmatprep.subr.mxu0 %v798
    %913 = vmatpush1.msra.mxu0 %v797
    %914 = vmatprep.subr.mxu0 %v802
    %915 = vmatpush1.msra.mxu0 %v801
    %916 = vmatprep.subr.mxu0 %v806
    %917 = vmatpush1.msra.mxu0 %v805
    %918 = vmatprep.subr.mxu0 %v810
    %919 = vmatpush1.msra.mxu0 %v809
    %920 = vmatprep.subr.mxu0 %v814
    %921 = vmatpush1.msra.mxu0 %v813
    %922 = vmatprep.subr.mxu0 %v818
    %923 = vmatpush1.msra.mxu0 %v817
    %924 = vmatprep.subr.mxu0 %v822
    %925 = vmatpush1.msra.mxu0 %v821
    %926 = vmatprep.subr.mxu0 0.0
    %927 = vmatpush1.msra.mxu0 0.0
    %928 = vmatprep.subr.mxu0 0.0
    %929 = vmatpush1.msra.mxu0 0.0
    %930 = vmatprep.subr.mxu0 0.0
    %931 = vmatpush1.msra.mxu0 0.0
    %932 = vmatprep.subr.mxu0 0.0
    %933 = vmatpush1.msra.mxu0 0.0
    %934 = vmatprep.subr.mxu0 0.0
    %935 = vmatpush1.msra.mxu0 0.0
    %936 = vmatprep.subr.mxu0 0.0
    %937 = vmatpush1.msra.mxu0 0.0
    %938 = vmatprep.subr.mxu0 0.0
    %939 = vmatpush1.msra.mxu0 0.0
    %940 = vmatprep.subr.mxu0 0.0
    %941 = vmatpush1.msra.mxu0 0.0
    %942 = vmatprep.subr.mxu0 0.0
    %943 = vmatpush1.msra.mxu0 0.0
    %944 = vmatprep.subr.mxu0 0.0
    %945 = vmatpush1.msra.mxu0 0.0
    %946 = vmatprep.subr.mxu0 0.0
    %947 = vmatpush1.msra.mxu0 0.0
    %948 = vmatprep.subr.mxu0 0.0
    %949 = vmatpush1.msra.mxu0 0.0
    %950 = vmatprep.subr.mxu0 0.0
    %951 = vmatpush1.msra.mxu0 0.0
    %952 = vmatprep.subr.mxu0 0.0
    %953 = vmatpush1.msra.mxu0 0.0
    %954 = vmatprep.subr.mxu0 0.0
    %955 = vmatpush1.msra.mxu0 0.0
    %956 = vmatprep.subr.mxu0 0.0
    %957 = vmatpush1.msra.mxu0 0.0
    %958 = vmatprep.mubr.f32.mxu0 0.0
    %959 = vmatmul.mubr.f32.gmra.mrb[0].mxu0 0.0
    %v960 = vpop.f32.mrb[0].mxu0
    %v961 = vadd.f32 0.0, %v960
    %v962 = vpop.f32.mrb[0].mxu0
    %v963 = vadd.f32 0.0, %v962
    %964 = vdwg.mxu0
    %v965 = vadd.f32 %v755, %v890
    %v966 = vadd.f32 %v756, %v892
    %v967 = vadd.f32 %v757, %v961
    %v968 = vadd.f32 %v758, %v963
    %s969 = scalar_lea.vmem [#allocation3], 224
    %v970 = vld [vmem:[%s969] sm:$0xff]
    %v971 = vld [vmem:[%s969 + $0x8] sm:$0xff]
    %v972 = vld [vmem:[%s969 + $0x10] sm:$0xff]
    %v973 = vld [vmem:[%s969 + $0x18] sm:$0xff]
    %s974 = scalar_lea.vmem [#allocation9], 512
    %v975 = vld [vmem:[%s974] sm:$0xff]
    %v976 = vld [vmem:[%s974 + $0x8] sm:$0xff]
    %v977 = vld [vmem:[%s974 + $0x10] sm:$0xff]
    %v978 = vld [vmem:[%s974 + $0x18] sm:$0xff]
    %v979 = vld [vmem:[%s974 + $0x20] sm:$0xff]
    %v980 = vld [vmem:[%s974 + $0x28] sm:$0xff]
    %v981 = vld [vmem:[%s974 + $0x30] sm:$0xff]
    %v982 = vld [vmem:[%s974 + $0x38] sm:$0xff]
    %v983 = vld [vmem:[%s974 + $0x40] sm:$0xff]
    %v984 = vld [vmem:[%s974 + $0x48] sm:$0xff]
    %v985 = vld [vmem:[%s974 + $0x50] sm:$0xff]
    %v986 = vld [vmem:[%s974 + $0x58] sm:$0xff]
    %v987 = vld [vmem:[%s974 + $0x60] sm:$0xff]
    %v988 = vld [vmem:[%s974 + $0x68] sm:$0xff]
    %v989 = vld [vmem:[%s974 + $0x70] sm:$0xff]
    %v990 = vld [vmem:[%s974 + $0x78] sm:$0xff]
    %v991 = vld [vmem:[%s974 + $0x80] sm:$0xff]
    %v992 = vld [vmem:[%s974 + $0x88] sm:$0xff]
    %v993 = vld [vmem:[%s974 + $0x90] sm:$0xff]
    %v994 = vld [vmem:[%s974 + $0x98] sm:$0xff]
    %v995 = vld [vmem:[%s974 + $0xa0] sm:$0xff]
    %v996 = vld [vmem:[%s974 + $0xa8] sm:$0xff]
    %v997 = vld [vmem:[%s974 + $0xb0] sm:$0xff]
    %v998 = vld [vmem:[%s974 + $0xb8] sm:$0xff]
    %v999 = vld [vmem:[%s974 + $0xc0] sm:$0xff]
    %v1000 = vld [vmem:[%s974 + $0xc8] sm:$0xff]
    %v1001 = vld [vmem:[%s974 + $0xd0] sm:$0xff]
    %v1002 = vld [vmem:[%s974 + $0xd8] sm:$0xff]
    %v1003 = vld [vmem:[%s974 + $0xe0] sm:$0xff]
    %v1004 = vld [vmem:[%s974 + $0xe8] sm:$0xff]
    %v1005 = vld [vmem:[%s974 + $0xf0] sm:$0xff]
    %v1006 = vld [vmem:[%s974 + $0xf8] sm:$0xff]
    %v1007 = vld [vmem:[%s974 + $0x100] sm:$0xff]
    %v1008 = vld [vmem:[%s974 + $0x108] sm:$0xff]
    %v1009 = vld [vmem:[%s974 + $0x110] sm:$0xff]
    %v1010 = vld [vmem:[%s974 + $0x118] sm:$0xff]
    %v1011 = vld [vmem:[%s974 + $0x120] sm:$0xff]
    %v1012 = vld [vmem:[%s974 + $0x128] sm:$0xff]
    %v1013 = vld [vmem:[%s974 + $0x130] sm:$0xff]
    %v1014 = vld [vmem:[%s974 + $0x138] sm:$0xff]
    %v1015 = vld [vmem:[%s974 + $0x140] sm:$0xff]
    %v1016 = vld [vmem:[%s974 + $0x148] sm:$0xff]
    %v1017 = vld [vmem:[%s974 + $0x150] sm:$0xff]
    %v1018 = vld [vmem:[%s974 + $0x158] sm:$0xff]
    %v1019 = vld [vmem:[%s974 + $0x160] sm:$0xff]
    %v1020 = vld [vmem:[%s974 + $0x168] sm:$0xff]
    %v1021 = vld [vmem:[%s974 + $0x170] sm:$0xff]
    %v1022 = vld [vmem:[%s974 + $0x178] sm:$0xff]
    %v1023 = vld [vmem:[%s974 + $0x180] sm:$0xff]
    %v1024 = vld [vmem:[%s974 + $0x188] sm:$0xff]
    %v1025 = vld [vmem:[%s974 + $0x190] sm:$0xff]
    %v1026 = vld [vmem:[%s974 + $0x198] sm:$0xff]
    %v1027 = vld [vmem:[%s974 + $0x1a0] sm:$0xff]
    %v1028 = vld [vmem:[%s974 + $0x1a8] sm:$0xff]
    %v1029 = vld [vmem:[%s974 + $0x1b0] sm:$0xff]
    %v1030 = vld [vmem:[%s974 + $0x1b8] sm:$0xff]
    %v1031 = vld [vmem:[%s974 + $0x1c0] sm:$0xff]
    %v1032 = vld [vmem:[%s974 + $0x1c8] sm:$0xff]
    %v1033 = vld [vmem:[%s974 + $0x1d0] sm:$0xff]
    %v1034 = vld [vmem:[%s974 + $0x1d8] sm:$0xff]
    %v1035 = vld [vmem:[%s974 + $0x1e0] sm:$0xff]
    %v1036 = vld [vmem:[%s974 + $0x1e8] sm:$0xff]
    %v1037 = vld [vmem:[%s974 + $0x1f0] sm:$0xff]
    %v1038 = vld [vmem:[%s974 + $0x1f8] sm:$0xff]
    %1039 = vmatprep.subr.mxu0 %v976
    %1040 = vmatpush1.msra.mxu0 %v975
    %1041 = vmatprep.subr.mxu0 %v980
    %1042 = vmatpush1.msra.mxu0 %v979
    %1043 = vmatprep.subr.mxu0 %v984
    %1044 = vmatpush1.msra.mxu0 %v983
    %1045 = vmatprep.subr.mxu0 %v988
    %1046 = vmatpush1.msra.mxu0 %v987
    %1047 = vmatprep.subr.mxu0 %v992
    %1048 = vmatpush1.msra.mxu0 %v991
    %1049 = vmatprep.subr.mxu0 %v996
    %1050 = vmatpush1.msra.mxu0 %v995
    %1051 = vmatprep.subr.mxu0 %v1000
    %1052 = vmatpush1.msra.mxu0 %v999
    %1053 = vmatprep.subr.mxu0 %v1004
    %1054 = vmatpush1.msra.mxu0 %v1003
    %1055 = vmatprep.subr.mxu0 %v1008
    %1056 = vmatpush1.msra.mxu0 %v1007
    %1057 = vmatprep.subr.mxu0 %v1012
    %1058 = vmatpush1.msra.mxu0 %v1011
    %1059 = vmatprep.subr.mxu0 %v1016
    %1060 = vmatpush1.msra.mxu0 %v1015
    %1061 = vmatprep.subr.mxu0 %v1020
    %1062 = vmatpush1.msra.mxu0 %v1019
    %1063 = vmatprep.subr.mxu0 %v1024
    %1064 = vmatpush1.msra.mxu0 %v1023
    %1065 = vmatprep.subr.mxu0 %v1028
    %1066 = vmatpush1.msra.mxu0 %v1027
    %1067 = vmatprep.subr.mxu0 %v1032
    %1068 = vmatpush1.msra.mxu0 %v1031
    %1069 = vmatprep.subr.mxu0 %v1036
    %1070 = vmatpush1.msra.mxu0 %v1035
    %1071 = vmatprep.subr.mxu0 0.0
    %1072 = vmatpush1.msra.mxu0 0.0
    %1073 = vmatprep.subr.mxu0 0.0
    %1074 = vmatpush1.msra.mxu0 0.0
    %1075 = vmatprep.subr.mxu0 0.0
    %1076 = vmatpush1.msra.mxu0 0.0
    %1077 = vmatprep.subr.mxu0 0.0
    %1078 = vmatpush1.msra.mxu0 0.0
    %1079 = vmatprep.subr.mxu0 0.0
    %1080 = vmatpush1.msra.mxu0 0.0
    %1081 = vmatprep.subr.mxu0 0.0
    %1082 = vmatpush1.msra.mxu0 0.0
    %1083 = vmatprep.subr.mxu0 0.0
    %1084 = vmatpush1.msra.mxu0 0.0
    %1085 = vmatprep.subr.mxu0 0.0
    %1086 = vmatpush1.msra.mxu0 0.0
    %1087 = vmatprep.subr.mxu0 0.0
    %1088 = vmatpush1.msra.mxu0 0.0
    %1089 = vmatprep.subr.mxu0 0.0
    %1090 = vmatpush1.msra.mxu0 0.0
    %1091 = vmatprep.subr.mxu0 0.0
    %1092 = vmatpush1.msra.mxu0 0.0
    %1093 = vmatprep.subr.mxu0 0.0
    %1094 = vmatpush1.msra.mxu0 0.0
    %1095 = vmatprep.subr.mxu0 0.0
    %1096 = vmatpush1.msra.mxu0 0.0
    %1097 = vmatprep.subr.mxu0 0.0
    %1098 = vmatpush1.msra.mxu0 0.0
    %1099 = vmatprep.subr.mxu0 0.0
    %1100 = vmatpush1.msra.mxu0 0.0
    %1101 = vmatprep.subr.mxu0 0.0
    %1102 = vmatpush1.msra.mxu0 0.0
    %1103 = vmatprep.mubr.f32.mxu0 0.0
    %1104 = vmatmul.mubr.f32.gmra.mrb[0].mxu0 0.0
    %v1105 = vpop.f32.mrb[0].mxu0
    %v1106 = vadd.f32 0.0, %v1105
    %v1107 = vpop.f32.mrb[0].mxu0
    %v1108 = vadd.f32 0.0, %v1107
    %1109 = vdwg.mxu0
    %1110 = vmatprep.subr.mxu0 %v978
    %1111 = vmatpush1.msra.mxu0 %v977
    %1112 = vmatprep.subr.mxu0 %v982
    %1113 = vmatpush1.msra.mxu0 %v981
    %1114 = vmatprep.subr.mxu0 %v986
    %1115 = vmatpush1.msra.mxu0 %v985
    %1116 = vmatprep.subr.mxu0 %v990
    %1117 = vmatpush1.msra.mxu0 %v989
    %1118 = vmatprep.subr.mxu0 %v994
    %1119 = vmatpush1.msra.mxu0 %v993
    %1120 = vmatprep.subr.mxu0 %v998
    %1121 = vmatpush1.msra.mxu0 %v997
    %1122 = vmatprep.subr.mxu0 %v1002
    %1123 = vmatpush1.msra.mxu0 %v1001
    %1124 = vmatprep.subr.mxu0 %v1006
    %1125 = vmatpush1.msra.mxu0 %v1005
    %1126 = vmatprep.subr.mxu0 %v1010
    %1127 = vmatpush1.msra.mxu0 %v1009
    %1128 = vmatprep.subr.mxu0 %v1014
    %1129 = vmatpush1.msra.mxu0 %v1013
    %1130 = vmatprep.subr.mxu0 %v1018
    %1131 = vmatpush1.msra.mxu0 %v1017
    %1132 = vmatprep.subr.mxu0 %v1022
    %1133 = vmatpush1.msra.mxu0 %v1021
    %1134 = vmatprep.subr.mxu0 %v1026
    %1135 = vmatpush1.msra.mxu0 %v1025
    %1136 = vmatprep.subr.mxu0 %v1030
    %1137 = vmatpush1.msra.mxu0 %v1029
    %1138 = vmatprep.subr.mxu0 %v1034
    %1139 = vmatpush1.msra.mxu0 %v1033
    %1140 = vmatprep.subr.mxu0 %v1038
    %1141 = vmatpush1.msra.mxu0 %v1037
    %1142 = vmatprep.subr.mxu0 0.0
    %1143 = vmatpush1.msra.mxu0 0.0
    %1144 = vmatprep.subr.mxu0 0.0
    %1145 = vmatpush1.msra.mxu0 0.0
    %1146 = vmatprep.subr.mxu0 0.0
    %1147 = vmatpush1.msra.mxu0 0.0
    %1148 = vmatprep.subr.mxu0 0.0
    %1149 = vmatpush1.msra.mxu0 0.0
    %1150 = vmatprep.subr.mxu0 0.0
    %1151 = vmatpush1.msra.mxu0 0.0
    %1152 = vmatprep.subr.mxu0 0.0
    %1153 = vmatpush1.msra.mxu0 0.0
    %1154 = vmatprep.subr.mxu0 0.0
    %1155 = vmatpush1.msra.mxu0 0.0
    %1156 = vmatprep.subr.mxu0 0.0
    %1157 = vmatpush1.msra.mxu0 0.0
    %1158 = vmatprep.subr.mxu0 0.0
    %1159 = vmatpush1.msra.mxu0 0.0
    %1160 = vmatprep.subr.mxu0 0.0
    %1161 = vmatpush1.msra.mxu0 0.0
    %1162 = vmatprep.subr.mxu0 0.0
    %1163 = vmatpush1.msra.mxu0 0.0
    %1164 = vmatprep.subr.mxu0 0.0
    %1165 = vmatpush1.msra.mxu0 0.0
    %1166 = vmatprep.subr.mxu0 0.0
    %1167 = vmatpush1.msra.mxu0 0.0
    %1168 = vmatprep.subr.mxu0 0.0
    %1169 = vmatpush1.msra.mxu0 0.0
    %1170 = vmatprep.subr.mxu0 0.0
    %1171 = vmatpush1.msra.mxu0 0.0
    %1172 = vmatprep.subr.mxu0 0.0
    %1173 = vmatpush1.msra.mxu0 0.0
    %1174 = vmatprep.mubr.f32.mxu0 0.0
    %1175 = vmatmul.mubr.f32.gmra.mrb[0].mxu0 0.0
    %v1176 = vpop.f32.mrb[0].mxu0
    %v1177 = vadd.f32 0.0, %v1176
    %v1178 = vpop.f32.mrb[0].mxu0
    %v1179 = vadd.f32 0.0, %v1178
    %1180 = vdwg.mxu0
    %v1181 = vadd.f32 %v970, %v1106
    %v1182 = vadd.f32 %v971, %v1108
    %v1183 = vadd.f32 %v972, %v1177
    %v1184 = vadd.f32 %v973, %v1179
    %v1185 = vxor.u32 %v965, 2147483648
    %v1186 = vxor.u32 %v966, 2147483648
    %v1187 = vxor.u32 %v967, 2147483648
    %v1188 = vmul.f32 %v1185, 1.442695
    %v1189 = vpow.pop %v1188
    %v1190 = vmul.f32 %v1186, 1.442695
    %v1191 = vpow.pop %v1190
    %v1192 = vmul.f32 %v1187, 1.442695
    %v1193 = vpow.pop %v1192
    %v1194 = vadd.f32 %v1189, 1.0
    %v1195 = vadd.f32 %v1191, 1.0
    %v1196 = vadd.f32 %v1193, 1.0
    %v1197 = vrcp.pop %v1194
    %v1198 = vmul.f32 1.0, %v1197
    %v1199 = vrcp.pop %v1195
    %v1200 = vmul.f32 1.0, %v1199
    %v1201 = vrcp.pop %v1196
    %v1202 = vmul.f32 1.0, %v1201
    %v1203 = vtanh.pop %v968
    %v1204 = vmul.f32 %v1200, 0.0
    %v1205 = vmul.f32 %v1198, %v1203
    %v1206 = vadd.f32 %v1204, %v1205
    %v1207 = vtanh.pop %v1206
    %v1208 = vmul.f32 %v1202, %v1207
    %v1209 = vxor.u32 %v1181, 2147483648
    %v1210 = vxor.u32 %v1182, 2147483648
    %v1211 = vxor.u32 %v1183, 2147483648
    %v1212 = vmul.f32 %v1209, 1.442695
    %v1213 = vpow.pop %v1212
    %v1214 = vmul.f32 %v1210, 1.442695
    %v1215 = vpow.pop %v1214
    %v1216 = vmul.f32 %v1211, 1.442695
    %v1217 = vpow.pop %v1216
    %v1218 = vadd.f32 %v1213, 1.0
    %v1219 = vadd.f32 %v1215, 1.0
    %v1220 = vadd.f32 %v1217, 1.0
    %v1221 = vrcp.pop %v1218
    %v1222 = vmul.f32 1.0, %v1221
    %v1223 = vrcp.pop %v1219
    %v1224 = vmul.f32 1.0, %v1223
    %v1225 = vrcp.pop %v1220
    %v1226 = vmul.f32 1.0, %v1225
    %v1227 = vtanh.pop %v1184
    %v1228 = vmul.f32 %v1224, 0.0
    %v1229 = vmul.f32 %v1222, %v1227
    %v1230 = vadd.f32 %v1228, %v1229
    %v1231 = vtanh.pop %v1230
    %v1232 = vmul.f32 %v1226, %v1231
    %1233 = vst [vmem:[#allocation4] sm:$0xff] %v1208
    %s1234 = scalar_lea.vmem [#allocation5], 56
    %1235 = vst [vmem:[%s1234] sm:$0xff] %v1232
    %s1236 = scalar_lea.vmem [#allocation2], 32
    %v1237 = vld [vmem:[%s1236] sm:$0xff]
    %v1238 = vld [vmem:[%s1236 + $0x8] sm:$0xff]
    %v1239 = vld [vmem:[%s1236 + $0x10] sm:$0xff]
    %v1240 = vld [vmem:[%s1236 + $0x18] sm:$0xff]
    %v1241 = vld [vmem:[#allocation9] sm:$0xff]
    %v1242 = vld [vmem:[#allocation9 + $0x8] sm:$0xff]
    %v1243 = vld [vmem:[#allocation9 + $0x10] sm:$0xff]
    %v1244 = vld [vmem:[#allocation9 + $0x18] sm:$0xff]
    %v1245 = vld [vmem:[#allocation9 + $0x20] sm:$0xff]
    %v1246 = vld [vmem:[#allocation9 + $0x28] sm:$0xff]
    %v1247 = vld [vmem:[#allocation9 + $0x30] sm:$0xff]
    %v1248 = vld [vmem:[#allocation9 + $0x38] sm:$0xff]
    %v1249 = vld [vmem:[#allocation9 + $0x40] sm:$0xff]
    %v1250 = vld [vmem:[#allocation9 + $0x48] sm:$0xff]
    %v1251 = vld [vmem:[#allocation9 + $0x50] sm:$0xff]
    %v1252 = vld [vmem:[#allocation9 + $0x58] sm:$0xff]
    %v1253 = vld [vmem:[#allocation9 + $0x60] sm:$0xff]
    %v1254 = vld [vmem:[#allocation9 + $0x68] sm:$0xff]
    %v1255 = vld [vmem:[#allocation9 + $0x70] sm:$0xff]
    %v1256 = vld [vmem:[#allocation9 + $0x78] sm:$0xff]
    %v1257 = vld [vmem:[#allocation9 + $0x80] sm:$0xff]
    %v1258 = vld [vmem:[#allocation9 + $0x88] sm:$0xff]
    %v1259 = vld [vmem:[#allocation9 + $0x90] sm:$0xff]
    %v1260 = vld [vmem:[#allocation9 + $0x98] sm:$0xff]
    %v1261 = vld [vmem:[#allocation9 + $0xa0] sm:$0xff]
    %v1262 = vld [vmem:[#allocation9 + $0xa8] sm:$0xff]
    %v1263 = vld [vmem:[#allocation9 + $0xb0] sm:$0xff]
    %v1264 = vld [vmem:[#allocation9 + $0xb8] sm:$0xff]
    %v1265 = vld [vmem:[#allocation9 + $0xc0] sm:$0xff]
    %v1266 = vld [vmem:[#allocation9 + $0xc8] sm:$0xff]
    %v1267 = vld [vmem:[#allocation9 + $0xd0] sm:$0xff]
    %v1268 = vld [vmem:[#allocation9 + $0xd8] sm:$0xff]
    %v1269 = vld [vmem:[#allocation9 + $0xe0] sm:$0xff]
    %v1270 = vld [vmem:[#allocation9 + $0xe8] sm:$0xff]
    %v1271 = vld [vmem:[#allocation9 + $0xf0] sm:$0xff]
    %v1272 = vld [vmem:[#allocation9 + $0xf8] sm:$0xff]
    %v1273 = vld [vmem:[#allocation9 + $0x100] sm:$0xff]
    %v1274 = vld [vmem:[#allocation9 + $0x108] sm:$0xff]
    %v1275 = vld [vmem:[#allocation9 + $0x110] sm:$0xff]
    %v1276 = vld [vmem:[#allocation9 + $0x118] sm:$0xff]
    %v1277 = vld [vmem:[#allocation9 + $0x120] sm:$0xff]
    %v1278 = vld [vmem:[#allocation9 + $0x128] sm:$0xff]
    %v1279 = vld [vmem:[#allocation9 + $0x130] sm:$0xff]
    %v1280 = vld [vmem:[#allocation9 + $0x138] sm:$0xff]
    %v1281 = vld [vmem:[#allocation9 + $0x140] sm:$0xff]
    %v1282 = vld [vmem:[#allocation9 + $0x148] sm:$0xff]
    %v1283 = vld [vmem:[#allocation9 + $0x150] sm:$0xff]
    %v1284 = vld [vmem:[#allocation9 + $0x158] sm:$0xff]
    %v1285 = vld [vmem:[#allocation9 + $0x160] sm:$0xff]
    %v1286 = vld [vmem:[#allocation9 + $0x168] sm:$0xff]
    %v1287 = vld [vmem:[#allocation9 + $0x170] sm:$0xff]
    %v1288 = vld [vmem:[#allocation9 + $0x178] sm:$0xff]
    %v1289 = vld [vmem:[#allocation9 + $0x180] sm:$0xff]
    %v1290 = vld [vmem:[#allocation9 + $0x188] sm:$0xff]
    %v1291 = vld [vmem:[#allocation9 + $0x190] sm:$0xff]
    %v1292 = vld [vmem:[#allocation9 + $0x198] sm:$0xff]
    %v1293 = vld [vmem:[#allocation9 + $0x1a0] sm:$0xff]
    %v1294 = vld [vmem:[#allocation9 + $0x1a8] sm:$0xff]
    %v1295 = vld [vmem:[#allocation9 + $0x1b0] sm:$0xff]
    %v1296 = vld [vmem:[#allocation9 + $0x1b8] sm:$0xff]
    %v1297 = vld [vmem:[#allocation9 + $0x1c0] sm:$0xff]
    %v1298 = vld [vmem:[#allocation9 + $0x1c8] sm:$0xff]
    %v1299 = vld [vmem:[#allocation9 + $0x1d0] sm:$0xff]
    %v1300 = vld [vmem:[#allocation9 + $0x1d8] sm:$0xff]
    %v1301 = vld [vmem:[#allocation9 + $0x1e0] sm:$0xff]
    %v1302 = vld [vmem:[#allocation9 + $0x1e8] sm:$0xff]
    %v1303 = vld [vmem:[#allocation9 + $0x1f0] sm:$0xff]
    %v1304 = vld [vmem:[#allocation9 + $0x1f8] sm:$0xff]
    %1305 = vmatprep.subr.mxu0 %v1242
    %1306 = vmatpush1.msra.mxu0 %v1241
    %1307 = vmatprep.subr.mxu0 %v1246
    %1308 = vmatpush1.msra.mxu0 %v1245
    %1309 = vmatprep.subr.mxu0 %v1250
    %1310 = vmatpush1.msra.mxu0 %v1249
    %1311 = vmatprep.subr.mxu0 %v1254
    %1312 = vmatpush1.msra.mxu0 %v1253
    %1313 = vmatprep.subr.mxu0 %v1258
    %1314 = vmatpush1.msra.mxu0 %v1257
    %1315 = vmatprep.subr.mxu0 %v1262
    %1316 = vmatpush1.msra.mxu0 %v1261
    %1317 = vmatprep.subr.mxu0 %v1266
    %1318 = vmatpush1.msra.mxu0 %v1265
    %1319 = vmatprep.subr.mxu0 %v1270
    %1320 = vmatpush1.msra.mxu0 %v1269
    %1321 = vmatprep.subr.mxu0 %v1274
    %1322 = vmatpush1.msra.mxu0 %v1273
    %1323 = vmatprep.subr.mxu0 %v1278
    %1324 = vmatpush1.msra.mxu0 %v1277
    %1325 = vmatprep.subr.mxu0 %v1282
    %1326 = vmatpush1.msra.mxu0 %v1281
    %1327 = vmatprep.subr.mxu0 %v1286
    %1328 = vmatpush1.msra.mxu0 %v1285
    %1329 = vmatprep.subr.mxu0 %v1290
    %1330 = vmatpush1.msra.mxu0 %v1289
    %1331 = vmatprep.subr.mxu0 %v1294
    %1332 = vmatpush1.msra.mxu0 %v1293
    %1333 = vmatprep.subr.mxu0 %v1298
    %1334 = vmatpush1.msra.mxu0 %v1297
    %1335 = vmatprep.subr.mxu0 %v1302
    %1336 = vmatpush1.msra.mxu0 %v1301
    %1337 = vmatprep.subr.mxu0 0.0
    %1338 = vmatpush1.msra.mxu0 0.0
    %1339 = vmatprep.subr.mxu0 0.0
    %1340 = vmatpush1.msra.mxu0 0.0
    %1341 = vmatprep.subr.mxu0 0.0
    %1342 = vmatpush1.msra.mxu0 0.0
    %1343 = vmatprep.subr.mxu0 0.0
    %1344 = vmatpush1.msra.mxu0 0.0
    %1345 = vmatprep.subr.mxu0 0.0
    %1346 = vmatpush1.msra.mxu0 0.0
    %1347 = vmatprep.subr.mxu0 0.0
    %1348 = vmatpush1.msra.mxu0 0.0
    %1349 = vmatprep.subr.mxu0 0.0
    %1350 = vmatpush1.msra.mxu0 0.0
    %1351 = vmatprep.subr.mxu0 0.0
    %1352 = vmatpush1.msra.mxu0 0.0
    %1353 = vmatprep.subr.mxu0 0.0
    %1354 = vmatpush1.msra.mxu0 0.0
    %1355 = vmatprep.subr.mxu0 0.0
    %1356 = vmatpush1.msra.mxu0 0.0
    %1357 = vmatprep.subr.mxu0 0.0
    %1358 = vmatpush1.msra.mxu0 0.0
    %1359 = vmatprep.subr.mxu0 0.0
    %1360 = vmatpush1.msra.mxu0 0.0
    %1361 = vmatprep.subr.mxu0 0.0
    %1362 = vmatpush1.msra.mxu0 0.0
    %1363 = vmatprep.subr.mxu0 0.0
    %1364 = vmatpush1.msra.mxu0 0.0
    %1365 = vmatprep.subr.mxu0 0.0
    %1366 = vmatpush1.msra.mxu0 0.0
    %1367 = vmatprep.subr.mxu0 0.0
    %1368 = vmatpush1.msra.mxu0 0.0
    %1369 = vmatprep.mubr.f32.mxu0 0.0
    %1370 = vmatmul.mubr.f32.gmra.mrb[0].mxu0 %v1208
    %v1371 = vpop.f32.mrb[0].mxu0
    %v1372 = vadd.f32 0.0, %v1371
    %v1373 = vpop.f32.mrb[0].mxu0
    %v1374 = vadd.f32 0.0, %v1373
    %1375 = vdwg.mxu0
    %1376 = vmatprep.subr.mxu0 %v1244
    %1377 = vmatpush1.msra.mxu0 %v1243
    %1378 = vmatprep.subr.mxu0 %v1248
    %1379 = vmatpush1.msra.mxu0 %v1247
    %1380 = vmatprep.subr.mxu0 %v1252
    %1381 = vmatpush1.msra.mxu0 %v1251
    %1382 = vmatprep.subr.mxu0 %v1256
    %1383 = vmatpush1.msra.mxu0 %v1255
    %1384 = vmatprep.subr.mxu0 %v1260
    %1385 = vmatpush1.msra.mxu0 %v1259
    %1386 = vmatprep.subr.mxu0 %v1264
    %1387 = vmatpush1.msra.mxu0 %v1263
    %1388 = vmatprep.subr.mxu0 %v1268
    %1389 = vmatpush1.msra.mxu0 %v1267
    %1390 = vmatprep.subr.mxu0 %v1272
    %1391 = vmatpush1.msra.mxu0 %v1271
    %1392 = vmatprep.subr.mxu0 %v1276
    %1393 = vmatpush1.msra.mxu0 %v1275
    %1394 = vmatprep.subr.mxu0 %v1280
    %1395 = vmatpush1.msra.mxu0 %v1279
    %1396 = vmatprep.subr.mxu0 %v1284
    %1397 = vmatpush1.msra.mxu0 %v1283
    %1398 = vmatprep.subr.mxu0 %v1288
    %1399 = vmatpush1.msra.mxu0 %v1287
    %1400 = vmatprep.subr.mxu0 %v1292
    %1401 = vmatpush1.msra.mxu0 %v1291
    %1402 = vmatprep.subr.mxu0 %v1296
    %1403 = vmatpush1.msra.mxu0 %v1295
    %1404 = vmatprep.subr.mxu0 %v1300
    %1405 = vmatpush1.msra.mxu0 %v1299
    %1406 = vmatprep.subr.mxu0 %v1304
    %1407 = vmatpush1.msra.mxu0 %v1303
    %1408 = vmatprep.subr.mxu0 0.0
    %1409 = vmatpush1.msra.mxu0 0.0
    %1410 = vmatprep.subr.mxu0 0.0
    %1411 = vmatpush1.msra.mxu0 0.0
    %1412 = vmatprep.subr.mxu0 0.0
    %1413 = vmatpush1.msra.mxu0 0.0
    %1414 = vmatprep.subr.mxu0 0.0
    %1415 = vmatpush1.msra.mxu0 0.0
    %1416 = vmatprep.subr.mxu0 0.0
    %1417 = vmatpush1.msra.mxu0 0.0
    %1418 = vmatprep.subr.mxu0 0.0
    %1419 = vmatpush1.msra.mxu0 0.0
    %1420 = vmatprep.subr.mxu0 0.0
    %1421 = vmatpush1.msra.mxu0 0.0
    %1422 = vmatprep.subr.mxu0 0.0
    %1423 = vmatpush1.msra.mxu0 0.0
    %1424 = vmatprep.subr.mxu0 0.0
    %1425 = vmatpush1.msra.mxu0 0.0
    %1426 = vmatprep.subr.mxu0 0.0
    %1427 = vmatpush1.msra.mxu0 0.0
    %1428 = vmatprep.subr.mxu0 0.0
    %1429 = vmatpush1.msra.mxu0 0.0
    %1430 = vmatprep.subr.mxu0 0.0
    %1431 = vmatpush1.msra.mxu0 0.0
    %1432 = vmatprep.subr.mxu0 0.0
    %1433 = vmatpush1.msra.mxu0 0.0
    %1434 = vmatprep.subr.mxu0 0.0
    %1435 = vmatpush1.msra.mxu0 0.0
    %1436 = vmatprep.subr.mxu0 0.0
    %1437 = vmatpush1.msra.mxu0 0.0
    %1438 = vmatprep.subr.mxu0 0.0
    %1439 = vmatpush1.msra.mxu0 0.0
    %1440 = vmatprep.mubr.f32.mxu0 0.0
    %1441 = vmatmul.mubr.f32.gmra.mrb[0].mxu0 %v1208
    %v1442 = vpop.f32.mrb[0].mxu0
    %v1443 = vadd.f32 0.0, %v1442
    %v1444 = vpop.f32.mrb[0].mxu0
    %v1445 = vadd.f32 0.0, %v1444
    %1446 = vdwg.mxu0
    %v1447 = vadd.f32 %v1237, %v1372
    %v1448 = vadd.f32 %v1238, %v1374
    %v1449 = vadd.f32 %v1239, %v1443
    %v1450 = vadd.f32 %v1240, %v1445
    %s1451 = scalar_lea.vmem [#allocation3], 192
    %v1452 = vld [vmem:[%s1451] sm:$0xff]
    %v1453 = vld [vmem:[%s1451 + $0x8] sm:$0xff]
    %v1454 = vld [vmem:[%s1451 + $0x10] sm:$0xff]
    %v1455 = vld [vmem:[%s1451 + $0x18] sm:$0xff]
    %v1456 = vld [vmem:[%s974] sm:$0xff]
    %v1457 = vld [vmem:[%s974 + $0x8] sm:$0xff]
    %v1458 = vld [vmem:[%s974 + $0x10] sm:$0xff]
    %v1459 = vld [vmem:[%s974 + $0x18] sm:$0xff]
    %v1460 = vld [vmem:[%s974 + $0x20] sm:$0xff]
    %v1461 = vld [vmem:[%s974 + $0x28] sm:$0xff]
    %v1462 = vld [vmem:[%s974 + $0x30] sm:$0xff]
    %v1463 = vld [vmem:[%s974 + $0x38] sm:$0xff]
    %v1464 = vld [vmem:[%s974 + $0x40] sm:$0xff]
    %v1465 = vld [vmem:[%s974 + $0x48] sm:$0xff]
    %v1466 = vld [vmem:[%s974 + $0x50] sm:$0xff]
    %v1467 = vld [vmem:[%s974 + $0x58] sm:$0xff]
    %v1468 = vld [vmem:[%s974 + $0x60] sm:$0xff]
    %v1469 = vld [vmem:[%s974 + $0x68] sm:$0xff]
    %v1470 = vld [vmem:[%s974 + $0x70] sm:$0xff]
    %v1471 = vld [vmem:[%s974 + $0x78] sm:$0xff]
    %v1472 = vld [vmem:[%s974 + $0x80] sm:$0xff]
    %v1473 = vld [vmem:[%s974 + $0x88] sm:$0xff]
    %v1474 = vld [vmem:[%s974 + $0x90] sm:$0xff]
    %v1475 = vld [vmem:[%s974 + $0x98] sm:$0xff]
    %v1476 = vld [vmem:[%s974 + $0xa0] sm:$0xff]
    %v1477 = vld [vmem:[%s974 + $0xa8] sm:$0xff]
    %v1478 = vld [vmem:[%s974 + $0xb0] sm:$0xff]
    %v1479 = vld [vmem:[%s974 + $0xb8] sm:$0xff]
    %v1480 = vld [vmem:[%s974 + $0xc0] sm:$0xff]
    %v1481 = vld [vmem:[%s974 + $0xc8] sm:$0xff]
    %v1482 = vld [vmem:[%s974 + $0xd0] sm:$0xff]
    %v1483 = vld [vmem:[%s974 + $0xd8] sm:$0xff]
    %v1484 = vld [vmem:[%s974 + $0xe0] sm:$0xff]
    %v1485 = vld [vmem:[%s974 + $0xe8] sm:$0xff]
    %v1486 = vld [vmem:[%s974 + $0xf0] sm:$0xff]
    %v1487 = vld [vmem:[%s974 + $0xf8] sm:$0xff]
    %v1488 = vld [vmem:[%s974 + $0x100] sm:$0xff]
    %v1489 = vld [vmem:[%s974 + $0x108] sm:$0xff]
    %v1490 = vld [vmem:[%s974 + $0x110] sm:$0xff]
    %v1491 = vld [vmem:[%s974 + $0x118] sm:$0xff]
    %v1492 = vld [vmem:[%s974 + $0x120] sm:$0xff]
    %v1493 = vld [vmem:[%s974 + $0x128] sm:$0xff]
    %v1494 = vld [vmem:[%s974 + $0x130] sm:$0xff]
    %v1495 = vld [vmem:[%s974 + $0x138] sm:$0xff]
    %v1496 = vld [vmem:[%s974 + $0x140] sm:$0xff]
    %v1497 = vld [vmem:[%s974 + $0x148] sm:$0xff]
    %v1498 = vld [vmem:[%s974 + $0x150] sm:$0xff]
    %v1499 = vld [vmem:[%s974 + $0x158] sm:$0xff]
    %v1500 = vld [vmem:[%s974 + $0x160] sm:$0xff]
    %v1501 = vld [vmem:[%s974 + $0x168] sm:$0xff]
    %v1502 = vld [vmem:[%s974 + $0x170] sm:$0xff]
    %v1503 = vld [vmem:[%s974 + $0x178] sm:$0xff]
    %v1504 = vld [vmem:[%s974 + $0x180] sm:$0xff]
    %v1505 = vld [vmem:[%s974 + $0x188] sm:$0xff]
    %v1506 = vld [vmem:[%s974 + $0x190] sm:$0xff]
    %v1507 = vld [vmem:[%s974 + $0x198] sm:$0xff]
    %v1508 = vld [vmem:[%s974 + $0x1a0] sm:$0xff]
    %v1509 = vld [vmem:[%s974 + $0x1a8] sm:$0xff]
    %v1510 = vld [vmem:[%s974 + $0x1b0] sm:$0xff]
    %v1511 = vld [vmem:[%s974 + $0x1b8] sm:$0xff]
    %v1512 = vld [vmem:[%s974 + $0x1c0] sm:$0xff]
    %v1513 = vld [vmem:[%s974 + $0x1c8] sm:$0xff]
    %v1514 = vld [vmem:[%s974 + $0x1d0] sm:$0xff]
    %v1515 = vld [vmem:[%s974 + $0x1d8] sm:$0xff]
    %v1516 = vld [vmem:[%s974 + $0x1e0] sm:$0xff]
    %v1517 = vld [vmem:[%s974 + $0x1e8] sm:$0xff]
    %v1518 = vld [vmem:[%s974 + $0x1f0] sm:$0xff]
    %v1519 = vld [vmem:[%s974 + $0x1f8] sm:$0xff]
    %1520 = vmatprep.subr.mxu0 %v1457
    %1521 = vmatpush1.msra.mxu0 %v1456
    %1522 = vmatprep.subr.mxu0 %v1461
    %1523 = vmatpush1.msra.mxu0 %v1460
    %1524 = vmatprep.subr.mxu0 %v1465
    %1525 = vmatpush1.msra.mxu0 %v1464
    %1526 = vmatprep.subr.mxu0 %v1469
    %1527 = vmatpush1.msra.mxu0 %v1468
    %1528 = vmatprep.subr.mxu0 %v1473
    %1529 = vmatpush1.msra.mxu0 %v1472
    %1530 = vmatprep.subr.mxu0 %v1477
    %1531 = vmatpush1.msra.mxu0 %v1476
    %1532 = vmatprep.subr.mxu0 %v1481
    %1533 = vmatpush1.msra.mxu0 %v1480
    %1534 = vmatprep.subr.mxu0 %v1485
    %1535 = vmatpush1.msra.mxu0 %v1484
    %1536 = vmatprep.subr.mxu0 %v1489
    %1537 = vmatpush1.msra.mxu0 %v1488
    %1538 = vmatprep.subr.mxu0 %v1493
    %1539 = vmatpush1.msra.mxu0 %v1492
    %1540 = vmatprep.subr.mxu0 %v1497
    %1541 = vmatpush1.msra.mxu0 %v1496
    %1542 = vmatprep.subr.mxu0 %v1501
    %1543 = vmatpush1.msra.mxu0 %v1500
    %1544 = vmatprep.subr.mxu0 %v1505
    %1545 = vmatpush1.msra.mxu0 %v1504
    %1546 = vmatprep.subr.mxu0 %v1509
    %1547 = vmatpush1.msra.mxu0 %v1508
    %1548 = vmatprep.subr.mxu0 %v1513
    %1549 = vmatpush1.msra.mxu0 %v1512
    %1550 = vmatprep.subr.mxu0 %v1517
    %1551 = vmatpush1.msra.mxu0 %v1516
    %1552 = vmatprep.subr.mxu0 0.0
    %1553 = vmatpush1.msra.mxu0 0.0
    %1554 = vmatprep.subr.mxu0 0.0
    %1555 = vmatpush1.msra.mxu0 0.0
    %1556 = vmatprep.subr.mxu0 0.0
    %1557 = vmatpush1.msra.mxu0 0.0
    %1558 = vmatprep.subr.mxu0 0.0
    %1559 = vmatpush1.msra.mxu0 0.0
    %1560 = vmatprep.subr.mxu0 0.0
    %1561 = vmatpush1.msra.mxu0 0.0
    %1562 = vmatprep.subr.mxu0 0.0
    %1563 = vmatpush1.msra.mxu0 0.0
    %1564 = vmatprep.subr.mxu0 0.0
    %1565 = vmatpush1.msra.mxu0 0.0
    %1566 = vmatprep.subr.mxu0 0.0
    %1567 = vmatpush1.msra.mxu0 0.0
    %1568 = vmatprep.subr.mxu0 0.0
    %1569 = vmatpush1.msra.mxu0 0.0
    %1570 = vmatprep.subr.mxu0 0.0
    %1571 = vmatpush1.msra.mxu0 0.0
    %1572 = vmatprep.subr.mxu0 0.0
    %1573 = vmatpush1.msra.mxu0 0.0
    %1574 = vmatprep.subr.mxu0 0.0
    %1575 = vmatpush1.msra.mxu0 0.0
    %1576 = vmatprep.subr.mxu0 0.0
    %1577 = vmatpush1.msra.mxu0 0.0
    %1578 = vmatprep.subr.mxu0 0.0
    %1579 = vmatpush1.msra.mxu0 0.0
    %1580 = vmatprep.subr.mxu0 0.0
    %1581 = vmatpush1.msra.mxu0 0.0
    %1582 = vmatprep.subr.mxu0 0.0
    %1583 = vmatpush1.msra.mxu0 0.0
    %1584 = vmatprep.mubr.f32.mxu0 0.0
    %1585 = vmatmul.mubr.f32.gmra.mrb[0].mxu0 %v1232
    %v1586 = vpop.f32.mrb[0].mxu0
    %v1587 = vadd.f32 0.0, %v1586
    %v1588 = vpop.f32.mrb[0].mxu0
    %v1589 = vadd.f32 0.0, %v1588
    %1590 = vdwg.mxu0
    %1591 = vmatprep.subr.mxu0 %v1459
    %1592 = vmatpush1.msra.mxu0 %v1458
    %1593 = vmatprep.subr.mxu0 %v1463
    %1594 = vmatpush1.msra.mxu0 %v1462
    %1595 = vmatprep.subr.mxu0 %v1467
    %1596 = vmatpush1.msra.mxu0 %v1466
    %1597 = vmatprep.subr.mxu0 %v1471
    %1598 = vmatpush1.msra.mxu0 %v1470
    %1599 = vmatprep.subr.mxu0 %v1475
    %1600 = vmatpush1.msra.mxu0 %v1474
    %1601 = vmatprep.subr.mxu0 %v1479
    %1602 = vmatpush1.msra.mxu0 %v1478
    %1603 = vmatprep.subr.mxu0 %v1483
    %1604 = vmatpush1.msra.mxu0 %v1482
    %1605 = vmatprep.subr.mxu0 %v1487
    %1606 = vmatpush1.msra.mxu0 %v1486
    %1607 = vmatprep.subr.mxu0 %v1491
    %1608 = vmatpush1.msra.mxu0 %v1490
    %1609 = vmatprep.subr.mxu0 %v1495
    %1610 = vmatpush1.msra.mxu0 %v1494
    %1611 = vmatprep.subr.mxu0 %v1499
    %1612 = vmatpush1.msra.mxu0 %v1498
    %1613 = vmatprep.subr.mxu0 %v1503
    %1614 = vmatpush1.msra.mxu0 %v1502
    %1615 = vmatprep.subr.mxu0 %v1507
    %1616 = vmatpush1.msra.mxu0 %v1506
    %1617 = vmatprep.subr.mxu0 %v1511
    %1618 = vmatpush1.msra.mxu0 %v1510
    %1619 = vmatprep.subr.mxu0 %v1515
    %1620 = vmatpush1.msra.mxu0 %v1514
    %1621 = vmatprep.subr.mxu0 %v1519
    %1622 = vmatpush1.msra.mxu0 %v1518
    %1623 = vmatprep.subr.mxu0 0.0
    %1624 = vmatpush1.msra.mxu0 0.0
    %1625 = vmatprep.subr.mxu0 0.0
    %1626 = vmatpush1.msra.mxu0 0.0
    %1627 = vmatprep.subr.mxu0 0.0
    %1628 = vmatpush1.msra.mxu0 0.0
    %1629 = vmatprep.subr.mxu0 0.0
    %1630 = vmatpush1.msra.mxu0 0.0
    %1631 = vmatprep.subr.mxu0 0.0
    %1632 = vmatpush1.msra.mxu0 0.0
    %1633 = vmatprep.subr.mxu0 0.0
    %1634 = vmatpush1.msra.mxu0 0.0
    %1635 = vmatprep.subr.mxu0 0.0
    %1636 = vmatpush1.msra.mxu0 0.0
    %1637 = vmatprep.subr.mxu0 0.0
    %1638 = vmatpush1.msra.mxu0 0.0
    %1639 = vmatprep.subr.mxu0 0.0
    %1640 = vmatpush1.msra.mxu0 0.0
    %1641 = vmatprep.subr.mxu0 0.0
    %1642 = vmatpush1.msra.mxu0 0.0
    %1643 = vmatprep.subr.mxu0 0.0
    %1644 = vmatpush1.msra.mxu0 0.0
    %1645 = vmatprep.subr.mxu0 0.0
    %1646 = vmatpush1.msra.mxu0 0.0
    %1647 = vmatprep.subr.mxu0 0.0
    %1648 = vmatpush1.msra.mxu0 0.0
    %1649 = vmatprep.subr.mxu0 0.0
    %1650 = vmatpush1.msra.mxu0 0.0
    %1651 = vmatprep.subr.mxu0 0.0
    %1652 = vmatpush1.msra.mxu0 0.0
    %1653 = vmatprep.subr.mxu0 0.0
    %1654 = vmatpush1.msra.mxu0 0.0
    %1655 = vmatprep.mubr.f32.mxu0 0.0
    %1656 = vmatmul.mubr.f32.gmra.mrb[0].mxu0 %v1232
    %v1657 = vpop.f32.mrb[0].mxu0
    %v1658 = vadd.f32 0.0, %v1657
    %v1659 = vpop.f32.mrb[0].mxu0
    %v1660 = vadd.f32 0.0, %v1659
    %1661 = vdwg.mxu0
    %v1662 = vadd.f32 %v1452, %v1587
    %v1663 = vadd.f32 %v1453, %v1589
    %v1664 = vadd.f32 %v1454, %v1658
    %v1665 = vadd.f32 %v1455, %v1660
    %v1666 = vxor.u32 %v1447, 2147483648
    %v1667 = vxor.u32 %v1448, 2147483648
    %v1668 = vxor.u32 %v1449, 2147483648
    %v1669 = vmul.f32 %v1666, 1.442695
    %v1670 = vpow.pop %v1669
    %v1671 = vmul.f32 %v1667, 1.442695
    %v1672 = vpow.pop %v1671
    %v1673 = vmul.f32 %v1668, 1.442695
    %v1674 = vpow.pop %v1673
    %v1675 = vadd.f32 %v1670, 1.0
    %v1676 = vadd.f32 %v1672, 1.0
    %v1677 = vadd.f32 %v1674, 1.0
    %v1678 = vrcp.pop %v1675
    %v1679 = vmul.f32 1.0, %v1678
    %v1680 = vrcp.pop %v1676
    %v1681 = vmul.f32 1.0, %v1680
    %v1682 = vrcp.pop %v1677
    %v1683 = vmul.f32 1.0, %v1682
    %v1684 = vtanh.pop %v1450
    %v1685 = vmul.f32 %v1681, %v1206
    %v1686 = vmul.f32 %v1679, %v1684
    %v1687 = vadd.f32 %v1685, %v1686
    %v1688 = vtanh.pop %v1687
    %v1689 = vmul.f32 %v1683, %v1688
    %v1690 = vxor.u32 %v1662, 2147483648
    %v1691 = vxor.u32 %v1663, 2147483648
    %v1692 = vxor.u32 %v1664, 2147483648
    %v1693 = vmul.f32 %v1690, 1.442695
    %v1694 = vpow.pop %v1693
    %v1695 = vmul.f32 %v1691, 1.442695
    %v1696 = vpow.pop %v1695
    %v1697 = vmul.f32 %v1692, 1.442695
    %v1698 = vpow.pop %v1697
    %v1699 = vadd.f32 %v1694, 1.0
    %v1700 = vadd.f32 %v1696, 1.0
    %v1701 = vadd.f32 %v1698, 1.0
    %v1702 = vrcp.pop %v1699
    %v1703 = vmul.f32 1.0, %v1702
    %v1704 = vrcp.pop %v1700
    %v1705 = vmul.f32 1.0, %v1704
    %v1706 = vrcp.pop %v1701
    %v1707 = vmul.f32 1.0, %v1706
    %v1708 = vtanh.pop %v1665
    %v1709 = vmul.f32 %v1705, %v1230
    %v1710 = vmul.f32 %v1703, %v1708
    %v1711 = vadd.f32 %v1709, %v1710
    %v1712 = vtanh.pop %v1711
    %v1713 = vmul.f32 %v1707, %v1712
    %s1714 = scalar_lea.vmem [#allocation4], 8
    %1715 = vst [vmem:[%s1714] sm:$0xff] %v1689
    %s1716 = scalar_lea.vmem [#allocation5], 48
    %1717 = vst [vmem:[%s1716] sm:$0xff] %v1713
    %s1718 = scalar_lea.vmem [#allocation2], 64
    %v1719 = vld [vmem:[%s1718] sm:$0xff]
    %v1720 = vld [vmem:[%s1718 + $0x8] sm:$0xff]
    %v1721 = vld [vmem:[%s1718 + $0x10] sm:$0xff]
    %v1722 = vld [vmem:[%s1718 + $0x18] sm:$0xff]
    %v1723 = vld [vmem:[#allocation9] sm:$0xff]
    %v1724 = vld [vmem:[#allocation9 + $0x8] sm:$0xff]
    %v1725 = vld [vmem:[#allocation9 + $0x10] sm:$0xff]
    %v1726 = vld [vmem:[#allocation9 + $0x18] sm:$0xff]
    %v1727 = vld [vmem:[#allocation9 + $0x20] sm:$0xff]
    %v1728 = vld [vmem:[#allocation9 + $0x28] sm:$0xff]
    %v1729 = vld [vmem:[#allocation9 + $0x30] sm:$0xff]
    %v1730 = vld [vmem:[#allocation9 + $0x38] sm:$0xff]
    %v1731 = vld [vmem:[#allocation9 + $0x40] sm:$0xff]
    %v1732 = vld [vmem:[#allocation9 + $0x48] sm:$0xff]
    %v1733 = vld [vmem:[#allocation9 + $0x50] sm:$0xff]
    %v1734 = vld [vmem:[#allocation9 + $0x58] sm:$0xff]
    %v1735 = vld [vmem:[#allocation9 + $0x60] sm:$0xff]
    %v1736 = vld [vmem:[#allocation9 + $0x68] sm:$0xff]
    %v1737 = vld [vmem:[#allocation9 + $0x70] sm:$0xff]
    %v1738 = vld [vmem:[#allocation9 + $0x78] sm:$0xff]
    %v1739 = vld [vmem:[#allocation9 + $0x80] sm:$0xff]
    %v1740 = vld [vmem:[#allocation9 + $0x88] sm:$0xff]
    %v1741 = vld [vmem:[#allocation9 + $0x90] sm:$0xff]
    %v1742 = vld [vmem:[#allocation9 + $0x98] sm:$0xff]
    %v1743 = vld [vmem:[#allocation9 + $0xa0] sm:$0xff]
    %v1744 = vld [vmem:[#allocation9 + $0xa8] sm:$0xff]
    %v1745 = vld [vmem:[#allocation9 + $0xb0] sm:$0xff]
    %v1746 = vld [vmem:[#allocation9 + $0xb8] sm:$0xff]
    %v1747 = vld [vmem:[#allocation9 + $0xc0] sm:$0xff]
    %v1748 = vld [vmem:[#allocation9 + $0xc8] sm:$0xff]
    %v1749 = vld [vmem:[#allocation9 + $0xd0] sm:$0xff]
    %v1750 = vld [vmem:[#allocation9 + $0xd8] sm:$0xff]
    %v1751 = vld [vmem:[#allocation9 + $0xe0] sm:$0xff]
    %v1752 = vld [vmem:[#allocation9 + $0xe8] sm:$0xff]
    %v1753 = vld [vmem:[#allocation9 + $0xf0] sm:$0xff]
    %v1754 = vld [vmem:[#allocation9 + $0xf8] sm:$0xff]
    %v1755 = vld [vmem:[#allocation9 + $0x100] sm:$0xff]
    %v1756 = vld [vmem:[#allocation9 + $0x108] sm:$0xff]
    %v1757 = vld [vmem:[#allocation9 + $0x110] sm:$0xff]
    %v1758 = vld [vmem:[#allocation9 + $0x118] sm:$0xff]
    %v1759 = vld [vmem:[#allocation9 + $0x120] sm:$0xff]
    %v1760 = vld [vmem:[#allocation9 + $0x128] sm:$0xff]
    %v1761 = vld [vmem:[#allocation9 + $0x130] sm:$0xff]
    %v1762 = vld [vmem:[#allocation9 + $0x138] sm:$0xff]
    %v1763 = vld [vmem:[#allocation9 + $0x140] sm:$0xff]
    %v1764 = vld [vmem:[#allocation9 + $0x148] sm:$0xff]
    %v1765 = vld [vmem:[#allocation9 + $0x150] sm:$0xff]
    %v1766 = vld [vmem:[#allocation9 + $0x158] sm:$0xff]
    %v1767 = vld [vmem:[#allocation9 + $0x160] sm:$0xff]
    %v1768 = vld [vmem:[#allocation9 + $0x168] sm:$0xff]
    %v1769 = vld [vmem:[#allocation9 + $0x170] sm:$0xff]
    %v1770 = vld [vmem:[#allocation9 + $0x178] sm:$0xff]
    %v1771 = vld [vmem:[#allocation9 + $0x180] sm:$0xff]
    %v1772 = vld [vmem:[#allocation9 + $0x188] sm:$0xff]
    %v1773 = vld [vmem:[#allocation9 + $0x190] sm:$0xff]
    %v1774 = vld [vmem:[#allocation9 + $0x198] sm:$0xff]
    %v1775 = vld [vmem:[#allocation9 + $0x1a0] sm:$0xff]
    %v1776 = vld [vmem:[#allocation9 + $0x1a8] sm:$0xff]
    %v1777 = vld [vmem:[#allocation9 + $0x1b0] sm:$0xff]
    %v1778 = vld [vmem:[#allocation9 + $0x1b8] sm:$0xff]
    %v1779 = vld [vmem:[#allocation9 + $0x1c0] sm:$0xff]
    %v1780 = vld [vmem:[#allocation9 + $0x1c8] sm:$0xff]
    %v1781 = vld [vmem:[#allocation9 + $0x1d0] sm:$0xff]
    %v1782 = vld [vmem:[#allocation9 + $0x1d8] sm:$0xff]
    %v1783 = vld [vmem:[#allocation9 + $0x1e0] sm:$0xff]
    %v1784 = vld [vmem:[#allocation9 + $0x1e8] sm:$0xff]
    %v1785 = vld [vmem:[#allocation9 + $0x1f0] sm:$0xff]
    %v1786 = vld [vmem:[#allocation9 + $0x1f8] sm:$0xff]
    %1787 = vmatprep.subr.mxu0 %v1724
    %1788 = vmatpush1.msra.mxu0 %v1723
    %1789 = vmatprep.subr.mxu0 %v1728
    %1790 = vmatpush1.msra.mxu0 %v1727
    %1791 = vmatprep.subr.mxu0 %v1732
    %1792 = vmatpush1.msra.mxu0 %v1731
    %1793 = vmatprep.subr.mxu0 %v1736
    %1794 = vmatpush1.msra.mxu0 %v1735
    %1795 = vmatprep.subr.mxu0 %v1740
    %1796 = vmatpush1.msra.mxu0 %v1739
    %1797 = vmatprep.subr.mxu0 %v1744
    %1798 = vmatpush1.msra.mxu0 %v1743
    %1799 = vmatprep.subr.mxu0 %v1748
    %1800 = vmatpush1.msra.mxu0 %v1747
    %1801 = vmatprep.subr.mxu0 %v1752
    %1802 = vmatpush1.msra.mxu0 %v1751
    %1803 = vmatprep.subr.mxu0 %v1756
    %1804 = vmatpush1.msra.mxu0 %v1755
    %1805 = vmatprep.subr.mxu0 %v1760
    %1806 = vmatpush1.msra.mxu0 %v1759
    %1807 = vmatprep.subr.mxu0 %v1764
    %1808 = vmatpush1.msra.mxu0 %v1763
    %1809 = vmatprep.subr.mxu0 %v1768
    %1810 = vmatpush1.msra.mxu0 %v1767
    %1811 = vmatprep.subr.mxu0 %v1772
    %1812 = vmatpush1.msra.mxu0 %v1771
    %1813 = vmatprep.subr.mxu0 %v1776
    %1814 = vmatpush1.msra.mxu0 %v1775
    %1815 = vmatprep.subr.mxu0 %v1780
    %1816 = vmatpush1.msra.mxu0 %v1779
    %1817 = vmatprep.subr.mxu0 %v1784
    %1818 = vmatpush1.msra.mxu0 %v1783
    %1819 = vmatprep.subr.mxu0 0.0
    %1820 = vmatpush1.msra.mxu0 0.0
    %1821 = vmatprep.subr.mxu0 0.0
    %1822 = vmatpush1.msra.mxu0 0.0
    %1823 = vmatprep.subr.mxu0 0.0
    %1824 = vmatpush1.msra.mxu0 0.0
    %1825 = vmatprep.subr.mxu0 0.0
    %1826 = vmatpush1.msra.mxu0 0.0
    %1827 = vmatprep.subr.mxu0 0.0
    %1828 = vmatpush1.msra.mxu0 0.0
    %1829 = vmatprep.subr.mxu0 0.0
    %1830 = vmatpush1.msra.mxu0 0.0
    %1831 = vmatprep.subr.mxu0 0.0
    %1832 = vmatpush1.msra.mxu0 0.0
    %1833 = vmatprep.subr.mxu0 0.0
    %1834 = vmatpush1.msra.mxu0 0.0
    %1835 = vmatprep.subr.mxu0 0.0
    %1836 = vmatpush1.msra.mxu0 0.0
    %1837 = vmatprep.subr.mxu0 0.0
    %1838 = vmatpush1.msra.mxu0 0.0
    %1839 = vmatprep.subr.mxu0 0.0
    %1840 = vmatpush1.msra.mxu0 0.0
    %1841 = vmatprep.subr.mxu0 0.0
    %1842 = vmatpush1.msra.mxu0 0.0
    %1843 = vmatprep.subr.mxu0 0.0
    %1844 = vmatpush1.msra.mxu0 0.0
    %1845 = vmatprep.subr.mxu0 0.0
    %1846 = vmatpush1.msra.mxu0 0.0
    %1847 = vmatprep.subr.mxu0 0.0
    %1848 = vmatpush1.msra.mxu0 0.0
    %1849 = vmatprep.subr.mxu0 0.0
    %1850 = vmatpush1.msra.mxu0 0.0
    %1851 = vmatprep.mubr.f32.mxu0 0.0
    %1852 = vmatmul.mubr.f32.gmra.mrb[0].mxu0 %v1689
    %v1853 = vpop.f32.mrb[0].mxu0
    %v1854 = vadd.f32 0.0, %v1853
    %v1855 = vpop.f32.mrb[0].mxu0
    %v1856 = vadd.f32 0.0, %v1855
    %1857 = vdwg.mxu0
    %1858 = vmatprep.subr.mxu0 %v1726
    %1859 = vmatpush1.msra.mxu0 %v1725
    %1860 = vmatprep.subr.mxu0 %v1730
    %1861 = vmatpush1.msra.mxu0 %v1729
    %1862 = vmatprep.subr.mxu0 %v1734
    %1863 = vmatpush1.msra.mxu0 %v1733
    %1864 = vmatprep.subr.mxu0 %v1738
    %1865 = vmatpush1.msra.mxu0 %v1737
    %1866 = vmatprep.subr.mxu0 %v1742
    %1867 = vmatpush1.msra.mxu0 %v1741
    %1868 = vmatprep.subr.mxu0 %v1746
    %1869 = vmatpush1.msra.mxu0 %v1745
    %1870 = vmatprep.subr.mxu0 %v1750
    %1871 = vmatpush1.msra.mxu0 %v1749
    %1872 = vmatprep.subr.mxu0 %v1754
    %1873 = vmatpush1.msra.mxu0 %v1753
    %1874 = vmatprep.subr.mxu0 %v1758
    %1875 = vmatpush1.msra.mxu0 %v1757
    %1876 = vmatprep.subr.mxu0 %v1762
    %1877 = vmatpush1.msra.mxu0 %v1761
    %1878 = vmatprep.subr.mxu0 %v1766
    %1879 = vmatpush1.msra.mxu0 %v1765
    %1880 = vmatprep.subr.mxu0 %v1770
    %1881 = vmatpush1.msra.mxu0 %v1769
    %1882 = vmatprep.subr.mxu0 %v1774
    %1883 = vmatpush1.msra.mxu0 %v1773
    %1884 = vmatprep.subr.mxu0 %v1778
    %1885 = vmatpush1.msra.mxu0 %v1777
    %1886 = vmatprep.subr.mxu0 %v1782
    %1887 = vmatpush1.msra.mxu0 %v1781
    %1888 = vmatprep.subr.mxu0 %v1786
    %1889 = vmatpush1.msra.mxu0 %v1785
    %1890 = vmatprep.subr.mxu0 0.0
    %1891 = vmatpush1.msra.mxu0 0.0
    %1892 = vmatprep.subr.mxu0 0.0
    %1893 = vmatpush1.msra.mxu0 0.0
    %1894 = vmatprep.subr.mxu0 0.0
    %1895 = vmatpush1.msra.mxu0 0.0
    %1896 = vmatprep.subr.mxu0 0.0
    %1897 = vmatpush1.msra.mxu0 0.0
    %1898 = vmatprep.subr.mxu0 0.0
    %1899 = vmatpush1.msra.mxu0 0.0
    %1900 = vmatprep.subr.mxu0 0.0
    %1901 = vmatpush1.msra.mxu0 0.0
    %1902 = vmatprep.subr.mxu0 0.0
    %1903 = vmatpush1.msra.mxu0 0.0
    %1904 = vmatprep.subr.mxu0 0.0
    %1905 = vmatpush1.msra.mxu0 0.0
    %1906 = vmatprep.subr.mxu0 0.0
    %1907 = vmatpush1.msra.mxu0 0.0
    %1908 = vmatprep.subr.mxu0 0.0
    %1909 = vmatpush1.msra.mxu0 0.0
    %1910 = vmatprep.subr.mxu0 0.0
    %1911 = vmatpush1.msra.mxu0 0.0
    %1912 = vmatprep.subr.mxu0 0.0
    %1913 = vmatpush1.msra.mxu0 0.0
    %1914 = vmatprep.subr.mxu0 0.0
    %1915 = vmatpush1.msra.mxu0 0.0
    %1916 = vmatprep.subr.mxu0 0.0
    %1917 = vmatpush1.msra.mxu0 0.0
    %1918 = vmatprep.subr.mxu0 0.0
    %1919 = vmatpush1.msra.mxu0 0.0
    %1920 = vmatprep.subr.mxu0 0.0
    %1921 = vmatpush1.msra.mxu0 0.0
    %1922 = vmatprep.mubr.f32.mxu0 0.0
    %1923 = vmatmul.mubr.f32.gmra.mrb[0].mxu0 %v1689
    %v1924 = vpop.f32.mrb[0].mxu0
    %v1925 = vadd.f32 0.0, %v1924
    %v1926 = vpop.f32.mrb[0].mxu0
    %v1927 = vadd.f32 0.0, %v1926
    %1928 = vdwg.mxu0
    %v1929 = vadd.f32 %v1719, %v1854
    %v1930 = vadd.f32 %v1720, %v1856
    %v1931 = vadd.f32 %v1721, %v1925
    %v1932 = vadd.f32 %v1722, %v1927
    %s1933 = scalar_lea.vmem [#allocation3], 160
    %v1934 = vld [vmem:[%s1933] sm:$0xff]
    %v1935 = vld [vmem:[%s1933 + $0x8] sm:$0xff]
    %v1936 = vld [vmem:[%s1933 + $0x10] sm:$0xff]
    %v1937 = vld [vmem:[%s1933 + $0x18] sm:$0xff]
    %v1938 = vld [vmem:[%s974] sm:$0xff]
    %v1939 = vld [vmem:[%s974 + $0x8] sm:$0xff]
    %v1940 = vld [vmem:[%s974 + $0x10] sm:$0xff]
    %v1941 = vld [vmem:[%s974 + $0x18] sm:$0xff]
    %v1942 = vld [vmem:[%s974 + $0x20] sm:$0xff]
    %v1943 = vld [vmem:[%s974 + $0x28] sm:$0xff]
    %v1944 = vld [vmem:[%s974 + $0x30] sm:$0xff]
    %v1945 = vld [vmem:[%s974 + $0x38] sm:$0xff]
    %v1946 = vld [vmem:[%s974 + $0x40] sm:$0xff]
    %v1947 = vld [vmem:[%s974 + $0x48] sm:$0xff]
    %v1948 = vld [vmem:[%s974 + $0x50] sm:$0xff]
    %v1949 = vld [vmem:[%s974 + $0x58] sm:$0xff]
    %v1950 = vld [vmem:[%s974 + $0x60] sm:$0xff]
    %v1951 = vld [vmem:[%s974 + $0x68] sm:$0xff]
    %v1952 = vld [vmem:[%s974 + $0x70] sm:$0xff]
    %v1953 = vld [vmem:[%s974 + $0x78] sm:$0xff]
    %v1954 = vld [vmem:[%s974 + $0x80] sm:$0xff]
    %v1955 = vld [vmem:[%s974 + $0x88] sm:$0xff]
    %v1956 = vld [vmem:[%s974 + $0x90] sm:$0xff]
    %v1957 = vld [vmem:[%s974 + $0x98] sm:$0xff]
    %v1958 = vld [vmem:[%s974 + $0xa0] sm:$0xff]
    %v1959 = vld [vmem:[%s974 + $0xa8] sm:$0xff]
    %v1960 = vld [vmem:[%s974 + $0xb0] sm:$0xff]
    %v1961 = vld [vmem:[%s974 + $0xb8] sm:$0xff]
    %v1962 = vld [vmem:[%s974 + $0xc0] sm:$0xff]
    %v1963 = vld [vmem:[%s974 + $0xc8] sm:$0xff]
    %v1964 = vld [vmem:[%s974 + $0xd0] sm:$0xff]
    %v1965 = vld [vmem:[%s974 + $0xd8] sm:$0xff]
    %v1966 = vld [vmem:[%s974 + $0xe0] sm:$0xff]
    %v1967 = vld [vmem:[%s974 + $0xe8] sm:$0xff]
    %v1968 = vld [vmem:[%s974 + $0xf0] sm:$0xff]
    %v1969 = vld [vmem:[%s974 + $0xf8] sm:$0xff]
    %v1970 = vld [vmem:[%s974 + $0x100] sm:$0xff]
    %v1971 = vld [vmem:[%s974 + $0x108] sm:$0xff]
    %v1972 = vld [vmem:[%s974 + $0x110] sm:$0xff]
    %v1973 = vld [vmem:[%s974 + $0x118] sm:$0xff]
    %v1974 = vld [vmem:[%s974 + $0x120] sm:$0xff]
    %v1975 = vld [vmem:[%s974 + $0x128] sm:$0xff]
    %v1976 = vld [vmem:[%s974 + $0x130] sm:$0xff]
    %v1977 = vld [vmem:[%s974 + $0x138] sm:$0xff]
    %v1978 = vld [vmem:[%s974 + $0x140] sm:$0xff]
    %v1979 = vld [vmem:[%s974 + $0x148] sm:$0xff]
    %v1980 = vld [vmem:[%s974 + $0x150] sm:$0xff]
    %v1981 = vld [vmem:[%s974 + $0x158] sm:$0xff]
    %v1982 = vld [vmem:[%s974 + $0x160] sm:$0xff]
    %v1983 = vld [vmem:[%s974 + $0x168] sm:$0xff]
    %v1984 = vld [vmem:[%s974 + $0x170] sm:$0xff]
    %v1985 = vld [vmem:[%s974 + $0x178] sm:$0xff]
    %v1986 = vld [vmem:[%s974 + $0x180] sm:$0xff]
    %v1987 = vld [vmem:[%s974 + $0x188] sm:$0xff]
    %v1988 = vld [vmem:[%s974 + $0x190] sm:$0xff]
    %v1989 = vld [vmem:[%s974 + $0x198] sm:$0xff]
    %v1990 = vld [vmem:[%s974 + $0x1a0] sm:$0xff]
    %v1991 = vld [vmem:[%s974 + $0x1a8] sm:$0xff]
    %v1992 = vld [vmem:[%s974 + $0x1b0] sm:$0xff]
    %v1993 = vld [vmem:[%s974 + $0x1b8] sm:$0xff]
    %v1994 = vld [vmem:[%s974 + $0x1c0] sm:$0xff]
    %v1995 = vld [vmem:[%s974 + $0x1c8] sm:$0xff]
    %v1996 = vld [vmem:[%s974 + $0x1d0] sm:$0xff]
    %v1997 = vld [vmem:[%s974 + $0x1d8] sm:$0xff]
    %v1998 = vld [vmem:[%s974 + $0x1e0] sm:$0xff]
    %v1999 = vld [vmem:[%s974 + $0x1e8] sm:$0xff]
    %v2000 = vld [vmem:[%s974 + $0x1f0] sm:$0xff]
    %v2001 = vld [vmem:[%s974 + $0x1f8] sm:$0xff]
    %2002 = vmatprep.subr.mxu0 %v1939
    %2003 = vmatpush1.msra.mxu0 %v1938
    %2004 = vmatprep.subr.mxu0 %v1943
    %2005 = vmatpush1.msra.mxu0 %v1942
    %2006 = vmatprep.subr.mxu0 %v1947
    %2007 = vmatpush1.msra.mxu0 %v1946
    %2008 = vmatprep.subr.mxu0 %v1951
    %2009 = vmatpush1.msra.mxu0 %v1950
    %2010 = vmatprep.subr.mxu0 %v1955
    %2011 = vmatpush1.msra.mxu0 %v1954
    %2012 = vmatprep.subr.mxu0 %v1959
    %2013 = vmatpush1.msra.mxu0 %v1958
    %2014 = vmatprep.subr.mxu0 %v1963
    %2015 = vmatpush1.msra.mxu0 %v1962
    %2016 = vmatprep.subr.mxu0 %v1967
    %2017 = vmatpush1.msra.mxu0 %v1966
    %2018 = vmatprep.subr.mxu0 %v1971
    %2019 = vmatpush1.msra.mxu0 %v1970
    %2020 = vmatprep.subr.mxu0 %v1975
    %2021 = vmatpush1.msra.mxu0 %v1974
    %2022 = vmatprep.subr.mxu0 %v1979
    %2023 = vmatpush1.msra.mxu0 %v1978
    %2024 = vmatprep.subr.mxu0 %v1983
    %2025 = vmatpush1.msra.mxu0 %v1982
    %2026 = vmatprep.subr.mxu0 %v1987
    %2027 = vmatpush1.msra.mxu0 %v1986
    %2028 = vmatprep.subr.mxu0 %v1991
    %2029 = vmatpush1.msra.mxu0 %v1990
    %2030 = vmatprep.subr.mxu0 %v1995
    %2031 = vmatpush1.msra.mxu0 %v1994
    %2032 = vmatprep.subr.mxu0 %v1999
    %2033 = vmatpush1.msra.mxu0 %v1998
    %2034 = vmatprep.subr.mxu0 0.0
    %2035 = vmatpush1.msra.mxu0 0.0
    %2036 = vmatprep.subr.mxu0 0.0
    %2037 = vmatpush1.msra.mxu0 0.0
    %2038 = vmatprep.subr.mxu0 0.0
    %2039 = vmatpush1.msra.mxu0 0.0
    %2040 = vmatprep.subr.mxu0 0.0
    %2041 = vmatpush1.msra.mxu0 0.0
    %2042 = vmatprep.subr.mxu0 0.0
    %2043 = vmatpush1.msra.mxu0 0.0
    %2044 = vmatprep.subr.mxu0 0.0
    %2045 = vmatpush1.msra.mxu0 0.0
    %2046 = vmatprep.subr.mxu0 0.0
    %2047 = vmatpush1.msra.mxu0 0.0
    %2048 = vmatprep.subr.mxu0 0.0
    %2049 = vmatpush1.msra.mxu0 0.0
    %2050 = vmatprep.subr.mxu0 0.0
    %2051 = vmatpush1.msra.mxu0 0.0
    %2052 = vmatprep.subr.mxu0 0.0
    %2053 = vmatpush1.msra.mxu0 0.0
    %2054 = vmatprep.subr.mxu0 0.0
    %2055 = vmatpush1.msra.mxu0 0.0
    %2056 = vmatprep.subr.mxu0 0.0
    %2057 = vmatpush1.msra.mxu0 0.0
    %2058 = vmatprep.subr.mxu0 0.0
    %2059 = vmatpush1.msra.mxu0 0.0
    %2060 = vmatprep.subr.mxu0 0.0
    %2061 = vmatpush1.msra.mxu0 0.0
    %2062 = vmatprep.subr.mxu0 0.0
    %2063 = vmatpush1.msra.mxu0 0.0
    %2064 = vmatprep.subr.mxu0 0.0
    %2065 = vmatpush1.msra.mxu0 0.0
    %2066 = vmatprep.mubr.f32.mxu0 0.0
    %2067 = vmatmul.mubr.f32.gmra.mrb[0].mxu0 %v1713
    %v2068 = vpop.f32.mrb[0].mxu0
    %v2069 = vadd.f32 0.0, %v2068
    %v2070 = vpop.f32.mrb[0].mxu0
    %v2071 = vadd.f32 0.0, %v2070
    %2072 = vdwg.mxu0
    %2073 = vmatprep.subr.mxu0 %v1941
    %2074 = vmatpush1.msra.mxu0 %v1940
    %2075 = vmatprep.subr.mxu0 %v1945
    %2076 = vmatpush1.msra.mxu0 %v1944
    %2077 = vmatprep.subr.mxu0 %v1949
    %2078 = vmatpush1.msra.mxu0 %v1948
    %2079 = vmatprep.subr.mxu0 %v1953
    %2080 = vmatpush1.msra.mxu0 %v1952
    %2081 = vmatprep.subr.mxu0 %v1957
    %2082 = vmatpush1.msra.mxu0 %v1956
    %2083 = vmatprep.subr.mxu0 %v1961
    %2084 = vmatpush1.msra.mxu0 %v1960
    %2085 = vmatprep.subr.mxu0 %v1965
    %2086 = vmatpush1.msra.mxu0 %v1964
    %2087 = vmatprep.subr.mxu0 %v1969
    %2088 = vmatpush1.msra.mxu0 %v1968
    %2089 = vmatprep.subr.mxu0 %v1973
    %2090 = vmatpush1.msra.mxu0 %v1972
    %2091 = vmatprep.subr.mxu0 %v1977
    %2092 = vmatpush1.msra.mxu0 %v1976
    %2093 = vmatprep.subr.mxu0 %v1981
    %2094 = vmatpush1.msra.mxu0 %v1980
    %2095 = vmatprep.subr.mxu0 %v1985
    %2096 = vmatpush1.msra.mxu0 %v1984
    %2097 = vmatprep.subr.mxu0 %v1989
    %2098 = vmatpush1.msra.mxu0 %v1988
    %2099 = vmatprep.subr.mxu0 %v1993
    %2100 = vmatpush1.msra.mxu0 %v1992
    %2101 = vmatprep.subr.mxu0 %v1997
    %2102 = vmatpush1.msra.mxu0 %v1996
    %2103 = vmatprep.subr.mxu0 %v2001
    %2104 = vmatpush1.msra.mxu0 %v2000
    %2105 = vmatprep.subr.mxu0 0.0
    %2106 = vmatpush1.msra.mxu0 0.0
    %2107 = vmatprep.subr.mxu0 0.0
    %2108 = vmatpush1.msra.mxu0 0.0
    %2109 = vmatprep.subr.mxu0 0.0
    %2110 = vmatpush1.msra.mxu0 0.0
    %2111 = vmatprep.subr.mxu0 0.0
    %2112 = vmatpush1.msra.mxu0 0.0
    %2113 = vmatprep.subr.mxu0 0.0
    %2114 = vmatpush1.msra.mxu0 0.0
    %2115 = vmatprep.subr.mxu0 0.0
    %2116 = vmatpush1.msra.mxu0 0.0
    %2117 = vmatprep.subr.mxu0 0.0
    %2118 = vmatpush1.msra.mxu0 0.0
    %2119 = vmatprep.subr.mxu0 0.0
    %2120 = vmatpush1.msra.mxu0 0.0
    %2121 = vmatprep.subr.mxu0 0.0
    %2122 = vmatpush1.msra.mxu0 0.0
    %2123 = vmatprep.subr.mxu0 0.0
    %2124 = vmatpush1.msra.mxu0 0.0
    %2125 = vmatprep.subr.mxu0 0.0
    %2126 = vmatpush1.msra.mxu0 0.0
    %2127 = vmatprep.subr.mxu0 0.0
    %2128 = vmatpush1.msra.mxu0 0.0
    %2129 = vmatprep.subr.mxu0 0.0
    %2130 = vmatpush1.msra.mxu0 0.0
    %2131 = vmatprep.subr.mxu0 0.0
    %2132 = vmatpush1.msra.mxu0 0.0
    %2133 = vmatprep.subr.mxu0 0.0
    %2134 = vmatpush1.msra.mxu0 0.0
    %2135 = vmatprep.subr.mxu0 0.0
    %2136 = vmatpush1.msra.mxu0 0.0
    %2137 = vmatprep.mubr.f32.mxu0 0.0
    %2138 = vmatmul.mubr.f32.gmra.mrb[0].mxu0 %v1713
    %v2139 = vpop.f32.mrb[0].mxu0
    %v2140 = vadd.f32 0.0, %v2139
    %v2141 = vpop.f32.mrb[0].mxu0
    %v2142 = vadd.f32 0.0, %v2141
    %2143 = vdwg.mxu0
    %v2144 = vadd.f32 %v1934, %v2069
    %v2145 = vadd.f32 %v1935, %v2071
    %v2146 = vadd.f32 %v1936, %v2140
    %v2147 = vadd.f32 %v1937, %v2142
    %v2148 = vxor.u32 %v1929, 2147483648
    %v2149 = vxor.u32 %v1930, 2147483648
    %v2150 = vxor.u32 %v1931, 2147483648
    %v2151 = vmul.f32 %v2148, 1.442695
    %v2152 = vpow.pop %v2151
    %v2153 = vmul.f32 %v2149, 1.442695
    %v2154 = vpow.pop %v2153
    %v2155 = vmul.f32 %v2150, 1.442695
    %v2156 = vpow.pop %v2155
    %v2157 = vadd.f32 %v2152, 1.0
    %v2158 = vadd.f32 %v2154, 1.0
    %v2159 = vadd.f32 %v2156, 1.0
    %v2160 = vrcp.pop %v2157
    %v2161 = vmul.f32 1.0, %v2160
    %v2162 = vrcp.pop %v2158
    %v2163 = vmul.f32 1.0, %v2162
    %v2164 = vrcp.pop %v2159
    %v2165 = vmul.f32 1.0, %v2164
    %v2166 = vtanh.pop %v1932
    %v2167 = vmul.f32 %v2163, %v1687
    %v2168 = vmul.f32 %v2161, %v2166
    %v2169 = vadd.f32 %v2167, %v2168
    %v2170 = vtanh.pop %v2169
    %v2171 = vmul.f32 %v2165, %v2170
    %v2172 = vxor.u32 %v2144, 2147483648
    %v2173 = vxor.u32 %v2145, 2147483648
    %v2174 = vxor.u32 %v2146, 2147483648
    %v2175 = vmul.f32 %v2172, 1.442695
    %v2176 = vpow.pop %v2175
    %v2177 = vmul.f32 %v2173, 1.442695
    %v2178 = vpow.pop %v2177
    %v2179 = vmul.f32 %v2174, 1.442695
    %v2180 = vpow.pop %v2179
    %v2181 = vadd.f32 %v2176, 1.0
    %v2182 = vadd.f32 %v2178, 1.0
    %v2183 = vadd.f32 %v2180, 1.0
    %v2184 = vrcp.pop %v2181
    %v2185 = vmul.f32 1.0, %v2184
    %v2186 = vrcp.pop %v2182
    %v2187 = vmul.f32 1.0, %v2186
    %v2188 = vrcp.pop %v2183
    %v2189 = vmul.f32 1.0, %v2188
    %v2190 = vtanh.pop %v2147
    %v2191 = vmul.f32 %v2187, %v1711
    %v2192 = vmul.f32 %v2185, %v2190
    %v2193 = vadd.f32 %v2191, %v2192
    %v2194 = vtanh.pop %v2193
    %v2195 = vmul.f32 %v2189, %v2194
    %s2196 = scalar_lea.vmem [#allocation4], 16
    %2197 = vst [vmem:[%s2196] sm:$0xff] %v2171
    %s2198 = scalar_lea.vmem [#allocation5], 40
    %2199 = vst [vmem:[%s2198] sm:$0xff] %v2195
    %s2200 = scalar_lea.vmem [#allocation2], 96
    %v2201 = vld [vmem:[%s2200] sm:$0xff]
    %v2202 = vld [vmem:[%s2200 + $0x8] sm:$0xff]
    %v2203 = vld [vmem:[%s2200 + $0x10] sm:$0xff]
    %v2204 = vld [vmem:[%s2200 + $0x18] sm:$0xff]
    %v2205 = vld [vmem:[#allocation9] sm:$0xff]
    %v2206 = vld [vmem:[#allocation9 + $0x8] sm:$0xff]
    %v2207 = vld [vmem:[#allocation9 + $0x10] sm:$0xff]
    %v2208 = vld [vmem:[#allocation9 + $0x18] sm:$0xff]
    %v2209 = vld [vmem:[#allocation9 + $0x20] sm:$0xff]
    %v2210 = vld [vmem:[#allocation9 + $0x28] sm:$0xff]
    %v2211 = vld [vmem:[#allocation9 + $0x30] sm:$0xff]
    %v2212 = vld [vmem:[#allocation9 + $0x38] sm:$0xff]
    %v2213 = vld [vmem:[#allocation9 + $0x40] sm:$0xff]
    %v2214 = vld [vmem:[#allocation9 + $0x48] sm:$0xff]
    %v2215 = vld [vmem:[#allocation9 + $0x50] sm:$0xff]
    %v2216 = vld [vmem:[#allocation9 + $0x58] sm:$0xff]
    %v2217 = vld [vmem:[#allocation9 + $0x60] sm:$0xff]
    %v2218 = vld [vmem:[#allocation9 + $0x68] sm:$0xff]
    %v2219 = vld [vmem:[#allocation9 + $0x70] sm:$0xff]
    %v2220 = vld [vmem:[#allocation9 + $0x78] sm:$0xff]
    %v2221 = vld [vmem:[#allocation9 + $0x80] sm:$0xff]
    %v2222 = vld [vmem:[#allocation9 + $0x88] sm:$0xff]
    %v2223 = vld [vmem:[#allocation9 + $0x90] sm:$0xff]
    %v2224 = vld [vmem:[#allocation9 + $0x98] sm:$0xff]
    %v2225 = vld [vmem:[#allocation9 + $0xa0] sm:$0xff]
    %v2226 = vld [vmem:[#allocation9 + $0xa8] sm:$0xff]
    %v2227 = vld [vmem:[#allocation9 + $0xb0] sm:$0xff]
    %v2228 = vld [vmem:[#allocation9 + $0xb8] sm:$0xff]
    %v2229 = vld [vmem:[#allocation9 + $0xc0] sm:$0xff]
    %v2230 = vld [vmem:[#allocation9 + $0xc8] sm:$0xff]
    %v2231 = vld [vmem:[#allocation9 + $0xd0] sm:$0xff]
    %v2232 = vld [vmem:[#allocation9 + $0xd8] sm:$0xff]
    %v2233 = vld [vmem:[#allocation9 + $0xe0] sm:$0xff]
    %v2234 = vld [vmem:[#allocation9 + $0xe8] sm:$0xff]
    %v2235 = vld [vmem:[#allocation9 + $0xf0] sm:$0xff]
    %v2236 = vld [vmem:[#allocation9 + $0xf8] sm:$0xff]
    %v2237 = vld [vmem:[#allocation9 + $0x100] sm:$0xff]
    %v2238 = vld [vmem:[#allocation9 + $0x108] sm:$0xff]
    %v2239 = vld [vmem:[#allocation9 + $0x110] sm:$0xff]
    %v2240 = vld [vmem:[#allocation9 + $0x118] sm:$0xff]
    %v2241 = vld [vmem:[#allocation9 + $0x120] sm:$0xff]
    %v2242 = vld [vmem:[#allocation9 + $0x128] sm:$0xff]
    %v2243 = vld [vmem:[#allocation9 + $0x130] sm:$0xff]
    %v2244 = vld [vmem:[#allocation9 + $0x138] sm:$0xff]
    %v2245 = vld [vmem:[#allocation9 + $0x140] sm:$0xff]
    %v2246 = vld [vmem:[#allocation9 + $0x148] sm:$0xff]
    %v2247 = vld [vmem:[#allocation9 + $0x150] sm:$0xff]
    %v2248 = vld [vmem:[#allocation9 + $0x158] sm:$0xff]
    %v2249 = vld [vmem:[#allocation9 + $0x160] sm:$0xff]
    %v2250 = vld [vmem:[#allocation9 + $0x168] sm:$0xff]
    %v2251 = vld [vmem:[#allocation9 + $0x170] sm:$0xff]
    %v2252 = vld [vmem:[#allocation9 + $0x178] sm:$0xff]
    %v2253 = vld [vmem:[#allocation9 + $0x180] sm:$0xff]
    %v2254 = vld [vmem:[#allocation9 + $0x188] sm:$0xff]
    %v2255 = vld [vmem:[#allocation9 + $0x190] sm:$0xff]
    %v2256 = vld [vmem:[#allocation9 + $0x198] sm:$0xff]
    %v2257 = vld [vmem:[#allocation9 + $0x1a0] sm:$0xff]
    %v2258 = vld [vmem:[#allocation9 + $0x1a8] sm:$0xff]
    %v2259 = vld [vmem:[#allocation9 + $0x1b0] sm:$0xff]
    %v2260 = vld [vmem:[#allocation9 + $0x1b8] sm:$0xff]
    %v2261 = vld [vmem:[#allocation9 + $0x1c0] sm:$0xff]
    %v2262 = vld [vmem:[#allocation9 + $0x1c8] sm:$0xff]
    %v2263 = vld [vmem:[#allocation9 + $0x1d0] sm:$0xff]
    %v2264 = vld [vmem:[#allocation9 + $0x1d8] sm:$0xff]
    %v2265 = vld [vmem:[#allocation9 + $0x1e0] sm:$0xff]
    %v2266 = vld [vmem:[#allocation9 + $0x1e8] sm:$0xff]
    %v2267 = vld [vmem:[#allocation9 + $0x1f0] sm:$0xff]
    %v2268 = vld [vmem:[#allocation9 + $0x1f8] sm:$0xff]
    %2269 = vmatprep.subr.mxu0 %v2206
    %2270 = vmatpush1.msra.mxu0 %v2205
    %2271 = vmatprep.subr.mxu0 %v2210
    %2272 = vmatpush1.msra.mxu0 %v2209
    %2273 = vmatprep.subr.mxu0 %v2214
    %2274 = vmatpush1.msra.mxu0 %v2213
    %2275 = vmatprep.subr.mxu0 %v2218
    %2276 = vmatpush1.msra.mxu0 %v2217
    %2277 = vmatprep.subr.mxu0 %v2222
    %2278 = vmatpush1.msra.mxu0 %v2221
    %2279 = vmatprep.subr.mxu0 %v2226
    %2280 = vmatpush1.msra.mxu0 %v2225
    %2281 = vmatprep.subr.mxu0 %v2230
    %2282 = vmatpush1.msra.mxu0 %v2229
    %2283 = vmatprep.subr.mxu0 %v2234
    %2284 = vmatpush1.msra.mxu0 %v2233
    %2285 = vmatprep.subr.mxu0 %v2238
    %2286 = vmatpush1.msra.mxu0 %v2237
    %2287 = vmatprep.subr.mxu0 %v2242
    %2288 = vmatpush1.msra.mxu0 %v2241
    %2289 = vmatprep.subr.mxu0 %v2246
    %2290 = vmatpush1.msra.mxu0 %v2245
    %2291 = vmatprep.subr.mxu0 %v2250
    %2292 = vmatpush1.msra.mxu0 %v2249
    %2293 = vmatprep.subr.mxu0 %v2254
    %2294 = vmatpush1.msra.mxu0 %v2253
    %2295 = vmatprep.subr.mxu0 %v2258
    %2296 = vmatpush1.msra.mxu0 %v2257
    %2297 = vmatprep.subr.mxu0 %v2262
    %2298 = vmatpush1.msra.mxu0 %v2261
    %2299 = vmatprep.subr.mxu0 %v2266
    %2300 = vmatpush1.msra.mxu0 %v2265
    %2301 = vmatprep.subr.mxu0 0.0
    %2302 = vmatpush1.msra.mxu0 0.0
    %2303 = vmatprep.subr.mxu0 0.0
    %2304 = vmatpush1.msra.mxu0 0.0
    %2305 = vmatprep.subr.mxu0 0.0
    %2306 = vmatpush1.msra.mxu0 0.0
    %2307 = vmatprep.subr.mxu0 0.0
    %2308 = vmatpush1.msra.mxu0 0.0
    %2309 = vmatprep.subr.mxu0 0.0
    %2310 = vmatpush1.msra.mxu0 0.0
    %2311 = vmatprep.subr.mxu0 0.0
    %2312 = vmatpush1.msra.mxu0 0.0
    %2313 = vmatprep.subr.mxu0 0.0
    %2314 = vmatpush1.msra.mxu0 0.0
    %2315 = vmatprep.subr.mxu0 0.0
    %2316 = vmatpush1.msra.mxu0 0.0
    %2317 = vmatprep.subr.mxu0 0.0
    %2318 = vmatpush1.msra.mxu0 0.0
    %2319 = vmatprep.subr.mxu0 0.0
    %2320 = vmatpush1.msra.mxu0 0.0
    %2321 = vmatprep.subr.mxu0 0.0
    %2322 = vmatpush1.msra.mxu0 0.0
    %2323 = vmatprep.subr.mxu0 0.0
    %2324 = vmatpush1.msra.mxu0 0.0
    %2325 = vmatprep.subr.mxu0 0.0
    %2326 = vmatpush1.msra.mxu0 0.0
    %2327 = vmatprep.subr.mxu0 0.0
    %2328 = vmatpush1.msra.mxu0 0.0
    %2329 = vmatprep.subr.mxu0 0.0
    %2330 = vmatpush1.msra.mxu0 0.0
    %2331 = vmatprep.subr.mxu0 0.0
    %2332 = vmatpush1.msra.mxu0 0.0
    %2333 = vmatprep.mubr.f32.mxu0 0.0
    %2334 = vmatmul.mubr.f32.gmra.mrb[0].mxu0 %v2171
    %v2335 = vpop.f32.mrb[0].mxu0
    %v2336 = vadd.f32 0.0, %v2335
    %v2337 = vpop.f32.mrb[0].mxu0
    %v2338 = vadd.f32 0.0, %v2337
    %2339 = vdwg.mxu0
    %2340 = vmatprep.subr.mxu0 %v2208
    %2341 = vmatpush1.msra.mxu0 %v2207
    %2342 = vmatprep.subr.mxu0 %v2212
    %2343 = vmatpush1.msra.mxu0 %v2211
    %2344 = vmatprep.subr.mxu0 %v2216
    %2345 = vmatpush1.msra.mxu0 %v2215
    %2346 = vmatprep.subr.mxu0 %v2220
    %2347 = vmatpush1.msra.mxu0 %v2219
    %2348 = vmatprep.subr.mxu0 %v2224
    %2349 = vmatpush1.msra.mxu0 %v2223
    %2350 = vmatprep.subr.mxu0 %v2228
    %2351 = vmatpush1.msra.mxu0 %v2227
    %2352 = vmatprep.subr.mxu0 %v2232
    %2353 = vmatpush1.msra.mxu0 %v2231
    %2354 = vmatprep.subr.mxu0 %v2236
    %2355 = vmatpush1.msra.mxu0 %v2235
    %2356 = vmatprep.subr.mxu0 %v2240
    %2357 = vmatpush1.msra.mxu0 %v2239
    %2358 = vmatprep.subr.mxu0 %v2244
    %2359 = vmatpush1.msra.mxu0 %v2243
    %2360 = vmatprep.subr.mxu0 %v2248
    %2361 = vmatpush1.msra.mxu0 %v2247
    %2362 = vmatprep.subr.mxu0 %v2252
    %2363 = vmatpush1.msra.mxu0 %v2251
    %2364 = vmatprep.subr.mxu0 %v2256
    %2365 = vmatpush1.msra.mxu0 %v2255
    %2366 = vmatprep.subr.mxu0 %v2260
    %2367 = vmatpush1.msra.mxu0 %v2259
    %2368 = vmatprep.subr.mxu0 %v2264
    %2369 = vmatpush1.msra.mxu0 %v2263
    %2370 = vmatprep.subr.mxu0 %v2268
    %2371 = vmatpush1.msra.mxu0 %v2267
    %2372 = vmatprep.subr.mxu0 0.0
    %2373 = vmatpush1.msra.mxu0 0.0
    %2374 = vmatprep.subr.mxu0 0.0
    %2375 = vmatpush1.msra.mxu0 0.0
    %2376 = vmatprep.subr.mxu0 0.0
    %2377 = vmatpush1.msra.mxu0 0.0
    %2378 = vmatprep.subr.mxu0 0.0
    %2379 = vmatpush1.msra.mxu0 0.0
    %2380 = vmatprep.subr.mxu0 0.0
    %2381 = vmatpush1.msra.mxu0 0.0
    %2382 = vmatprep.subr.mxu0 0.0
    %2383 = vmatpush1.msra.mxu0 0.0
    %2384 = vmatprep.subr.mxu0 0.0
    %2385 = vmatpush1.msra.mxu0 0.0
    %2386 = vmatprep.subr.mxu0 0.0
    %2387 = vmatpush1.msra.mxu0 0.0
    %2388 = vmatprep.subr.mxu0 0.0
    %2389 = vmatpush1.msra.mxu0 0.0
    %2390 = vmatprep.subr.mxu0 0.0
    %2391 = vmatpush1.msra.mxu0 0.0
    %2392 = vmatprep.subr.mxu0 0.0
    %2393 = vmatpush1.msra.mxu0 0.0
    %2394 = vmatprep.subr.mxu0 0.0
    %2395 = vmatpush1.msra.mxu0 0.0
    %2396 = vmatprep.subr.mxu0 0.0
    %2397 = vmatpush1.msra.mxu0 0.0
    %2398 = vmatprep.subr.mxu0 0.0
    %2399 = vmatpush1.msra.mxu0 0.0
    %2400 = vmatprep.subr.mxu0 0.0
    %2401 = vmatpush1.msra.mxu0 0.0
    %2402 = vmatprep.subr.mxu0 0.0
    %2403 = vmatpush1.msra.mxu0 0.0
    %2404 = vmatprep.mubr.f32.mxu0 0.0
    %2405 = vmatmul.mubr.f32.gmra.mrb[0].mxu0 %v2171
    %v2406 = vpop.f32.mrb[0].mxu0
    %v2407 = vadd.f32 0.0, %v2406
    %v2408 = vpop.f32.mrb[0].mxu0
    %v2409 = vadd.f32 0.0, %v2408
    %2410 = vdwg.mxu0
    %v2411 = vadd.f32 %v2201, %v2336
    %v2412 = vadd.f32 %v2202, %v2338
    %v2413 = vadd.f32 %v2203, %v2407
    %v2414 = vadd.f32 %v2204, %v2409
    %s2415 = scalar_lea.vmem [#allocation3], 128
    %v2416 = vld [vmem:[%s2415] sm:$0xff]
    %v2417 = vld [vmem:[%s2415 + $0x8] sm:$0xff]
    %v2418 = vld [vmem:[%s2415 + $0x10] sm:$0xff]
    %v2419 = vld [vmem:[%s2415 + $0x18] sm:$0xff]
    %v2420 = vld [vmem:[%s974] sm:$0xff]
    %v2421 = vld [vmem:[%s974 + $0x8] sm:$0xff]
    %v2422 = vld [vmem:[%s974 + $0x10] sm:$0xff]
    %v2423 = vld [vmem:[%s974 + $0x18] sm:$0xff]
    %v2424 = vld [vmem:[%s974 + $0x20] sm:$0xff]
    %v2425 = vld [vmem:[%s974 + $0x28] sm:$0xff]
    %v2426 = vld [vmem:[%s974 + $0x30] sm:$0xff]
    %v2427 = vld [vmem:[%s974 + $0x38] sm:$0xff]
    %v2428 = vld [vmem:[%s974 + $0x40] sm:$0xff]
    %v2429 = vld [vmem:[%s974 + $0x48] sm:$0xff]
    %v2430 = vld [vmem:[%s974 + $0x50] sm:$0xff]
    %v2431 = vld [vmem:[%s974 + $0x58] sm:$0xff]
    %v2432 = vld [vmem:[%s974 + $0x60] sm:$0xff]
    %v2433 = vld [vmem:[%s974 + $0x68] sm:$0xff]
    %v2434 = vld [vmem:[%s974 + $0x70] sm:$0xff]
    %v2435 = vld [vmem:[%s974 + $0x78] sm:$0xff]
    %v2436 = vld [vmem:[%s974 + $0x80] sm:$0xff]
    %v2437 = vld [vmem:[%s974 + $0x88] sm:$0xff]
    %v2438 = vld [vmem:[%s974 + $0x90] sm:$0xff]
    %v2439 = vld [vmem:[%s974 + $0x98] sm:$0xff]
    %v2440 = vld [vmem:[%s974 + $0xa0] sm:$0xff]
    %v2441 = vld [vmem:[%s974 + $0xa8] sm:$0xff]
    %v2442 = vld [vmem:[%s974 + $0xb0] sm:$0xff]
    %v2443 = vld [vmem:[%s974 + $0xb8] sm:$0xff]
    %v2444 = vld [vmem:[%s974 + $0xc0] sm:$0xff]
    %v2445 = vld [vmem:[%s974 + $0xc8] sm:$0xff]
    %v2446 = vld [vmem:[%s974 + $0xd0] sm:$0xff]
    %v2447 = vld [vmem:[%s974 + $0xd8] sm:$0xff]
    %v2448 = vld [vmem:[%s974 + $0xe0] sm:$0xff]
    %v2449 = vld [vmem:[%s974 + $0xe8] sm:$0xff]
    %v2450 = vld [vmem:[%s974 + $0xf0] sm:$0xff]
    %v2451 = vld [vmem:[%s974 + $0xf8] sm:$0xff]
    %v2452 = vld [vmem:[%s974 + $0x100] sm:$0xff]
    %v2453 = vld [vmem:[%s974 + $0x108] sm:$0xff]
    %v2454 = vld [vmem:[%s974 + $0x110] sm:$0xff]
    %v2455 = vld [vmem:[%s974 + $0x118] sm:$0xff]
    %v2456 = vld [vmem:[%s974 + $0x120] sm:$0xff]
    %v2457 = vld [vmem:[%s974 + $0x128] sm:$0xff]
    %v2458 = vld [vmem:[%s974 + $0x130] sm:$0xff]
    %v2459 = vld [vmem:[%s974 + $0x138] sm:$0xff]
    %v2460 = vld [vmem:[%s974 + $0x140] sm:$0xff]
    %v2461 = vld [vmem:[%s974 + $0x148] sm:$0xff]
    %v2462 = vld [vmem:[%s974 + $0x150] sm:$0xff]
    %v2463 = vld [vmem:[%s974 + $0x158] sm:$0xff]
    %v2464 = vld [vmem:[%s974 + $0x160] sm:$0xff]
    %v2465 = vld [vmem:[%s974 + $0x168] sm:$0xff]
    %v2466 = vld [vmem:[%s974 + $0x170] sm:$0xff]
    %v2467 = vld [vmem:[%s974 + $0x178] sm:$0xff]
    %v2468 = vld [vmem:[%s974 + $0x180] sm:$0xff]
    %v2469 = vld [vmem:[%s974 + $0x188] sm:$0xff]
    %v2470 = vld [vmem:[%s974 + $0x190] sm:$0xff]
    %v2471 = vld [vmem:[%s974 + $0x198] sm:$0xff]
    %v2472 = vld [vmem:[%s974 + $0x1a0] sm:$0xff]
    %v2473 = vld [vmem:[%s974 + $0x1a8] sm:$0xff]
    %v2474 = vld [vmem:[%s974 + $0x1b0] sm:$0xff]
    %v2475 = vld [vmem:[%s974 + $0x1b8] sm:$0xff]
    %v2476 = vld [vmem:[%s974 + $0x1c0] sm:$0xff]
    %v2477 = vld [vmem:[%s974 + $0x1c8] sm:$0xff]
    %v2478 = vld [vmem:[%s974 + $0x1d0] sm:$0xff]
    %v2479 = vld [vmem:[%s974 + $0x1d8] sm:$0xff]
    %v2480 = vld [vmem:[%s974 + $0x1e0] sm:$0xff]
    %v2481 = vld [vmem:[%s974 + $0x1e8] sm:$0xff]
    %v2482 = vld [vmem:[%s974 + $0x1f0] sm:$0xff]
    %v2483 = vld [vmem:[%s974 + $0x1f8] sm:$0xff]
    %2484 = vmatprep.subr.mxu0 %v2421
    %2485 = vmatpush1.msra.mxu0 %v2420
    %2486 = vmatprep.subr.mxu0 %v2425
    %2487 = vmatpush1.msra.mxu0 %v2424
    %2488 = vmatprep.subr.mxu0 %v2429
    %2489 = vmatpush1.msra.mxu0 %v2428
    %2490 = vmatprep.subr.mxu0 %v2433
    %2491 = vmatpush1.msra.mxu0 %v2432
    %2492 = vmatprep.subr.mxu0 %v2437
    %2493 = vmatpush1.msra.mxu0 %v2436
    %2494 = vmatprep.subr.mxu0 %v2441
    %2495 = vmatpush1.msra.mxu0 %v2440
    %2496 = vmatprep.subr.mxu0 %v2445
    %2497 = vmatpush1.msra.mxu0 %v2444
    %2498 = vmatprep.subr.mxu0 %v2449
    %2499 = vmatpush1.msra.mxu0 %v2448
    %2500 = vmatprep.subr.mxu0 %v2453
    %2501 = vmatpush1.msra.mxu0 %v2452
    %2502 = vmatprep.subr.mxu0 %v2457
    %2503 = vmatpush1.msra.mxu0 %v2456
    %2504 = vmatprep.subr.mxu0 %v2461
    %2505 = vmatpush1.msra.mxu0 %v2460
    %2506 = vmatprep.subr.mxu0 %v2465
    %2507 = vmatpush1.msra.mxu0 %v2464
    %2508 = vmatprep.subr.mxu0 %v2469
    %2509 = vmatpush1.msra.mxu0 %v2468
    %2510 = vmatprep.subr.mxu0 %v2473
    %2511 = vmatpush1.msra.mxu0 %v2472
    %2512 = vmatprep.subr.mxu0 %v2477
    %2513 = vmatpush1.msra.mxu0 %v2476
    %2514 = vmatprep.subr.mxu0 %v2481
    %2515 = vmatpush1.msra.mxu0 %v2480
    %2516 = vmatprep.subr.mxu0 0.0
    %2517 = vmatpush1.msra.mxu0 0.0
    %2518 = vmatprep.subr.mxu0 0.0
    %2519 = vmatpush1.msra.mxu0 0.0
    %2520 = vmatprep.subr.mxu0 0.0
    %2521 = vmatpush1.msra.mxu0 0.0
    %2522 = vmatprep.subr.mxu0 0.0
    %2523 = vmatpush1.msra.mxu0 0.0
    %2524 = vmatprep.subr.mxu0 0.0
    %2525 = vmatpush1.msra.mxu0 0.0
    %2526 = vmatprep.subr.mxu0 0.0
    %2527 = vmatpush1.msra.mxu0 0.0
    %2528 = vmatprep.subr.mxu0 0.0
    %2529 = vmatpush1.msra.mxu0 0.0
    %2530 = vmatprep.subr.mxu0 0.0
    %2531 = vmatpush1.msra.mxu0 0.0
    %2532 = vmatprep.subr.mxu0 0.0
    %2533 = vmatpush1.msra.mxu0 0.0
    %2534 = vmatprep.subr.mxu0 0.0
    %2535 = vmatpush1.msra.mxu0 0.0
    %2536 = vmatprep.subr.mxu0 0.0
    %2537 = vmatpush1.msra.mxu0 0.0
    %2538 = vmatprep.subr.mxu0 0.0
    %2539 = vmatpush1.msra.mxu0 0.0
    %2540 = vmatprep.subr.mxu0 0.0
    %2541 = vmatpush1.msra.mxu0 0.0
    %2542 = vmatprep.subr.mxu0 0.0
    %2543 = vmatpush1.msra.mxu0 0.0
    %2544 = vmatprep.subr.mxu0 0.0
    %2545 = vmatpush1.msra.mxu0 0.0
    %2546 = vmatprep.subr.mxu0 0.0
    %2547 = vmatpush1.msra.mxu0 0.0
    %2548 = vmatprep.mubr.f32.mxu0 0.0
    %2549 = vmatmul.mubr.f32.gmra.mrb[0].mxu0 %v2195
    %v2550 = vpop.f32.mrb[0].mxu0
    %v2551 = vadd.f32 0.0, %v2550
    %v2552 = vpop.f32.mrb[0].mxu0
    %v2553 = vadd.f32 0.0, %v2552
    %2554 = vdwg.mxu0
    %2555 = vmatprep.subr.mxu0 %v2423
    %2556 = vmatpush1.msra.mxu0 %v2422
    %2557 = vmatprep.subr.mxu0 %v2427
    %2558 = vmatpush1.msra.mxu0 %v2426
    %2559 = vmatprep.subr.mxu0 %v2431
    %2560 = vmatpush1.msra.mxu0 %v2430
    %2561 = vmatprep.subr.mxu0 %v2435
    %2562 = vmatpush1.msra.mxu0 %v2434
    %2563 = vmatprep.subr.mxu0 %v2439
    %2564 = vmatpush1.msra.mxu0 %v2438
    %2565 = vmatprep.subr.mxu0 %v2443
    %2566 = vmatpush1.msra.mxu0 %v2442
    %2567 = vmatprep.subr.mxu0 %v2447
    %2568 = vmatpush1.msra.mxu0 %v2446
    %2569 = vmatprep.subr.mxu0 %v2451
    %2570 = vmatpush1.msra.mxu0 %v2450
    %2571 = vmatprep.subr.mxu0 %v2455
    %2572 = vmatpush1.msra.mxu0 %v2454
    %2573 = vmatprep.subr.mxu0 %v2459
    %2574 = vmatpush1.msra.mxu0 %v2458
    %2575 = vmatprep.subr.mxu0 %v2463
    %2576 = vmatpush1.msra.mxu0 %v2462
    %2577 = vmatprep.subr.mxu0 %v2467
    %2578 = vmatpush1.msra.mxu0 %v2466
    %2579 = vmatprep.subr.mxu0 %v2471
    %2580 = vmatpush1.msra.mxu0 %v2470
    %2581 = vmatprep.subr.mxu0 %v2475
    %2582 = vmatpush1.msra.mxu0 %v2474
    %2583 = vmatprep.subr.mxu0 %v2479
    %2584 = vmatpush1.msra.mxu0 %v2478
    %2585 = vmatprep.subr.mxu0 %v2483
    %2586 = vmatpush1.msra.mxu0 %v2482
    %2587 = vmatprep.subr.mxu0 0.0
    %2588 = vmatpush1.msra.mxu0 0.0
    %2589 = vmatprep.subr.mxu0 0.0
    %2590 = vmatpush1.msra.mxu0 0.0
    %2591 = vmatprep.subr.mxu0 0.0
    %2592 = vmatpush1.msra.mxu0 0.0
    %2593 = vmatprep.subr.mxu0 0.0
    %2594 = vmatpush1.msra.mxu0 0.0
    %2595 = vmatprep.subr.mxu0 0.0
    %2596 = vmatpush1.msra.mxu0 0.0
    %2597 = vmatprep.subr.mxu0 0.0
    %2598 = vmatpush1.msra.mxu0 0.0
    %2599 = vmatprep.subr.mxu0 0.0
    %2600 = vmatpush1.msra.mxu0 0.0
    %2601 = vmatprep.subr.mxu0 0.0
    %2602 = vmatpush1.msra.mxu0 0.0
    %2603 = vmatprep.subr.mxu0 0.0
    %2604 = vmatpush1.msra.mxu0 0.0
    %2605 = vmatprep.subr.mxu0 0.0
    %2606 = vmatpush1.msra.mxu0 0.0
    %2607 = vmatprep.subr.mxu0 0.0
    %2608 = vmatpush1.msra.mxu0 0.0
    %2609 = vmatprep.subr.mxu0 0.0
    %2610 = vmatpush1.msra.mxu0 0.0
    %2611 = vmatprep.subr.mxu0 0.0
    %2612 = vmatpush1.msra.mxu0 0.0
    %2613 = vmatprep.subr.mxu0 0.0
    %2614 = vmatpush1.msra.mxu0 0.0
    %2615 = vmatprep.subr.mxu0 0.0
    %2616 = vmatpush1.msra.mxu0 0.0
    %2617 = vmatprep.subr.mxu0 0.0
    %2618 = vmatpush1.msra.mxu0 0.0
    %2619 = vmatprep.mubr.f32.mxu0 0.0
    %2620 = vmatmul.mubr.f32.gmra.mrb[0].mxu0 %v2195
    %v2621 = vpop.f32.mrb[0].mxu0
    %v2622 = vadd.f32 0.0, %v2621
    %v2623 = vpop.f32.mrb[0].mxu0
    %v2624 = vadd.f32 0.0, %v2623
    %2625 = vdwg.mxu0
    %v2626 = vadd.f32 %v2416, %v2551
    %v2627 = vadd.f32 %v2417, %v2553
    %v2628 = vadd.f32 %v2418, %v2622
    %v2629 = vadd.f32 %v2419, %v2624
    %v2630 = vxor.u32 %v2411, 2147483648
    %v2631 = vxor.u32 %v2412, 2147483648
    %v2632 = vxor.u32 %v2413, 2147483648
    %v2633 = vmul.f32 %v2630, 1.442695
    %v2634 = vpow.pop %v2633
    %v2635 = vmul.f32 %v2631, 1.442695
    %v2636 = vpow.pop %v2635
    %v2637 = vmul.f32 %v2632, 1.442695
    %v2638 = vpow.pop %v2637
    %v2639 = vadd.f32 %v2634, 1.0
    %v2640 = vadd.f32 %v2636, 1.0
    %v2641 = vadd.f32 %v2638, 1.0
    %v2642 = vrcp.pop %v2639
    %v2643 = vmul.f32 1.0, %v2642
    %v2644 = vrcp.pop %v2640
    %v2645 = vmul.f32 1.0, %v2644
    %v2646 = vrcp.pop %v2641
    %v2647 = vmul.f32 1.0, %v2646
    %v2648 = vtanh.pop %v2414
    %v2649 = vmul.f32 %v2645, %v2169
    %v2650 = vmul.f32 %v2643, %v2648
    %v2651 = vadd.f32 %v2649, %v2650
    %v2652 = vtanh.pop %v2651
    %v2653 = vmul.f32 %v2647, %v2652
    %v2654 = vxor.u32 %v2626, 2147483648
    %v2655 = vxor.u32 %v2627, 2147483648
    %v2656 = vxor.u32 %v2628, 2147483648
    %v2657 = vmul.f32 %v2654, 1.442695
    %v2658 = vpow.pop %v2657
    %v2659 = vmul.f32 %v2655, 1.442695
    %v2660 = vpow.pop %v2659
    %v2661 = vmul.f32 %v2656, 1.442695
    %v2662 = vpow.pop %v2661
    %v2663 = vadd.f32 %v2658, 1.0
    %v2664 = vadd.f32 %v2660, 1.0
    %v2665 = vadd.f32 %v2662, 1.0
    %v2666 = vrcp.pop %v2663
    %v2667 = vmul.f32 1.0, %v2666
    %v2668 = vrcp.pop %v2664
    %v2669 = vmul.f32 1.0, %v2668
    %v2670 = vrcp.pop %v2665
    %v2671 = vmul.f32 1.0, %v2670
    %v2672 = vtanh.pop %v2629
    %v2673 = vmul.f32 %v2669, %v2193
    %v2674 = vmul.f32 %v2667, %v2672
    %v2675 = vadd.f32 %v2673, %v2674
    %v2676 = vtanh.pop %v2675
    %v2677 = vmul.f32 %v2671, %v2676
    %s2678 = scalar_lea.vmem [#allocation4], 24
    %2679 = vst [vmem:[%s2678] sm:$0xff] %v2653
    %s2680 = scalar_lea.vmem [#allocation5], 32
    %2681 = vst [vmem:[%s2680] sm:$0xff] %v2677
    %s2682 = scalar_lea.vmem [#allocation2], 128
    %v2683 = vld [vmem:[%s2682] sm:$0xff]
    %v2684 = vld [vmem:[%s2682 + $0x8] sm:$0xff]
    %v2685 = vld [vmem:[%s2682 + $0x10] sm:$0xff]
    %v2686 = vld [vmem:[%s2682 + $0x18] sm:$0xff]
    %v2687 = vld [vmem:[#allocation9] sm:$0xff]
    %v2688 = vld [vmem:[#allocation9 + $0x8] sm:$0xff]
    %v2689 = vld [vmem:[#allocation9 + $0x10] sm:$0xff]
    %v2690 = vld [vmem:[#allocation9 + $0x18] sm:$0xff]
    %v2691 = vld [vmem:[#allocation9 + $0x20] sm:$0xff]
    %v2692 = vld [vmem:[#allocation9 + $0x28] sm:$0xff]
    %v2693 = vld [vmem:[#allocation9 + $0x30] sm:$0xff]
    %v2694 = vld [vmem:[#allocation9 + $0x38] sm:$0xff]
    %v2695 = vld [vmem:[#allocation9 + $0x40] sm:$0xff]
    %v2696 = vld [vmem:[#allocation9 + $0x48] sm:$0xff]
    %v2697 = vld [vmem:[#allocation9 + $0x50] sm:$0xff]
    %v2698 = vld [vmem:[#allocation9 + $0x58] sm:$0xff]
    %v2699 = vld [vmem:[#allocation9 + $0x60] sm:$0xff]
    %v2700 = vld [vmem:[#allocation9 + $0x68] sm:$0xff]
    %v2701 = vld [vmem:[#allocation9 + $0x70] sm:$0xff]
    %v2702 = vld [vmem:[#allocation9 + $0x78] sm:$0xff]
    %v2703 = vld [vmem:[#allocation9 + $0x80] sm:$0xff]
    %v2704 = vld [vmem:[#allocation9 + $0x88] sm:$0xff]
    %v2705 = vld [vmem:[#allocation9 + $0x90] sm:$0xff]
    %v2706 = vld [vmem:[#allocation9 + $0x98] sm:$0xff]
    %v2707 = vld [vmem:[#allocation9 + $0xa0] sm:$0xff]
    %v2708 = vld [vmem:[#allocation9 + $0xa8] sm:$0xff]
    %v2709 = vld [vmem:[#allocation9 + $0xb0] sm:$0xff]
    %v2710 = vld [vmem:[#allocation9 + $0xb8] sm:$0xff]
    %v2711 = vld [vmem:[#allocation9 + $0xc0] sm:$0xff]
    %v2712 = vld [vmem:[#allocation9 + $0xc8] sm:$0xff]
    %v2713 = vld [vmem:[#allocation9 + $0xd0] sm:$0xff]
    %v2714 = vld [vmem:[#allocation9 + $0xd8] sm:$0xff]
    %v2715 = vld [vmem:[#allocation9 + $0xe0] sm:$0xff]
    %v2716 = vld [vmem:[#allocation9 + $0xe8] sm:$0xff]
    %v2717 = vld [vmem:[#allocation9 + $0xf0] sm:$0xff]
    %v2718 = vld [vmem:[#allocation9 + $0xf8] sm:$0xff]
    %v2719 = vld [vmem:[#allocation9 + $0x100] sm:$0xff]
    %v2720 = vld [vmem:[#allocation9 + $0x108] sm:$0xff]
    %v2721 = vld [vmem:[#allocation9 + $0x110] sm:$0xff]
    %v2722 = vld [vmem:[#allocation9 + $0x118] sm:$0xff]
    %v2723 = vld [vmem:[#allocation9 + $0x120] sm:$0xff]
    %v2724 = vld [vmem:[#allocation9 + $0x128] sm:$0xff]
    %v2725 = vld [vmem:[#allocation9 + $0x130] sm:$0xff]
    %v2726 = vld [vmem:[#allocation9 + $0x138] sm:$0xff]
    %v2727 = vld [vmem:[#allocation9 + $0x140] sm:$0xff]
    %v2728 = vld [vmem:[#allocation9 + $0x148] sm:$0xff]
    %v2729 = vld [vmem:[#allocation9 + $0x150] sm:$0xff]
    %v2730 = vld [vmem:[#allocation9 + $0x158] sm:$0xff]
    %v2731 = vld [vmem:[#allocation9 + $0x160] sm:$0xff]
    %v2732 = vld [vmem:[#allocation9 + $0x168] sm:$0xff]
    %v2733 = vld [vmem:[#allocation9 + $0x170] sm:$0xff]
    %v2734 = vld [vmem:[#allocation9 + $0x178] sm:$0xff]
    %v2735 = vld [vmem:[#allocation9 + $0x180] sm:$0xff]
    %v2736 = vld [vmem:[#allocation9 + $0x188] sm:$0xff]
    %v2737 = vld [vmem:[#allocation9 + $0x190] sm:$0xff]
    %v2738 = vld [vmem:[#allocation9 + $0x198] sm:$0xff]
    %v2739 = vld [vmem:[#allocation9 + $0x1a0] sm:$0xff]
    %v2740 = vld [vmem:[#allocation9 + $0x1a8] sm:$0xff]
    %v2741 = vld [vmem:[#allocation9 + $0x1b0] sm:$0xff]
    %v2742 = vld [vmem:[#allocation9 + $0x1b8] sm:$0xff]
    %v2743 = vld [vmem:[#allocation9 + $0x1c0] sm:$0xff]
    %v2744 = vld [vmem:[#allocation9 + $0x1c8] sm:$0xff]
    %v2745 = vld [vmem:[#allocation9 + $0x1d0] sm:$0xff]
    %v2746 = vld [vmem:[#allocation9 + $0x1d8] sm:$0xff]
    %v2747 = vld [vmem:[#allocation9 + $0x1e0] sm:$0xff]
    %v2748 = vld [vmem:[#allocation9 + $0x1e8] sm:$0xff]
    %v2749 = vld [vmem:[#allocation9 + $0x1f0] sm:$0xff]
    %v2750 = vld [vmem:[#allocation9 + $0x1f8] sm:$0xff]
    %2751 = vmatprep.subr.mxu0 %v2688
    %2752 = vmatpush1.msra.mxu0 %v2687
    %2753 = vmatprep.subr.mxu0 %v2692
    %2754 = vmatpush1.msra.mxu0 %v2691
    %2755 = vmatprep.subr.mxu0 %v2696
    %2756 = vmatpush1.msra.mxu0 %v2695
    %2757 = vmatprep.subr.mxu0 %v2700
    %2758 = vmatpush1.msra.mxu0 %v2699
    %2759 = vmatprep.subr.mxu0 %v2704
    %2760 = vmatpush1.msra.mxu0 %v2703
    %2761 = vmatprep.subr.mxu0 %v2708
    %2762 = vmatpush1.msra.mxu0 %v2707
    %2763 = vmatprep.subr.mxu0 %v2712
    %2764 = vmatpush1.msra.mxu0 %v2711
    %2765 = vmatprep.subr.mxu0 %v2716
    %2766 = vmatpush1.msra.mxu0 %v2715
    %2767 = vmatprep.subr.mxu0 %v2720
    %2768 = vmatpush1.msra.mxu0 %v2719
    %2769 = vmatprep.subr.mxu0 %v2724
    %2770 = vmatpush1.msra.mxu0 %v2723
    %2771 = vmatprep.subr.mxu0 %v2728
    %2772 = vmatpush1.msra.mxu0 %v2727
    %2773 = vmatprep.subr.mxu0 %v2732
    %2774 = vmatpush1.msra.mxu0 %v2731
    %2775 = vmatprep.subr.mxu0 %v2736
    %2776 = vmatpush1.msra.mxu0 %v2735
    %2777 = vmatprep.subr.mxu0 %v2740
    %2778 = vmatpush1.msra.mxu0 %v2739
    %2779 = vmatprep.subr.mxu0 %v2744
    %2780 = vmatpush1.msra.mxu0 %v2743
    %2781 = vmatprep.subr.mxu0 %v2748
    %2782 = vmatpush1.msra.mxu0 %v2747
    %2783 = vmatprep.subr.mxu0 0.0
    %2784 = vmatpush1.msra.mxu0 0.0
    %2785 = vmatprep.subr.mxu0 0.0
    %2786 = vmatpush1.msra.mxu0 0.0
    %2787 = vmatprep.subr.mxu0 0.0
    %2788 = vmatpush1.msra.mxu0 0.0
    %2789 = vmatprep.subr.mxu0 0.0
    %2790 = vmatpush1.msra.mxu0 0.0
    %2791 = vmatprep.subr.mxu0 0.0
    %2792 = vmatpush1.msra.mxu0 0.0
    %2793 = vmatprep.subr.mxu0 0.0
    %2794 = vmatpush1.msra.mxu0 0.0
    %2795 = vmatprep.subr.mxu0 0.0
    %2796 = vmatpush1.msra.mxu0 0.0
    %2797 = vmatprep.subr.mxu0 0.0
    %2798 = vmatpush1.msra.mxu0 0.0
    %2799 = vmatprep.subr.mxu0 0.0
    %2800 = vmatpush1.msra.mxu0 0.0
    %2801 = vmatprep.subr.mxu0 0.0
    %2802 = vmatpush1.msra.mxu0 0.0
    %2803 = vmatprep.subr.mxu0 0.0
    %2804 = vmatpush1.msra.mxu0 0.0
    %2805 = vmatprep.subr.mxu0 0.0
    %2806 = vmatpush1.msra.mxu0 0.0
    %2807 = vmatprep.subr.mxu0 0.0
    %2808 = vmatpush1.msra.mxu0 0.0
    %2809 = vmatprep.subr.mxu0 0.0
    %2810 = vmatpush1.msra.mxu0 0.0
    %2811 = vmatprep.subr.mxu0 0.0
    %2812 = vmatpush1.msra.mxu0 0.0
    %2813 = vmatprep.subr.mxu0 0.0
    %2814 = vmatpush1.msra.mxu0 0.0
    %2815 = vmatprep.mubr.f32.mxu0 0.0
    %2816 = vmatmul.mubr.f32.gmra.mrb[0].mxu0 %v2653
    %v2817 = vpop.f32.mrb[0].mxu0
    %v2818 = vadd.f32 0.0, %v2817
    %v2819 = vpop.f32.mrb[0].mxu0
    %v2820 = vadd.f32 0.0, %v2819
    %2821 = vdwg.mxu0
    %2822 = vmatprep.subr.mxu0 %v2690
    %2823 = vmatpush1.msra.mxu0 %v2689
    %2824 = vmatprep.subr.mxu0 %v2694
    %2825 = vmatpush1.msra.mxu0 %v2693
    %2826 = vmatprep.subr.mxu0 %v2698
    %2827 = vmatpush1.msra.mxu0 %v2697
    %2828 = vmatprep.subr.mxu0 %v2702
    %2829 = vmatpush1.msra.mxu0 %v2701
    %2830 = vmatprep.subr.mxu0 %v2706
    %2831 = vmatpush1.msra.mxu0 %v2705
    %2832 = vmatprep.subr.mxu0 %v2710
    %2833 = vmatpush1.msra.mxu0 %v2709
    %2834 = vmatprep.subr.mxu0 %v2714
    %2835 = vmatpush1.msra.mxu0 %v2713
    %2836 = vmatprep.subr.mxu0 %v2718
    %2837 = vmatpush1.msra.mxu0 %v2717
    %2838 = vmatprep.subr.mxu0 %v2722
    %2839 = vmatpush1.msra.mxu0 %v2721
    %2840 = vmatprep.subr.mxu0 %v2726
    %2841 = vmatpush1.msra.mxu0 %v2725
    %2842 = vmatprep.subr.mxu0 %v2730
    %2843 = vmatpush1.msra.mxu0 %v2729
    %2844 = vmatprep.subr.mxu0 %v2734
    %2845 = vmatpush1.msra.mxu0 %v2733
    %2846 = vmatprep.subr.mxu0 %v2738
    %2847 = vmatpush1.msra.mxu0 %v2737
    %2848 = vmatprep.subr.mxu0 %v2742
    %2849 = vmatpush1.msra.mxu0 %v2741
    %2850 = vmatprep.subr.mxu0 %v2746
    %2851 = vmatpush1.msra.mxu0 %v2745
    %2852 = vmatprep.subr.mxu0 %v2750
    %2853 = vmatpush1.msra.mxu0 %v2749
    %2854 = vmatprep.subr.mxu0 0.0
    %2855 = vmatpush1.msra.mxu0 0.0
    %2856 = vmatprep.subr.mxu0 0.0
    %2857 = vmatpush1.msra.mxu0 0.0
    %2858 = vmatprep.subr.mxu0 0.0
    %2859 = vmatpush1.msra.mxu0 0.0
    %2860 = vmatprep.subr.mxu0 0.0
    %2861 = vmatpush1.msra.mxu0 0.0
    %2862 = vmatprep.subr.mxu0 0.0
    %2863 = vmatpush1.msra.mxu0 0.0
    %2864 = vmatprep.subr.mxu0 0.0
    %2865 = vmatpush1.msra.mxu0 0.0
    %2866 = vmatprep.subr.mxu0 0.0
    %2867 = vmatpush1.msra.mxu0 0.0
    %2868 = vmatprep.subr.mxu0 0.0
    %2869 = vmatpush1.msra.mxu0 0.0
    %2870 = vmatprep.subr.mxu0 0.0
    %2871 = vmatpush1.msra.mxu0 0.0
    %2872 = vmatprep.subr.mxu0 0.0
    %2873 = vmatpush1.msra.mxu0 0.0
    %2874 = vmatprep.subr.mxu0 0.0
    %2875 = vmatpush1.msra.mxu0 0.0
    %2876 = vmatprep.subr.mxu0 0.0
    %2877 = vmatpush1.msra.mxu0 0.0
    %2878 = vmatprep.subr.mxu0 0.0
    %2879 = vmatpush1.msra.mxu0 0.0
    %2880 = vmatprep.subr.mxu0 0.0
    %2881 = vmatpush1.msra.mxu0 0.0
    %2882 = vmatprep.subr.mxu0 0.0
    %2883 = vmatpush1.msra.mxu0 0.0
    %2884 = vmatprep.subr.mxu0 0.0
    %2885 = vmatpush1.msra.mxu0 0.0
    %2886 = vmatprep.mubr.f32.mxu0 0.0
    %2887 = vmatmul.mubr.f32.gmra.mrb[0].mxu0 %v2653
    %v2888 = vpop.f32.mrb[0].mxu0
    %v2889 = vadd.f32 0.0, %v2888
    %v2890 = vpop.f32.mrb[0].mxu0
    %v2891 = vadd.f32 0.0, %v2890
    %2892 = vdwg.mxu0
    %v2893 = vadd.f32 %v2683, %v2818
    %v2894 = vadd.f32 %v2684, %v2820
    %v2895 = vadd.f32 %v2685, %v2889
    %v2896 = vadd.f32 %v2686, %v2891
    %s2897 = scalar_lea.vmem [#allocation3], 96
    %v2898 = vld [vmem:[%s2897] sm:$0xff]
    %v2899 = vld [vmem:[%s2897 + $0x8] sm:$0xff]
    %v2900 = vld [vmem:[%s2897 + $0x10] sm:$0xff]
    %v2901 = vld [vmem:[%s2897 + $0x18] sm:$0xff]
    %v2902 = vld [vmem:[%s974] sm:$0xff]
    %v2903 = vld [vmem:[%s974 + $0x8] sm:$0xff]
    %v2904 = vld [vmem:[%s974 + $0x10] sm:$0xff]
    %v2905 = vld [vmem:[%s974 + $0x18] sm:$0xff]
    %v2906 = vld [vmem:[%s974 + $0x20] sm:$0xff]
    %v2907 = vld [vmem:[%s974 + $0x28] sm:$0xff]
    %v2908 = vld [vmem:[%s974 + $0x30] sm:$0xff]
    %v2909 = vld [vmem:[%s974 + $0x38] sm:$0xff]
    %v2910 = vld [vmem:[%s974 + $0x40] sm:$0xff]
    %v2911 = vld [vmem:[%s974 + $0x48] sm:$0xff]
    %v2912 = vld [vmem:[%s974 + $0x50] sm:$0xff]
    %v2913 = vld [vmem:[%s974 + $0x58] sm:$0xff]
    %v2914 = vld [vmem:[%s974 + $0x60] sm:$0xff]
    %v2915 = vld [vmem:[%s974 + $0x68] sm:$0xff]
    %v2916 = vld [vmem:[%s974 + $0x70] sm:$0xff]
    %v2917 = vld [vmem:[%s974 + $0x78] sm:$0xff]
    %v2918 = vld [vmem:[%s974 + $0x80] sm:$0xff]
    %v2919 = vld [vmem:[%s974 + $0x88] sm:$0xff]
    %v2920 = vld [vmem:[%s974 + $0x90] sm:$0xff]
    %v2921 = vld [vmem:[%s974 + $0x98] sm:$0xff]
    %v2922 = vld [vmem:[%s974 + $0xa0] sm:$0xff]
    %v2923 = vld [vmem:[%s974 + $0xa8] sm:$0xff]
    %v2924 = vld [vmem:[%s974 + $0xb0] sm:$0xff]
    %v2925 = vld [vmem:[%s974 + $0xb8] sm:$0xff]
    %v2926 = vld [vmem:[%s974 + $0xc0] sm:$0xff]
    %v2927 = vld [vmem:[%s974 + $0xc8] sm:$0xff]
    %v2928 = vld [vmem:[%s974 + $0xd0] sm:$0xff]
    %v2929 = vld [vmem:[%s974 + $0xd8] sm:$0xff]
    %v2930 = vld [vmem:[%s974 + $0xe0] sm:$0xff]
    %v2931 = vld [vmem:[%s974 + $0xe8] sm:$0xff]
    %v2932 = vld [vmem:[%s974 + $0xf0] sm:$0xff]
    %v2933 = vld [vmem:[%s974 + $0xf8] sm:$0xff]
    %v2934 = vld [vmem:[%s974 + $0x100] sm:$0xff]
    %v2935 = vld [vmem:[%s974 + $0x108] sm:$0xff]
    %v2936 = vld [vmem:[%s974 + $0x110] sm:$0xff]
    %v2937 = vld [vmem:[%s974 + $0x118] sm:$0xff]
    %v2938 = vld [vmem:[%s974 + $0x120] sm:$0xff]
    %v2939 = vld [vmem:[%s974 + $0x128] sm:$0xff]
    %v2940 = vld [vmem:[%s974 + $0x130] sm:$0xff]
    %v2941 = vld [vmem:[%s974 + $0x138] sm:$0xff]
    %v2942 = vld [vmem:[%s974 + $0x140] sm:$0xff]
    %v2943 = vld [vmem:[%s974 + $0x148] sm:$0xff]
    %v2944 = vld [vmem:[%s974 + $0x150] sm:$0xff]
    %v2945 = vld [vmem:[%s974 + $0x158] sm:$0xff]
    %v2946 = vld [vmem:[%s974 + $0x160] sm:$0xff]
    %v2947 = vld [vmem:[%s974 + $0x168] sm:$0xff]
    %v2948 = vld [vmem:[%s974 + $0x170] sm:$0xff]
    %v2949 = vld [vmem:[%s974 + $0x178] sm:$0xff]
    %v2950 = vld [vmem:[%s974 + $0x180] sm:$0xff]
    %v2951 = vld [vmem:[%s974 + $0x188] sm:$0xff]
    %v2952 = vld [vmem:[%s974 + $0x190] sm:$0xff]
    %v2953 = vld [vmem:[%s974 + $0x198] sm:$0xff]
    %v2954 = vld [vmem:[%s974 + $0x1a0] sm:$0xff]
    %v2955 = vld [vmem:[%s974 + $0x1a8] sm:$0xff]
    %v2956 = vld [vmem:[%s974 + $0x1b0] sm:$0xff]
    %v2957 = vld [vmem:[%s974 + $0x1b8] sm:$0xff]
    %v2958 = vld [vmem:[%s974 + $0x1c0] sm:$0xff]
    %v2959 = vld [vmem:[%s974 + $0x1c8] sm:$0xff]
    %v2960 = vld [vmem:[%s974 + $0x1d0] sm:$0xff]
    %v2961 = vld [vmem:[%s974 + $0x1d8] sm:$0xff]
    %v2962 = vld [vmem:[%s974 + $0x1e0] sm:$0xff]
    %v2963 = vld [vmem:[%s974 + $0x1e8] sm:$0xff]
    %v2964 = vld [vmem:[%s974 + $0x1f0] sm:$0xff]
    %v2965 = vld [vmem:[%s974 + $0x1f8] sm:$0xff]
    %2966 = vmatprep.subr.mxu0 %v2903
    %2967 = vmatpush1.msra.mxu0 %v2902
    %2968 = vmatprep.subr.mxu0 %v2907
    %2969 = vmatpush1.msra.mxu0 %v2906
    %2970 = vmatprep.subr.mxu0 %v2911
    %2971 = vmatpush1.msra.mxu0 %v2910
    %2972 = vmatprep.subr.mxu0 %v2915
    %2973 = vmatpush1.msra.mxu0 %v2914
    %2974 = vmatprep.subr.mxu0 %v2919
    %2975 = vmatpush1.msra.mxu0 %v2918
    %2976 = vmatprep.subr.mxu0 %v2923
    %2977 = vmatpush1.msra.mxu0 %v2922
    %2978 = vmatprep.subr.mxu0 %v2927
    %2979 = vmatpush1.msra.mxu0 %v2926
    %2980 = vmatprep.subr.mxu0 %v2931
    %2981 = vmatpush1.msra.mxu0 %v2930
    %2982 = vmatprep.subr.mxu0 %v2935
    %2983 = vmatpush1.msra.mxu0 %v2934
    %2984 = vmatprep.subr.mxu0 %v2939
    %2985 = vmatpush1.msra.mxu0 %v2938
    %2986 = vmatprep.subr.mxu0 %v2943
    %2987 = vmatpush1.msra.mxu0 %v2942
    %2988 = vmatprep.subr.mxu0 %v2947
    %2989 = vmatpush1.msra.mxu0 %v2946
    %2990 = vmatprep.subr.mxu0 %v2951
    %2991 = vmatpush1.msra.mxu0 %v2950
    %2992 = vmatprep.subr.mxu0 %v2955
    %2993 = vmatpush1.msra.mxu0 %v2954
    %2994 = vmatprep.subr.mxu0 %v2959
    %2995 = vmatpush1.msra.mxu0 %v2958
    %2996 = vmatprep.subr.mxu0 %v2963
    %2997 = vmatpush1.msra.mxu0 %v2962
    %2998 = vmatprep.subr.mxu0 0.0
    %2999 = vmatpush1.msra.mxu0 0.0
    %3000 = vmatprep.subr.mxu0 0.0
    %3001 = vmatpush1.msra.mxu0 0.0
    %3002 = vmatprep.subr.mxu0 0.0
    %3003 = vmatpush1.msra.mxu0 0.0
    %3004 = vmatprep.subr.mxu0 0.0
    %3005 = vmatpush1.msra.mxu0 0.0
    %3006 = vmatprep.subr.mxu0 0.0
    %3007 = vmatpush1.msra.mxu0 0.0
    %3008 = vmatprep.subr.mxu0 0.0
    %3009 = vmatpush1.msra.mxu0 0.0
    %3010 = vmatprep.subr.mxu0 0.0
    %3011 = vmatpush1.msra.mxu0 0.0
    %3012 = vmatprep.subr.mxu0 0.0
    %3013 = vmatpush1.msra.mxu0 0.0
    %3014 = vmatprep.subr.mxu0 0.0
    %3015 = vmatpush1.msra.mxu0 0.0
    %3016 = vmatprep.subr.mxu0 0.0
    %3017 = vmatpush1.msra.mxu0 0.0
    %3018 = vmatprep.subr.mxu0 0.0
    %3019 = vmatpush1.msra.mxu0 0.0
    %3020 = vmatprep.subr.mxu0 0.0
    %3021 = vmatpush1.msra.mxu0 0.0
    %3022 = vmatprep.subr.mxu0 0.0
    %3023 = vmatpush1.msra.mxu0 0.0
    %3024 = vmatprep.subr.mxu0 0.0
    %3025 = vmatpush1.msra.mxu0 0.0
    %3026 = vmatprep.subr.mxu0 0.0
    %3027 = vmatpush1.msra.mxu0 0.0
    %3028 = vmatprep.subr.mxu0 0.0
    %3029 = vmatpush1.msra.mxu0 0.0
    %3030 = vmatprep.mubr.f32.mxu0 0.0
    %3031 = vmatmul.mubr.f32.gmra.mrb[0].mxu0 %v2677
    %v3032 = vpop.f32.mrb[0].mxu0
    %v3033 = vadd.f32 0.0, %v3032
    %v3034 = vpop.f32.mrb[0].mxu0
    %v3035 = vadd.f32 0.0, %v3034
    %3036 = vdwg.mxu0
    %3037 = vmatprep.subr.mxu0 %v2905
    %3038 = vmatpush1.msra.mxu0 %v2904
    %3039 = vmatprep.subr.mxu0 %v2909
    %3040 = vmatpush1.msra.mxu0 %v2908
    %3041 = vmatprep.subr.mxu0 %v2913
    %3042 = vmatpush1.msra.mxu0 %v2912
    %3043 = vmatprep.subr.mxu0 %v2917
    %3044 = vmatpush1.msra.mxu0 %v2916
    %3045 = vmatprep.subr.mxu0 %v2921
    %3046 = vmatpush1.msra.mxu0 %v2920
    %3047 = vmatprep.subr.mxu0 %v2925
    %3048 = vmatpush1.msra.mxu0 %v2924
    %3049 = vmatprep.subr.mxu0 %v2929
    %3050 = vmatpush1.msra.mxu0 %v2928
    %3051 = vmatprep.subr.mxu0 %v2933
    %3052 = vmatpush1.msra.mxu0 %v2932
    %3053 = vmatprep.subr.mxu0 %v2937
    %3054 = vmatpush1.msra.mxu0 %v2936
    %3055 = vmatprep.subr.mxu0 %v2941
    %3056 = vmatpush1.msra.mxu0 %v2940
    %3057 = vmatprep.subr.mxu0 %v2945
    %3058 = vmatpush1.msra.mxu0 %v2944
    %3059 = vmatprep.subr.mxu0 %v2949
    %3060 = vmatpush1.msra.mxu0 %v2948
    %3061 = vmatprep.subr.mxu0 %v2953
    %3062 = vmatpush1.msra.mxu0 %v2952
    %3063 = vmatprep.subr.mxu0 %v2957
    %3064 = vmatpush1.msra.mxu0 %v2956
    %3065 = vmatprep.subr.mxu0 %v2961
    %3066 = vmatpush1.msra.mxu0 %v2960
    %3067 = vmatprep.subr.mxu0 %v2965
    %3068 = vmatpush1.msra.mxu0 %v2964
    %3069 = vmatprep.subr.mxu0 0.0
    %3070 = vmatpush1.msra.mxu0 0.0
    %3071 = vmatprep.subr.mxu0 0.0
    %3072 = vmatpush1.msra.mxu0 0.0
    %3073 = vmatprep.subr.mxu0 0.0
    %3074 = vmatpush1.msra.mxu0 0.0
    %3075 = vmatprep.subr.mxu0 0.0
    %3076 = vmatpush1.msra.mxu0 0.0
    %3077 = vmatprep.subr.mxu0 0.0
    %3078 = vmatpush1.msra.mxu0 0.0
    %3079 = vmatprep.subr.mxu0 0.0
    %3080 = vmatpush1.msra.mxu0 0.0
    %3081 = vmatprep.subr.mxu0 0.0
    %3082 = vmatpush1.msra.mxu0 0.0
    %3083 = vmatprep.subr.mxu0 0.0
    %3084 = vmatpush1.msra.mxu0 0.0
    %3085 = vmatprep.subr.mxu0 0.0
    %3086 = vmatpush1.msra.mxu0 0.0
    %3087 = vmatprep.subr.mxu0 0.0
    %3088 = vmatpush1.msra.mxu0 0.0
    %3089 = vmatprep.subr.mxu0 0.0
    %3090 = vmatpush1.msra.mxu0 0.0
    %3091 = vmatprep.subr.mxu0 0.0
    %3092 = vmatpush1.msra.mxu0 0.0
    %3093 = vmatprep.subr.mxu0 0.0
    %3094 = vmatpush1.msra.mxu0 0.0
    %3095 = vmatprep.subr.mxu0 0.0
    %3096 = vmatpush1.msra.mxu0 0.0
    %3097 = vmatprep.subr.mxu0 0.0
    %3098 = vmatpush1.msra.mxu0 0.0
    %3099 = vmatprep.subr.mxu0 0.0
    %3100 = vmatpush1.msra.mxu0 0.0
    %3101 = vmatprep.mubr.f32.mxu0 0.0
    %3102 = vmatmul.mubr.f32.gmra.mrb[0].mxu0 %v2677
    %v3103 = vpop.f32.mrb[0].mxu0
    %v3104 = vadd.f32 0.0, %v3103
    %v3105 = vpop.f32.mrb[0].mxu0
    %v3106 = vadd.f32 0.0, %v3105
    %3107 = vdwg.mxu0
    %v3108 = vadd.f32 %v2898, %v3033
    %v3109 = vadd.f32 %v2899, %v3035
    %v3110 = vadd.f32 %v2900, %v3104
    %v3111 = vadd.f32 %v2901, %v3106
    %v3112 = vxor.u32 %v2893, 2147483648
    %v3113 = vxor.u32 %v2894, 2147483648
    %v3114 = vxor.u32 %v2895, 2147483648
    %v3115 = vmul.f32 %v3112, 1.442695
    %v3116 = vpow.pop %v3115
    %v3117 = vmul.f32 %v3113, 1.442695
    %v3118 = vpow.pop %v3117
    %v3119 = vmul.f32 %v3114, 1.442695
    %v3120 = vpow.pop %v3119
    %v3121 = vadd.f32 %v3116, 1.0
    %v3122 = vadd.f32 %v3118, 1.0
    %v3123 = vadd.f32 %v3120, 1.0
    %v3124 = vrcp.pop %v3121
    %v3125 = vmul.f32 1.0, %v3124
    %v3126 = vrcp.pop %v3122
    %v3127 = vmul.f32 1.0, %v3126
    %v3128 = vrcp.pop %v3123
    %v3129 = vmul.f32 1.0, %v3128
    %v3130 = vtanh.pop %v2896
    %v3131 = vmul.f32 %v3127, %v2651
    %v3132 = vmul.f32 %v3125, %v3130
    %v3133 = vadd.f32 %v3131, %v3132
    %v3134 = vtanh.pop %v3133
    %v3135 = vmul.f32 %v3129, %v3134
    %v3136 = vxor.u32 %v3108, 2147483648
    %v3137 = vxor.u32 %v3109, 2147483648
    %v3138 = vxor.u32 %v3110, 2147483648
    %v3139 = vmul.f32 %v3136, 1.442695
    %v3140 = vpow.pop %v3139
    %v3141 = vmul.f32 %v3137, 1.442695
    %v3142 = vpow.pop %v3141
    %v3143 = vmul.f32 %v3138, 1.442695
    %v3144 = vpow.pop %v3143
    %v3145 = vadd.f32 %v3140, 1.0
    %v3146 = vadd.f32 %v3142, 1.0
    %v3147 = vadd.f32 %v3144, 1.0
    %v3148 = vrcp.pop %v3145
    %v3149 = vmul.f32 1.0, %v3148
    %v3150 = vrcp.pop %v3146
    %v3151 = vmul.f32 1.0, %v3150
    %v3152 = vrcp.pop %v3147
    %v3153 = vmul.f32 1.0, %v3152
    %v3154 = vtanh.pop %v3111
    %v3155 = vmul.f32 %v3151, %v2675
    %v3156 = vmul.f32 %v3149, %v3154
    %v3157 = vadd.f32 %v3155, %v3156
    %v3158 = vtanh.pop %v3157
    %v3159 = vmul.f32 %v3153, %v3158
    %s3160 = scalar_lea.vmem [#allocation4], 32
    %3161 = vst [vmem:[%s3160] sm:$0xff] %v3135
    %s3162 = scalar_lea.vmem [#allocation5], 24
    %3163 = vst [vmem:[%s3162] sm:$0xff] %v3159
    %s3164 = scalar_lea.vmem [#allocation2], 160
    %v3165 = vld [vmem:[%s3164] sm:$0xff]
    %v3166 = vld [vmem:[%s3164 + $0x8] sm:$0xff]
    %v3167 = vld [vmem:[%s3164 + $0x10] sm:$0xff]
    %v3168 = vld [vmem:[%s3164 + $0x18] sm:$0xff]
    %v3169 = vld [vmem:[#allocation9] sm:$0xff]
    %v3170 = vld [vmem:[#allocation9 + $0x8] sm:$0xff]
    %v3171 = vld [vmem:[#allocation9 + $0x10] sm:$0xff]
    %v3172 = vld [vmem:[#allocation9 + $0x18] sm:$0xff]
    %v3173 = vld [vmem:[#allocation9 + $0x20] sm:$0xff]
    %v3174 = vld [vmem:[#allocation9 + $0x28] sm:$0xff]
    %v3175 = vld [vmem:[#allocation9 + $0x30] sm:$0xff]
    %v3176 = vld [vmem:[#allocation9 + $0x38] sm:$0xff]
    %v3177 = vld [vmem:[#allocation9 + $0x40] sm:$0xff]
    %v3178 = vld [vmem:[#allocation9 + $0x48] sm:$0xff]
    %v3179 = vld [vmem:[#allocation9 + $0x50] sm:$0xff]
    %v3180 = vld [vmem:[#allocation9 + $0x58] sm:$0xff]
    %v3181 = vld [vmem:[#allocation9 + $0x60] sm:$0xff]
    %v3182 = vld [vmem:[#allocation9 + $0x68] sm:$0xff]
    %v3183 = vld [vmem:[#allocation9 + $0x70] sm:$0xff]
    %v3184 = vld [vmem:[#allocation9 + $0x78] sm:$0xff]
    %v3185 = vld [vmem:[#allocation9 + $0x80] sm:$0xff]
    %v3186 = vld [vmem:[#allocation9 + $0x88] sm:$0xff]
    %v3187 = vld [vmem:[#allocation9 + $0x90] sm:$0xff]
    %v3188 = vld [vmem:[#allocation9 + $0x98] sm:$0xff]
    %v3189 = vld [vmem:[#allocation9 + $0xa0] sm:$0xff]
    %v3190 = vld [vmem:[#allocation9 + $0xa8] sm:$0xff]
    %v3191 = vld [vmem:[#allocation9 + $0xb0] sm:$0xff]
    %v3192 = vld [vmem:[#allocation9 + $0xb8] sm:$0xff]
    %v3193 = vld [vmem:[#allocation9 + $0xc0] sm:$0xff]
    %v3194 = vld [vmem:[#allocation9 + $0xc8] sm:$0xff]
    %v3195 = vld [vmem:[#allocation9 + $0xd0] sm:$0xff]
    %v3196 = vld [vmem:[#allocation9 + $0xd8] sm:$0xff]
    %v3197 = vld [vmem:[#allocation9 + $0xe0] sm:$0xff]
    %v3198 = vld [vmem:[#allocation9 + $0xe8] sm:$0xff]
    %v3199 = vld [vmem:[#allocation9 + $0xf0] sm:$0xff]
    %v3200 = vld [vmem:[#allocation9 + $0xf8] sm:$0xff]
    %v3201 = vld [vmem:[#allocation9 + $0x100] sm:$0xff]
    %v3202 = vld [vmem:[#allocation9 + $0x108] sm:$0xff]
    %v3203 = vld [vmem:[#allocation9 + $0x110] sm:$0xff]
    %v3204 = vld [vmem:[#allocation9 + $0x118] sm:$0xff]
    %v3205 = vld [vmem:[#allocation9 + $0x120] sm:$0xff]
    %v3206 = vld [vmem:[#allocation9 + $0x128] sm:$0xff]
    %v3207 = vld [vmem:[#allocation9 + $0x130] sm:$0xff]
    %v3208 = vld [vmem:[#allocation9 + $0x138] sm:$0xff]
    %v3209 = vld [vmem:[#allocation9 + $0x140] sm:$0xff]
    %v3210 = vld [vmem:[#allocation9 + $0x148] sm:$0xff]
    %v3211 = vld [vmem:[#allocation9 + $0x150] sm:$0xff]
    %v3212 = vld [vmem:[#allocation9 + $0x158] sm:$0xff]
    %v3213 = vld [vmem:[#allocation9 + $0x160] sm:$0xff]
    %v3214 = vld [vmem:[#allocation9 + $0x168] sm:$0xff]
    %v3215 = vld [vmem:[#allocation9 + $0x170] sm:$0xff]
    %v3216 = vld [vmem:[#allocation9 + $0x178] sm:$0xff]
    %v3217 = vld [vmem:[#allocation9 + $0x180] sm:$0xff]
    %v3218 = vld [vmem:[#allocation9 + $0x188] sm:$0xff]
    %v3219 = vld [vmem:[#allocation9 + $0x190] sm:$0xff]
    %v3220 = vld [vmem:[#allocation9 + $0x198] sm:$0xff]
    %v3221 = vld [vmem:[#allocation9 + $0x1a0] sm:$0xff]
    %v3222 = vld [vmem:[#allocation9 + $0x1a8] sm:$0xff]
    %v3223 = vld [vmem:[#allocation9 + $0x1b0] sm:$0xff]
    %v3224 = vld [vmem:[#allocation9 + $0x1b8] sm:$0xff]
    %v3225 = vld [vmem:[#allocation9 + $0x1c0] sm:$0xff]
    %v3226 = vld [vmem:[#allocation9 + $0x1c8] sm:$0xff]
    %v3227 = vld [vmem:[#allocation9 + $0x1d0] sm:$0xff]
    %v3228 = vld [vmem:[#allocation9 + $0x1d8] sm:$0xff]
    %v3229 = vld [vmem:[#allocation9 + $0x1e0] sm:$0xff]
    %v3230 = vld [vmem:[#allocation9 + $0x1e8] sm:$0xff]
    %v3231 = vld [vmem:[#allocation9 + $0x1f0] sm:$0xff]
    %v3232 = vld [vmem:[#allocation9 + $0x1f8] sm:$0xff]
    %3233 = vmatprep.subr.mxu0 %v3170
    %3234 = vmatpush1.msra.mxu0 %v3169
    %3235 = vmatprep.subr.mxu0 %v3174
    %3236 = vmatpush1.msra.mxu0 %v3173
    %3237 = vmatprep.subr.mxu0 %v3178
    %3238 = vmatpush1.msra.mxu0 %v3177
    %3239 = vmatprep.subr.mxu0 %v3182
    %3240 = vmatpush1.msra.mxu0 %v3181
    %3241 = vmatprep.subr.mxu0 %v3186
    %3242 = vmatpush1.msra.mxu0 %v3185
    %3243 = vmatprep.subr.mxu0 %v3190
    %3244 = vmatpush1.msra.mxu0 %v3189
    %3245 = vmatprep.subr.mxu0 %v3194
    %3246 = vmatpush1.msra.mxu0 %v3193
    %3247 = vmatprep.subr.mxu0 %v3198
    %3248 = vmatpush1.msra.mxu0 %v3197
    %3249 = vmatprep.subr.mxu0 %v3202
    %3250 = vmatpush1.msra.mxu0 %v3201
    %3251 = vmatprep.subr.mxu0 %v3206
    %3252 = vmatpush1.msra.mxu0 %v3205
    %3253 = vmatprep.subr.mxu0 %v3210
    %3254 = vmatpush1.msra.mxu0 %v3209
    %3255 = vmatprep.subr.mxu0 %v3214
    %3256 = vmatpush1.msra.mxu0 %v3213
    %3257 = vmatprep.subr.mxu0 %v3218
    %3258 = vmatpush1.msra.mxu0 %v3217
    %3259 = vmatprep.subr.mxu0 %v3222
    %3260 = vmatpush1.msra.mxu0 %v3221
    %3261 = vmatprep.subr.mxu0 %v3226
    %3262 = vmatpush1.msra.mxu0 %v3225
    %3263 = vmatprep.subr.mxu0 %v3230
    %3264 = vmatpush1.msra.mxu0 %v3229
    %3265 = vmatprep.subr.mxu0 0.0
    %3266 = vmatpush1.msra.mxu0 0.0
    %3267 = vmatprep.subr.mxu0 0.0
    %3268 = vmatpush1.msra.mxu0 0.0
    %3269 = vmatprep.subr.mxu0 0.0
    %3270 = vmatpush1.msra.mxu0 0.0
    %3271 = vmatprep.subr.mxu0 0.0
    %3272 = vmatpush1.msra.mxu0 0.0
    %3273 = vmatprep.subr.mxu0 0.0
    %3274 = vmatpush1.msra.mxu0 0.0
    %3275 = vmatprep.subr.mxu0 0.0
    %3276 = vmatpush1.msra.mxu0 0.0
    %3277 = vmatprep.subr.mxu0 0.0
    %3278 = vmatpush1.msra.mxu0 0.0
    %3279 = vmatprep.subr.mxu0 0.0
    %3280 = vmatpush1.msra.mxu0 0.0
    %3281 = vmatprep.subr.mxu0 0.0
    %3282 = vmatpush1.msra.mxu0 0.0
    %3283 = vmatprep.subr.mxu0 0.0
    %3284 = vmatpush1.msra.mxu0 0.0
    %3285 = vmatprep.subr.mxu0 0.0
    %3286 = vmatpush1.msra.mxu0 0.0
    %3287 = vmatprep.subr.mxu0 0.0
    %3288 = vmatpush1.msra.mxu0 0.0
    %3289 = vmatprep.subr.mxu0 0.0
    %3290 = vmatpush1.msra.mxu0 0.0
    %3291 = vmatprep.subr.mxu0 0.0
    %3292 = vmatpush1.msra.mxu0 0.0
    %3293 = vmatprep.subr.mxu0 0.0
    %3294 = vmatpush1.msra.mxu0 0.0
    %3295 = vmatprep.subr.mxu0 0.0
    %3296 = vmatpush1.msra.mxu0 0.0
    %3297 = vmatprep.mubr.f32.mxu0 0.0
    %3298 = vmatmul.mubr.f32.gmra.mrb[0].mxu0 %v3135
    %v3299 = vpop.f32.mrb[0].mxu0
    %v3300 = vadd.f32 0.0, %v3299
    %v3301 = vpop.f32.mrb[0].mxu0
    %v3302 = vadd.f32 0.0, %v3301
    %3303 = vdwg.mxu0
    %3304 = vmatprep.subr.mxu0 %v3172
    %3305 = vmatpush1.msra.mxu0 %v3171
    %3306 = vmatprep.subr.mxu0 %v3176
    %3307 = vmatpush1.msra.mxu0 %v3175
    %3308 = vmatprep.subr.mxu0 %v3180
    %3309 = vmatpush1.msra.mxu0 %v3179
    %3310 = vmatprep.subr.mxu0 %v3184
    %3311 = vmatpush1.msra.mxu0 %v3183
    %3312 = vmatprep.subr.mxu0 %v3188
    %3313 = vmatpush1.msra.mxu0 %v3187
    %3314 = vmatprep.subr.mxu0 %v3192
    %3315 = vmatpush1.msra.mxu0 %v3191
    %3316 = vmatprep.subr.mxu0 %v3196
    %3317 = vmatpush1.msra.mxu0 %v3195
    %3318 = vmatprep.subr.mxu0 %v3200
    %3319 = vmatpush1.msra.mxu0 %v3199
    %3320 = vmatprep.subr.mxu0 %v3204
    %3321 = vmatpush1.msra.mxu0 %v3203
    %3322 = vmatprep.subr.mxu0 %v3208
    %3323 = vmatpush1.msra.mxu0 %v3207
    %3324 = vmatprep.subr.mxu0 %v3212
    %3325 = vmatpush1.msra.mxu0 %v3211
    %3326 = vmatprep.subr.mxu0 %v3216
    %3327 = vmatpush1.msra.mxu0 %v3215
    %3328 = vmatprep.subr.mxu0 %v3220
    %3329 = vmatpush1.msra.mxu0 %v3219
    %3330 = vmatprep.subr.mxu0 %v3224
    %3331 = vmatpush1.msra.mxu0 %v3223
    %3332 = vmatprep.subr.mxu0 %v3228
    %3333 = vmatpush1.msra.mxu0 %v3227
    %3334 = vmatprep.subr.mxu0 %v3232
    %3335 = vmatpush1.msra.mxu0 %v3231
    %3336 = vmatprep.subr.mxu0 0.0
    %3337 = vmatpush1.msra.mxu0 0.0
    %3338 = vmatprep.subr.mxu0 0.0
    %3339 = vmatpush1.msra.mxu0 0.0
    %3340 = vmatprep.subr.mxu0 0.0
    %3341 = vmatpush1.msra.mxu0 0.0
    %3342 = vmatprep.subr.mxu0 0.0
    %3343 = vmatpush1.msra.mxu0 0.0
    %3344 = vmatprep.subr.mxu0 0.0
    %3345 = vmatpush1.msra.mxu0 0.0
    %3346 = vmatprep.subr.mxu0 0.0
    %3347 = vmatpush1.msra.mxu0 0.0
    %3348 = vmatprep.subr.mxu0 0.0
    %3349 = vmatpush1.msra.mxu0 0.0
    %3350 = vmatprep.subr.mxu0 0.0
    %3351 = vmatpush1.msra.mxu0 0.0
    %3352 = vmatprep.subr.mxu0 0.0
    %3353 = vmatpush1.msra.mxu0 0.0
    %3354 = vmatprep.subr.mxu0 0.0
    %3355 = vmatpush1.msra.mxu0 0.0
    %3356 = vmatprep.subr.mxu0 0.0
    %3357 = vmatpush1.msra.mxu0 0.0
    %3358 = vmatprep.subr.mxu0 0.0
    %3359 = vmatpush1.msra.mxu0 0.0
    %3360 = vmatprep.subr.mxu0 0.0
    %3361 = vmatpush1.msra.mxu0 0.0
    %3362 = vmatprep.subr.mxu0 0.0
    %3363 = vmatpush1.msra.mxu0 0.0
    %3364 = vmatprep.subr.mxu0 0.0
    %3365 = vmatpush1.msra.mxu0 0.0
    %3366 = vmatprep.subr.mxu0 0.0
    %3367 = vmatpush1.msra.mxu0 0.0
    %3368 = vmatprep.mubr.f32.mxu0 0.0
    %3369 = vmatmul.mubr.f32.gmra.mrb[0].mxu0 %v3135
    %v3370 = vpop.f32.mrb[0].mxu0
    %v3371 = vadd.f32 0.0, %v3370
    %v3372 = vpop.f32.mrb[0].mxu0
    %v3373 = vadd.f32 0.0, %v3372
    %3374 = vdwg.mxu0
    %v3375 = vadd.f32 %v3165, %v3300
    %v3376 = vadd.f32 %v3166, %v3302
    %v3377 = vadd.f32 %v3167, %v3371
    %v3378 = vadd.f32 %v3168, %v3373
    %s3379 = scalar_lea.vmem [#allocation3], 64
    %v3380 = vld [vmem:[%s3379] sm:$0xff]
    %v3381 = vld [vmem:[%s3379 + $0x8] sm:$0xff]
    %v3382 = vld [vmem:[%s3379 + $0x10] sm:$0xff]
    %v3383 = vld [vmem:[%s3379 + $0x18] sm:$0xff]
    %v3384 = vld [vmem:[%s974] sm:$0xff]
    %v3385 = vld [vmem:[%s974 + $0x8] sm:$0xff]
    %v3386 = vld [vmem:[%s974 + $0x10] sm:$0xff]
    %v3387 = vld [vmem:[%s974 + $0x18] sm:$0xff]
    %v3388 = vld [vmem:[%s974 + $0x20] sm:$0xff]
    %v3389 = vld [vmem:[%s974 + $0x28] sm:$0xff]
    %v3390 = vld [vmem:[%s974 + $0x30] sm:$0xff]
    %v3391 = vld [vmem:[%s974 + $0x38] sm:$0xff]
    %v3392 = vld [vmem:[%s974 + $0x40] sm:$0xff]
    %v3393 = vld [vmem:[%s974 + $0x48] sm:$0xff]
    %v3394 = vld [vmem:[%s974 + $0x50] sm:$0xff]
    %v3395 = vld [vmem:[%s974 + $0x58] sm:$0xff]
    %v3396 = vld [vmem:[%s974 + $0x60] sm:$0xff]
    %v3397 = vld [vmem:[%s974 + $0x68] sm:$0xff]
    %v3398 = vld [vmem:[%s974 + $0x70] sm:$0xff]
    %v3399 = vld [vmem:[%s974 + $0x78] sm:$0xff]
    %v3400 = vld [vmem:[%s974 + $0x80] sm:$0xff]
    %v3401 = vld [vmem:[%s974 + $0x88] sm:$0xff]
    %v3402 = vld [vmem:[%s974 + $0x90] sm:$0xff]
    %v3403 = vld [vmem:[%s974 + $0x98] sm:$0xff]
    %v3404 = vld [vmem:[%s974 + $0xa0] sm:$0xff]
    %v3405 = vld [vmem:[%s974 + $0xa8] sm:$0xff]
    %v3406 = vld [vmem:[%s974 + $0xb0] sm:$0xff]
    %v3407 = vld [vmem:[%s974 + $0xb8] sm:$0xff]
    %v3408 = vld [vmem:[%s974 + $0xc0] sm:$0xff]
    %v3409 = vld [vmem:[%s974 + $0xc8] sm:$0xff]
    %v3410 = vld [vmem:[%s974 + $0xd0] sm:$0xff]
    %v3411 = vld [vmem:[%s974 + $0xd8] sm:$0xff]
    %v3412 = vld [vmem:[%s974 + $0xe0] sm:$0xff]
    %v3413 = vld [vmem:[%s974 + $0xe8] sm:$0xff]
    %v3414 = vld [vmem:[%s974 + $0xf0] sm:$0xff]
    %v3415 = vld [vmem:[%s974 + $0xf8] sm:$0xff]
    %v3416 = vld [vmem:[%s974 + $0x100] sm:$0xff]
    %v3417 = vld [vmem:[%s974 + $0x108] sm:$0xff]
    %v3418 = vld [vmem:[%s974 + $0x110] sm:$0xff]
    %v3419 = vld [vmem:[%s974 + $0x118] sm:$0xff]
    %v3420 = vld [vmem:[%s974 + $0x120] sm:$0xff]
    %v3421 = vld [vmem:[%s974 + $0x128] sm:$0xff]
    %v3422 = vld [vmem:[%s974 + $0x130] sm:$0xff]
    %v3423 = vld [vmem:[%s974 + $0x138] sm:$0xff]
    %v3424 = vld [vmem:[%s974 + $0x140] sm:$0xff]
    %v3425 = vld [vmem:[%s974 + $0x148] sm:$0xff]
    %v3426 = vld [vmem:[%s974 + $0x150] sm:$0xff]
    %v3427 = vld [vmem:[%s974 + $0x158] sm:$0xff]
    %v3428 = vld [vmem:[%s974 + $0x160] sm:$0xff]
    %v3429 = vld [vmem:[%s974 + $0x168] sm:$0xff]
    %v3430 = vld [vmem:[%s974 + $0x170] sm:$0xff]
    %v3431 = vld [vmem:[%s974 + $0x178] sm:$0xff]
    %v3432 = vld [vmem:[%s974 + $0x180] sm:$0xff]
    %v3433 = vld [vmem:[%s974 + $0x188] sm:$0xff]
    %v3434 = vld [vmem:[%s974 + $0x190] sm:$0xff]
    %v3435 = vld [vmem:[%s974 + $0x198] sm:$0xff]
    %v3436 = vld [vmem:[%s974 + $0x1a0] sm:$0xff]
    %v3437 = vld [vmem:[%s974 + $0x1a8] sm:$0xff]
    %v3438 = vld [vmem:[%s974 + $0x1b0] sm:$0xff]
    %v3439 = vld [vmem:[%s974 + $0x1b8] sm:$0xff]
    %v3440 = vld [vmem:[%s974 + $0x1c0] sm:$0xff]
    %v3441 = vld [vmem:[%s974 + $0x1c8] sm:$0xff]
    %v3442 = vld [vmem:[%s974 + $0x1d0] sm:$0xff]
    %v3443 = vld [vmem:[%s974 + $0x1d8] sm:$0xff]
    %v3444 = vld [vmem:[%s974 + $0x1e0] sm:$0xff]
    %v3445 = vld [vmem:[%s974 + $0x1e8] sm:$0xff]
    %v3446 = vld [vmem:[%s974 + $0x1f0] sm:$0xff]
    %v3447 = vld [vmem:[%s974 + $0x1f8] sm:$0xff]
    %3448 = vmatprep.subr.mxu0 %v3385
    %3449 = vmatpush1.msra.mxu0 %v3384
    %3450 = vmatprep.subr.mxu0 %v3389
    %3451 = vmatpush1.msra.mxu0 %v3388
    %3452 = vmatprep.subr.mxu0 %v3393
    %3453 = vmatpush1.msra.mxu0 %v3392
    %3454 = vmatprep.subr.mxu0 %v3397
    %3455 = vmatpush1.msra.mxu0 %v3396
    %3456 = vmatprep.subr.mxu0 %v3401
    %3457 = vmatpush1.msra.mxu0 %v3400
    %3458 = vmatprep.subr.mxu0 %v3405
    %3459 = vmatpush1.msra.mxu0 %v3404
    %3460 = vmatprep.subr.mxu0 %v3409
    %3461 = vmatpush1.msra.mxu0 %v3408
    %3462 = vmatprep.subr.mxu0 %v3413
    %3463 = vmatpush1.msra.mxu0 %v3412
    %3464 = vmatprep.subr.mxu0 %v3417
    %3465 = vmatpush1.msra.mxu0 %v3416
    %3466 = vmatprep.subr.mxu0 %v3421
    %3467 = vmatpush1.msra.mxu0 %v3420
    %3468 = vmatprep.subr.mxu0 %v3425
    %3469 = vmatpush1.msra.mxu0 %v3424
    %3470 = vmatprep.subr.mxu0 %v3429
    %3471 = vmatpush1.msra.mxu0 %v3428
    %3472 = vmatprep.subr.mxu0 %v3433
    %3473 = vmatpush1.msra.mxu0 %v3432
    %3474 = vmatprep.subr.mxu0 %v3437
    %3475 = vmatpush1.msra.mxu0 %v3436
    %3476 = vmatprep.subr.mxu0 %v3441
    %3477 = vmatpush1.msra.mxu0 %v3440
    %3478 = vmatprep.subr.mxu0 %v3445
    %3479 = vmatpush1.msra.mxu0 %v3444
    %3480 = vmatprep.subr.mxu0 0.0
    %3481 = vmatpush1.msra.mxu0 0.0
    %3482 = vmatprep.subr.mxu0 0.0
    %3483 = vmatpush1.msra.mxu0 0.0
    %3484 = vmatprep.subr.mxu0 0.0
    %3485 = vmatpush1.msra.mxu0 0.0
    %3486 = vmatprep.subr.mxu0 0.0
    %3487 = vmatpush1.msra.mxu0 0.0
    %3488 = vmatprep.subr.mxu0 0.0
    %3489 = vmatpush1.msra.mxu0 0.0
    %3490 = vmatprep.subr.mxu0 0.0
    %3491 = vmatpush1.msra.mxu0 0.0
    %3492 = vmatprep.subr.mxu0 0.0
    %3493 = vmatpush1.msra.mxu0 0.0
    %3494 = vmatprep.subr.mxu0 0.0
    %3495 = vmatpush1.msra.mxu0 0.0
    %3496 = vmatprep.subr.mxu0 0.0
    %3497 = vmatpush1.msra.mxu0 0.0
    %3498 = vmatprep.subr.mxu0 0.0
    %3499 = vmatpush1.msra.mxu0 0.0
    %3500 = vmatprep.subr.mxu0 0.0
    %3501 = vmatpush1.msra.mxu0 0.0
    %3502 = vmatprep.subr.mxu0 0.0
    %3503 = vmatpush1.msra.mxu0 0.0
    %3504 = vmatprep.subr.mxu0 0.0
    %3505 = vmatpush1.msra.mxu0 0.0
    %3506 = vmatprep.subr.mxu0 0.0
    %3507 = vmatpush1.msra.mxu0 0.0
    %3508 = vmatprep.subr.mxu0 0.0
    %3509 = vmatpush1.msra.mxu0 0.0
    %3510 = vmatprep.subr.mxu0 0.0
    %3511 = vmatpush1.msra.mxu0 0.0
    %3512 = vmatprep.mubr.f32.mxu0 0.0
    %3513 = vmatmul.mubr.f32.gmra.mrb[0].mxu0 %v3159
    %v3514 = vpop.f32.mrb[0].mxu0
    %v3515 = vadd.f32 0.0, %v3514
    %v3516 = vpop.f32.mrb[0].mxu0
    %v3517 = vadd.f32 0.0, %v3516
    %3518 = vdwg.mxu0
    %3519 = vmatprep.subr.mxu0 %v3387
    %3520 = vmatpush1.msra.mxu0 %v3386
    %3521 = vmatprep.subr.mxu0 %v3391
    %3522 = vmatpush1.msra.mxu0 %v3390
    %3523 = vmatprep.subr.mxu0 %v3395
    %3524 = vmatpush1.msra.mxu0 %v3394
    %3525 = vmatprep.subr.mxu0 %v3399
    %3526 = vmatpush1.msra.mxu0 %v3398
    %3527 = vmatprep.subr.mxu0 %v3403
    %3528 = vmatpush1.msra.mxu0 %v3402
    %3529 = vmatprep.subr.mxu0 %v3407
    %3530 = vmatpush1.msra.mxu0 %v3406
    %3531 = vmatprep.subr.mxu0 %v3411
    %3532 = vmatpush1.msra.mxu0 %v3410
    %3533 = vmatprep.subr.mxu0 %v3415
    %3534 = vmatpush1.msra.mxu0 %v3414
    %3535 = vmatprep.subr.mxu0 %v3419
    %3536 = vmatpush1.msra.mxu0 %v3418
    %3537 = vmatprep.subr.mxu0 %v3423
    %3538 = vmatpush1.msra.mxu0 %v3422
    %3539 = vmatprep.subr.mxu0 %v3427
    %3540 = vmatpush1.msra.mxu0 %v3426
    %3541 = vmatprep.subr.mxu0 %v3431
    %3542 = vmatpush1.msra.mxu0 %v3430
    %3543 = vmatprep.subr.mxu0 %v3435
    %3544 = vmatpush1.msra.mxu0 %v3434
    %3545 = vmatprep.subr.mxu0 %v3439
    %3546 = vmatpush1.msra.mxu0 %v3438
    %3547 = vmatprep.subr.mxu0 %v3443
    %3548 = vmatpush1.msra.mxu0 %v3442
    %3549 = vmatprep.subr.mxu0 %v3447
    %3550 = vmatpush1.msra.mxu0 %v3446
    %3551 = vmatprep.subr.mxu0 0.0
    %3552 = vmatpush1.msra.mxu0 0.0
    %3553 = vmatprep.subr.mxu0 0.0
    %3554 = vmatpush1.msra.mxu0 0.0
    %3555 = vmatprep.subr.mxu0 0.0
    %3556 = vmatpush1.msra.mxu0 0.0
    %3557 = vmatprep.subr.mxu0 0.0
    %3558 = vmatpush1.msra.mxu0 0.0
    %3559 = vmatprep.subr.mxu0 0.0
    %3560 = vmatpush1.msra.mxu0 0.0
    %3561 = vmatprep.subr.mxu0 0.0
    %3562 = vmatpush1.msra.mxu0 0.0
    %3563 = vmatprep.subr.mxu0 0.0
    %3564 = vmatpush1.msra.mxu0 0.0
    %3565 = vmatprep.subr.mxu0 0.0
    %3566 = vmatpush1.msra.mxu0 0.0
    %3567 = vmatprep.subr.mxu0 0.0
    %3568 = vmatpush1.msra.mxu0 0.0
    %3569 = vmatprep.subr.mxu0 0.0
    %3570 = vmatpush1.msra.mxu0 0.0
    %3571 = vmatprep.subr.mxu0 0.0
    %3572 = vmatpush1.msra.mxu0 0.0
    %3573 = vmatprep.subr.mxu0 0.0
    %3574 = vmatpush1.msra.mxu0 0.0
    %3575 = vmatprep.subr.mxu0 0.0
    %3576 = vmatpush1.msra.mxu0 0.0
    %3577 = vmatprep.subr.mxu0 0.0
    %3578 = vmatpush1.msra.mxu0 0.0
    %3579 = vmatprep.subr.mxu0 0.0
    %3580 = vmatpush1.msra.mxu0 0.0
    %3581 = vmatprep.subr.mxu0 0.0
    %3582 = vmatpush1.msra.mxu0 0.0
    %3583 = vmatprep.mubr.f32.mxu0 0.0
    %3584 = vmatmul.mubr.f32.gmra.mrb[0].mxu0 %v3159
    %v3585 = vpop.f32.mrb[0].mxu0
    %v3586 = vadd.f32 0.0, %v3585
    %v3587 = vpop.f32.mrb[0].mxu0
    %v3588 = vadd.f32 0.0, %v3587
    %3589 = vdwg.mxu0
    %v3590 = vadd.f32 %v3380, %v3515
    %v3591 = vadd.f32 %v3381, %v3517
    %v3592 = vadd.f32 %v3382, %v3586
    %v3593 = vadd.f32 %v3383, %v3588
    %v3594 = vxor.u32 %v3375, 2147483648
    %v3595 = vxor.u32 %v3376, 2147483648
    %v3596 = vxor.u32 %v3377, 2147483648
    %v3597 = vmul.f32 %v3594, 1.442695
    %v3598 = vpow.pop %v3597
    %v3599 = vmul.f32 %v3595, 1.442695
    %v3600 = vpow.pop %v3599
    %v3601 = vmul.f32 %v3596, 1.442695
    %v3602 = vpow.pop %v3601
    %v3603 = vadd.f32 %v3598, 1.0
    %v3604 = vadd.f32 %v3600, 1.0
    %v3605 = vadd.f32 %v3602, 1.0
    %v3606 = vrcp.pop %v3603
    %v3607 = vmul.f32 1.0, %v3606
    %v3608 = vrcp.pop %v3604
    %v3609 = vmul.f32 1.0, %v3608
    %v3610 = vrcp.pop %v3605
    %v3611 = vmul.f32 1.0, %v3610
    %v3612 = vtanh.pop %v3378
    %v3613 = vmul.f32 %v3609, %v3133
    %v3614 = vmul.f32 %v3607, %v3612
    %v3615 = vadd.f32 %v3613, %v3614
    %v3616 = vtanh.pop %v3615
    %v3617 = vmul.f32 %v3611, %v3616
    %v3618 = vxor.u32 %v3590, 2147483648
    %v3619 = vxor.u32 %v3591, 2147483648
    %v3620 = vxor.u32 %v3592, 2147483648
    %v3621 = vmul.f32 %v3618, 1.442695
    %v3622 = vpow.pop %v3621
    %v3623 = vmul.f32 %v3619, 1.442695
    %v3624 = vpow.pop %v3623
    %v3625 = vmul.f32 %v3620, 1.442695
    %v3626 = vpow.pop %v3625
    %v3627 = vadd.f32 %v3622, 1.0
    %v3628 = vadd.f32 %v3624, 1.0
    %v3629 = vadd.f32 %v3626, 1.0
    %v3630 = vrcp.pop %v3627
    %v3631 = vmul.f32 1.0, %v3630
    %v3632 = vrcp.pop %v3628
    %v3633 = vmul.f32 1.0, %v3632
    %v3634 = vrcp.pop %v3629
    %v3635 = vmul.f32 1.0, %v3634
    %v3636 = vtanh.pop %v3593
    %v3637 = vmul.f32 %v3633, %v3157
    %v3638 = vmul.f32 %v3631, %v3636
    %v3639 = vadd.f32 %v3637, %v3638
    %v3640 = vtanh.pop %v3639
    %v3641 = vmul.f32 %v3635, %v3640
    %s3642 = scalar_lea.vmem [#allocation4], 40
    %3643 = vst [vmem:[%s3642] sm:$0xff] %v3617
    %s3644 = scalar_lea.vmem [#allocation5], 16
    %3645 = vst [vmem:[%s3644] sm:$0xff] %v3641
    %s3646 = scalar_lea.vmem [#allocation2], 192
    %v3647 = vld [vmem:[%s3646] sm:$0xff]
    %v3648 = vld [vmem:[%s3646 + $0x8] sm:$0xff]
    %v3649 = vld [vmem:[%s3646 + $0x10] sm:$0xff]
    %v3650 = vld [vmem:[%s3646 + $0x18] sm:$0xff]
    %v3651 = vld [vmem:[#allocation9] sm:$0xff]
    %v3652 = vld [vmem:[#allocation9 + $0x8] sm:$0xff]
    %v3653 = vld [vmem:[#allocation9 + $0x10] sm:$0xff]
    %v3654 = vld [vmem:[#allocation9 + $0x18] sm:$0xff]
    %v3655 = vld [vmem:[#allocation9 + $0x20] sm:$0xff]
    %v3656 = vld [vmem:[#allocation9 + $0x28] sm:$0xff]
    %v3657 = vld [vmem:[#allocation9 + $0x30] sm:$0xff]
    %v3658 = vld [vmem:[#allocation9 + $0x38] sm:$0xff]
    %v3659 = vld [vmem:[#allocation9 + $0x40] sm:$0xff]
    %v3660 = vld [vmem:[#allocation9 + $0x48] sm:$0xff]
    %v3661 = vld [vmem:[#allocation9 + $0x50] sm:$0xff]
    %v3662 = vld [vmem:[#allocation9 + $0x58] sm:$0xff]
    %v3663 = vld [vmem:[#allocation9 + $0x60] sm:$0xff]
    %v3664 = vld [vmem:[#allocation9 + $0x68] sm:$0xff]
    %v3665 = vld [vmem:[#allocation9 + $0x70] sm:$0xff]
    %v3666 = vld [vmem:[#allocation9 + $0x78] sm:$0xff]
    %v3667 = vld [vmem:[#allocation9 + $0x80] sm:$0xff]
    %v3668 = vld [vmem:[#allocation9 + $0x88] sm:$0xff]
    %v3669 = vld [vmem:[#allocation9 + $0x90] sm:$0xff]
    %v3670 = vld [vmem:[#allocation9 + $0x98] sm:$0xff]
    %v3671 = vld [vmem:[#allocation9 + $0xa0] sm:$0xff]
    %v3672 = vld [vmem:[#allocation9 + $0xa8] sm:$0xff]
    %v3673 = vld [vmem:[#allocation9 + $0xb0] sm:$0xff]
    %v3674 = vld [vmem:[#allocation9 + $0xb8] sm:$0xff]
    %v3675 = vld [vmem:[#allocation9 + $0xc0] sm:$0xff]
    %v3676 = vld [vmem:[#allocation9 + $0xc8] sm:$0xff]
    %v3677 = vld [vmem:[#allocation9 + $0xd0] sm:$0xff]
    %v3678 = vld [vmem:[#allocation9 + $0xd8] sm:$0xff]
    %v3679 = vld [vmem:[#allocation9 + $0xe0] sm:$0xff]
    %v3680 = vld [vmem:[#allocation9 + $0xe8] sm:$0xff]
    %v3681 = vld [vmem:[#allocation9 + $0xf0] sm:$0xff]
    %v3682 = vld [vmem:[#allocation9 + $0xf8] sm:$0xff]
    %v3683 = vld [vmem:[#allocation9 + $0x100] sm:$0xff]
    %v3684 = vld [vmem:[#allocation9 + $0x108] sm:$0xff]
    %v3685 = vld [vmem:[#allocation9 + $0x110] sm:$0xff]
    %v3686 = vld [vmem:[#allocation9 + $0x118] sm:$0xff]
    %v3687 = vld [vmem:[#allocation9 + $0x120] sm:$0xff]
    %v3688 = vld [vmem:[#allocation9 + $0x128] sm:$0xff]
    %v3689 = vld [vmem:[#allocation9 + $0x130] sm:$0xff]
    %v3690 = vld [vmem:[#allocation9 + $0x138] sm:$0xff]
    %v3691 = vld [vmem:[#allocation9 + $0x140] sm:$0xff]
    %v3692 = vld [vmem:[#allocation9 + $0x148] sm:$0xff]
    %v3693 = vld [vmem:[#allocation9 + $0x150] sm:$0xff]
    %v3694 = vld [vmem:[#allocation9 + $0x158] sm:$0xff]
    %v3695 = vld [vmem:[#allocation9 + $0x160] sm:$0xff]
    %v3696 = vld [vmem:[#allocation9 + $0x168] sm:$0xff]
    %v3697 = vld [vmem:[#allocation9 + $0x170] sm:$0xff]
    %v3698 = vld [vmem:[#allocation9 + $0x178] sm:$0xff]
    %v3699 = vld [vmem:[#allocation9 + $0x180] sm:$0xff]
    %v3700 = vld [vmem:[#allocation9 + $0x188] sm:$0xff]
    %v3701 = vld [vmem:[#allocation9 + $0x190] sm:$0xff]
    %v3702 = vld [vmem:[#allocation9 + $0x198] sm:$0xff]
    %v3703 = vld [vmem:[#allocation9 + $0x1a0] sm:$0xff]
    %v3704 = vld [vmem:[#allocation9 + $0x1a8] sm:$0xff]
    %v3705 = vld [vmem:[#allocation9 + $0x1b0] sm:$0xff]
    %v3706 = vld [vmem:[#allocation9 + $0x1b8] sm:$0xff]
    %v3707 = vld [vmem:[#allocation9 + $0x1c0] sm:$0xff]
    %v3708 = vld [vmem:[#allocation9 + $0x1c8] sm:$0xff]
    %v3709 = vld [vmem:[#allocation9 + $0x1d0] sm:$0xff]
    %v3710 = vld [vmem:[#allocation9 + $0x1d8] sm:$0xff]
    %v3711 = vld [vmem:[#allocation9 + $0x1e0] sm:$0xff]
    %v3712 = vld [vmem:[#allocation9 + $0x1e8] sm:$0xff]
    %v3713 = vld [vmem:[#allocation9 + $0x1f0] sm:$0xff]
    %v3714 = vld [vmem:[#allocation9 + $0x1f8] sm:$0xff]
    %3715 = vmatprep.subr.mxu0 %v3652
    %3716 = vmatpush1.msra.mxu0 %v3651
    %3717 = vmatprep.subr.mxu0 %v3656
    %3718 = vmatpush1.msra.mxu0 %v3655
    %3719 = vmatprep.subr.mxu0 %v3660
    %3720 = vmatpush1.msra.mxu0 %v3659
    %3721 = vmatprep.subr.mxu0 %v3664
    %3722 = vmatpush1.msra.mxu0 %v3663
    %3723 = vmatprep.subr.mxu0 %v3668
    %3724 = vmatpush1.msra.mxu0 %v3667
    %3725 = vmatprep.subr.mxu0 %v3672
    %3726 = vmatpush1.msra.mxu0 %v3671
    %3727 = vmatprep.subr.mxu0 %v3676
    %3728 = vmatpush1.msra.mxu0 %v3675
    %3729 = vmatprep.subr.mxu0 %v3680
    %3730 = vmatpush1.msra.mxu0 %v3679
    %3731 = vmatprep.subr.mxu0 %v3684
    %3732 = vmatpush1.msra.mxu0 %v3683
    %3733 = vmatprep.subr.mxu0 %v3688
    %3734 = vmatpush1.msra.mxu0 %v3687
    %3735 = vmatprep.subr.mxu0 %v3692
    %3736 = vmatpush1.msra.mxu0 %v3691
    %3737 = vmatprep.subr.mxu0 %v3696
    %3738 = vmatpush1.msra.mxu0 %v3695
    %3739 = vmatprep.subr.mxu0 %v3700
    %3740 = vmatpush1.msra.mxu0 %v3699
    %3741 = vmatprep.subr.mxu0 %v3704
    %3742 = vmatpush1.msra.mxu0 %v3703
    %3743 = vmatprep.subr.mxu0 %v3708
    %3744 = vmatpush1.msra.mxu0 %v3707
    %3745 = vmatprep.subr.mxu0 %v3712
    %3746 = vmatpush1.msra.mxu0 %v3711
    %3747 = vmatprep.subr.mxu0 0.0
    %3748 = vmatpush1.msra.mxu0 0.0
    %3749 = vmatprep.subr.mxu0 0.0
    %3750 = vmatpush1.msra.mxu0 0.0
    %3751 = vmatprep.subr.mxu0 0.0
    %3752 = vmatpush1.msra.mxu0 0.0
    %3753 = vmatprep.subr.mxu0 0.0
    %3754 = vmatpush1.msra.mxu0 0.0
    %3755 = vmatprep.subr.mxu0 0.0
    %3756 = vmatpush1.msra.mxu0 0.0
    %3757 = vmatprep.subr.mxu0 0.0
    %3758 = vmatpush1.msra.mxu0 0.0
    %3759 = vmatprep.subr.mxu0 0.0
    %3760 = vmatpush1.msra.mxu0 0.0
    %3761 = vmatprep.subr.mxu0 0.0
    %3762 = vmatpush1.msra.mxu0 0.0
    %3763 = vmatprep.subr.mxu0 0.0
    %3764 = vmatpush1.msra.mxu0 0.0
    %3765 = vmatprep.subr.mxu0 0.0
    %3766 = vmatpush1.msra.mxu0 0.0
    %3767 = vmatprep.subr.mxu0 0.0
    %3768 = vmatpush1.msra.mxu0 0.0
    %3769 = vmatprep.subr.mxu0 0.0
    %3770 = vmatpush1.msra.mxu0 0.0
    %3771 = vmatprep.subr.mxu0 0.0
    %3772 = vmatpush1.msra.mxu0 0.0
    %3773 = vmatprep.subr.mxu0 0.0
    %3774 = vmatpush1.msra.mxu0 0.0
    %3775 = vmatprep.subr.mxu0 0.0
    %3776 = vmatpush1.msra.mxu0 0.0
    %3777 = vmatprep.subr.mxu0 0.0
    %3778 = vmatpush1.msra.mxu0 0.0
    %3779 = vmatprep.mubr.f32.mxu0 0.0
    %3780 = vmatmul.mubr.f32.gmra.mrb[0].mxu0 %v3617
    %v3781 = vpop.f32.mrb[0].mxu0
    %v3782 = vadd.f32 0.0, %v3781
    %v3783 = vpop.f32.mrb[0].mxu0
    %v3784 = vadd.f32 0.0, %v3783
    %3785 = vdwg.mxu0
    %3786 = vmatprep.subr.mxu0 %v3654
    %3787 = vmatpush1.msra.mxu0 %v3653
    %3788 = vmatprep.subr.mxu0 %v3658
    %3789 = vmatpush1.msra.mxu0 %v3657
    %3790 = vmatprep.subr.mxu0 %v3662
    %3791 = vmatpush1.msra.mxu0 %v3661
    %3792 = vmatprep.subr.mxu0 %v3666
    %3793 = vmatpush1.msra.mxu0 %v3665
    %3794 = vmatprep.subr.mxu0 %v3670
    %3795 = vmatpush1.msra.mxu0 %v3669
    %3796 = vmatprep.subr.mxu0 %v3674
    %3797 = vmatpush1.msra.mxu0 %v3673
    %3798 = vmatprep.subr.mxu0 %v3678
    %3799 = vmatpush1.msra.mxu0 %v3677
    %3800 = vmatprep.subr.mxu0 %v3682
    %3801 = vmatpush1.msra.mxu0 %v3681
    %3802 = vmatprep.subr.mxu0 %v3686
    %3803 = vmatpush1.msra.mxu0 %v3685
    %3804 = vmatprep.subr.mxu0 %v3690
    %3805 = vmatpush1.msra.mxu0 %v3689
    %3806 = vmatprep.subr.mxu0 %v3694
    %3807 = vmatpush1.msra.mxu0 %v3693
    %3808 = vmatprep.subr.mxu0 %v3698
    %3809 = vmatpush1.msra.mxu0 %v3697
    %3810 = vmatprep.subr.mxu0 %v3702
    %3811 = vmatpush1.msra.mxu0 %v3701
    %3812 = vmatprep.subr.mxu0 %v3706
    %3813 = vmatpush1.msra.mxu0 %v3705
    %3814 = vmatprep.subr.mxu0 %v3710
    %3815 = vmatpush1.msra.mxu0 %v3709
    %3816 = vmatprep.subr.mxu0 %v3714
    %3817 = vmatpush1.msra.mxu0 %v3713
    %3818 = vmatprep.subr.mxu0 0.0
    %3819 = vmatpush1.msra.mxu0 0.0
    %3820 = vmatprep.subr.mxu0 0.0
    %3821 = vmatpush1.msra.mxu0 0.0
    %3822 = vmatprep.subr.mxu0 0.0
    %3823 = vmatpush1.msra.mxu0 0.0
    %3824 = vmatprep.subr.mxu0 0.0
    %3825 = vmatpush1.msra.mxu0 0.0
    %3826 = vmatprep.subr.mxu0 0.0
    %3827 = vmatpush1.msra.mxu0 0.0
    %3828 = vmatprep.subr.mxu0 0.0
    %3829 = vmatpush1.msra.mxu0 0.0
    %3830 = vmatprep.subr.mxu0 0.0
    %3831 = vmatpush1.msra.mxu0 0.0
    %3832 = vmatprep.subr.mxu0 0.0
    %3833 = vmatpush1.msra.mxu0 0.0
    %3834 = vmatprep.subr.mxu0 0.0
    %3835 = vmatpush1.msra.mxu0 0.0
    %3836 = vmatprep.subr.mxu0 0.0
    %3837 = vmatpush1.msra.mxu0 0.0
    %3838 = vmatprep.subr.mxu0 0.0
    %3839 = vmatpush1.msra.mxu0 0.0
    %3840 = vmatprep.subr.mxu0 0.0
    %3841 = vmatpush1.msra.mxu0 0.0
    %3842 = vmatprep.subr.mxu0 0.0
    %3843 = vmatpush1.msra.mxu0 0.0
    %3844 = vmatprep.subr.mxu0 0.0
    %3845 = vmatpush1.msra.mxu0 0.0
    %3846 = vmatprep.subr.mxu0 0.0
    %3847 = vmatpush1.msra.mxu0 0.0
    %3848 = vmatprep.subr.mxu0 0.0
    %3849 = vmatpush1.msra.mxu0 0.0
    %3850 = vmatprep.mubr.f32.mxu0 0.0
    %3851 = vmatmul.mubr.f32.gmra.mrb[0].mxu0 %v3617
    %v3852 = vpop.f32.mrb[0].mxu0
    %v3853 = vadd.f32 0.0, %v3852
    %v3854 = vpop.f32.mrb[0].mxu0
    %v3855 = vadd.f32 0.0, %v3854
    %3856 = vdwg.mxu0
    %v3857 = vadd.f32 %v3647, %v3782
    %v3858 = vadd.f32 %v3648, %v3784
    %v3859 = vadd.f32 %v3649, %v3853
    %v3860 = vadd.f32 %v3650, %v3855
    %s3861 = scalar_lea.vmem [#allocation3], 32
    %v3862 = vld [vmem:[%s3861] sm:$0xff]
    %v3863 = vld [vmem:[%s3861 + $0x8] sm:$0xff]
    %v3864 = vld [vmem:[%s3861 + $0x10] sm:$0xff]
    %v3865 = vld [vmem:[%s3861 + $0x18] sm:$0xff]
    %v3866 = vld [vmem:[%s974] sm:$0xff]
    %v3867 = vld [vmem:[%s974 + $0x8] sm:$0xff]
    %v3868 = vld [vmem:[%s974 + $0x10] sm:$0xff]
    %v3869 = vld [vmem:[%s974 + $0x18] sm:$0xff]
    %v3870 = vld [vmem:[%s974 + $0x20] sm:$0xff]
    %v3871 = vld [vmem:[%s974 + $0x28] sm:$0xff]
    %v3872 = vld [vmem:[%s974 + $0x30] sm:$0xff]
    %v3873 = vld [vmem:[%s974 + $0x38] sm:$0xff]
    %v3874 = vld [vmem:[%s974 + $0x40] sm:$0xff]
    %v3875 = vld [vmem:[%s974 + $0x48] sm:$0xff]
    %v3876 = vld [vmem:[%s974 + $0x50] sm:$0xff]
    %v3877 = vld [vmem:[%s974 + $0x58] sm:$0xff]
    %v3878 = vld [vmem:[%s974 + $0x60] sm:$0xff]
    %v3879 = vld [vmem:[%s974 + $0x68] sm:$0xff]
    %v3880 = vld [vmem:[%s974 + $0x70] sm:$0xff]
    %v3881 = vld [vmem:[%s974 + $0x78] sm:$0xff]
    %v3882 = vld [vmem:[%s974 + $0x80] sm:$0xff]
    %v3883 = vld [vmem:[%s974 + $0x88] sm:$0xff]
    %v3884 = vld [vmem:[%s974 + $0x90] sm:$0xff]
    %v3885 = vld [vmem:[%s974 + $0x98] sm:$0xff]
    %v3886 = vld [vmem:[%s974 + $0xa0] sm:$0xff]
    %v3887 = vld [vmem:[%s974 + $0xa8] sm:$0xff]
    %v3888 = vld [vmem:[%s974 + $0xb0] sm:$0xff]
    %v3889 = vld [vmem:[%s974 + $0xb8] sm:$0xff]
    %v3890 = vld [vmem:[%s974 + $0xc0] sm:$0xff]
    %v3891 = vld [vmem:[%s974 + $0xc8] sm:$0xff]
    %v3892 = vld [vmem:[%s974 + $0xd0] sm:$0xff]
    %v3893 = vld [vmem:[%s974 + $0xd8] sm:$0xff]
    %v3894 = vld [vmem:[%s974 + $0xe0] sm:$0xff]
    %v3895 = vld [vmem:[%s974 + $0xe8] sm:$0xff]
    %v3896 = vld [vmem:[%s974 + $0xf0] sm:$0xff]
    %v3897 = vld [vmem:[%s974 + $0xf8] sm:$0xff]
    %v3898 = vld [vmem:[%s974 + $0x100] sm:$0xff]
    %v3899 = vld [vmem:[%s974 + $0x108] sm:$0xff]
    %v3900 = vld [vmem:[%s974 + $0x110] sm:$0xff]
    %v3901 = vld [vmem:[%s974 + $0x118] sm:$0xff]
    %v3902 = vld [vmem:[%s974 + $0x120] sm:$0xff]
    %v3903 = vld [vmem:[%s974 + $0x128] sm:$0xff]
    %v3904 = vld [vmem:[%s974 + $0x130] sm:$0xff]
    %v3905 = vld [vmem:[%s974 + $0x138] sm:$0xff]
    %v3906 = vld [vmem:[%s974 + $0x140] sm:$0xff]
    %v3907 = vld [vmem:[%s974 + $0x148] sm:$0xff]
    %v3908 = vld [vmem:[%s974 + $0x150] sm:$0xff]
    %v3909 = vld [vmem:[%s974 + $0x158] sm:$0xff]
    %v3910 = vld [vmem:[%s974 + $0x160] sm:$0xff]
    %v3911 = vld [vmem:[%s974 + $0x168] sm:$0xff]
    %v3912 = vld [vmem:[%s974 + $0x170] sm:$0xff]
    %v3913 = vld [vmem:[%s974 + $0x178] sm:$0xff]
    %v3914 = vld [vmem:[%s974 + $0x180] sm:$0xff]
    %v3915 = vld [vmem:[%s974 + $0x188] sm:$0xff]
    %v3916 = vld [vmem:[%s974 + $0x190] sm:$0xff]
    %v3917 = vld [vmem:[%s974 + $0x198] sm:$0xff]
    %v3918 = vld [vmem:[%s974 + $0x1a0] sm:$0xff]
    %v3919 = vld [vmem:[%s974 + $0x1a8] sm:$0xff]
    %v3920 = vld [vmem:[%s974 + $0x1b0] sm:$0xff]
    %v3921 = vld [vmem:[%s974 + $0x1b8] sm:$0xff]
    %v3922 = vld [vmem:[%s974 + $0x1c0] sm:$0xff]
    %v3923 = vld [vmem:[%s974 + $0x1c8] sm:$0xff]
    %v3924 = vld [vmem:[%s974 + $0x1d0] sm:$0xff]
    %v3925 = vld [vmem:[%s974 + $0x1d8] sm:$0xff]
    %v3926 = vld [vmem:[%s974 + $0x1e0] sm:$0xff]
    %v3927 = vld [vmem:[%s974 + $0x1e8] sm:$0xff]
    %v3928 = vld [vmem:[%s974 + $0x1f0] sm:$0xff]
    %v3929 = vld [vmem:[%s974 + $0x1f8] sm:$0xff]
    %3930 = vmatprep.subr.mxu0 %v3867
    %3931 = vmatpush1.msra.mxu0 %v3866
    %3932 = vmatprep.subr.mxu0 %v3871
    %3933 = vmatpush1.msra.mxu0 %v3870
    %3934 = vmatprep.subr.mxu0 %v3875
    %3935 = vmatpush1.msra.mxu0 %v3874
    %3936 = vmatprep.subr.mxu0 %v3879
    %3937 = vmatpush1.msra.mxu0 %v3878
    %3938 = vmatprep.subr.mxu0 %v3883
    %3939 = vmatpush1.msra.mxu0 %v3882
    %3940 = vmatprep.subr.mxu0 %v3887
    %3941 = vmatpush1.msra.mxu0 %v3886
    %3942 = vmatprep.subr.mxu0 %v3891
    %3943 = vmatpush1.msra.mxu0 %v3890
    %3944 = vmatprep.subr.mxu0 %v3895
    %3945 = vmatpush1.msra.mxu0 %v3894
    %3946 = vmatprep.subr.mxu0 %v3899
    %3947 = vmatpush1.msra.mxu0 %v3898
    %3948 = vmatprep.subr.mxu0 %v3903
    %3949 = vmatpush1.msra.mxu0 %v3902
    %3950 = vmatprep.subr.mxu0 %v3907
    %3951 = vmatpush1.msra.mxu0 %v3906
    %3952 = vmatprep.subr.mxu0 %v3911
    %3953 = vmatpush1.msra.mxu0 %v3910
    %3954 = vmatprep.subr.mxu0 %v3915
    %3955 = vmatpush1.msra.mxu0 %v3914
    %3956 = vmatprep.subr.mxu0 %v3919
    %3957 = vmatpush1.msra.mxu0 %v3918
    %3958 = vmatprep.subr.mxu0 %v3923
    %3959 = vmatpush1.msra.mxu0 %v3922
    %3960 = vmatprep.subr.mxu0 %v3927
    %3961 = vmatpush1.msra.mxu0 %v3926
    %3962 = vmatprep.subr.mxu0 0.0
    %3963 = vmatpush1.msra.mxu0 0.0
    %3964 = vmatprep.subr.mxu0 0.0
    %3965 = vmatpush1.msra.mxu0 0.0
    %3966 = vmatprep.subr.mxu0 0.0
    %3967 = vmatpush1.msra.mxu0 0.0
    %3968 = vmatprep.subr.mxu0 0.0
    %3969 = vmatpush1.msra.mxu0 0.0
    %3970 = vmatprep.subr.mxu0 0.0
    %3971 = vmatpush1.msra.mxu0 0.0
    %3972 = vmatprep.subr.mxu0 0.0
    %3973 = vmatpush1.msra.mxu0 0.0
    %3974 = vmatprep.subr.mxu0 0.0
    %3975 = vmatpush1.msra.mxu0 0.0
    %3976 = vmatprep.subr.mxu0 0.0
    %3977 = vmatpush1.msra.mxu0 0.0
    %3978 = vmatprep.subr.mxu0 0.0
    %3979 = vmatpush1.msra.mxu0 0.0
    %3980 = vmatprep.subr.mxu0 0.0
    %3981 = vmatpush1.msra.mxu0 0.0
    %3982 = vmatprep.subr.mxu0 0.0
    %3983 = vmatpush1.msra.mxu0 0.0
    %3984 = vmatprep.subr.mxu0 0.0
    %3985 = vmatpush1.msra.mxu0 0.0
    %3986 = vmatprep.subr.mxu0 0.0
    %3987 = vmatpush1.msra.mxu0 0.0
    %3988 = vmatprep.subr.mxu0 0.0
    %3989 = vmatpush1.msra.mxu0 0.0
    %3990 = vmatprep.subr.mxu0 0.0
    %3991 = vmatpush1.msra.mxu0 0.0
    %3992 = vmatprep.subr.mxu0 0.0
    %3993 = vmatpush1.msra.mxu0 0.0
    %3994 = vmatprep.mubr.f32.mxu0 0.0
    %3995 = vmatmul.mubr.f32.gmra.mrb[0].mxu0 %v3641
    %v3996 = vpop.f32.mrb[0].mxu0
    %v3997 = vadd.f32 0.0, %v3996
    %v3998 = vpop.f32.mrb[0].mxu0
    %v3999 = vadd.f32 0.0, %v3998
    %4000 = vdwg.mxu0
    %4001 = vmatprep.subr.mxu0 %v3869
    %4002 = vmatpush1.msra.mxu0 %v3868
    %4003 = vmatprep.subr.mxu0 %v3873
    %4004 = vmatpush1.msra.mxu0 %v3872
    %4005 = vmatprep.subr.mxu0 %v3877
    %4006 = vmatpush1.msra.mxu0 %v3876
    %4007 = vmatprep.subr.mxu0 %v3881
    %4008 = vmatpush1.msra.mxu0 %v3880
    %4009 = vmatprep.subr.mxu0 %v3885
    %4010 = vmatpush1.msra.mxu0 %v3884
    %4011 = vmatprep.subr.mxu0 %v3889
    %4012 = vmatpush1.msra.mxu0 %v3888
    %4013 = vmatprep.subr.mxu0 %v3893
    %4014 = vmatpush1.msra.mxu0 %v3892
    %4015 = vmatprep.subr.mxu0 %v3897
    %4016 = vmatpush1.msra.mxu0 %v3896
    %4017 = vmatprep.subr.mxu0 %v3901
    %4018 = vmatpush1.msra.mxu0 %v3900
    %4019 = vmatprep.subr.mxu0 %v3905
    %4020 = vmatpush1.msra.mxu0 %v3904
    %4021 = vmatprep.subr.mxu0 %v3909
    %4022 = vmatpush1.msra.mxu0 %v3908
    %4023 = vmatprep.subr.mxu0 %v3913
    %4024 = vmatpush1.msra.mxu0 %v3912
    %4025 = vmatprep.subr.mxu0 %v3917
    %4026 = vmatpush1.msra.mxu0 %v3916
    %4027 = vmatprep.subr.mxu0 %v3921
    %4028 = vmatpush1.msra.mxu0 %v3920
    %4029 = vmatprep.subr.mxu0 %v3925
    %4030 = vmatpush1.msra.mxu0 %v3924
    %4031 = vmatprep.subr.mxu0 %v3929
    %4032 = vmatpush1.msra.mxu0 %v3928
    %4033 = vmatprep.subr.mxu0 0.0
    %4034 = vmatpush1.msra.mxu0 0.0
    %4035 = vmatprep.subr.mxu0 0.0
    %4036 = vmatpush1.msra.mxu0 0.0
    %4037 = vmatprep.subr.mxu0 0.0
    %4038 = vmatpush1.msra.mxu0 0.0
    %4039 = vmatprep.subr.mxu0 0.0
    %4040 = vmatpush1.msra.mxu0 0.0
    %4041 = vmatprep.subr.mxu0 0.0
    %4042 = vmatpush1.msra.mxu0 0.0
    %4043 = vmatprep.subr.mxu0 0.0
    %4044 = vmatpush1.msra.mxu0 0.0
    %4045 = vmatprep.subr.mxu0 0.0
    %4046 = vmatpush1.msra.mxu0 0.0
    %4047 = vmatprep.subr.mxu0 0.0
    %4048 = vmatpush1.msra.mxu0 0.0
    %4049 = vmatprep.subr.mxu0 0.0
    %4050 = vmatpush1.msra.mxu0 0.0
    %4051 = vmatprep.subr.mxu0 0.0
    %4052 = vmatpush1.msra.mxu0 0.0
    %4053 = vmatprep.subr.mxu0 0.0
    %4054 = vmatpush1.msra.mxu0 0.0
    %4055 = vmatprep.subr.mxu0 0.0
    %4056 = vmatpush1.msra.mxu0 0.0
    %4057 = vmatprep.subr.mxu0 0.0
    %4058 = vmatpush1.msra.mxu0 0.0
    %4059 = vmatprep.subr.mxu0 0.0
    %4060 = vmatpush1.msra.mxu0 0.0
    %4061 = vmatprep.subr.mxu0 0.0
    %4062 = vmatpush1.msra.mxu0 0.0
    %4063 = vmatprep.subr.mxu0 0.0
    %4064 = vmatpush1.msra.mxu0 0.0
    %4065 = vmatprep.mubr.f32.mxu0 0.0
    %4066 = vmatmul.mubr.f32.gmra.mrb[0].mxu0 %v3641
    %v4067 = vpop.f32.mrb[0].mxu0
    %v4068 = vadd.f32 0.0, %v4067
    %v4069 = vpop.f32.mrb[0].mxu0
    %v4070 = vadd.f32 0.0, %v4069
    %4071 = vdwg.mxu0
    %v4072 = vadd.f32 %v3862, %v3997
    %v4073 = vadd.f32 %v3863, %v3999
    %v4074 = vadd.f32 %v3864, %v4068
    %v4075 = vadd.f32 %v3865, %v4070
    %v4076 = vxor.u32 %v3857, 2147483648
    %v4077 = vxor.u32 %v3858, 2147483648
    %v4078 = vxor.u32 %v3859, 2147483648
    %v4079 = vmul.f32 %v4076, 1.442695
    %v4080 = vpow.pop %v4079
    %v4081 = vmul.f32 %v4077, 1.442695
    %v4082 = vpow.pop %v4081
    %v4083 = vmul.f32 %v4078, 1.442695
    %v4084 = vpow.pop %v4083
    %v4085 = vadd.f32 %v4080, 1.0
    %v4086 = vadd.f32 %v4082, 1.0
    %v4087 = vadd.f32 %v4084, 1.0
    %v4088 = vrcp.pop %v4085
    %v4089 = vmul.f32 1.0, %v4088
    %v4090 = vrcp.pop %v4086
    %v4091 = vmul.f32 1.0, %v4090
    %v4092 = vrcp.pop %v4087
    %v4093 = vmul.f32 1.0, %v4092
    %v4094 = vtanh.pop %v3860
    %v4095 = vmul.f32 %v4091, %v3615
    %v4096 = vmul.f32 %v4089, %v4094
    %v4097 = vadd.f32 %v4095, %v4096
    %v4098 = vtanh.pop %v4097
    %v4099 = vmul.f32 %v4093, %v4098
    %v4100 = vxor.u32 %v4072, 2147483648
    %v4101 = vxor.u32 %v4073, 2147483648
    %v4102 = vxor.u32 %v4074, 2147483648
    %v4103 = vmul.f32 %v4100, 1.442695
    %v4104 = vpow.pop %v4103
    %v4105 = vmul.f32 %v4101, 1.442695
    %v4106 = vpow.pop %v4105
    %v4107 = vmul.f32 %v4102, 1.442695
    %v4108 = vpow.pop %v4107
    %v4109 = vadd.f32 %v4104, 1.0
    %v4110 = vadd.f32 %v4106, 1.0
    %v4111 = vadd.f32 %v4108, 1.0
    %v4112 = vrcp.pop %v4109
    %v4113 = vmul.f32 1.0, %v4112
    %v4114 = vrcp.pop %v4110
    %v4115 = vmul.f32 1.0, %v4114
    %v4116 = vrcp.pop %v4111
    %v4117 = vmul.f32 1.0, %v4116
    %v4118 = vtanh.pop %v4075
    %v4119 = vmul.f32 %v4115, %v3639
    %v4120 = vmul.f32 %v4113, %v4118
    %v4121 = vadd.f32 %v4119, %v4120
    %v4122 = vtanh.pop %v4121
    %v4123 = vmul.f32 %v4117, %v4122
    %s4124 = scalar_lea.vmem [#allocation4], 48
    %4125 = vst [vmem:[%s4124] sm:$0xff] %v4099
    %s4126 = scalar_lea.vmem [#allocation5], 8
    %4127 = vst [vmem:[%s4126] sm:$0xff] %v4123
    %s4128 = scalar_lea.vmem [#allocation2], 224
    %v4129 = vld [vmem:[%s4128] sm:$0xff]
    %v4130 = vld [vmem:[%s4128 + $0x8] sm:$0xff]
    %v4131 = vld [vmem:[%s4128 + $0x10] sm:$0xff]
    %v4132 = vld [vmem:[%s4128 + $0x18] sm:$0xff]
    %v4133 = vld [vmem:[#allocation9] sm:$0xff]
    %v4134 = vld [vmem:[#allocation9 + $0x8] sm:$0xff]
    %v4135 = vld [vmem:[#allocation9 + $0x10] sm:$0xff]
    %v4136 = vld [vmem:[#allocation9 + $0x18] sm:$0xff]
    %v4137 = vld [vmem:[#allocation9 + $0x20] sm:$0xff]
    %v4138 = vld [vmem:[#allocation9 + $0x28] sm:$0xff]
    %v4139 = vld [vmem:[#allocation9 + $0x30] sm:$0xff]
    %v4140 = vld [vmem:[#allocation9 + $0x38] sm:$0xff]
    %v4141 = vld [vmem:[#allocation9 + $0x40] sm:$0xff]
    %v4142 = vld [vmem:[#allocation9 + $0x48] sm:$0xff]
    %v4143 = vld [vmem:[#allocation9 + $0x50] sm:$0xff]
    %v4144 = vld [vmem:[#allocation9 + $0x58] sm:$0xff]
    %v4145 = vld [vmem:[#allocation9 + $0x60] sm:$0xff]
    %v4146 = vld [vmem:[#allocation9 + $0x68] sm:$0xff]
    %v4147 = vld [vmem:[#allocation9 + $0x70] sm:$0xff]
    %v4148 = vld [vmem:[#allocation9 + $0x78] sm:$0xff]
    %v4149 = vld [vmem:[#allocation9 + $0x80] sm:$0xff]
    %v4150 = vld [vmem:[#allocation9 + $0x88] sm:$0xff]
    %v4151 = vld [vmem:[#allocation9 + $0x90] sm:$0xff]
    %v4152 = vld [vmem:[#allocation9 + $0x98] sm:$0xff]
    %v4153 = vld [vmem:[#allocation9 + $0xa0] sm:$0xff]
    %v4154 = vld [vmem:[#allocation9 + $0xa8] sm:$0xff]
    %v4155 = vld [vmem:[#allocation9 + $0xb0] sm:$0xff]
    %v4156 = vld [vmem:[#allocation9 + $0xb8] sm:$0xff]
    %v4157 = vld [vmem:[#allocation9 + $0xc0] sm:$0xff]
    %v4158 = vld [vmem:[#allocation9 + $0xc8] sm:$0xff]
    %v4159 = vld [vmem:[#allocation9 + $0xd0] sm:$0xff]
    %v4160 = vld [vmem:[#allocation9 + $0xd8] sm:$0xff]
    %v4161 = vld [vmem:[#allocation9 + $0xe0] sm:$0xff]
    %v4162 = vld [vmem:[#allocation9 + $0xe8] sm:$0xff]
    %v4163 = vld [vmem:[#allocation9 + $0xf0] sm:$0xff]
    %v4164 = vld [vmem:[#allocation9 + $0xf8] sm:$0xff]
    %v4165 = vld [vmem:[#allocation9 + $0x100] sm:$0xff]
    %v4166 = vld [vmem:[#allocation9 + $0x108] sm:$0xff]
    %v4167 = vld [vmem:[#allocation9 + $0x110] sm:$0xff]
    %v4168 = vld [vmem:[#allocation9 + $0x118] sm:$0xff]
    %v4169 = vld [vmem:[#allocation9 + $0x120] sm:$0xff]
    %v4170 = vld [vmem:[#allocation9 + $0x128] sm:$0xff]
    %v4171 = vld [vmem:[#allocation9 + $0x130] sm:$0xff]
    %v4172 = vld [vmem:[#allocation9 + $0x138] sm:$0xff]
    %v4173 = vld [vmem:[#allocation9 + $0x140] sm:$0xff]
    %v4174 = vld [vmem:[#allocation9 + $0x148] sm:$0xff]
    %v4175 = vld [vmem:[#allocation9 + $0x150] sm:$0xff]
    %v4176 = vld [vmem:[#allocation9 + $0x158] sm:$0xff]
    %v4177 = vld [vmem:[#allocation9 + $0x160] sm:$0xff]
    %v4178 = vld [vmem:[#allocation9 + $0x168] sm:$0xff]
    %v4179 = vld [vmem:[#allocation9 + $0x170] sm:$0xff]
    %v4180 = vld [vmem:[#allocation9 + $0x178] sm:$0xff]
    %v4181 = vld [vmem:[#allocation9 + $0x180] sm:$0xff]
    %v4182 = vld [vmem:[#allocation9 + $0x188] sm:$0xff]
    %v4183 = vld [vmem:[#allocation9 + $0x190] sm:$0xff]
    %v4184 = vld [vmem:[#allocation9 + $0x198] sm:$0xff]
    %v4185 = vld [vmem:[#allocation9 + $0x1a0] sm:$0xff]
    %v4186 = vld [vmem:[#allocation9 + $0x1a8] sm:$0xff]
    %v4187 = vld [vmem:[#allocation9 + $0x1b0] sm:$0xff]
    %v4188 = vld [vmem:[#allocation9 + $0x1b8] sm:$0xff]
    %v4189 = vld [vmem:[#allocation9 + $0x1c0] sm:$0xff]
    %v4190 = vld [vmem:[#allocation9 + $0x1c8] sm:$0xff]
    %v4191 = vld [vmem:[#allocation9 + $0x1d0] sm:$0xff]
    %v4192 = vld [vmem:[#allocation9 + $0x1d8] sm:$0xff]
    %v4193 = vld [vmem:[#allocation9 + $0x1e0] sm:$0xff]
    %v4194 = vld [vmem:[#allocation9 + $0x1e8] sm:$0xff]
    %v4195 = vld [vmem:[#allocation9 + $0x1f0] sm:$0xff]
    %v4196 = vld [vmem:[#allocation9 + $0x1f8] sm:$0xff]
    %4197 = vmatprep.subr.mxu0 %v4134
    %4198 = vmatpush1.msra.mxu0 %v4133
    %4199 = vmatprep.subr.mxu0 %v4138
    %4200 = vmatpush1.msra.mxu0 %v4137
    %4201 = vmatprep.subr.mxu0 %v4142
    %4202 = vmatpush1.msra.mxu0 %v4141
    %4203 = vmatprep.subr.mxu0 %v4146
    %4204 = vmatpush1.msra.mxu0 %v4145
    %4205 = vmatprep.subr.mxu0 %v4150
    %4206 = vmatpush1.msra.mxu0 %v4149
    %4207 = vmatprep.subr.mxu0 %v4154
    %4208 = vmatpush1.msra.mxu0 %v4153
    %4209 = vmatprep.subr.mxu0 %v4158
    %4210 = vmatpush1.msra.mxu0 %v4157
    %4211 = vmatprep.subr.mxu0 %v4162
    %4212 = vmatpush1.msra.mxu0 %v4161
    %4213 = vmatprep.subr.mxu0 %v4166
    %4214 = vmatpush1.msra.mxu0 %v4165
    %4215 = vmatprep.subr.mxu0 %v4170
    %4216 = vmatpush1.msra.mxu0 %v4169
    %4217 = vmatprep.subr.mxu0 %v4174
    %4218 = vmatpush1.msra.mxu0 %v4173
    %4219 = vmatprep.subr.mxu0 %v4178
    %4220 = vmatpush1.msra.mxu0 %v4177
    %4221 = vmatprep.subr.mxu0 %v4182
    %4222 = vmatpush1.msra.mxu0 %v4181
    %4223 = vmatprep.subr.mxu0 %v4186
    %4224 = vmatpush1.msra.mxu0 %v4185
    %4225 = vmatprep.subr.mxu0 %v4190
    %4226 = vmatpush1.msra.mxu0 %v4189
    %4227 = vmatprep.subr.mxu0 %v4194
    %4228 = vmatpush1.msra.mxu0 %v4193
    %4229 = vmatprep.subr.mxu0 0.0
    %4230 = vmatpush1.msra.mxu0 0.0
    %4231 = vmatprep.subr.mxu0 0.0
    %4232 = vmatpush1.msra.mxu0 0.0
    %4233 = vmatprep.subr.mxu0 0.0
    %4234 = vmatpush1.msra.mxu0 0.0
    %4235 = vmatprep.subr.mxu0 0.0
    %4236 = vmatpush1.msra.mxu0 0.0
    %4237 = vmatprep.subr.mxu0 0.0
    %4238 = vmatpush1.msra.mxu0 0.0
    %4239 = vmatprep.subr.mxu0 0.0
    %4240 = vmatpush1.msra.mxu0 0.0
    %4241 = vmatprep.subr.mxu0 0.0
    %4242 = vmatpush1.msra.mxu0 0.0
    %4243 = vmatprep.subr.mxu0 0.0
    %4244 = vmatpush1.msra.mxu0 0.0
    %4245 = vmatprep.subr.mxu0 0.0
    %4246 = vmatpush1.msra.mxu0 0.0
    %4247 = vmatprep.subr.mxu0 0.0
    %4248 = vmatpush1.msra.mxu0 0.0
    %4249 = vmatprep.subr.mxu0 0.0
    %4250 = vmatpush1.msra.mxu0 0.0
    %4251 = vmatprep.subr.mxu0 0.0
    %4252 = vmatpush1.msra.mxu0 0.0
    %4253 = vmatprep.subr.mxu0 0.0
    %4254 = vmatpush1.msra.mxu0 0.0
    %4255 = vmatprep.subr.mxu0 0.0
    %4256 = vmatpush1.msra.mxu0 0.0
    %4257 = vmatprep.subr.mxu0 0.0
    %4258 = vmatpush1.msra.mxu0 0.0
    %4259 = vmatprep.subr.mxu0 0.0
    %4260 = vmatpush1.msra.mxu0 0.0
    %4261 = vmatprep.mubr.f32.mxu0 0.0
    %4262 = vmatmul.mubr.f32.gmra.mrb[0].mxu0 %v4099
    %v4263 = vpop.f32.mrb[0].mxu0
    %v4264 = vadd.f32 0.0, %v4263
    %v4265 = vpop.f32.mrb[0].mxu0
    %v4266 = vadd.f32 0.0, %v4265
    %4267 = vdwg.mxu0
    %4268 = vmatprep.subr.mxu0 %v4136
    %4269 = vmatpush1.msra.mxu0 %v4135
    %4270 = vmatprep.subr.mxu0 %v4140
    %4271 = vmatpush1.msra.mxu0 %v4139
    %4272 = vmatprep.subr.mxu0 %v4144
    %4273 = vmatpush1.msra.mxu0 %v4143
    %4274 = vmatprep.subr.mxu0 %v4148
    %4275 = vmatpush1.msra.mxu0 %v4147
    %4276 = vmatprep.subr.mxu0 %v4152
    %4277 = vmatpush1.msra.mxu0 %v4151
    %4278 = vmatprep.subr.mxu0 %v4156
    %4279 = vmatpush1.msra.mxu0 %v4155
    %4280 = vmatprep.subr.mxu0 %v4160
    %4281 = vmatpush1.msra.mxu0 %v4159
    %4282 = vmatprep.subr.mxu0 %v4164
    %4283 = vmatpush1.msra.mxu0 %v4163
    %4284 = vmatprep.subr.mxu0 %v4168
    %4285 = vmatpush1.msra.mxu0 %v4167
    %4286 = vmatprep.subr.mxu0 %v4172
    %4287 = vmatpush1.msra.mxu0 %v4171
    %4288 = vmatprep.subr.mxu0 %v4176
    %4289 = vmatpush1.msra.mxu0 %v4175
    %4290 = vmatprep.subr.mxu0 %v4180
    %4291 = vmatpush1.msra.mxu0 %v4179
    %4292 = vmatprep.subr.mxu0 %v4184
    %4293 = vmatpush1.msra.mxu0 %v4183
    %4294 = vmatprep.subr.mxu0 %v4188
    %4295 = vmatpush1.msra.mxu0 %v4187
    %4296 = vmatprep.subr.mxu0 %v4192
    %4297 = vmatpush1.msra.mxu0 %v4191
    %4298 = vmatprep.subr.mxu0 %v4196
    %4299 = vmatpush1.msra.mxu0 %v4195
    %4300 = vmatprep.subr.mxu0 0.0
    %4301 = vmatpush1.msra.mxu0 0.0
    %4302 = vmatprep.subr.mxu0 0.0
    %4303 = vmatpush1.msra.mxu0 0.0
    %4304 = vmatprep.subr.mxu0 0.0
    %4305 = vmatpush1.msra.mxu0 0.0
    %4306 = vmatprep.subr.mxu0 0.0
    %4307 = vmatpush1.msra.mxu0 0.0
    %4308 = vmatprep.subr.mxu0 0.0
    %4309 = vmatpush1.msra.mxu0 0.0
    %4310 = vmatprep.subr.mxu0 0.0
    %4311 = vmatpush1.msra.mxu0 0.0
    %4312 = vmatprep.subr.mxu0 0.0
    %4313 = vmatpush1.msra.mxu0 0.0
    %4314 = vmatprep.subr.mxu0 0.0
    %4315 = vmatpush1.msra.mxu0 0.0
    %4316 = vmatprep.subr.mxu0 0.0
    %4317 = vmatpush1.msra.mxu0 0.0
    %4318 = vmatprep.subr.mxu0 0.0
    %4319 = vmatpush1.msra.mxu0 0.0
    %4320 = vmatprep.subr.mxu0 0.0
    %4321 = vmatpush1.msra.mxu0 0.0
    %4322 = vmatprep.subr.mxu0 0.0
    %4323 = vmatpush1.msra.mxu0 0.0
    %4324 = vmatprep.subr.mxu0 0.0
    %4325 = vmatpush1.msra.mxu0 0.0
    %4326 = vmatprep.subr.mxu0 0.0
    %4327 = vmatpush1.msra.mxu0 0.0
    %4328 = vmatprep.subr.mxu0 0.0
    %4329 = vmatpush1.msra.mxu0 0.0
    %4330 = vmatprep.subr.mxu0 0.0
    %4331 = vmatpush1.msra.mxu0 0.0
    %4332 = vmatprep.mubr.f32.mxu0 0.0
    %4333 = vmatmul.mubr.f32.gmra.mrb[0].mxu0 %v4099
    %v4334 = vpop.f32.mrb[0].mxu0
    %v4335 = vadd.f32 0.0, %v4334
    %v4336 = vpop.f32.mrb[0].mxu0
    %v4337 = vadd.f32 0.0, %v4336
    %4338 = vdwg.mxu0
    %v4339 = vadd.f32 %v4129, %v4264
    %v4340 = vadd.f32 %v4130, %v4266
    %v4341 = vadd.f32 %v4131, %v4335
    %v4342 = vadd.f32 %v4132, %v4337
    %v4343 = vld [vmem:[#allocation3] sm:$0xff]
    %v4344 = vld [vmem:[#allocation3 + $0x8] sm:$0xff]
    %v4345 = vld [vmem:[#allocation3 + $0x10] sm:$0xff]
    %v4346 = vld [vmem:[#allocation3 + $0x18] sm:$0xff]
    %v4347 = vld [vmem:[%s974] sm:$0xff]
    %v4348 = vld [vmem:[%s974 + $0x8] sm:$0xff]
    %v4349 = vld [vmem:[%s974 + $0x10] sm:$0xff]
    %v4350 = vld [vmem:[%s974 + $0x18] sm:$0xff]
    %v4351 = vld [vmem:[%s974 + $0x20] sm:$0xff]
    %v4352 = vld [vmem:[%s974 + $0x28] sm:$0xff]
    %v4353 = vld [vmem:[%s974 + $0x30] sm:$0xff]
    %v4354 = vld [vmem:[%s974 + $0x38] sm:$0xff]
    %v4355 = vld [vmem:[%s974 + $0x40] sm:$0xff]
    %v4356 = vld [vmem:[%s974 + $0x48] sm:$0xff]
    %v4357 = vld [vmem:[%s974 + $0x50] sm:$0xff]
    %v4358 = vld [vmem:[%s974 + $0x58] sm:$0xff]
    %v4359 = vld [vmem:[%s974 + $0x60] sm:$0xff]
    %v4360 = vld [vmem:[%s974 + $0x68] sm:$0xff]
    %v4361 = vld [vmem:[%s974 + $0x70] sm:$0xff]
    %v4362 = vld [vmem:[%s974 + $0x78] sm:$0xff]
    %v4363 = vld [vmem:[%s974 + $0x80] sm:$0xff]
    %v4364 = vld [vmem:[%s974 + $0x88] sm:$0xff]
    %v4365 = vld [vmem:[%s974 + $0x90] sm:$0xff]
    %v4366 = vld [vmem:[%s974 + $0x98] sm:$0xff]
    %v4367 = vld [vmem:[%s974 + $0xa0] sm:$0xff]
    %v4368 = vld [vmem:[%s974 + $0xa8] sm:$0xff]
    %v4369 = vld [vmem:[%s974 + $0xb0] sm:$0xff]
    %v4370 = vld [vmem:[%s974 + $0xb8] sm:$0xff]
    %v4371 = vld [vmem:[%s974 + $0xc0] sm:$0xff]
    %v4372 = vld [vmem:[%s974 + $0xc8] sm:$0xff]
    %v4373 = vld [vmem:[%s974 + $0xd0] sm:$0xff]
    %v4374 = vld [vmem:[%s974 + $0xd8] sm:$0xff]
    %v4375 = vld [vmem:[%s974 + $0xe0] sm:$0xff]
    %v4376 = vld [vmem:[%s974 + $0xe8] sm:$0xff]
    %v4377 = vld [vmem:[%s974 + $0xf0] sm:$0xff]
    %v4378 = vld [vmem:[%s974 + $0xf8] sm:$0xff]
    %v4379 = vld [vmem:[%s974 + $0x100] sm:$0xff]
    %v4380 = vld [vmem:[%s974 + $0x108] sm:$0xff]
    %v4381 = vld [vmem:[%s974 + $0x110] sm:$0xff]
    %v4382 = vld [vmem:[%s974 + $0x118] sm:$0xff]
    %v4383 = vld [vmem:[%s974 + $0x120] sm:$0xff]
    %v4384 = vld [vmem:[%s974 + $0x128] sm:$0xff]
    %v4385 = vld [vmem:[%s974 + $0x130] sm:$0xff]
    %v4386 = vld [vmem:[%s974 + $0x138] sm:$0xff]
    %v4387 = vld [vmem:[%s974 + $0x140] sm:$0xff]
    %v4388 = vld [vmem:[%s974 + $0x148] sm:$0xff]
    %v4389 = vld [vmem:[%s974 + $0x150] sm:$0xff]
    %v4390 = vld [vmem:[%s974 + $0x158] sm:$0xff]
    %v4391 = vld [vmem:[%s974 + $0x160] sm:$0xff]
    %v4392 = vld [vmem:[%s974 + $0x168] sm:$0xff]
    %v4393 = vld [vmem:[%s974 + $0x170] sm:$0xff]
    %v4394 = vld [vmem:[%s974 + $0x178] sm:$0xff]
    %v4395 = vld [vmem:[%s974 + $0x180] sm:$0xff]
    %v4396 = vld [vmem:[%s974 + $0x188] sm:$0xff]
    %v4397 = vld [vmem:[%s974 + $0x190] sm:$0xff]
    %v4398 = vld [vmem:[%s974 + $0x198] sm:$0xff]
    %v4399 = vld [vmem:[%s974 + $0x1a0] sm:$0xff]
    %v4400 = vld [vmem:[%s974 + $0x1a8] sm:$0xff]
    %v4401 = vld [vmem:[%s974 + $0x1b0] sm:$0xff]
    %v4402 = vld [vmem:[%s974 + $0x1b8] sm:$0xff]
    %v4403 = vld [vmem:[%s974 + $0x1c0] sm:$0xff]
    %v4404 = vld [vmem:[%s974 + $0x1c8] sm:$0xff]
    %v4405 = vld [vmem:[%s974 + $0x1d0] sm:$0xff]
    %v4406 = vld [vmem:[%s974 + $0x1d8] sm:$0xff]
    %v4407 = vld [vmem:[%s974 + $0x1e0] sm:$0xff]
    %v4408 = vld [vmem:[%s974 + $0x1e8] sm:$0xff]
    %v4409 = vld [vmem:[%s974 + $0x1f0] sm:$0xff]
    %v4410 = vld [vmem:[%s974 + $0x1f8] sm:$0xff]
    %4411 = vmatprep.subr.mxu0 %v4348
    %4412 = vmatpush1.msra.mxu0 %v4347
    %4413 = vmatprep.subr.mxu0 %v4352
    %4414 = vmatpush1.msra.mxu0 %v4351
    %4415 = vmatprep.subr.mxu0 %v4356
    %4416 = vmatpush1.msra.mxu0 %v4355
    %4417 = vmatprep.subr.mxu0 %v4360
    %4418 = vmatpush1.msra.mxu0 %v4359
    %4419 = vmatprep.subr.mxu0 %v4364
    %4420 = vmatpush1.msra.mxu0 %v4363
    %4421 = vmatprep.subr.mxu0 %v4368
    %4422 = vmatpush1.msra.mxu0 %v4367
    %4423 = vmatprep.subr.mxu0 %v4372
    %4424 = vmatpush1.msra.mxu0 %v4371
    %4425 = vmatprep.subr.mxu0 %v4376
    %4426 = vmatpush1.msra.mxu0 %v4375
    %4427 = vmatprep.subr.mxu0 %v4380
    %4428 = vmatpush1.msra.mxu0 %v4379
    %4429 = vmatprep.subr.mxu0 %v4384
    %4430 = vmatpush1.msra.mxu0 %v4383
    %4431 = vmatprep.subr.mxu0 %v4388
    %4432 = vmatpush1.msra.mxu0 %v4387
    %4433 = vmatprep.subr.mxu0 %v4392
    %4434 = vmatpush1.msra.mxu0 %v4391
    %4435 = vmatprep.subr.mxu0 %v4396
    %4436 = vmatpush1.msra.mxu0 %v4395
    %4437 = vmatprep.subr.mxu0 %v4400
    %4438 = vmatpush1.msra.mxu0 %v4399
    %4439 = vmatprep.subr.mxu0 %v4404
    %4440 = vmatpush1.msra.mxu0 %v4403
    %4441 = vmatprep.subr.mxu0 %v4408
    %4442 = vmatpush1.msra.mxu0 %v4407
    %4443 = vmatprep.subr.mxu0 0.0
    %4444 = vmatpush1.msra.mxu0 0.0
    %4445 = vmatprep.subr.mxu0 0.0
    %4446 = vmatpush1.msra.mxu0 0.0
    %4447 = vmatprep.subr.mxu0 0.0
    %4448 = vmatpush1.msra.mxu0 0.0
    %4449 = vmatprep.subr.mxu0 0.0
    %4450 = vmatpush1.msra.mxu0 0.0
    %4451 = vmatprep.subr.mxu0 0.0
    %4452 = vmatpush1.msra.mxu0 0.0
    %4453 = vmatprep.subr.mxu0 0.0
    %4454 = vmatpush1.msra.mxu0 0.0
    %4455 = vmatprep.subr.mxu0 0.0
    %4456 = vmatpush1.msra.mxu0 0.0
    %4457 = vmatprep.subr.mxu0 0.0
    %4458 = vmatpush1.msra.mxu0 0.0
    %4459 = vmatprep.subr.mxu0 0.0
    %4460 = vmatpush1.msra.mxu0 0.0
    %4461 = vmatprep.subr.mxu0 0.0
    %4462 = vmatpush1.msra.mxu0 0.0
    %4463 = vmatprep.subr.mxu0 0.0
    %4464 = vmatpush1.msra.mxu0 0.0
    %4465 = vmatprep.subr.mxu0 0.0
    %4466 = vmatpush1.msra.mxu0 0.0
    %4467 = vmatprep.subr.mxu0 0.0
    %4468 = vmatpush1.msra.mxu0 0.0
    %4469 = vmatprep.subr.mxu0 0.0
    %4470 = vmatpush1.msra.mxu0 0.0
    %4471 = vmatprep.subr.mxu0 0.0
    %4472 = vmatpush1.msra.mxu0 0.0
    %4473 = vmatprep.subr.mxu0 0.0
    %4474 = vmatpush1.msra.mxu0 0.0
    %4475 = vmatprep.mubr.f32.mxu0 0.0
    %4476 = vmatmul.mubr.f32.gmra.mrb[0].mxu0 %v4123
    %v4477 = vpop.f32.mrb[0].mxu0
    %v4478 = vadd.f32 0.0, %v4477
    %v4479 = vpop.f32.mrb[0].mxu0
    %v4480 = vadd.f32 0.0, %v4479
    %4481 = vdwg.mxu0
    %4482 = vmatprep.subr.mxu0 %v4350
    %4483 = vmatpush1.msra.mxu0 %v4349
    %4484 = vmatprep.subr.mxu0 %v4354
    %4485 = vmatpush1.msra.mxu0 %v4353
    %4486 = vmatprep.subr.mxu0 %v4358
    %4487 = vmatpush1.msra.mxu0 %v4357
    %4488 = vmatprep.subr.mxu0 %v4362
    %4489 = vmatpush1.msra.mxu0 %v4361
    %4490 = vmatprep.subr.mxu0 %v4366
    %4491 = vmatpush1.msra.mxu0 %v4365
    %4492 = vmatprep.subr.mxu0 %v4370
    %4493 = vmatpush1.msra.mxu0 %v4369
    %4494 = vmatprep.subr.mxu0 %v4374
    %4495 = vmatpush1.msra.mxu0 %v4373
    %4496 = vmatprep.subr.mxu0 %v4378
    %4497 = vmatpush1.msra.mxu0 %v4377
    %4498 = vmatprep.subr.mxu0 %v4382
    %4499 = vmatpush1.msra.mxu0 %v4381
    %4500 = vmatprep.subr.mxu0 %v4386
    %4501 = vmatpush1.msra.mxu0 %v4385
    %4502 = vmatprep.subr.mxu0 %v4390
    %4503 = vmatpush1.msra.mxu0 %v4389
    %4504 = vmatprep.subr.mxu0 %v4394
    %4505 = vmatpush1.msra.mxu0 %v4393
    %4506 = vmatprep.subr.mxu0 %v4398
    %4507 = vmatpush1.msra.mxu0 %v4397
    %4508 = vmatprep.subr.mxu0 %v4402
    %4509 = vmatpush1.msra.mxu0 %v4401
    %4510 = vmatprep.subr.mxu0 %v4406
    %4511 = vmatpush1.msra.mxu0 %v4405
    %4512 = vmatprep.subr.mxu0 %v4410
    %4513 = vmatpush1.msra.mxu0 %v4409
    %4514 = vmatprep.subr.mxu0 0.0
    %4515 = vmatpush1.msra.mxu0 0.0
    %4516 = vmatprep.subr.mxu0 0.0
    %4517 = vmatpush1.msra.mxu0 0.0
    %4518 = vmatprep.subr.mxu0 0.0
    %4519 = vmatpush1.msra.mxu0 0.0
    %4520 = vmatprep.subr.mxu0 0.0
    %4521 = vmatpush1.msra.mxu0 0.0
    %4522 = vmatprep.subr.mxu0 0.0
    %4523 = vmatpush1.msra.mxu0 0.0
    %4524 = vmatprep.subr.mxu0 0.0
    %4525 = vmatpush1.msra.mxu0 0.0
    %4526 = vmatprep.subr.mxu0 0.0
    %4527 = vmatpush1.msra.mxu0 0.0
    %4528 = vmatprep.subr.mxu0 0.0
    %4529 = vmatpush1.msra.mxu0 0.0
    %4530 = vmatprep.subr.mxu0 0.0
    %4531 = vmatpush1.msra.mxu0 0.0
    %4532 = vmatprep.subr.mxu0 0.0
    %4533 = vmatpush1.msra.mxu0 0.0
    %4534 = vmatprep.subr.mxu0 0.0
    %4535 = vmatpush1.msra.mxu0 0.0
    %4536 = vmatprep.subr.mxu0 0.0
    %4537 = vmatpush1.msra.mxu0 0.0
    %4538 = vmatprep.subr.mxu0 0.0
    %4539 = vmatpush1.msra.mxu0 0.0
    %4540 = vmatprep.subr.mxu0 0.0
    %4541 = vmatpush1.msra.mxu0 0.0
    %4542 = vmatprep.subr.mxu0 0.0
    %4543 = vmatpush1.msra.mxu0 0.0
    %4544 = vmatprep.subr.mxu0 0.0
    %4545 = vmatpush1.msra.mxu0 0.0
    %4546 = vmatprep.mubr.f32.mxu0 0.0
    %4547 = vmatmul.mubr.f32.gmra.mrb[0].mxu0 %v4123
    %v4548 = vpop.f32.mrb[0].mxu0
    %v4549 = vadd.f32 0.0, %v4548
    %v4550 = vpop.f32.mrb[0].mxu0
    %v4551 = vadd.f32 0.0, %v4550
    %4552 = vdwg.mxu0
    %v4553 = vadd.f32 %v4343, %v4478
    %v4554 = vadd.f32 %v4344, %v4480
    %v4555 = vadd.f32 %v4345, %v4549
    %v4556 = vadd.f32 %v4346, %v4551
    %v4557 = vxor.u32 %v4339, 2147483648
    %v4558 = vxor.u32 %v4340, 2147483648
    %v4559 = vxor.u32 %v4341, 2147483648
    %v4560 = vmul.f32 %v4557, 1.442695
    %v4561 = vpow.pop %v4560
    %v4562 = vmul.f32 %v4558, 1.442695
    %v4563 = vpow.pop %v4562
    %v4564 = vmul.f32 %v4559, 1.442695
    %v4565 = vpow.pop %v4564
    %v4566 = vadd.f32 %v4561, 1.0
    %v4567 = vadd.f32 %v4563, 1.0
    %v4568 = vadd.f32 %v4565, 1.0
    %v4569 = vrcp.pop %v4566
    %v4570 = vmul.f32 1.0, %v4569
    %v4571 = vrcp.pop %v4567
    %v4572 = vmul.f32 1.0, %v4571
    %v4573 = vrcp.pop %v4568
    %v4574 = vmul.f32 1.0, %v4573
    %v4575 = vtanh.pop %v4342
    %v4576 = vmul.f32 %v4572, %v4097
    %v4577 = vmul.f32 %v4570, %v4575
    %v4578 = vadd.f32 %v4576, %v4577
    %v4579 = vtanh.pop %v4578
    %v4580 = vmul.f32 %v4574, %v4579
    %v4581 = vxor.u32 %v4553, 2147483648
    %v4582 = vxor.u32 %v4554, 2147483648
    %v4583 = vxor.u32 %v4555, 2147483648
    %v4584 = vmul.f32 %v4581, 1.442695
    %v4585 = vpow.pop %v4584
    %v4586 = vmul.f32 %v4582, 1.442695
    %v4587 = vpow.pop %v4586
    %v4588 = vmul.f32 %v4583, 1.442695
    %v4589 = vpow.pop %v4588
    %v4590 = vadd.f32 %v4585, 1.0
    %v4591 = vadd.f32 %v4587, 1.0
    %v4592 = vadd.f32 %v4589, 1.0
    %v4593 = vrcp.pop %v4590
    %v4594 = vmul.f32 1.0, %v4593
    %v4595 = vrcp.pop %v4591
    %v4596 = vmul.f32 1.0, %v4595
    %v4597 = vrcp.pop %v4592
    %v4598 = vmul.f32 1.0, %v4597
    %v4599 = vtanh.pop %v4556
    %v4600 = vmul.f32 %v4596, %v4121
    %v4601 = vmul.f32 %v4594, %v4599
    %v4602 = vadd.f32 %v4600, %v4601
    %v4603 = vtanh.pop %v4602
    %v4604 = vmul.f32 %v4598, %v4603
    %s4605 = scalar_lea.vmem [#allocation4], 56
    %4606 = vst [vmem:[%s4605] sm:$0xff] %v4580
    %4607 = vst [vmem:[#allocation5] sm:$0xff] %v4604
    %4608 = vst [vmem:[%s9] sm:$0xff] %v4580
    %s4609 = scalar_lea.vmem %s9, 8
    %4610 = vst [vmem:[%s4609] sm:$0xff] %v4604
    %4611 = vst [vmem:[%s10] sm:$0xff] %v4578
    %s4612 = scalar_lea.vmem %s10, 8
    %4613 = vst [vmem:[%s4612] sm:$0xff] %v4602
    %v4614 = vld [vmem:[#allocation4] sm:$0xff]
    %v4615 = vld [vmem:[#allocation4 + $0x8] sm:$0xff]
    %v4616 = vld [vmem:[#allocation4 + $0x10] sm:$0xff]
    %v4617 = vld [vmem:[#allocation4 + $0x18] sm:$0xff]
    %v4618 = vld [vmem:[#allocation4 + $0x20] sm:$0xff]
    %v4619 = vld [vmem:[#allocation4 + $0x28] sm:$0xff]
    %v4620 = vld [vmem:[#allocation4 + $0x30] sm:$0xff]
    %v4621 = vld [vmem:[#allocation4 + $0x38] sm:$0xff]
    %v4622 = vld [vmem:[#allocation5] sm:$0xff]
    %v4623 = vld [vmem:[#allocation5 + $0x8] sm:$0xff]
    %v4624 = vld [vmem:[#allocation5 + $0x10] sm:$0xff]
    %v4625 = vld [vmem:[#allocation5 + $0x18] sm:$0xff]
    %v4626 = vld [vmem:[#allocation5 + $0x20] sm:$0xff]
    %v4627 = vld [vmem:[#allocation5 + $0x28] sm:$0xff]
    %v4628 = vld [vmem:[#allocation5 + $0x30] sm:$0xff]
    %v4629 = vld [vmem:[#allocation5 + $0x38] sm:$0xff]
    %v4630 = vld [vmem:[%s4] sm:$0xff]
    %v4631 = vld [vmem:[%s4 + $0x8] sm:$0xff]
    %v4632 = vld [vmem:[%s4 + $0x10] sm:$0xff]
    %v4633 = vld [vmem:[%s4 + $0x18] sm:$0xff]
    %v4634 = vld [vmem:[%s4 + $0x20] sm:$0xff]
    %v4635 = vld [vmem:[%s4 + $0x28] sm:$0xff]
    %v4636 = vld [vmem:[%s4 + $0x30] sm:$0xff]
    %v4637 = vld [vmem:[%s4 + $0x38] sm:$0xff]
    %v4638 = vld [vmem:[%s4 + $0x40] sm:$0xff]
    %v4639 = vld [vmem:[%s4 + $0x48] sm:$0xff]
    %v4640 = vld [vmem:[%s4 + $0x50] sm:$0xff]
    %v4641 = vld [vmem:[%s4 + $0x58] sm:$0xff]
    %v4642 = vld [vmem:[%s4 + $0x60] sm:$0xff]
    %v4643 = vld [vmem:[%s4 + $0x68] sm:$0xff]
    %v4644 = vld [vmem:[%s4 + $0x70] sm:$0xff]
    %v4645 = vld [vmem:[%s4 + $0x78] sm:$0xff]
    %s4646 = scalar_lea.vmem %s4, 128
    %v4647 = vld [vmem:[%s4646] sm:$0xff]
    %v4648 = vld [vmem:[%s4646 + $0x8] sm:$0xff]
    %v4649 = vld [vmem:[%s4646 + $0x10] sm:$0xff]
    %v4650 = vld [vmem:[%s4646 + $0x18] sm:$0xff]
    %v4651 = vld [vmem:[%s4646 + $0x20] sm:$0xff]
    %v4652 = vld [vmem:[%s4646 + $0x28] sm:$0xff]
    %v4653 = vld [vmem:[%s4646 + $0x30] sm:$0xff]
    %v4654 = vld [vmem:[%s4646 + $0x38] sm:$0xff]
    %v4655 = vld [vmem:[%s4646 + $0x40] sm:$0xff]
    %v4656 = vld [vmem:[%s4646 + $0x48] sm:$0xff]
    %v4657 = vld [vmem:[%s4646 + $0x50] sm:$0xff]
    %v4658 = vld [vmem:[%s4646 + $0x58] sm:$0xff]
    %v4659 = vld [vmem:[%s4646 + $0x60] sm:$0xff]
    %v4660 = vld [vmem:[%s4646 + $0x68] sm:$0xff]
    %v4661 = vld [vmem:[%s4646 + $0x70] sm:$0xff]
    %v4662 = vld [vmem:[%s4646 + $0x78] sm:$0xff]
    %4663 = vmatprep.subr.mxu0 0.0
    %4664 = vmatpush1.msra.mxu0 %v4647
    %4665 = vmatprep.subr.mxu0 0.0
    %4666 = vmatpush1.msra.mxu0 %v4648
    %4667 = vmatprep.subr.mxu0 0.0
    %4668 = vmatpush1.msra.mxu0 %v4649
    %4669 = vmatprep.subr.mxu0 0.0
    %4670 = vmatpush1.msra.mxu0 %v4650
    %4671 = vmatprep.subr.mxu0 0.0
    %4672 = vmatpush1.msra.mxu0 %v4651
    %4673 = vmatprep.subr.mxu0 0.0
    %4674 = vmatpush1.msra.mxu0 %v4652
    %4675 = vmatprep.subr.mxu0 0.0
    %4676 = vmatpush1.msra.mxu0 %v4653
    %4677 = vmatprep.subr.mxu0 0.0
    %4678 = vmatpush1.msra.mxu0 %v4654
    %4679 = vmatprep.subr.mxu0 0.0
    %4680 = vmatpush1.msra.mxu0 %v4655
    %4681 = vmatprep.subr.mxu0 0.0
    %4682 = vmatpush1.msra.mxu0 %v4656
    %4683 = vmatprep.subr.mxu0 0.0
    %4684 = vmatpush1.msra.mxu0 %v4657
    %4685 = vmatprep.subr.mxu0 0.0
    %4686 = vmatpush1.msra.mxu0 %v4658
    %4687 = vmatprep.subr.mxu0 0.0
    %4688 = vmatpush1.msra.mxu0 %v4659
    %4689 = vmatprep.subr.mxu0 0.0
    %4690 = vmatpush1.msra.mxu0 %v4660
    %4691 = vmatprep.subr.mxu0 0.0
    %4692 = vmatpush1.msra.mxu0 %v4661
    %4693 = vmatprep.subr.mxu0 0.0
    %4694 = vmatpush1.msra.mxu0 %v4662
    %4695 = vmatprep.subr.mxu0 0.0
    %4696 = vmatpush1.msra.mxu0 0.0
    %4697 = vmatprep.subr.mxu0 0.0
    %4698 = vmatpush1.msra.mxu0 0.0
    %4699 = vmatprep.subr.mxu0 0.0
    %4700 = vmatpush1.msra.mxu0 0.0
    %4701 = vmatprep.subr.mxu0 0.0
    %4702 = vmatpush1.msra.mxu0 0.0
    %4703 = vmatprep.subr.mxu0 0.0
    %4704 = vmatpush1.msra.mxu0 0.0
    %4705 = vmatprep.subr.mxu0 0.0
    %4706 = vmatpush1.msra.mxu0 0.0
    %4707 = vmatprep.subr.mxu0 0.0
    %4708 = vmatpush1.msra.mxu0 0.0
    %4709 = vmatprep.subr.mxu0 0.0
    %4710 = vmatpush1.msra.mxu0 0.0
    %4711 = vmatprep.subr.mxu0 0.0
    %4712 = vmatpush1.msra.mxu0 0.0
    %4713 = vmatprep.subr.mxu0 0.0
    %4714 = vmatpush1.msra.mxu0 0.0
    %4715 = vmatprep.subr.mxu0 0.0
    %4716 = vmatpush1.msra.mxu0 0.0
    %4717 = vmatprep.subr.mxu0 0.0
    %4718 = vmatpush1.msra.mxu0 0.0
    %4719 = vmatprep.subr.mxu0 0.0
    %4720 = vmatpush1.msra.mxu0 0.0
    %4721 = vmatprep.subr.mxu0 0.0
    %4722 = vmatpush1.msra.mxu0 0.0
    %4723 = vmatprep.subr.mxu0 0.0
    %4724 = vmatpush1.msra.mxu0 0.0
    %4725 = vmatprep.subr.mxu0 0.0
    %4726 = vmatpush1.msra.mxu0 0.0
    %4727 = vmatprep.mubr.f32.mxu0 0.0
    %4728 = vmatmul.mubr.f32.gmra.mrb[0].mxu0 %v4622
    %v4729 = vpop.f32.mrb[0].mxu0
    %v4730 = vadd.f32 0.0, %v4729
    %v4731 = vpop.f32.mrb[0].mxu0
    %4732 = vmatprep.mubr.f32.mxu0 0.0
    %4733 = vmatmul.mubr.f32.gmra.mrb[0].mxu0 %v4623
    %v4734 = vpop.f32.mrb[0].mxu0
    %v4735 = vadd.f32 0.0, %v4734
    %v4736 = vpop.f32.mrb[0].mxu0
    %4737 = vmatprep.mubr.f32.mxu0 0.0
    %4738 = vmatmul.mubr.f32.gmra.mrb[0].mxu0 %v4624
    %v4739 = vpop.f32.mrb[0].mxu0
    %v4740 = vadd.f32 0.0, %v4739
    %v4741 = vpop.f32.mrb[0].mxu0
    %4742 = vmatprep.mubr.f32.mxu0 0.0
    %4743 = vmatmul.mubr.f32.gmra.mrb[0].mxu0 %v4625
    %v4744 = vpop.f32.mrb[0].mxu0
    %v4745 = vadd.f32 0.0, %v4744
    %v4746 = vpop.f32.mrb[0].mxu0
    %4747 = vmatprep.mubr.f32.mxu0 0.0
    %4748 = vmatmul.mubr.f32.gmra.mrb[0].mxu0 %v4626
    %v4749 = vpop.f32.mrb[0].mxu0
    %v4750 = vadd.f32 0.0, %v4749
    %v4751 = vpop.f32.mrb[0].mxu0
    %4752 = vmatprep.mubr.f32.mxu0 0.0
    %4753 = vmatmul.mubr.f32.gmra.mrb[0].mxu0 %v4627
    %v4754 = vpop.f32.mrb[0].mxu0
    %v4755 = vadd.f32 0.0, %v4754
    %v4756 = vpop.f32.mrb[0].mxu0
    %4757 = vmatprep.mubr.f32.mxu0 0.0
    %4758 = vmatmul.mubr.f32.gmra.mrb[0].mxu0 %v4628
    %v4759 = vpop.f32.mrb[0].mxu0
    %v4760 = vadd.f32 0.0, %v4759
    %v4761 = vpop.f32.mrb[0].mxu0
    %4762 = vmatprep.mubr.f32.mxu0 0.0
    %4763 = vmatmul.mubr.f32.gmra.mrb[0].mxu0 %v4629
    %v4764 = vpop.f32.mrb[0].mxu0
    %v4765 = vadd.f32 0.0, %v4764
    %v4766 = vpop.f32.mrb[0].mxu0
    %4767 = vdwg.mxu0
    %4768 = vmatprep.subr.mxu0 0.0
    %4769 = vmatpush1.msra.mxu0 %v4630
    %4770 = vmatprep.subr.mxu0 0.0
    %4771 = vmatpush1.msra.mxu0 %v4631
    %4772 = vmatprep.subr.mxu0 0.0
    %4773 = vmatpush1.msra.mxu0 %v4632
    %4774 = vmatprep.subr.mxu0 0.0
    %4775 = vmatpush1.msra.mxu0 %v4633
    %4776 = vmatprep.subr.mxu0 0.0
    %4777 = vmatpush1.msra.mxu0 %v4634
    %4778 = vmatprep.subr.mxu0 0.0
    %4779 = vmatpush1.msra.mxu0 %v4635
    %4780 = vmatprep.subr.mxu0 0.0
    %4781 = vmatpush1.msra.mxu0 %v4636
    %4782 = vmatprep.subr.mxu0 0.0
    %4783 = vmatpush1.msra.mxu0 %v4637
    %4784 = vmatprep.subr.mxu0 0.0
    %4785 = vmatpush1.msra.mxu0 %v4638
    %4786 = vmatprep.subr.mxu0 0.0
    %4787 = vmatpush1.msra.mxu0 %v4639
    %4788 = vmatprep.subr.mxu0 0.0
    %4789 = vmatpush1.msra.mxu0 %v4640
    %4790 = vmatprep.subr.mxu0 0.0
    %4791 = vmatpush1.msra.mxu0 %v4641
    %4792 = vmatprep.subr.mxu0 0.0
    %4793 = vmatpush1.msra.mxu0 %v4642
    %4794 = vmatprep.subr.mxu0 0.0
    %4795 = vmatpush1.msra.mxu0 %v4643
    %4796 = vmatprep.subr.mxu0 0.0
    %4797 = vmatpush1.msra.mxu0 %v4644
    %4798 = vmatprep.subr.mxu0 0.0
    %4799 = vmatpush1.msra.mxu0 %v4645
    %4800 = vmatprep.subr.mxu0 0.0
    %4801 = vmatpush1.msra.mxu0 0.0
    %4802 = vmatprep.subr.mxu0 0.0
    %4803 = vmatpush1.msra.mxu0 0.0
    %4804 = vmatprep.subr.mxu0 0.0
    %4805 = vmatpush1.msra.mxu0 0.0
    %4806 = vmatprep.subr.mxu0 0.0
    %4807 = vmatpush1.msra.mxu0 0.0
    %4808 = vmatprep.subr.mxu0 0.0
    %4809 = vmatpush1.msra.mxu0 0.0
    %4810 = vmatprep.subr.mxu0 0.0
    %4811 = vmatpush1.msra.mxu0 0.0
    %4812 = vmatprep.subr.mxu0 0.0
    %4813 = vmatpush1.msra.mxu0 0.0
    %4814 = vmatprep.subr.mxu0 0.0
    %4815 = vmatpush1.msra.mxu0 0.0
    %4816 = vmatprep.subr.mxu0 0.0
    %4817 = vmatpush1.msra.mxu0 0.0
    %4818 = vmatprep.subr.mxu0 0.0
    %4819 = vmatpush1.msra.mxu0 0.0
    %4820 = vmatprep.subr.mxu0 0.0
    %4821 = vmatpush1.msra.mxu0 0.0
    %4822 = vmatprep.subr.mxu0 0.0
    %4823 = vmatpush1.msra.mxu0 0.0
    %4824 = vmatprep.subr.mxu0 0.0
    %4825 = vmatpush1.msra.mxu0 0.0
    %4826 = vmatprep.subr.mxu0 0.0
    %4827 = vmatpush1.msra.mxu0 0.0
    %4828 = vmatprep.subr.mxu0 0.0
    %4829 = vmatpush1.msra.mxu0 0.0
    %4830 = vmatprep.subr.mxu0 0.0
    %4831 = vmatpush1.msra.mxu0 0.0
    %4832 = vmatprep.mubr.f32.mxu0 0.0
    %4833 = vmatmul.mubr.f32.gmra.mrb[0].mxu0 %v4614
    %v4834 = vpop.f32.mrb[0].mxu0
    %v4835 = vadd.f32 %v4730, %v4834
    %v4836 = vpop.f32.mrb[0].mxu0
    %4837 = vmatprep.mubr.f32.mxu0 0.0
    %4838 = vmatmul.mubr.f32.gmra.mrb[0].mxu0 %v4615
    %v4839 = vpop.f32.mrb[0].mxu0
    %v4840 = vadd.f32 %v4735, %v4839
    %v4841 = vpop.f32.mrb[0].mxu0
    %4842 = vmatprep.mubr.f32.mxu0 0.0
    %4843 = vmatmul.mubr.f32.gmra.mrb[0].mxu0 %v4616
    %v4844 = vpop.f32.mrb[0].mxu0
    %v4845 = vadd.f32 %v4740, %v4844
    %v4846 = vpop.f32.mrb[0].mxu0
    %4847 = vmatprep.mubr.f32.mxu0 0.0
    %4848 = vmatmul.mubr.f32.gmra.mrb[0].mxu0 %v4617
    %v4849 = vpop.f32.mrb[0].mxu0
    %v4850 = vadd.f32 %v4745, %v4849
    %v4851 = vpop.f32.mrb[0].mxu0
    %4852 = vmatprep.mubr.f32.mxu0 0.0
    %4853 = vmatmul.mubr.f32.gmra.mrb[0].mxu0 %v4618
    %v4854 = vpop.f32.mrb[0].mxu0
    %v4855 = vadd.f32 %v4750, %v4854
    %v4856 = vpop.f32.mrb[0].mxu0
    %4857 = vmatprep.mubr.f32.mxu0 0.0
    %4858 = vmatmul.mubr.f32.gmra.mrb[0].mxu0 %v4619
    %v4859 = vpop.f32.mrb[0].mxu0
    %v4860 = vadd.f32 %v4755, %v4859
    %v4861 = vpop.f32.mrb[0].mxu0
    %4862 = vmatprep.mubr.f32.mxu0 0.0
    %4863 = vmatmul.mubr.f32.gmra.mrb[0].mxu0 %v4620
    %v4864 = vpop.f32.mrb[0].mxu0
    %v4865 = vadd.f32 %v4760, %v4864
    %v4866 = vpop.f32.mrb[0].mxu0
    %4867 = vmatprep.mubr.f32.mxu0 0.0
    %4868 = vmatmul.mubr.f32.gmra.mrb[0].mxu0 %v4621
    %v4869 = vpop.f32.mrb[0].mxu0
    %v4870 = vadd.f32 %v4765, %v4869
    %v4871 = vpop.f32.mrb[0].mxu0
    %4872 = vdwg.mxu0
    %v4873 = vld [vmem:[%s5] sm:$0x1]
    %v4875 = vlaneseq
    %v4876 = vshrl.u32 %v4875, 7
    %v4877 = vsub.s32 0, %v4876
    %v4878 = vrot.slane %v4873, %v4877
    %v4880 = vadd.f32 %v4835, %v4878
    %v4881 = vadd.f32 %v4840, %v4878
    %v4882 = vadd.f32 %v4845, %v4878
    %v4883 = vadd.f32 %v4850, %v4878
    %v4884 = vadd.f32 %v4855, %v4878
    %v4885 = vadd.f32 %v4860, %v4878
    %v4886 = vadd.f32 %v4865, %v4878
    %v4887 = vadd.f32 %v4870, %v4878
    %v4888 = vtanh.pop %v4880
    %v4889 = vtanh.pop %v4881
    %v4890 = vtanh.pop %v4882
    %v4891 = vtanh.pop %v4883
    %v4892 = vtanh.pop %v4884
    %v4893 = vtanh.pop %v4885
    %v4894 = vtanh.pop %v4886
    %v4895 = vtanh.pop %v4887
    %v4896 = vld [vmem:[%s6] sm:$0x1]
    %v4898 = vlaneseq
    %v4899 = vshrl.u32 %v4898, 7
    %v4900 = vsub.s32 0, %v4899
    %v4901 = vrot.slane %v4896, %v4900
    %v4903 = vmul.f32 %v4888, %v4901
    %v4904 = vmul.f32 %v4889, %v4901
    %v4905 = vmul.f32 %v4890, %v4901
    %v4906 = vmul.f32 %v4891, %v4901
    %v4907 = vmul.f32 %v4892, %v4901
    %v4908 = vmul.f32 %v4893, %v4901
    %v4909 = vmul.f32 %v4894, %v4901
    %v4910 = vmul.f32 %v4895, %v4901
    %4911 = vadd.xlane.f32.xlu0 %v4903
    %v4912 = vpop.xlane.xlu0 %4911
    %4913 = vadd.xlane.f32.xlu0 %v4904
    %v4914 = vpop.xlane.xlu0 %4913
    %4915 = vadd.xlane.f32.xlu0 %v4905
    %v4916 = vpop.xlane.xlu0 %4915
    %4917 = vadd.xlane.f32.xlu0 %v4906
    %v4918 = vpop.xlane.xlu0 %4917
    %4919 = vadd.xlane.f32.xlu0 %v4907
    %v4920 = vpop.xlane.xlu0 %4919
    %4921 = vadd.xlane.f32.xlu0 %v4908
    %v4922 = vpop.xlane.xlu0 %4921
    %4923 = vadd.xlane.f32.xlu0 %v4909
    %v4924 = vpop.xlane.xlu0 %4923
    %4925 = vadd.xlane.f32.xlu0 %v4910
    %v4926 = vpop.xlane.xlu0 %4925
    %s4927 = sld [smem:[#allocation6]]
    %v4928 = vstv %s4927
    %v4929 = vadd.f32 %v4912, %v4928
    %v4930 = vadd.f32 %v4914, %v4928
    %v4931 = vadd.f32 %v4916, %v4928
    %v4932 = vadd.f32 %v4918, %v4928
    %v4933 = vadd.f32 %v4920, %v4928
    %v4934 = vadd.f32 %v4922, %v4928
    %v4935 = vadd.f32 %v4924, %v4928
    %v4936 = vadd.f32 %v4926, %v4928
    %v4945 = vlaneseq
    %v4946 = vand.u32 %v4945, 127
    %v4947 = vlaneseq
    %v4948 = vshrl.u32 %v4947, 7
    %v4949 = vsub.s32 %v4946, %v4948
    %v4950 = vrot.slane %v4929, %v4949
    %v4951 = vlaneseq
    %v4952 = vshrl.u32 %v4951, 7
    %v4953 = vsub.s32 %v4946, %v4952
    %v4954 = vrot.slane %v4930, %v4953
    %v4955 = vlaneseq
    %v4956 = vshrl.u32 %v4955, 7
    %v4957 = vsub.s32 %v4946, %v4956
    %v4958 = vrot.slane %v4931, %v4957
    %v4959 = vlaneseq
    %v4960 = vshrl.u32 %v4959, 7
    %v4961 = vsub.s32 %v4946, %v4960
    %v4962 = vrot.slane %v4932, %v4961
    %v4963 = vlaneseq
    %v4964 = vshrl.u32 %v4963, 7
    %v4965 = vsub.s32 %v4946, %v4964
    %v4966 = vrot.slane %v4933, %v4965
    %v4967 = vlaneseq
    %v4968 = vshrl.u32 %v4967, 7
    %v4969 = vsub.s32 %v4946, %v4968
    %v4970 = vrot.slane %v4934, %v4969
    %v4971 = vlaneseq
    %v4972 = vshrl.u32 %v4971, 7
    %v4973 = vsub.s32 %v4946, %v4972
    %v4974 = vrot.slane %v4935, %v4973
    %v4975 = vlaneseq
    %v4976 = vshrl.u32 %v4975, 7
    %v4977 = vsub.s32 %v4946, %v4976
    %v4978 = vrot.slane %v4936, %v4977
    %vm4979 = vcmask 1041409
    %v4980 = vsel %vm4979, %v4954, %v4950
    %vm4981 = vcmask 1042434
    %v4982 = vsel %vm4981, %v4958, %v4980
    %vm4983 = vcmask 1043459
    %v4984 = vsel %vm4983, %v4962, %v4982
    %vm4985 = vcmask 1044484
    %v4986 = vsel %vm4985, %v4966, %v4984
    %vm4987 = vcmask 1045509
    %v4988 = vsel %vm4987, %v4970, %v4986
    %vm4989 = vcmask 1046534
    %v4990 = vsel %vm4989, %v4974, %v4988
    %vm4991 = vcmask 1047559
    %v4992 = vsel %vm4991, %v4978, %v4990
    %vm4994 = vcmask 64512
    %4995 = vst.msk [vmem:[%s8] sm:$0xff] %vm4994, %v4992
    // Predicated region
    $region42: #{simple_lstm_forward.1} parent=1 // pred_check
      _
    $region43: #{simple_lstm_forward.1} parent=1 // pred_check_branch
      %4997 = sbr.rel (0) target = $region45
    $region44: #{simple_lstm_forward.1} parent=1 // pred_region
      _
    $region45: #{simple_lstm_forward.1} parent=1 // pred_fallthru
      _
    // Predicated region
    $region46: #{simple_lstm_forward.1} parent=1 // pred_check
      _
    $region47: #{simple_lstm_forward.1} parent=1 // pred_check_branch
      %4999 = sbr.rel (0) target = $region49
    $region48: #{simple_lstm_forward.1} parent=1 // pred_region
      _
    $region49: #{simple_lstm_forward.1} parent=1 // pred_fallthru
      _
    // Predicated region
    $region50: #{simple_lstm_forward.1} parent=1 // pred_check
      _
    $region51: #{simple_lstm_forward.1} parent=1 // pred_check_branch
      %5001 = sbr.rel (0) target = $region53
    $region52: #{simple_lstm_forward.1} parent=1 // pred_region
      _
    $region53: #{simple_lstm_forward.1} parent=1 // pred_fallthru
      _
    // Predicated region
    $region54: #{simple_lstm_forward.1} parent=1 // pred_check
      _
    $region55: #{simple_lstm_forward.1} parent=1 // pred_check_branch
      %5003 = sbr.rel (0) target = $region57
    $region56: #{simple_lstm_forward.1} parent=1 // pred_region
      _
    $region57: #{simple_lstm_forward.1} parent=1 // pred_fallthru
      _
    // Predicated region
    $region58: #{simple_lstm_forward.1} parent=1 // pred_check
      _
    $region59: #{simple_lstm_forward.1} parent=1 // pred_check_branch
      %5005 = sbr.rel (0) target = $region61
    $region60: #{simple_lstm_forward.1} parent=1 // pred_region
      _
    $region61: #{simple_lstm_forward.1} parent=1 // pred_fallthru
      _
    // Predicated region
    $region62: #{simple_lstm_forward.1} parent=1 // pred_check
      _
    $region63: #{simple_lstm_forward.1} parent=1 // pred_check_branch
      %5007 = sbr.rel (0) target = $region65
    $region64: #{simple_lstm_forward.1} parent=1 // pred_region
      _
    $region65: #{simple_lstm_forward.1} parent=1 // pred_fallthru
      _
    %5008 = vsyncpa [#allocation8], 1
    %5009 = vsyncpa [#allocation10], 1

</llo_original>
